<compile_context>
chip_gen: v7x
topology: tpu7x:2x2x1
jax: 0.10.0
libtpu: 0.0.40
codegen_flags: <defaults>
</compile_context>

<pallas_src>
import functools

import jax
import jax.numpy as jnp
from jax.experimental import pallas as pl
from jax.experimental.pallas import tpu as pltpu

# Logical sizes (from the PyTorch module).
FEATURE = 784
HIDDEN = 400
LATENT = 20
CLASSES = 10

# Lane-friendly padded sizes.
FEATURE_PAD = 896                 # 784 -> 896  (7 * 128)
HIDDEN_PAD = 512                  # 400 -> 512
LATENT_PAD = 128                  # 20  -> 128  (mu and logvar each get a full lane tile)
CLASSES_PAD = 128                 # 10  -> 128
XC_PAD = FEATURE_PAD + CLASSES_PAD  # fused encoder input width: 1024


def _cvae_kernel(xc_ref, c_ref, eps_ref,
                 w1_ref, b1_ref,
                 wh_ref, bh_ref,
                 w3z_ref, w3c_ref, b3_ref,
                 w4_ref, b4_ref,
                 recon_ref, mulv_ref):
    """One batch tile: encode -> reparameterize -> decode."""
    xc = xc_ref[...]        # (TB, 1024) bf16 : pre-packed [x | 0 | c | 0]
    c = c_ref[...]          # (TB, 128)  bf16 : padded one-hot labels
    eps = eps_ref[...]      # (TB, 128)  f32  : zero-padded N(0,1) noise

    # ---- encode: h1 = relu(cat(x, c) @ W1 + b1)  (single fused K=1024 matmul) ----
    h1 = jnp.dot(xc, w1_ref[...], preferred_element_type=jnp.float32) + b1_ref[...]
    h1 = jnp.maximum(h1, 0.0)

    # ---- fused latent heads: one (512, 256) matmul -> [mu | logvar] ----
    mulv = jnp.dot(h1.astype(jnp.bfloat16), wh_ref[...],
                   preferred_element_type=jnp.float32) + bh_ref[...]
    mu = mulv[:, :LATENT_PAD]          # lane-tile aligned slices (free)
    logvar = mulv[:, LATENT_PAD:]

    # ---- reparameterize (training mode): z = mu + eps * exp(0.5 * logvar) ----
    # Padded lanes: logvar==0 -> std==1, eps==0 -> z==0, so padding stays inert.
    z = mu + eps * jnp.exp(0.5 * logvar)

    # ---- decode: sigmoid(relu(z @ W3z + c @ W3c + b3) @ W4 + b4) ----
    h3 = (jnp.dot(z.astype(jnp.bfloat16), w3z_ref[...],
                  preferred_element_type=jnp.float32)
          + jnp.dot(c, w3c_ref[...], preferred_element_type=jnp.float32)
          + b3_ref[...])
    h3 = jnp.maximum(h3, 0.0)

    logits = jnp.dot(h3.astype(jnp.bfloat16), w4_ref[...],
                     preferred_element_type=jnp.float32) + b4_ref[...]

    recon_ref[...] = jax.nn.sigmoid(logits)   # (TB, 896) f32, lane-dense store
    mulv_ref[...] = mulv                      # (TB, 256) f32, lane-dense store


@functools.partial(jax.jit, static_argnames=("tb",))
def cvae_forward(x, c, eps, packed, tb=128):
    """x: (B,784) f32, c: (B,10) one-hot f32, eps: (B,20) f32, packed: packed params."""
    B = x.shape[0]
    nb = pl.cdiv(B, tb)
    b_pad = nb * tb

    (w1, b1, wh, bh, w3z, w3c, b3, w4, b4) = packed

    # Pad batch + lanes; pre-pack the encoder input cat(x, c) as one bf16 slab.
    x_p = jnp.pad(x, ((0, b_pad - B), (0, FEATURE_PAD - FEATURE)))
    c_p = jnp.pad(c, ((0, b_pad - B), (0, CLASSES_PAD - CLASSES)))
    eps_p = jnp.pad(eps, ((0, b_pad - B), (0, LATENT_PAD - LATENT)))
    xc = jnp.concatenate([x_p, c_p], axis=1).astype(jnp.bfloat16)   # (b_pad, 1024)
    c_b = c_p.astype(jnp.bfloat16)                                   # (b_pad, 128)

    def batch_spec(width):
        return pl.BlockSpec((tb, width), lambda i: (i, 0))

    def const_spec(a):
        return pl.BlockSpec(a.shape, lambda i: (0,) * a.ndim)

    weights = (w1, b1, wh, bh, w3z, w3c, b3, w4, b4)
    in_arrays = (xc, c_b, eps_p) + weights
    in_specs = ([batch_spec(XC_PAD), batch_spec(CLASSES_PAD), batch_spec(LATENT_PAD)]
                + [const_spec(a) for a in weights])

    out_shapes = (
        jax.ShapeDtypeStruct((b_pad, FEATURE_PAD), jnp.float32),      # recon (padded)
        jax.ShapeDtypeStruct((b_pad, 2 * LATENT_PAD), jnp.float32),   # [mu | logvar]
    )
    out_specs = (batch_spec(FEATURE_PAD), batch_spec(2 * LATENT_PAD))

    # Advisory cost estimate for the XLA scheduler.
    flops = 2 * b_pad * (
        XC_PAD * HIDDEN_PAD            # fc1 (fused x|c)
        + HIDDEN_PAD * 2 * LATENT_PAD  # fused fc21/fc22
        + LATENT_PAD * HIDDEN_PAD      # fc3 (z part)
        + CLASSES_PAD * HIDDEN_PAD     # fc3 (c part)
        + HIDDEN_PAD * FEATURE_PAD     # fc4
    )
    weight_bytes = sum(int(a.size) * a.dtype.itemsize for a in weights)
    act_bytes = b_pad * (XC_PAD * 2 + CLASSES_PAD * 2 + LATENT_PAD * 4
                         + FEATURE_PAD * 4 + 2 * LATENT_PAD * 4)
    cost = pl.CostEstimate(flops=flops,
                           transcendentals=b_pad * (LATENT_PAD + FEATURE_PAD),
                           bytes_accessed=weight_bytes + act_bytes)

    recon_p, mulv_p = pl.pallas_call(
        _cvae_kernel,
        out_shape=out_shapes,
        grid=(nb,),
        in_specs=in_specs,
        out_specs=out_specs,
        compiler_params=pltpu.CompilerParams(
            dimension_semantics=("parallel",),   # v7x: shard batch tiles over both TCs
            vmem_limit_bytes=32 << 20,
        ),
        cost_estimate=cost,
    )(*in_arrays)

    recon = recon_p[:B, :FEATURE]
    mu = mulv_p[:B, :LATENT]
    logvar = mulv_p[:B, LATENT_PAD:LATENT_PAD + LATENT]
    return recon, mu, logvar


def init_params(key):
    """f32 params mimicking nn.Linear init, stored as (in_features, out_features)."""
    def linear(key, fan_in, fan_out):
        kw, kb = jax.random.split(key)
        bound = 1.0 / jnp.sqrt(jnp.float32(fan_in))
        w = jax.random.uniform(kw, (fan_in, fan_out), jnp.float32, -bound, bound)
        b = jax.random.uniform(kb, (1, fan_out), jnp.float32, -bound, bound)
        return w, b

    k1, k2, k3, k4, k5 = jax.random.split(key, 5)
    w1, b1 = linear(k1, FEATURE + CLASSES, HIDDEN)      # fc1: 794 -> 400
    w21, b21 = linear(k2, HIDDEN, LATENT)               # fc21: 400 -> 20
    w22, b22 = linear(k3, HIDDEN, LATENT)               # fc22: 400 -> 20
    w3, b3 = linear(k4, LATENT + CLASSES, HIDDEN)       # fc3: 30 -> 400
    w4, b4 = linear(k5, HIDDEN, FEATURE)                # fc4: 400 -> 784
    return dict(w1=w1, b1=b1, w21=w21, b21=b21, w22=w22, b22=b22,
                w3=w3, b3=b3, w4=w4, b4=b4)


def pack_params(p):
    """Zero-pad to lane-dense shapes, fuse fc21/fc22, and cast weights to bf16."""
    w1 = jnp.zeros((XC_PAD, HIDDEN_PAD), jnp.float32)
    w1 = w1.at[:FEATURE, :HIDDEN].set(p["w1"][:FEATURE])                       # x rows
    w1 = w1.at[FEATURE_PAD:FEATURE_PAD + CLASSES, :HIDDEN].set(p["w1"][FEATURE:])  # c rows
    b1 = jnp.zeros((1, HIDDEN_PAD), jnp.float32).at[:, :HIDDEN].set(p["b1"])

    wh = jnp.zeros((HIDDEN_PAD, 2 * LATENT_PAD), jnp.float32)
    wh = wh.at[:HIDDEN, :LATENT].set(p["w21"])                                  # mu head
    wh = wh.at[:HIDDEN, LATENT_PAD:LATENT_PAD + LATENT].set(p["w22"])           # logvar head
    bh = jnp.zeros((1, 2 * LATENT_PAD), jnp.float32)
    bh = bh.at[:, :LATENT].set(p["b21"])
    bh = bh.at[:, LATENT_PAD:LATENT_PAD + LATENT].set(p["b22"])

    w3z = jnp.zeros((LATENT_PAD, HIDDEN_PAD), jnp.float32)
    w3z = w3z.at[:LATENT, :HIDDEN].set(p["w3"][:LATENT])
    w3c = jnp.zeros((CLASSES_PAD, HIDDEN_PAD), jnp.float32)
    w3c = w3c.at[:CLASSES, :HIDDEN].set(p["w3"][LATENT:])
    b3 = jnp.zeros((1, HIDDEN_PAD), jnp.float32).at[:, :HIDDEN].set(p["b3"])

    w4 = jnp.zeros((HIDDEN_PAD, FEATURE_PAD), jnp.float32)
    w4 = w4.at[:HIDDEN, :FEATURE].set(p["w4"])
    b4 = jnp.zeros((1, FEATURE_PAD), jnp.float32).at[:, :FEATURE].set(p["b4"])

    bf = lambda a: a.astype(jnp.bfloat16)
    # Weights in bf16 (MXU rate / half bandwidth), biases stay f32.
    return (bf(w1), b1, bf(wh), bh, bf(w3z), bf(w3c), b3, bf(w4), b4)


def reference_forward(x, c, eps, p):
    """Pure-JAX f32 reference matching the PyTorch forward (training mode)."""
    w1x, w1c = p["w1"][:FEATURE], p["w1"][FEATURE:]
    h1 = jax.nn.relu(x @ w1x + c @ w1c + p["b1"])
    mu = h1 @ p["w21"] + p["b21"]
    logvar = h1 @ p["w22"] + p["b22"]
    z = mu + eps * jnp.exp(0.5 * logvar)
    w3z, w3c = p["w3"][:LATENT], p["w3"][LATENT:]
    h3 = jax.nn.relu(z @ w3z + c @ w3c + p["b3"])
    recon = jax.nn.sigmoid(h3 @ p["w4"] + p["b4"])
    return recon, mu, logvar


if __name__ == "__main__":
    key = jax.random.PRNGKey(0)
    kx, kc, keps, kparams = jax.random.split(key, 4)

    B = 256  # two TB=128 batch tiles -> exercises the grid; still a small demo size
    x = jax.random.uniform(kx, (B, FEATURE), jnp.float32)              # flattened images
    labels = jax.random.randint(kc, (B,), 0, CLASSES)
    c = jax.nn.one_hot(labels, CLASSES, dtype=jnp.float32)             # one-hot labels
    eps = jax.random.normal(keps, (B, LATENT), jnp.float32)            # randn_like noise

    params = init_params(kparams)
    packed = pack_params(params)

    recon, mu, logvar = cvae_forward(x, c, eps, packed, tb=128)
    jax.block_until_ready((recon, mu, logvar))

    # Correctness vs. f32 reference (bf16 MXU operands -> loose-ish tolerance).
    r_recon, r_mu, r_logvar = reference_forward(x, c, eps, params)
    assert recon.shape == (B, FEATURE) and mu.shape == (B, LATENT) and logvar.shape == (B, LATENT)
    assert jnp.allclose(recon, r_recon, atol=3e-2, rtol=3e-2)
    assert jnp.allclose(mu, r_mu, atol=3e-2, rtol=3e-2)
    assert jnp.allclose(logvar, r_logvar, atol=3e-2, rtol=3e-2)

    print("KERNEL_OK")
</pallas_src>

<mosaic_0001>
module attributes {stable_mosaic.version = 11 : i64} {
  func.func @_cvae_kernel(%arg0: i32, %arg1: memref<128x1024xbf16, #tpu.memory_space<vmem>>, %arg2: memref<128x128xbf16, #tpu.memory_space<vmem>>, %arg3: memref<128x128xf32, #tpu.memory_space<vmem>>, %arg4: memref<1024x512xbf16, #tpu.memory_space<vmem>>, %arg5: memref<1x512xf32, #tpu.memory_space<vmem>>, %arg6: memref<512x256xbf16, #tpu.memory_space<vmem>>, %arg7: memref<1x256xf32, #tpu.memory_space<vmem>>, %arg8: memref<128x512xbf16, #tpu.memory_space<vmem>>, %arg9: memref<128x512xbf16, #tpu.memory_space<vmem>>, %arg10: memref<1x512xf32, #tpu.memory_space<vmem>>, %arg11: memref<512x896xbf16, #tpu.memory_space<vmem>>, %arg12: memref<1x896xf32, #tpu.memory_space<vmem>>, %arg13: memref<128x896xf32, #tpu.memory_space<vmem>>, %arg14: memref<128x256xf32, #tpu.memory_space<vmem>>) attributes {dimension_semantics = [#tpu.dimension_semantics<parallel>], iteration_bounds = array<i64: 2>, scalar_prefetch = 0 : i64, scratch_operands = 0 : i64, tpu.core_type = #tpu.core_type<tc>, window_params = [{transform_indices = @transform_0, window_bounds = array<i64: 128, 1024>}, {transform_indices = @transform_1, window_bounds = array<i64: 128, 128>}, {transform_indices = @transform_2, window_bounds = array<i64: 128, 128>}, {pipeline_mode = #tpu.pipeline_mode<synchronous>, transform_indices = @transform_3, window_bounds = array<i64: 1024, 512>}, {pipeline_mode = #tpu.pipeline_mode<synchronous>, transform_indices = @transform_4, window_bounds = array<i64: 1, 512>}, {pipeline_mode = #tpu.pipeline_mode<synchronous>, transform_indices = @transform_5, window_bounds = array<i64: 512, 256>}, {pipeline_mode = #tpu.pipeline_mode<synchronous>, transform_indices = @transform_6, window_bounds = array<i64: 1, 256>}, {pipeline_mode = #tpu.pipeline_mode<synchronous>, transform_indices = @transform_7, window_bounds = array<i64: 128, 512>}, {pipeline_mode = #tpu.pipeline_mode<synchronous>, transform_indices = @transform_8, window_bounds = array<i64: 128, 512>}, {pipeline_mode = #tpu.pipeline_mode<synchronous>, transform_indices = @transform_9, window_bounds = array<i64: 1, 512>}, {pipeline_mode = #tpu.pipeline_mode<synchronous>, transform_indices = @transform_10, window_bounds = array<i64: 512, 896>}, {pipeline_mode = #tpu.pipeline_mode<synchronous>, transform_indices = @transform_11, window_bounds = array<i64: 1, 896>}, {transform_indices = @transform_12, window_bounds = array<i64: 128, 896>}, {transform_indices = @transform_13, window_bounds = array<i64: 128, 256>}]} {
    %c0 = arith.constant 0 : index
    %c0_0 = arith.constant 0 : index
    %0 = vector.load %arg1[%c0, %c0_0] : memref<128x1024xbf16, #tpu.memory_space<vmem>>, vector<128x1024xbf16>
    %c0_1 = arith.constant 0 : index
    %c0_2 = arith.constant 0 : index
    %1 = vector.load %arg2[%c0_1, %c0_2] : memref<128x128xbf16, #tpu.memory_space<vmem>>, vector<128x128xbf16>
    %c0_3 = arith.constant 0 : index
    %c0_4 = arith.constant 0 : index
    %2 = vector.load %arg3[%c0_3, %c0_4] : memref<128x128xf32, #tpu.memory_space<vmem>>, vector<128x128xf32>
    %c0_5 = arith.constant 0 : index
    %c0_6 = arith.constant 0 : index
    %3 = vector.load %arg4[%c0_5, %c0_6] : memref<1024x512xbf16, #tpu.memory_space<vmem>>, vector<1024x512xbf16>
    %cst = arith.constant dense<0.000000e+00> : vector<128x512xf32>
    %4 = tpu.matmul %0, %3, %cst {dimension_numbers = #tpu.dot_dimension_numbers<[1], [0], [0], [1], [0, 0, 1, 1], [], []>} : vector<128x1024xbf16>, vector<1024x512xbf16>, vector<128x512xf32> -> vector<128x512xf32>
    %c0_7 = arith.constant 0 : index
    %c0_8 = arith.constant 0 : index
    %5 = vector.load %arg5[%c0_7, %c0_8] : memref<1x512xf32, #tpu.memory_space<vmem>>, vector<1x512xf32>
    %6 = vector.broadcast %5 : vector<1x512xf32> to vector<128x512xf32>
    %7 = arith.addf %4, %6 : vector<128x512xf32>
    %cst_9 = arith.constant 0.000000e+00 : f32
    %8 = vector.broadcast %cst_9 : f32 to vector<128x512xf32>
    %9 = arith.maximumf %7, %8 : vector<128x512xf32>
    %10 = arith.truncf %9 : vector<128x512xf32> to vector<128x512xbf16>
    %c0_10 = arith.constant 0 : index
    %c0_11 = arith.constant 0 : index
    %11 = vector.load %arg6[%c0_10, %c0_11] : memref<512x256xbf16, #tpu.memory_space<vmem>>, vector<512x256xbf16>
    %cst_12 = arith.constant dense<0.000000e+00> : vector<128x256xf32>
    %12 = tpu.matmul %10, %11, %cst_12 {dimension_numbers = #tpu.dot_dimension_numbers<[1], [0], [0], [1], [0, 0, 1, 1], [], []>} : vector<128x512xbf16>, vector<512x256xbf16>, vector<128x256xf32> -> vector<128x256xf32>
    %c0_13 = arith.constant 0 : index
    %c0_14 = arith.constant 0 : index
    %13 = vector.load %arg7[%c0_13, %c0_14] : memref<1x256xf32, #tpu.memory_space<vmem>>, vector<1x256xf32>
    %14 = vector.broadcast %13 : vector<1x256xf32> to vector<128x256xf32>
    %15 = arith.addf %12, %14 : vector<128x256xf32>
    %16 = vector.extract_strided_slice %15 {offsets = [0, 0], sizes = [128, 128], strides = [1, 1]} : vector<128x256xf32> to vector<128x128xf32>
    %17 = vector.extract_strided_slice %15 {offsets = [0, 128], sizes = [128, 128], strides = [1, 1]} : vector<128x256xf32> to vector<128x128xf32>
    %cst_15 = arith.constant 5.000000e-01 : f32
    %18 = vector.broadcast %cst_15 : f32 to vector<128x128xf32>
    %19 = arith.mulf %18, %17 : vector<128x128xf32>
    %20 = math.exp %19 : vector<128x128xf32>
    %21 = arith.mulf %2, %20 : vector<128x128xf32>
    %22 = arith.addf %16, %21 : vector<128x128xf32>
    %23 = arith.truncf %22 : vector<128x128xf32> to vector<128x128xbf16>
    %c0_16 = arith.constant 0 : index
    %c0_17 = arith.constant 0 : index
    %24 = vector.load %arg8[%c0_16, %c0_17] : memref<128x512xbf16, #tpu.memory_space<vmem>>, vector<128x512xbf16>
    %cst_18 = arith.constant dense<0.000000e+00> : vector<128x512xf32>
    %25 = tpu.matmul %23, %24, %cst_18 {dimension_numbers = #tpu.dot_dimension_numbers<[1], [0], [0], [1], [0, 0, 1, 1], [], []>} : vector<128x128xbf16>, vector<128x512xbf16>, vector<128x512xf32> -> vector<128x512xf32>
    %c0_19 = arith.constant 0 : index
    %c0_20 = arith.constant 0 : index
    %26 = vector.load %arg9[%c0_19, %c0_20] : memref<128x512xbf16, #tpu.memory_space<vmem>>, vector<128x512xbf16>
    %cst_21 = arith.constant dense<0.000000e+00> : vector<128x512xf32>
    %27 = tpu.matmul %1, %26, %cst_21 {dimension_numbers = #tpu.dot_dimension_numbers<[1], [0], [0], [1], [0, 0, 1, 1], [], []>} : vector<128x128xbf16>, vector<128x512xbf16>, vector<128x512xf32> -> vector<128x512xf32>
    %28 = arith.addf %25, %27 : vector<128x512xf32>
    %c0_22 = arith.constant 0 : index
    %c0_23 = arith.constant 0 : index
    %29 = vector.load %arg10[%c0_22, %c0_23] : memref<1x512xf32, #tpu.memory_space<vmem>>, vector<1x512xf32>
    %30 = vector.broadcast %29 : vector<1x512xf32> to vector<128x512xf32>
    %31 = arith.addf %28, %30 : vector<128x512xf32>
    %cst_24 = arith.constant 0.000000e+00 : f32
    %32 = vector.broadcast %cst_24 : f32 to vector<128x512xf32>
    %33 = arith.maximumf %31, %32 : vector<128x512xf32>
    %34 = arith.truncf %33 : vector<128x512xf32> to vector<128x512xbf16>
    %c0_25 = arith.constant 0 : index
    %c0_26 = arith.constant 0 : index
    %35 = vector.load %arg11[%c0_25, %c0_26] : memref<512x896xbf16, #tpu.memory_space<vmem>>, vector<512x896xbf16>
    %cst_27 = arith.constant dense<0.000000e+00> : vector<128x896xf32>
    %36 = tpu.matmul %34, %35, %cst_27 {dimension_numbers = #tpu.dot_dimension_numbers<[1], [0], [0], [1], [0, 0, 1, 1], [], []>} : vector<128x512xbf16>, vector<512x896xbf16>, vector<128x896xf32> -> vector<128x896xf32>
    %c0_28 = arith.constant 0 : index
    %c0_29 = arith.constant 0 : index
    %37 = vector.load %arg12[%c0_28, %c0_29] : memref<1x896xf32, #tpu.memory_space<vmem>>, vector<1x896xf32>
    %38 = vector.broadcast %37 : vector<1x896xf32> to vector<128x896xf32>
    %39 = arith.addf %36, %38 : vector<128x896xf32>
    %40 = arith.negf %39 : vector<128x896xf32>
    %41 = math.exp %40 : vector<128x896xf32>
    %cst_30 = arith.constant 1.000000e+00 : f32
    %42 = vector.broadcast %cst_30 : f32 to vector<128x896xf32>
    %43 = arith.addf %42, %41 : vector<128x896xf32>
    %44 = arith.divf %42, %43 : vector<128x896xf32>
    %c0_31 = arith.constant 0 : index
    %c0_32 = arith.constant 0 : index
    %45 = vector.load %arg13[%c0_31, %c0_32] : memref<128x896xf32, #tpu.memory_space<vmem>>, vector<128x896xf32>
    tpu.vector_store %arg13[%c0_31, %c0_32], %44 {strides = array<i32>} : memref<128x896xf32, #tpu.memory_space<vmem>>, vector<128x896xf32>,
    %c0_33 = arith.constant 0 : index
    %c0_34 = arith.constant 0 : index
    %46 = vector.load %arg14[%c0_33, %c0_34] : memref<128x256xf32, #tpu.memory_space<vmem>>, vector<128x256xf32>
    tpu.vector_store %arg14[%c0_33, %c0_34], %15 {strides = array<i32>} : memref<128x256xf32, #tpu.memory_space<vmem>>, vector<128x256xf32>,
    return
  }
  func.func @transform_0(%arg0: i32) -> (i32, i32) {
    %c0_i32 = arith.constant 0 : i32
    %c0_i32_0 = arith.constant 0 : i32
    return %arg0, %c0_i32 : i32, i32
  }
  func.func @transform_1(%arg0: i32) -> (i32, i32) {
    %c0_i32 = arith.constant 0 : i32
    %c0_i32_0 = arith.constant 0 : i32
    return %arg0, %c0_i32 : i32, i32
  }
  func.func @transform_2(%arg0: i32) -> (i32, i32) {
    %c0_i32 = arith.constant 0 : i32
    %c0_i32_0 = arith.constant 0 : i32
    return %arg0, %c0_i32 : i32, i32
  }
  func.func @transform_3(%arg0: i32) -> (i32, i32) {
    %c0_i32 = arith.constant 0 : i32
    %c0_i32_0 = arith.constant 0 : i32
    %c0_i32_1 = arith.constant 0 : i32
    return %c0_i32, %c0_i32_0 : i32, i32
  }
  func.func @transform_4(%arg0: i32) -> (i32, i32) {
    %c0_i32 = arith.constant 0 : i32
    %c0_i32_0 = arith.constant 0 : i32
    %c0_i32_1 = arith.constant 0 : i32
    return %c0_i32, %c0_i32_0 : i32, i32
  }
  func.func @transform_5(%arg0: i32) -> (i32, i32) {
    %c0_i32 = arith.constant 0 : i32
    %c0_i32_0 = arith.constant 0 : i32
    %c0_i32_1 = arith.constant 0 : i32
    return %c0_i32, %c0_i32_0 : i32, i32
  }
  func.func @transform_6(%arg0: i32) -> (i32, i32) {
    %c0_i32 = arith.constant 0 : i32
    %c0_i32_0 = arith.constant 0 : i32
    %c0_i32_1 = arith.constant 0 : i32
    return %c0_i32, %c0_i32_0 : i32, i32
  }
  func.func @transform_7(%arg0: i32) -> (i32, i32) {
    %c0_i32 = arith.constant 0 : i32
    %c0_i32_0 = arith.constant 0 : i32
    %c0_i32_1 = arith.constant 0 : i32
    return %c0_i32, %c0_i32_0 : i32, i32
  }
  func.func @transform_8(%arg0: i32) -> (i32, i32) {
    %c0_i32 = arith.constant 0 : i32
    %c0_i32_0 = arith.constant 0 : i32
    %c0_i32_1 = arith.constant 0 : i32
    return %c0_i32, %c0_i32_0 : i32, i32
  }
  func.func @transform_9(%arg0: i32) -> (i32, i32) {
    %c0_i32 = arith.constant 0 : i32
    %c0_i32_0 = arith.constant 0 : i32
    %c0_i32_1 = arith.constant 0 : i32
    return %c0_i32, %c0_i32_0 : i32, i32
  }
  func.func @transform_10(%arg0: i32) -> (i32, i32) {
    %c0_i32 = arith.constant 0 : i32
    %c0_i32_0 = arith.constant 0 : i32
    %c0_i32_1 = arith.constant 0 : i32
    return %c0_i32, %c0_i32_0 : i32, i32
  }
  func.func @transform_11(%arg0: i32) -> (i32, i32) {
    %c0_i32 = arith.constant 0 : i32
    %c0_i32_0 = arith.constant 0 : i32
    %c0_i32_1 = arith.constant 0 : i32
    return %c0_i32, %c0_i32_0 : i32, i32
  }
  func.func @transform_12(%arg0: i32) -> (i32, i32) {
    %c0_i32 = arith.constant 0 : i32
    %c0_i32_0 = arith.constant 0 : i32
    return %arg0, %c0_i32 : i32, i32
  }
  func.func @transform_13(%arg0: i32) -> (i32, i32) {
    %c0_i32 = arith.constant 0 : i32
    %c0_i32_0 = arith.constant 0 : i32
    return %arg0, %c0_i32 : i32, i32
  }
}

</mosaic_0001>

<llo_original>
// kernel: cvae_forward.1
$region0: #{cvae_forward.1}
  #allocation0 [shape = 'u32[]', space=smem, size = 0x4, offset = 0x4, fixed_abs, tag = 'smem constant byte address 0x4 - core index']
  #allocation1 [shape = 'u32[144,128]{1,0:T(1,128)}', space=vmem, size = 0x12000, scoped, tag = 'internal scratch']
  %s0 = inlined_call_operand.vmem [shape: bf16[256,1024], index: 0, kind: input, shape index: {}]
  %s1 = inlined_call_operand.vmem [shape: bf16[256,128], index: 1, kind: input, shape index: {}]
  %s2 = inlined_call_operand.vmem [shape: f32[256,128], index: 2, kind: input, shape index: {}]
  %s3 = inlined_call_operand.vmem [shape: bf16[1024,512], index: 3, kind: input, shape index: {}]
  %s4 = inlined_call_operand.vmem [shape: f32[1,512], index: 4, kind: input, shape index: {}]
  %s5 = inlined_call_operand.vmem [shape: bf16[512,256], index: 5, kind: input, shape index: {}]
  %s6 = inlined_call_operand.vmem [shape: f32[1,256], index: 6, kind: input, shape index: {}]
  %s7 = inlined_call_operand.vmem [shape: bf16[128,512], index: 7, kind: input, shape index: {}]
  %s8 = inlined_call_operand.vmem [shape: bf16[128,512], index: 8, kind: input, shape index: {}]
  %s9 = inlined_call_operand.vmem [shape: f32[1,512], index: 9, kind: input, shape index: {}]
  %s10 = inlined_call_operand.vmem [shape: bf16[512,896], index: 10, kind: input, shape index: {}]
  %s11 = inlined_call_operand.vmem [shape: f32[1,896], index: 11, kind: input, shape index: {}]
  %s12 = inlined_call_operand.vmem [shape: f32[256,896], index: 12, kind: output, shape index: {0}]
  %s13 = inlined_call_operand.vmem [shape: f32[256,256], index: 13, kind: output, shape index: {1}]
  %14 = xla_tuple %s12, %s13
  %s15 = sld [smem:[#allocation0]]
  $region89: #{cvae_forward.1} parent=0
    _
  %s17 = ssub.s32 1, %s15
  %s18 = scalar_select 0, %s17, %s15
  loop: start=0, step=1, limit=4
  $region2: #{cvae_forward.1} parent=0 // loop_pre_header
    _
  $region3: #{cvae_forward.1} parent=0 // loop_header
    %s20 = sphi 0, %s24
    %p21 = scmp.ge.s32.totalorder %s20, 4
    %s30 = sphi 0, %s32
    %s33 = sphi 0, %s30
    %s34 = sphi 0, %s33
    %s50 = sphi 0, %s34
    %s56 = sphi 0, %s58
    %s59 = sphi 0, %s56
    %s60 = sphi 0, %s59
    %s76 = sphi 0, %s60
    %s82 = sphi 0, %s84
    %s85 = sphi 0, %s82
    %s86 = sphi 0, %s85
    %s102 = sphi 0, %s86
    %s106 = sphi 0, %s106
    %s108 = sphi 0, %s106
    %s109 = sphi 0, %s108
    %s123 = sphi 0, %s109
    %s127 = sphi 0, %s127
    %s129 = sphi 0, %s127
    %s130 = sphi 0, %s129
    %s144 = sphi 0, %s130
    %s148 = sphi 0, %s148
    %s150 = sphi 0, %s148
    %s151 = sphi 0, %s150
    %s165 = sphi 0, %s151
    %s169 = sphi 0, %s169
    %s171 = sphi 0, %s169
    %s172 = sphi 0, %s171
    %s186 = sphi 0, %s172
    %s190 = sphi 0, %s190
    %s192 = sphi 0, %s190
    %s193 = sphi 0, %s192
    %s207 = sphi 0, %s193
    %s211 = sphi 0, %s211
    %s213 = sphi 0, %s211
    %s214 = sphi 0, %s213
    %s228 = sphi 0, %s214
    %s232 = sphi 0, %s232
    %s234 = sphi 0, %s232
    %s235 = sphi 0, %s234
    %s249 = sphi 0, %s235
    %s253 = sphi 0, %s253
    %s255 = sphi 0, %s253
    %s256 = sphi 0, %s255
    %s270 = sphi 0, %s256
    %s274 = sphi 0, %s274
    %s276 = sphi 0, %s274
    %s277 = sphi 0, %s276
    %s291 = sphi 0, %s277
    %s297 = sphi 0, %s299
    %s300 = sphi 0, %s297
    %s301 = sphi 0, %s300
    %s317 = sphi 0, %s301
    %s323 = sphi 0, %s325
    %s326 = sphi 0, %s323
    %s327 = sphi 0, %s326
    %s343 = sphi 0, %s327
  $region4: #{cvae_forward.1} parent=0 // loop_header_branch
    %23 = sbr.rel (%p21) target = $region8
  $region5: #{cvae_forward.1} parent=0 // loop_body
    %s25 = ssub.s32 %s20, 1
    %s26 = ssub.s32 %s20, 2
    %s27 = sadd.s32 %s20, 1
    %s28 = ssub.s32 %s20, %s27
    %p29 = scmp.eq.s32.totalorder %s28, 0
    %s31 = sadd.s32 %s30, 1
    %s32 = scalar_select %p29, %s30, %s31
    %p35 = pneg %p29
    %p36 = scmp.eq.s32.totalorder %s20, 1
    %p37 = por %p35, %p36
    %p38 = scmp.ne.s32.totalorder %s30, %s33
    %p39 = scmp.eq.s32.totalorder %s20, 0
    %p40 = por %p38, %p39
    %p41 = scmp.ne.s32.totalorder %s30, %s33
    %p42 = scmp.eq.s32.totalorder %s25, 1
    %p43 = por %p41, %p42
    %p44 = scmp.ne.s32.totalorder %s33, %s34
    %p45 = scmp.eq.s32.totalorder %s25, 0
    %p46 = por %p44, %p45
    %p47 = scmp.ne.s32.totalorder %s33, %s34
    %p48 = scmp.eq.s32.totalorder %s26, 1
    %p49 = por %p47, %p48
    %p51 = scmp.ne.s32.totalorder %s34, %s50
    %p52 = scmp.eq.s32.totalorder %s26, 0
    %p53 = por %p51, %p52
    %s54 = ssub.s32 %s20, %s27
    %p55 = scmp.eq.s32.totalorder %s54, 0
    %s57 = sadd.s32 %s56, 1
    %s58 = scalar_select %p55, %s56, %s57
    %p61 = pneg %p55
    %p62 = scmp.eq.s32.totalorder %s20, 1
    %p63 = por %p61, %p62
    %p64 = scmp.ne.s32.totalorder %s56, %s59
    %p65 = scmp.eq.s32.totalorder %s20, 0
    %p66 = por %p64, %p65
    %p67 = scmp.ne.s32.totalorder %s56, %s59
    %p68 = scmp.eq.s32.totalorder %s25, 1
    %p69 = por %p67, %p68
    %p70 = scmp.ne.s32.totalorder %s59, %s60
    %p71 = scmp.eq.s32.totalorder %s25, 0
    %p72 = por %p70, %p71
    %p73 = scmp.ne.s32.totalorder %s59, %s60
    %p74 = scmp.eq.s32.totalorder %s26, 1
    %p75 = por %p73, %p74
    %p77 = scmp.ne.s32.totalorder %s60, %s76
    %p78 = scmp.eq.s32.totalorder %s26, 0
    %p79 = por %p77, %p78
    %s80 = ssub.s32 %s20, %s27
    %p81 = scmp.eq.s32.totalorder %s80, 0
    %s83 = sadd.s32 %s82, 1
    %s84 = scalar_select %p81, %s82, %s83
    %p87 = pneg %p81
    %p88 = scmp.eq.s32.totalorder %s20, 1
    %p89 = por %p87, %p88
    %p90 = scmp.ne.s32.totalorder %s82, %s85
    %p91 = scmp.eq.s32.totalorder %s20, 0
    %p92 = por %p90, %p91
    %p93 = scmp.ne.s32.totalorder %s82, %s85
    %p94 = scmp.eq.s32.totalorder %s25, 1
    %p95 = por %p93, %p94
    %p96 = scmp.ne.s32.totalorder %s85, %s86
    %p97 = scmp.eq.s32.totalorder %s25, 0
    %p98 = por %p96, %p97
    %p99 = scmp.ne.s32.totalorder %s85, %s86
    %p100 = scmp.eq.s32.totalorder %s26, 1
    %p101 = por %p99, %p100
    %p103 = scmp.ne.s32.totalorder %s86, %s102
    %p104 = scmp.eq.s32.totalorder %s26, 0
    %p105 = por %p103, %p104
    %s107 = sadd.s32 %s106, 1
    %p110 = scmp.eq.s32.totalorder %s20, 1
    %p111 = scmp.ne.s32.totalorder %s106, %s108
    %p112 = scmp.eq.s32.totalorder %s20, 0
    %p113 = por %p111, %p112
    %p114 = scmp.ne.s32.totalorder %s106, %s108
    %p115 = scmp.eq.s32.totalorder %s25, 1
    %p116 = por %p114, %p115
    %p117 = scmp.ne.s32.totalorder %s108, %s109
    %p118 = scmp.eq.s32.totalorder %s25, 0
    %p119 = por %p117, %p118
    %p120 = scmp.ne.s32.totalorder %s108, %s109
    %p121 = scmp.eq.s32.totalorder %s26, 1
    %p122 = por %p120, %p121
    %p124 = scmp.ne.s32.totalorder %s109, %s123
    %p125 = scmp.eq.s32.totalorder %s26, 0
    %p126 = por %p124, %p125
    %s128 = sadd.s32 %s127, 1
    %p131 = scmp.eq.s32.totalorder %s20, 1
    %p132 = scmp.ne.s32.totalorder %s127, %s129
    %p133 = scmp.eq.s32.totalorder %s20, 0
    %p134 = por %p132, %p133
    %p135 = scmp.ne.s32.totalorder %s127, %s129
    %p136 = scmp.eq.s32.totalorder %s25, 1
    %p137 = por %p135, %p136
    %p138 = scmp.ne.s32.totalorder %s129, %s130
    %p139 = scmp.eq.s32.totalorder %s25, 0
    %p140 = por %p138, %p139
    %p141 = scmp.ne.s32.totalorder %s129, %s130
    %p142 = scmp.eq.s32.totalorder %s26, 1
    %p143 = por %p141, %p142
    %p145 = scmp.ne.s32.totalorder %s130, %s144
    %p146 = scmp.eq.s32.totalorder %s26, 0
    %p147 = por %p145, %p146
    %s149 = sadd.s32 %s148, 1
    %p152 = scmp.eq.s32.totalorder %s20, 1
    %p153 = scmp.ne.s32.totalorder %s148, %s150
    %p154 = scmp.eq.s32.totalorder %s20, 0
    %p155 = por %p153, %p154
    %p156 = scmp.ne.s32.totalorder %s148, %s150
    %p157 = scmp.eq.s32.totalorder %s25, 1
    %p158 = por %p156, %p157
    %p159 = scmp.ne.s32.totalorder %s150, %s151
    %p160 = scmp.eq.s32.totalorder %s25, 0
    %p161 = por %p159, %p160
    %p162 = scmp.ne.s32.totalorder %s150, %s151
    %p163 = scmp.eq.s32.totalorder %s26, 1
    %p164 = por %p162, %p163
    %p166 = scmp.ne.s32.totalorder %s151, %s165
    %p167 = scmp.eq.s32.totalorder %s26, 0
    %p168 = por %p166, %p167
    %s170 = sadd.s32 %s169, 1
    %p173 = scmp.eq.s32.totalorder %s20, 1
    %p174 = scmp.ne.s32.totalorder %s169, %s171
    %p175 = scmp.eq.s32.totalorder %s20, 0
    %p176 = por %p174, %p175
    %p177 = scmp.ne.s32.totalorder %s169, %s171
    %p178 = scmp.eq.s32.totalorder %s25, 1
    %p179 = por %p177, %p178
    %p180 = scmp.ne.s32.totalorder %s171, %s172
    %p181 = scmp.eq.s32.totalorder %s25, 0
    %p182 = por %p180, %p181
    %p183 = scmp.ne.s32.totalorder %s171, %s172
    %p184 = scmp.eq.s32.totalorder %s26, 1
    %p185 = por %p183, %p184
    %p187 = scmp.ne.s32.totalorder %s172, %s186
    %p188 = scmp.eq.s32.totalorder %s26, 0
    %p189 = por %p187, %p188
    %s191 = sadd.s32 %s190, 1
    %p194 = scmp.eq.s32.totalorder %s20, 1
    %p195 = scmp.ne.s32.totalorder %s190, %s192
    %p196 = scmp.eq.s32.totalorder %s20, 0
    %p197 = por %p195, %p196
    %p198 = scmp.ne.s32.totalorder %s190, %s192
    %p199 = scmp.eq.s32.totalorder %s25, 1
    %p200 = por %p198, %p199
    %p201 = scmp.ne.s32.totalorder %s192, %s193
    %p202 = scmp.eq.s32.totalorder %s25, 0
    %p203 = por %p201, %p202
    %p204 = scmp.ne.s32.totalorder %s192, %s193
    %p205 = scmp.eq.s32.totalorder %s26, 1
    %p206 = por %p204, %p205
    %p208 = scmp.ne.s32.totalorder %s193, %s207
    %p209 = scmp.eq.s32.totalorder %s26, 0
    %p210 = por %p208, %p209
    %s212 = sadd.s32 %s211, 1
    %p215 = scmp.eq.s32.totalorder %s20, 1
    %p216 = scmp.ne.s32.totalorder %s211, %s213
    %p217 = scmp.eq.s32.totalorder %s20, 0
    %p218 = por %p216, %p217
    %p219 = scmp.ne.s32.totalorder %s211, %s213
    %p220 = scmp.eq.s32.totalorder %s25, 1
    %p221 = por %p219, %p220
    %p222 = scmp.ne.s32.totalorder %s213, %s214
    %p223 = scmp.eq.s32.totalorder %s25, 0
    %p224 = por %p222, %p223
    %p225 = scmp.ne.s32.totalorder %s213, %s214
    %p226 = scmp.eq.s32.totalorder %s26, 1
    %p227 = por %p225, %p226
    %p229 = scmp.ne.s32.totalorder %s214, %s228
    %p230 = scmp.eq.s32.totalorder %s26, 0
    %p231 = por %p229, %p230
    %s233 = sadd.s32 %s232, 1
    %p236 = scmp.eq.s32.totalorder %s20, 1
    %p237 = scmp.ne.s32.totalorder %s232, %s234
    %p238 = scmp.eq.s32.totalorder %s20, 0
    %p239 = por %p237, %p238
    %p240 = scmp.ne.s32.totalorder %s232, %s234
    %p241 = scmp.eq.s32.totalorder %s25, 1
    %p242 = por %p240, %p241
    %p243 = scmp.ne.s32.totalorder %s234, %s235
    %p244 = scmp.eq.s32.totalorder %s25, 0
    %p245 = por %p243, %p244
    %p246 = scmp.ne.s32.totalorder %s234, %s235
    %p247 = scmp.eq.s32.totalorder %s26, 1
    %p248 = por %p246, %p247
    %p250 = scmp.ne.s32.totalorder %s235, %s249
    %p251 = scmp.eq.s32.totalorder %s26, 0
    %p252 = por %p250, %p251
    %s254 = sadd.s32 %s253, 1
    %p257 = scmp.eq.s32.totalorder %s20, 1
    %p258 = scmp.ne.s32.totalorder %s253, %s255
    %p259 = scmp.eq.s32.totalorder %s20, 0
    %p260 = por %p258, %p259
    %p261 = scmp.ne.s32.totalorder %s253, %s255
    %p262 = scmp.eq.s32.totalorder %s25, 1
    %p263 = por %p261, %p262
    %p264 = scmp.ne.s32.totalorder %s255, %s256
    %p265 = scmp.eq.s32.totalorder %s25, 0
    %p266 = por %p264, %p265
    %p267 = scmp.ne.s32.totalorder %s255, %s256
    %p268 = scmp.eq.s32.totalorder %s26, 1
    %p269 = por %p267, %p268
    %p271 = scmp.ne.s32.totalorder %s256, %s270
    %p272 = scmp.eq.s32.totalorder %s26, 0
    %p273 = por %p271, %p272
    %s275 = sadd.s32 %s274, 1
    %p278 = scmp.eq.s32.totalorder %s20, 1
    %p279 = scmp.ne.s32.totalorder %s274, %s276
    %p280 = scmp.eq.s32.totalorder %s20, 0
    %p281 = por %p279, %p280
    %p282 = scmp.ne.s32.totalorder %s274, %s276
    %p283 = scmp.eq.s32.totalorder %s25, 1
    %p284 = por %p282, %p283
    %p285 = scmp.ne.s32.totalorder %s276, %s277
    %p286 = scmp.eq.s32.totalorder %s25, 0
    %p287 = por %p285, %p286
    %p288 = scmp.ne.s32.totalorder %s276, %s277
    %p289 = scmp.eq.s32.totalorder %s26, 1
    %p290 = por %p288, %p289
    %p292 = scmp.ne.s32.totalorder %s277, %s291
    %p293 = scmp.eq.s32.totalorder %s26, 0
    %p294 = por %p292, %p293
    %s295 = ssub.s32 %s20, %s27
    %p296 = scmp.eq.s32.totalorder %s295, 0
    %s298 = sadd.s32 %s297, 1
    %s299 = scalar_select %p296, %s297, %s298
    %p302 = pneg %p296
    %p303 = scmp.eq.s32.totalorder %s20, 1
    %p304 = por %p302, %p303
    %p305 = scmp.ne.s32.totalorder %s297, %s300
    %p306 = scmp.eq.s32.totalorder %s20, 0
    %p307 = por %p305, %p306
    %p308 = scmp.ne.s32.totalorder %s297, %s300
    %p309 = scmp.eq.s32.totalorder %s25, 1
    %p310 = por %p308, %p309
    %p311 = scmp.ne.s32.totalorder %s300, %s301
    %p312 = scmp.eq.s32.totalorder %s25, 0
    %p313 = por %p311, %p312
    %p314 = scmp.ne.s32.totalorder %s300, %s301
    %p315 = scmp.eq.s32.totalorder %s26, 1
    %p316 = por %p314, %p315
    %p318 = scmp.ne.s32.totalorder %s301, %s317
    %p319 = scmp.eq.s32.totalorder %s26, 0
    %p320 = por %p318, %p319
    %s321 = ssub.s32 %s20, %s27
    %p322 = scmp.eq.s32.totalorder %s321, 0
    %s324 = sadd.s32 %s323, 1
    %s325 = scalar_select %p322, %s323, %s324
    %p328 = pneg %p322
    %p329 = scmp.eq.s32.totalorder %s20, 1
    %p330 = por %p328, %p329
    %p331 = scmp.ne.s32.totalorder %s323, %s326
    %p332 = scmp.eq.s32.totalorder %s20, 0
    %p333 = por %p331, %p332
    %p334 = scmp.ne.s32.totalorder %s323, %s326
    %p335 = scmp.eq.s32.totalorder %s25, 1
    %p336 = por %p334, %p335
    %p337 = scmp.ne.s32.totalorder %s326, %s327
    %p338 = scmp.eq.s32.totalorder %s25, 0
    %p339 = por %p337, %p338
    %p340 = scmp.ne.s32.totalorder %s326, %s327
    %p341 = scmp.eq.s32.totalorder %s26, 1
    %p342 = por %p340, %p341
    %p344 = scmp.ne.s32.totalorder %s327, %s343
    %p345 = scmp.eq.s32.totalorder %s26, 0
    %p346 = por %p344, %p345
    %p347 = scmp.le.s32.totalorder 1, %s20
    %p348 = scmp.lt.s32.totalorder %s20, 3
    %p349 = pnand %p347, %p348
    %p350 = pneg %p349
    // Predicated region
    $region9: #{cvae_forward.1} parent=5 // pred_check
      _
    $region10: #{cvae_forward.1} parent=5 // pred_check_branch
      %352 = sbr.rel (%p349) target = $region12
    $region11: #{cvae_forward.1} parent=5 // pred_region
      %s353 = ssub.s32 %s20, 1
      // Predicated region
      $region13: #{cvae_forward.1} parent=11 // pred_check
        %p354 = pneg %p119
      $region14: #{cvae_forward.1} parent=11 // pred_check_branch
        %356 = sbr.rel (%p354) target = $region16
      $region15: #{cvae_forward.1} parent=11 // pred_region
        _
      $region16: #{cvae_forward.1} parent=11 // pred_fallthru
        _
      // Predicated region
      $region17: #{cvae_forward.1} parent=11 // pred_check
        %p357 = pneg %p140
      $region18: #{cvae_forward.1} parent=11 // pred_check_branch
        %359 = sbr.rel (%p357) target = $region20
      $region19: #{cvae_forward.1} parent=11 // pred_region
        _
      $region20: #{cvae_forward.1} parent=11 // pred_fallthru
        _
      // Predicated region
      $region21: #{cvae_forward.1} parent=11 // pred_check
        %p360 = pneg %p161
      $region22: #{cvae_forward.1} parent=11 // pred_check_branch
        %362 = sbr.rel (%p360) target = $region24
      $region23: #{cvae_forward.1} parent=11 // pred_region
        _
      $region24: #{cvae_forward.1} parent=11 // pred_fallthru
        _
      // Predicated region
      $region25: #{cvae_forward.1} parent=11 // pred_check
        %p363 = pneg %p182
      $region26: #{cvae_forward.1} parent=11 // pred_check_branch
        %365 = sbr.rel (%p363) target = $region28
      $region27: #{cvae_forward.1} parent=11 // pred_region
        _
      $region28: #{cvae_forward.1} parent=11 // pred_fallthru
        _
      // Predicated region
      $region29: #{cvae_forward.1} parent=11 // pred_check
        %p366 = pneg %p203
      $region30: #{cvae_forward.1} parent=11 // pred_check_branch
        %368 = sbr.rel (%p366) target = $region32
      $region31: #{cvae_forward.1} parent=11 // pred_region
        _
      $region32: #{cvae_forward.1} parent=11 // pred_fallthru
        _
      // Predicated region
      $region33: #{cvae_forward.1} parent=11 // pred_check
        %p369 = pneg %p224
      $region34: #{cvae_forward.1} parent=11 // pred_check_branch
        %371 = sbr.rel (%p369) target = $region36
      $region35: #{cvae_forward.1} parent=11 // pred_region
        _
      $region36: #{cvae_forward.1} parent=11 // pred_fallthru
        _
      // Predicated region
      $region37: #{cvae_forward.1} parent=11 // pred_check
        %p372 = pneg %p245
      $region38: #{cvae_forward.1} parent=11 // pred_check_branch
        %374 = sbr.rel (%p372) target = $region40
      $region39: #{cvae_forward.1} parent=11 // pred_region
        _
      $region40: #{cvae_forward.1} parent=11 // pred_fallthru
        _
      // Predicated region
      $region41: #{cvae_forward.1} parent=11 // pred_check
        %p375 = pneg %p266
      $region42: #{cvae_forward.1} parent=11 // pred_check_branch
        %377 = sbr.rel (%p375) target = $region44
      $region43: #{cvae_forward.1} parent=11 // pred_region
        _
      $region44: #{cvae_forward.1} parent=11 // pred_fallthru
        _
      // Predicated region
      $region45: #{cvae_forward.1} parent=11 // pred_check
        %p378 = pneg %p287
      $region46: #{cvae_forward.1} parent=11 // pred_check_branch
        %380 = sbr.rel (%p378) target = $region48
      $region47: #{cvae_forward.1} parent=11 // pred_region
        _
      $region48: #{cvae_forward.1} parent=11 // pred_fallthru
        _
    $region12: #{cvae_forward.1} parent=5 // pred_fallthru
      _
    %p381 = scmp.lt.s32.totalorder %s20, 2
    // Predicated region
    $region49: #{cvae_forward.1} parent=5 // pred_check
      %p382 = pneg %p381
    $region50: #{cvae_forward.1} parent=5 // pred_check_branch
      %384 = sbr.rel (%p382) target = $region52
    $region51: #{cvae_forward.1} parent=5 // pred_region
      // Predicated region
      $region53: #{cvae_forward.1} parent=51 // pred_check
        %p385 = pneg %p40
      $region54: #{cvae_forward.1} parent=51 // pred_check_branch
        %387 = sbr.rel (%p385) target = $region56
      $region55: #{cvae_forward.1} parent=51 // pred_region
        %s388 = smul.u32 16, %s20
        %p389 = scmp.lt.s32.totalorder %s388, 31
        %s390 = scalar_select %p389, %s388, 31
        %s391 = smul.addr %s390, 8
        %s392 = smul.addr %s391, 4
        %s393 = scalar_lea.vmem %s0, %s392
        %s394 = smul.u32 16, %s20
      $region56: #{cvae_forward.1} parent=51 // pred_fallthru
        _
      // Predicated region
      $region57: #{cvae_forward.1} parent=51 // pred_check
        %p395 = pneg %p66
      $region58: #{cvae_forward.1} parent=51 // pred_check_branch
        %397 = sbr.rel (%p395) target = $region60
      $region59: #{cvae_forward.1} parent=51 // pred_region
        %s398 = smul.u32 16, %s20
        %p399 = scmp.lt.s32.totalorder %s398, 31
        %s400 = scalar_select %p399, %s398, 31
        %s401 = smul.addr %s400, 4
        %s402 = scalar_lea.vmem %s1, %s401
        %s403 = smul.u32 16, %s20
      $region60: #{cvae_forward.1} parent=51 // pred_fallthru
        _
      // Predicated region
      $region61: #{cvae_forward.1} parent=51 // pred_check
        %p404 = pneg %p92
      $region62: #{cvae_forward.1} parent=51 // pred_check_branch
        %406 = sbr.rel (%p404) target = $region64
      $region63: #{cvae_forward.1} parent=51 // pred_region
        %s407 = smul.u32 16, %s20
        %p408 = scmp.lt.s32.totalorder %s407, 31
        %s409 = scalar_select %p408, %s407, 31
        %s410 = smul.addr %s409, 8
        %s411 = scalar_lea.vmem %s2, %s410
        %s412 = smul.u32 16, %s20
      $region64: #{cvae_forward.1} parent=51 // pred_fallthru
        _
    $region52: #{cvae_forward.1} parent=5 // pred_fallthru
      _
    %p413 = scmp.le.s32.totalorder 1, %s20
    %p414 = scmp.lt.s32.totalorder %s20, 3
    %p415 = pnand %p413, %p414
    %p416 = pneg %p415
    // Predicated region
    $region65: #{cvae_forward.1} parent=5 // pred_check
      _
    $region66: #{cvae_forward.1} parent=5 // pred_check_branch
      %418 = sbr.rel (%p415) target = $region68
    $region67: #{cvae_forward.1} parent=5 // pred_region
      %s419 = ssub.s32 %s20, 1
      %s420 = smul.u32 16, %s25
      %p421 = scmp.lt.s32.totalorder %s420, 31
      %s422 = scalar_select %p421, %s420, 31
      %s423 = smul.addr %s422, 8
      %s424 = smul.addr %s423, 4
      %s425 = scalar_lea.vmem %s0, %s424
      %p426 = pneg %p46
      %p427 = pneg %p43
      %s428 = smul.u32 16, %s25
      %p429 = scmp.lt.s32.totalorder %s428, 31
      %s430 = scalar_select %p429, %s428, 31
      %s431 = smul.addr %s430, 4
      %s432 = scalar_lea.vmem %s1, %s431
      %p433 = pneg %p72
      %p434 = pneg %p69
      %s435 = smul.u32 16, %s25
      %p436 = scmp.lt.s32.totalorder %s435, 31
      %s437 = scalar_select %p436, %s435, 31
      %s438 = smul.addr %s437, 8
      %s439 = scalar_lea.vmem %s2, %s438
      %p440 = pneg %p98
      %p441 = pneg %p95
      %p442 = pneg %p119
      %p443 = pneg %p116
      %p444 = pneg %p140
      %p445 = pneg %p137
      %p446 = pneg %p161
      %p447 = pneg %p158
      %p448 = pneg %p182
      %p449 = pneg %p179
      %p450 = pneg %p203
      %p451 = pneg %p200
      %p452 = pneg %p224
      %p453 = pneg %p221
      %p454 = pneg %p245
      %p455 = pneg %p242
      %p456 = pneg %p266
      %p457 = pneg %p263
      %p458 = pneg %p287
      %p459 = pneg %p284
      %p460 = pneg %p313
      %p461 = pneg %p310
      %s462 = smul.u32 16, %s25
      %p463 = scmp.lt.s32.totalorder %s462, 31
      %s464 = scalar_select %p463, %s462, 31
      %s465 = smul.addr %s464, 7
      %s466 = smul.addr %s465, 8
      %s467 = scalar_lea.vmem %s12, %s466
      %p468 = pneg %p339
      %p469 = pneg %p336
      %s470 = smul.u32 16, %s25
      %p471 = scmp.lt.s32.totalorder %s470, 31
      %s472 = scalar_select %p471, %s470, 31
      %s473 = smul.addr %s472, 2
      %s474 = smul.addr %s473, 8
      %s475 = scalar_lea.vmem %s13, %s474
      %s476 = smul.u32 16, %s25
      %p477 = scmp.lt.s32.totalorder %s476, 31
      %s478 = scalar_select %p477, %s476, 31
      %s479 = smul.addr %s478, 8
      %s480 = smul.addr %s479, 4
      %s481 = scalar_lea.vmem %s0, %s480
      %s482 = smul.u32 16, %s25
      %s483 = smul.u32 16, %s25
      %p484 = scmp.lt.s32.totalorder %s483, 31
      %s485 = scalar_select %p484, %s483, 31
      %s486 = smul.addr %s485, 4
      %s487 = scalar_lea.vmem %s1, %s486
      %s488 = smul.u32 16, %s25
      %s489 = smul.u32 16, %s25
      %p490 = scmp.lt.s32.totalorder %s489, 31
      %s491 = scalar_select %p490, %s489, 31
      %s492 = smul.addr %s491, 8
      %s493 = scalar_lea.vmem %s2, %s492
      %s494 = smul.u32 16, %s25
      %s495 = smul.u32 16, %s25
      %p496 = scmp.lt.s32.totalorder %s495, 31
      %s497 = scalar_select %p496, %s495, 31
      %s498 = smul.addr %s497, 7
      %s499 = smul.addr %s498, 8
      %s500 = scalar_lea.vmem %s12, %s499
      %s501 = smul.u32 16, %s25
      %s502 = smul.u32 16, %s25
      %p503 = scmp.lt.s32.totalorder %s502, 31
      %s504 = scalar_select %p503, %s502, 31
      %s505 = smul.addr %s504, 2
      %s506 = smul.addr %s505, 8
      %s507 = scalar_lea.vmem %s13, %s506
      %s508 = smul.u32 16, %s25
      %v510 = vld [vmem:[%s481] sm:$0xff]
      %v511 = vld [vmem:[%s481 + $0x8] sm:$0xff]
      %v512 = vld [vmem:[%s481 + $0x10] sm:$0xff]
      %v513 = vld [vmem:[%s481 + $0x18] sm:$0xff]
      %v514 = vld [vmem:[%s481 + $0x20] sm:$0xff]
      %v515 = vld [vmem:[%s481 + $0x28] sm:$0xff]
      %v516 = vld [vmem:[%s481 + $0x30] sm:$0xff]
      %v517 = vld [vmem:[%s481 + $0x38] sm:$0xff]
      %v518 = vld [vmem:[%s481 + $0x40] sm:$0xff]
      %v519 = vld [vmem:[%s481 + $0x48] sm:$0xff]
      %v520 = vld [vmem:[%s481 + $0x50] sm:$0xff]
      %v521 = vld [vmem:[%s481 + $0x58] sm:$0xff]
      %v522 = vld [vmem:[%s481 + $0x60] sm:$0xff]
      %v523 = vld [vmem:[%s481 + $0x68] sm:$0xff]
      %v524 = vld [vmem:[%s481 + $0x70] sm:$0xff]
      %v525 = vld [vmem:[%s481 + $0x78] sm:$0xff]
      %v526 = vld [vmem:[%s481 + $0x80] sm:$0xff]
      %v527 = vld [vmem:[%s481 + $0x88] sm:$0xff]
      %v528 = vld [vmem:[%s481 + $0x90] sm:$0xff]
      %v529 = vld [vmem:[%s481 + $0x98] sm:$0xff]
      %v530 = vld [vmem:[%s481 + $0xa0] sm:$0xff]
      %v531 = vld [vmem:[%s481 + $0xa8] sm:$0xff]
      %v532 = vld [vmem:[%s481 + $0xb0] sm:$0xff]
      %v533 = vld [vmem:[%s481 + $0xb8] sm:$0xff]
      %v534 = vld [vmem:[%s481 + $0xc0] sm:$0xff]
      %v535 = vld [vmem:[%s481 + $0xc8] sm:$0xff]
      %v536 = vld [vmem:[%s481 + $0xd0] sm:$0xff]
      %v537 = vld [vmem:[%s481 + $0xd8] sm:$0xff]
      %v538 = vld [vmem:[%s481 + $0xe0] sm:$0xff]
      %v539 = vld [vmem:[%s481 + $0xe8] sm:$0xff]
      %v540 = vld [vmem:[%s481 + $0xf0] sm:$0xff]
      %v541 = vld [vmem:[%s481 + $0xf8] sm:$0xff]
      %v542 = vld [vmem:[%s481 + $0x100] sm:$0xff]
      %v543 = vld [vmem:[%s481 + $0x108] sm:$0xff]
      %v544 = vld [vmem:[%s481 + $0x110] sm:$0xff]
      %v545 = vld [vmem:[%s481 + $0x118] sm:$0xff]
      %v546 = vld [vmem:[%s481 + $0x120] sm:$0xff]
      %v547 = vld [vmem:[%s481 + $0x128] sm:$0xff]
      %v548 = vld [vmem:[%s481 + $0x130] sm:$0xff]
      %v549 = vld [vmem:[%s481 + $0x138] sm:$0xff]
      %v550 = vld [vmem:[%s481 + $0x140] sm:$0xff]
      %v551 = vld [vmem:[%s481 + $0x148] sm:$0xff]
      %v552 = vld [vmem:[%s481 + $0x150] sm:$0xff]
      %v553 = vld [vmem:[%s481 + $0x158] sm:$0xff]
      %v554 = vld [vmem:[%s481 + $0x160] sm:$0xff]
      %v555 = vld [vmem:[%s481 + $0x168] sm:$0xff]
      %v556 = vld [vmem:[%s481 + $0x170] sm:$0xff]
      %v557 = vld [vmem:[%s481 + $0x178] sm:$0xff]
      %v558 = vld [vmem:[%s481 + $0x180] sm:$0xff]
      %v559 = vld [vmem:[%s481 + $0x188] sm:$0xff]
      %v560 = vld [vmem:[%s481 + $0x190] sm:$0xff]
      %v561 = vld [vmem:[%s481 + $0x198] sm:$0xff]
      %v562 = vld [vmem:[%s481 + $0x1a0] sm:$0xff]
      %v563 = vld [vmem:[%s481 + $0x1a8] sm:$0xff]
      %v564 = vld [vmem:[%s481 + $0x1b0] sm:$0xff]
      %v565 = vld [vmem:[%s481 + $0x1b8] sm:$0xff]
      %v566 = vld [vmem:[%s481 + $0x1c0] sm:$0xff]
      %v567 = vld [vmem:[%s481 + $0x1c8] sm:$0xff]
      %v568 = vld [vmem:[%s481 + $0x1d0] sm:$0xff]
      %v569 = vld [vmem:[%s481 + $0x1d8] sm:$0xff]
      %v570 = vld [vmem:[%s481 + $0x1e0] sm:$0xff]
      %v571 = vld [vmem:[%s481 + $0x1e8] sm:$0xff]
      %v572 = vld [vmem:[%s481 + $0x1f0] sm:$0xff]
      %v573 = vld [vmem:[%s481 + $0x1f8] sm:$0xff]
      %v574 = vld [vmem:[%s487] sm:$0xf]
      %v575 = vld [vmem:[%s487 + $0x4] sm:$0xf]
      %v576 = vld [vmem:[%s487 + $0x8] sm:$0xf]
      %v577 = vld [vmem:[%s487 + $0xc] sm:$0xf]
      %v578 = vld [vmem:[%s487 + $0x10] sm:$0xf]
      %v579 = vld [vmem:[%s487 + $0x14] sm:$0xf]
      %v580 = vld [vmem:[%s487 + $0x18] sm:$0xf]
      %v581 = vld [vmem:[%s487 + $0x1c] sm:$0xf]
      %v582 = vld [vmem:[%s487 + $0x20] sm:$0xf]
      %v583 = vld [vmem:[%s487 + $0x24] sm:$0xf]
      %v584 = vld [vmem:[%s487 + $0x28] sm:$0xf]
      %v585 = vld [vmem:[%s487 + $0x2c] sm:$0xf]
      %v586 = vld [vmem:[%s487 + $0x30] sm:$0xf]
      %v587 = vld [vmem:[%s487 + $0x34] sm:$0xf]
      %v588 = vld [vmem:[%s487 + $0x38] sm:$0xf]
      %v589 = vld [vmem:[%s487 + $0x3c] sm:$0xf]
      %v590 = vld [vmem:[%s493] sm:$0xff]
      %v591 = vld [vmem:[%s493 + $0x8] sm:$0xff]
      %v592 = vld [vmem:[%s493 + $0x10] sm:$0xff]
      %v593 = vld [vmem:[%s493 + $0x18] sm:$0xff]
      %v594 = vld [vmem:[%s493 + $0x20] sm:$0xff]
      %v595 = vld [vmem:[%s493 + $0x28] sm:$0xff]
      %v596 = vld [vmem:[%s493 + $0x30] sm:$0xff]
      %v597 = vld [vmem:[%s493 + $0x38] sm:$0xff]
      %v598 = vld [vmem:[%s493 + $0x40] sm:$0xff]
      %v599 = vld [vmem:[%s493 + $0x48] sm:$0xff]
      %v600 = vld [vmem:[%s493 + $0x50] sm:$0xff]
      %v601 = vld [vmem:[%s493 + $0x58] sm:$0xff]
      %v602 = vld [vmem:[%s493 + $0x60] sm:$0xff]
      %v603 = vld [vmem:[%s493 + $0x68] sm:$0xff]
      %v604 = vld [vmem:[%s493 + $0x70] sm:$0xff]
      %v605 = vld [vmem:[%s493 + $0x78] sm:$0xff]
      %v606 = vld [vmem:[%s3] sm:$0xff]
      %v607 = vld [vmem:[%s3 + $0x8] sm:$0xff]
      %v608 = vld [vmem:[%s3 + $0x10] sm:$0xff]
      %v609 = vld [vmem:[%s3 + $0x18] sm:$0xff]
      %v610 = vld [vmem:[%s3 + $0x20] sm:$0xff]
      %v611 = vld [vmem:[%s3 + $0x28] sm:$0xff]
      %v612 = vld [vmem:[%s3 + $0x30] sm:$0xff]
      %v613 = vld [vmem:[%s3 + $0x38] sm:$0xff]
      %v614 = vld [vmem:[%s3 + $0x40] sm:$0xff]
      %v615 = vld [vmem:[%s3 + $0x48] sm:$0xff]
      %v616 = vld [vmem:[%s3 + $0x50] sm:$0xff]
      %v617 = vld [vmem:[%s3 + $0x58] sm:$0xff]
      %v618 = vld [vmem:[%s3 + $0x60] sm:$0xff]
      %v619 = vld [vmem:[%s3 + $0x68] sm:$0xff]
      %v620 = vld [vmem:[%s3 + $0x70] sm:$0xff]
      %v621 = vld [vmem:[%s3 + $0x78] sm:$0xff]
      %v622 = vld [vmem:[%s3 + $0x80] sm:$0xff]
      %v623 = vld [vmem:[%s3 + $0x88] sm:$0xff]
      %v624 = vld [vmem:[%s3 + $0x90] sm:$0xff]
      %v625 = vld [vmem:[%s3 + $0x98] sm:$0xff]
      %v626 = vld [vmem:[%s3 + $0xa0] sm:$0xff]
      %v627 = vld [vmem:[%s3 + $0xa8] sm:$0xff]
      %v628 = vld [vmem:[%s3 + $0xb0] sm:$0xff]
      %v629 = vld [vmem:[%s3 + $0xb8] sm:$0xff]
      %v630 = vld [vmem:[%s3 + $0xc0] sm:$0xff]
      %v631 = vld [vmem:[%s3 + $0xc8] sm:$0xff]
      %v632 = vld [vmem:[%s3 + $0xd0] sm:$0xff]
      %v633 = vld [vmem:[%s3 + $0xd8] sm:$0xff]
      %v634 = vld [vmem:[%s3 + $0xe0] sm:$0xff]
      %v635 = vld [vmem:[%s3 + $0xe8] sm:$0xff]
      %v636 = vld [vmem:[%s3 + $0xf0] sm:$0xff]
      %v637 = vld [vmem:[%s3 + $0xf8] sm:$0xff]
      %v638 = vld [vmem:[%s3 + $0x100] sm:$0xff]
      %v639 = vld [vmem:[%s3 + $0x108] sm:$0xff]
      %v640 = vld [vmem:[%s3 + $0x110] sm:$0xff]
      %v641 = vld [vmem:[%s3 + $0x118] sm:$0xff]
      %v642 = vld [vmem:[%s3 + $0x120] sm:$0xff]
      %v643 = vld [vmem:[%s3 + $0x128] sm:$0xff]
      %v644 = vld [vmem:[%s3 + $0x130] sm:$0xff]
      %v645 = vld [vmem:[%s3 + $0x138] sm:$0xff]
      %v646 = vld [vmem:[%s3 + $0x140] sm:$0xff]
      %v647 = vld [vmem:[%s3 + $0x148] sm:$0xff]
      %v648 = vld [vmem:[%s3 + $0x150] sm:$0xff]
      %v649 = vld [vmem:[%s3 + $0x158] sm:$0xff]
      %v650 = vld [vmem:[%s3 + $0x160] sm:$0xff]
      %v651 = vld [vmem:[%s3 + $0x168] sm:$0xff]
      %v652 = vld [vmem:[%s3 + $0x170] sm:$0xff]
      %v653 = vld [vmem:[%s3 + $0x178] sm:$0xff]
      %v654 = vld [vmem:[%s3 + $0x180] sm:$0xff]
      %v655 = vld [vmem:[%s3 + $0x188] sm:$0xff]
      %v656 = vld [vmem:[%s3 + $0x190] sm:$0xff]
      %v657 = vld [vmem:[%s3 + $0x198] sm:$0xff]
      %v658 = vld [vmem:[%s3 + $0x1a0] sm:$0xff]
      %v659 = vld [vmem:[%s3 + $0x1a8] sm:$0xff]
      %v660 = vld [vmem:[%s3 + $0x1b0] sm:$0xff]
      %v661 = vld [vmem:[%s3 + $0x1b8] sm:$0xff]
      %v662 = vld [vmem:[%s3 + $0x1c0] sm:$0xff]
      %v663 = vld [vmem:[%s3 + $0x1c8] sm:$0xff]
      %v664 = vld [vmem:[%s3 + $0x1d0] sm:$0xff]
      %v665 = vld [vmem:[%s3 + $0x1d8] sm:$0xff]
      %v666 = vld [vmem:[%s3 + $0x1e0] sm:$0xff]
      %v667 = vld [vmem:[%s3 + $0x1e8] sm:$0xff]
      %v668 = vld [vmem:[%s3 + $0x1f0] sm:$0xff]
      %v669 = vld [vmem:[%s3 + $0x1f8] sm:$0xff]
      %v670 = vld [vmem:[%s3 + $0x200] sm:$0xff]
      %v671 = vld [vmem:[%s3 + $0x208] sm:$0xff]
      %v672 = vld [vmem:[%s3 + $0x210] sm:$0xff]
      %v673 = vld [vmem:[%s3 + $0x218] sm:$0xff]
      %v674 = vld [vmem:[%s3 + $0x220] sm:$0xff]
      %v675 = vld [vmem:[%s3 + $0x228] sm:$0xff]
      %v676 = vld [vmem:[%s3 + $0x230] sm:$0xff]
      %v677 = vld [vmem:[%s3 + $0x238] sm:$0xff]
      %v678 = vld [vmem:[%s3 + $0x240] sm:$0xff]
      %v679 = vld [vmem:[%s3 + $0x248] sm:$0xff]
      %v680 = vld [vmem:[%s3 + $0x250] sm:$0xff]
      %v681 = vld [vmem:[%s3 + $0x258] sm:$0xff]
      %v682 = vld [vmem:[%s3 + $0x260] sm:$0xff]
      %v683 = vld [vmem:[%s3 + $0x268] sm:$0xff]
      %v684 = vld [vmem:[%s3 + $0x270] sm:$0xff]
      %v685 = vld [vmem:[%s3 + $0x278] sm:$0xff]
      %v686 = vld [vmem:[%s3 + $0x280] sm:$0xff]
      %v687 = vld [vmem:[%s3 + $0x288] sm:$0xff]
      %v688 = vld [vmem:[%s3 + $0x290] sm:$0xff]
      %v689 = vld [vmem:[%s3 + $0x298] sm:$0xff]
      %v690 = vld [vmem:[%s3 + $0x2a0] sm:$0xff]
      %v691 = vld [vmem:[%s3 + $0x2a8] sm:$0xff]
      %v692 = vld [vmem:[%s3 + $0x2b0] sm:$0xff]
      %v693 = vld [vmem:[%s3 + $0x2b8] sm:$0xff]
      %v694 = vld [vmem:[%s3 + $0x2c0] sm:$0xff]
      %v695 = vld [vmem:[%s3 + $0x2c8] sm:$0xff]
      %v696 = vld [vmem:[%s3 + $0x2d0] sm:$0xff]
      %v697 = vld [vmem:[%s3 + $0x2d8] sm:$0xff]
      %v698 = vld [vmem:[%s3 + $0x2e0] sm:$0xff]
      %v699 = vld [vmem:[%s3 + $0x2e8] sm:$0xff]
      %v700 = vld [vmem:[%s3 + $0x2f0] sm:$0xff]
      %v701 = vld [vmem:[%s3 + $0x2f8] sm:$0xff]
      %v702 = vld [vmem:[%s3 + $0x300] sm:$0xff]
      %v703 = vld [vmem:[%s3 + $0x308] sm:$0xff]
      %v704 = vld [vmem:[%s3 + $0x310] sm:$0xff]
      %v705 = vld [vmem:[%s3 + $0x318] sm:$0xff]
      %v706 = vld [vmem:[%s3 + $0x320] sm:$0xff]
      %v707 = vld [vmem:[%s3 + $0x328] sm:$0xff]
      %v708 = vld [vmem:[%s3 + $0x330] sm:$0xff]
      %v709 = vld [vmem:[%s3 + $0x338] sm:$0xff]
      %v710 = vld [vmem:[%s3 + $0x340] sm:$0xff]
      %v711 = vld [vmem:[%s3 + $0x348] sm:$0xff]
      %v712 = vld [vmem:[%s3 + $0x350] sm:$0xff]
      %v713 = vld [vmem:[%s3 + $0x358] sm:$0xff]
      %v714 = vld [vmem:[%s3 + $0x360] sm:$0xff]
      %v715 = vld [vmem:[%s3 + $0x368] sm:$0xff]
      %v716 = vld [vmem:[%s3 + $0x370] sm:$0xff]
      %v717 = vld [vmem:[%s3 + $0x378] sm:$0xff]
      %v718 = vld [vmem:[%s3 + $0x380] sm:$0xff]
      %v719 = vld [vmem:[%s3 + $0x388] sm:$0xff]
      %v720 = vld [vmem:[%s3 + $0x390] sm:$0xff]
      %v721 = vld [vmem:[%s3 + $0x398] sm:$0xff]
      %v722 = vld [vmem:[%s3 + $0x3a0] sm:$0xff]
      %v723 = vld [vmem:[%s3 + $0x3a8] sm:$0xff]
      %v724 = vld [vmem:[%s3 + $0x3b0] sm:$0xff]
      %v725 = vld [vmem:[%s3 + $0x3b8] sm:$0xff]
      %v726 = vld [vmem:[%s3 + $0x3c0] sm:$0xff]
      %v727 = vld [vmem:[%s3 + $0x3c8] sm:$0xff]
      %v728 = vld [vmem:[%s3 + $0x3d0] sm:$0xff]
      %v729 = vld [vmem:[%s3 + $0x3d8] sm:$0xff]
      %v730 = vld [vmem:[%s3 + $0x3e0] sm:$0xff]
      %v731 = vld [vmem:[%s3 + $0x3e8] sm:$0xff]
      %v732 = vld [vmem:[%s3 + $0x3f0] sm:$0xff]
      %v733 = vld [vmem:[%s3 + $0x3f8] sm:$0xff]
      %v734 = vld [vmem:[%s3 + $0x400] sm:$0xff]
      %v735 = vld [vmem:[%s3 + $0x408] sm:$0xff]
      %v736 = vld [vmem:[%s3 + $0x410] sm:$0xff]
      %v737 = vld [vmem:[%s3 + $0x418] sm:$0xff]
      %v738 = vld [vmem:[%s3 + $0x420] sm:$0xff]
      %v739 = vld [vmem:[%s3 + $0x428] sm:$0xff]
      %v740 = vld [vmem:[%s3 + $0x430] sm:$0xff]
      %v741 = vld [vmem:[%s3 + $0x438] sm:$0xff]
      %v742 = vld [vmem:[%s3 + $0x440] sm:$0xff]
      %v743 = vld [vmem:[%s3 + $0x448] sm:$0xff]
      %v744 = vld [vmem:[%s3 + $0x450] sm:$0xff]
      %v745 = vld [vmem:[%s3 + $0x458] sm:$0xff]
      %v746 = vld [vmem:[%s3 + $0x460] sm:$0xff]
      %v747 = vld [vmem:[%s3 + $0x468] sm:$0xff]
      %v748 = vld [vmem:[%s3 + $0x470] sm:$0xff]
      %v749 = vld [vmem:[%s3 + $0x478] sm:$0xff]
      %v750 = vld [vmem:[%s3 + $0x480] sm:$0xff]
      %v751 = vld [vmem:[%s3 + $0x488] sm:$0xff]
      %v752 = vld [vmem:[%s3 + $0x490] sm:$0xff]
      %v753 = vld [vmem:[%s3 + $0x498] sm:$0xff]
      %v754 = vld [vmem:[%s3 + $0x4a0] sm:$0xff]
      %v755 = vld [vmem:[%s3 + $0x4a8] sm:$0xff]
      %v756 = vld [vmem:[%s3 + $0x4b0] sm:$0xff]
      %v757 = vld [vmem:[%s3 + $0x4b8] sm:$0xff]
      %v758 = vld [vmem:[%s3 + $0x4c0] sm:$0xff]
      %v759 = vld [vmem:[%s3 + $0x4c8] sm:$0xff]
      %v760 = vld [vmem:[%s3 + $0x4d0] sm:$0xff]
      %v761 = vld [vmem:[%s3 + $0x4d8] sm:$0xff]
      %v762 = vld [vmem:[%s3 + $0x4e0] sm:$0xff]
      %v763 = vld [vmem:[%s3 + $0x4e8] sm:$0xff]
      %v764 = vld [vmem:[%s3 + $0x4f0] sm:$0xff]
      %v765 = vld [vmem:[%s3 + $0x4f8] sm:$0xff]
      %v766 = vld [vmem:[%s3 + $0x500] sm:$0xff]
      %v767 = vld [vmem:[%s3 + $0x508] sm:$0xff]
      %v768 = vld [vmem:[%s3 + $0x510] sm:$0xff]
      %v769 = vld [vmem:[%s3 + $0x518] sm:$0xff]
      %v770 = vld [vmem:[%s3 + $0x520] sm:$0xff]
      %v771 = vld [vmem:[%s3 + $0x528] sm:$0xff]
      %v772 = vld [vmem:[%s3 + $0x530] sm:$0xff]
      %v773 = vld [vmem:[%s3 + $0x538] sm:$0xff]
      %v774 = vld [vmem:[%s3 + $0x540] sm:$0xff]
      %v775 = vld [vmem:[%s3 + $0x548] sm:$0xff]
      %v776 = vld [vmem:[%s3 + $0x550] sm:$0xff]
      %v777 = vld [vmem:[%s3 + $0x558] sm:$0xff]
      %v778 = vld [vmem:[%s3 + $0x560] sm:$0xff]
      %v779 = vld [vmem:[%s3 + $0x568] sm:$0xff]
      %v780 = vld [vmem:[%s3 + $0x570] sm:$0xff]
      %v781 = vld [vmem:[%s3 + $0x578] sm:$0xff]
      %v782 = vld [vmem:[%s3 + $0x580] sm:$0xff]
      %v783 = vld [vmem:[%s3 + $0x588] sm:$0xff]
      %v784 = vld [vmem:[%s3 + $0x590] sm:$0xff]
      %v785 = vld [vmem:[%s3 + $0x598] sm:$0xff]
      %v786 = vld [vmem:[%s3 + $0x5a0] sm:$0xff]
      %v787 = vld [vmem:[%s3 + $0x5a8] sm:$0xff]
      %v788 = vld [vmem:[%s3 + $0x5b0] sm:$0xff]
      %v789 = vld [vmem:[%s3 + $0x5b8] sm:$0xff]
      %v790 = vld [vmem:[%s3 + $0x5c0] sm:$0xff]
      %v791 = vld [vmem:[%s3 + $0x5c8] sm:$0xff]
      %v792 = vld [vmem:[%s3 + $0x5d0] sm:$0xff]
      %v793 = vld [vmem:[%s3 + $0x5d8] sm:$0xff]
      %v794 = vld [vmem:[%s3 + $0x5e0] sm:$0xff]
      %v795 = vld [vmem:[%s3 + $0x5e8] sm:$0xff]
      %v796 = vld [vmem:[%s3 + $0x5f0] sm:$0xff]
      %v797 = vld [vmem:[%s3 + $0x5f8] sm:$0xff]
      %v798 = vld [vmem:[%s3 + $0x600] sm:$0xff]
      %v799 = vld [vmem:[%s3 + $0x608] sm:$0xff]
      %v800 = vld [vmem:[%s3 + $0x610] sm:$0xff]
      %v801 = vld [vmem:[%s3 + $0x618] sm:$0xff]
      %v802 = vld [vmem:[%s3 + $0x620] sm:$0xff]
      %v803 = vld [vmem:[%s3 + $0x628] sm:$0xff]
      %v804 = vld [vmem:[%s3 + $0x630] sm:$0xff]
      %v805 = vld [vmem:[%s3 + $0x638] sm:$0xff]
      %v806 = vld [vmem:[%s3 + $0x640] sm:$0xff]
      %v807 = vld [vmem:[%s3 + $0x648] sm:$0xff]
      %v808 = vld [vmem:[%s3 + $0x650] sm:$0xff]
      %v809 = vld [vmem:[%s3 + $0x658] sm:$0xff]
      %v810 = vld [vmem:[%s3 + $0x660] sm:$0xff]
      %v811 = vld [vmem:[%s3 + $0x668] sm:$0xff]
      %v812 = vld [vmem:[%s3 + $0x670] sm:$0xff]
      %v813 = vld [vmem:[%s3 + $0x678] sm:$0xff]
      %v814 = vld [vmem:[%s3 + $0x680] sm:$0xff]
      %v815 = vld [vmem:[%s3 + $0x688] sm:$0xff]
      %v816 = vld [vmem:[%s3 + $0x690] sm:$0xff]
      %v817 = vld [vmem:[%s3 + $0x698] sm:$0xff]
      %v818 = vld [vmem:[%s3 + $0x6a0] sm:$0xff]
      %v819 = vld [vmem:[%s3 + $0x6a8] sm:$0xff]
      %v820 = vld [vmem:[%s3 + $0x6b0] sm:$0xff]
      %v821 = vld [vmem:[%s3 + $0x6b8] sm:$0xff]
      %v822 = vld [vmem:[%s3 + $0x6c0] sm:$0xff]
      %v823 = vld [vmem:[%s3 + $0x6c8] sm:$0xff]
      %v824 = vld [vmem:[%s3 + $0x6d0] sm:$0xff]
      %v825 = vld [vmem:[%s3 + $0x6d8] sm:$0xff]
      %v826 = vld [vmem:[%s3 + $0x6e0] sm:$0xff]
      %v827 = vld [vmem:[%s3 + $0x6e8] sm:$0xff]
      %v828 = vld [vmem:[%s3 + $0x6f0] sm:$0xff]
      %v829 = vld [vmem:[%s3 + $0x6f8] sm:$0xff]
      %v830 = vld [vmem:[%s3 + $0x700] sm:$0xff]
      %v831 = vld [vmem:[%s3 + $0x708] sm:$0xff]
      %v832 = vld [vmem:[%s3 + $0x710] sm:$0xff]
      %v833 = vld [vmem:[%s3 + $0x718] sm:$0xff]
      %v834 = vld [vmem:[%s3 + $0x720] sm:$0xff]
      %v835 = vld [vmem:[%s3 + $0x728] sm:$0xff]
      %v836 = vld [vmem:[%s3 + $0x730] sm:$0xff]
      %v837 = vld [vmem:[%s3 + $0x738] sm:$0xff]
      %v838 = vld [vmem:[%s3 + $0x740] sm:$0xff]
      %v839 = vld [vmem:[%s3 + $0x748] sm:$0xff]
      %v840 = vld [vmem:[%s3 + $0x750] sm:$0xff]
      %v841 = vld [vmem:[%s3 + $0x758] sm:$0xff]
      %v842 = vld [vmem:[%s3 + $0x760] sm:$0xff]
      %v843 = vld [vmem:[%s3 + $0x768] sm:$0xff]
      %v844 = vld [vmem:[%s3 + $0x770] sm:$0xff]
      %v845 = vld [vmem:[%s3 + $0x778] sm:$0xff]
      %v846 = vld [vmem:[%s3 + $0x780] sm:$0xff]
      %v847 = vld [vmem:[%s3 + $0x788] sm:$0xff]
      %v848 = vld [vmem:[%s3 + $0x790] sm:$0xff]
      %v849 = vld [vmem:[%s3 + $0x798] sm:$0xff]
      %v850 = vld [vmem:[%s3 + $0x7a0] sm:$0xff]
      %v851 = vld [vmem:[%s3 + $0x7a8] sm:$0xff]
      %v852 = vld [vmem:[%s3 + $0x7b0] sm:$0xff]
      %v853 = vld [vmem:[%s3 + $0x7b8] sm:$0xff]
      %v854 = vld [vmem:[%s3 + $0x7c0] sm:$0xff]
      %v855 = vld [vmem:[%s3 + $0x7c8] sm:$0xff]
      %v856 = vld [vmem:[%s3 + $0x7d0] sm:$0xff]
      %v857 = vld [vmem:[%s3 + $0x7d8] sm:$0xff]
      %v858 = vld [vmem:[%s3 + $0x7e0] sm:$0xff]
      %v859 = vld [vmem:[%s3 + $0x7e8] sm:$0xff]
      %v860 = vld [vmem:[%s3 + $0x7f0] sm:$0xff]
      %v861 = vld [vmem:[%s3 + $0x7f8] sm:$0xff]
      %v862 = vld [vmem:[%s4] sm:$0xf]
      %v864 = vlaneseq
      %v865 = vshrl.u32 %v864, 7
      %v866 = vsub.s32 0, %v865
      %v867 = vrot.slane %v862, %v866
      %v868 = vlaneseq
      %v869 = vshrl.u32 %v868, 7
      %v870 = vsub.s32 1, %v869
      %v871 = vrot.slane %v862, %v870
      %v872 = vlaneseq
      %v873 = vshrl.u32 %v872, 7
      %v874 = vsub.s32 2, %v873
      %v875 = vrot.slane %v862, %v874
      %v876 = vlaneseq
      %v877 = vshrl.u32 %v876, 7
      %v878 = vsub.s32 3, %v877
      %v879 = vrot.slane %v862, %v878
      %v948 = vunpack.c.l.b16 %v510
      %v949 = vunpack.c.h.b16 %v510
      %v950 = vunpack.c.l.b16 %v511
      %v951 = vunpack.c.h.b16 %v511
      %v952 = vunpack.c.l.b16 %v512
      %v953 = vunpack.c.h.b16 %v512
      %v954 = vunpack.c.l.b16 %v513
      %v955 = vunpack.c.h.b16 %v513
      %v956 = vunpack.c.l.b16 %v514
      %v957 = vunpack.c.h.b16 %v514
      %v958 = vunpack.c.l.b16 %v515
      %v959 = vunpack.c.h.b16 %v515
      %v960 = vunpack.c.l.b16 %v516
      %v961 = vunpack.c.h.b16 %v516
      %v962 = vunpack.c.l.b16 %v517
      %v963 = vunpack.c.h.b16 %v517
      %v964 = vunpack.c.l.b16 %v518
      %v965 = vunpack.c.h.b16 %v518
      %v966 = vunpack.c.l.b16 %v519
      %v967 = vunpack.c.h.b16 %v519
      %v968 = vunpack.c.l.b16 %v520
      %v969 = vunpack.c.h.b16 %v520
      %v970 = vunpack.c.l.b16 %v521
      %v971 = vunpack.c.h.b16 %v521
      %v972 = vunpack.c.l.b16 %v522
      %v973 = vunpack.c.h.b16 %v522
      %v974 = vunpack.c.l.b16 %v523
      %v975 = vunpack.c.h.b16 %v523
      %v976 = vunpack.c.l.b16 %v524
      %v977 = vunpack.c.h.b16 %v524
      %v978 = vunpack.c.l.b16 %v525
      %v979 = vunpack.c.h.b16 %v525
      %v980 = vunpack.c.l.b16 %v526
      %v981 = vunpack.c.h.b16 %v526
      %v982 = vunpack.c.l.b16 %v527
      %v983 = vunpack.c.h.b16 %v527
      %v984 = vunpack.c.l.b16 %v528
      %v985 = vunpack.c.h.b16 %v528
      %v986 = vunpack.c.l.b16 %v529
      %v987 = vunpack.c.h.b16 %v529
      %v988 = vunpack.c.l.b16 %v530
      %v989 = vunpack.c.h.b16 %v530
      %v990 = vunpack.c.l.b16 %v531
      %v991 = vunpack.c.h.b16 %v531
      %v992 = vunpack.c.l.b16 %v532
      %v993 = vunpack.c.h.b16 %v532
      %v994 = vunpack.c.l.b16 %v533
      %v995 = vunpack.c.h.b16 %v533
      %v996 = vunpack.c.l.b16 %v534
      %v997 = vunpack.c.h.b16 %v534
      %v998 = vunpack.c.l.b16 %v535
      %v999 = vunpack.c.h.b16 %v535
      %v1000 = vunpack.c.l.b16 %v536
      %v1001 = vunpack.c.h.b16 %v536
      %v1002 = vunpack.c.l.b16 %v537
      %v1003 = vunpack.c.h.b16 %v537
      %v1004 = vunpack.c.l.b16 %v538
      %v1005 = vunpack.c.h.b16 %v538
      %v1006 = vunpack.c.l.b16 %v539
      %v1007 = vunpack.c.h.b16 %v539
      %v1008 = vunpack.c.l.b16 %v540
      %v1009 = vunpack.c.h.b16 %v540
      %v1010 = vunpack.c.l.b16 %v541
      %v1011 = vunpack.c.h.b16 %v541
      %v1012 = vunpack.c.l.b16 %v542
      %v1013 = vunpack.c.h.b16 %v542
      %v1014 = vunpack.c.l.b16 %v543
      %v1015 = vunpack.c.h.b16 %v543
      %v1016 = vunpack.c.l.b16 %v544
      %v1017 = vunpack.c.h.b16 %v544
      %v1018 = vunpack.c.l.b16 %v545
      %v1019 = vunpack.c.h.b16 %v545
      %v1020 = vunpack.c.l.b16 %v546
      %v1021 = vunpack.c.h.b16 %v546
      %v1022 = vunpack.c.l.b16 %v547
      %v1023 = vunpack.c.h.b16 %v547
      %v1024 = vunpack.c.l.b16 %v548
      %v1025 = vunpack.c.h.b16 %v548
      %v1026 = vunpack.c.l.b16 %v549
      %v1027 = vunpack.c.h.b16 %v549
      %v1028 = vunpack.c.l.b16 %v550
      %v1029 = vunpack.c.h.b16 %v550
      %v1030 = vunpack.c.l.b16 %v551
      %v1031 = vunpack.c.h.b16 %v551
      %v1032 = vunpack.c.l.b16 %v552
      %v1033 = vunpack.c.h.b16 %v552
      %v1034 = vunpack.c.l.b16 %v553
      %v1035 = vunpack.c.h.b16 %v553
      %v1036 = vunpack.c.l.b16 %v554
      %v1037 = vunpack.c.h.b16 %v554
      %v1038 = vunpack.c.l.b16 %v555
      %v1039 = vunpack.c.h.b16 %v555
      %v1040 = vunpack.c.l.b16 %v556
      %v1041 = vunpack.c.h.b16 %v556
      %v1042 = vunpack.c.l.b16 %v557
      %v1043 = vunpack.c.h.b16 %v557
      %v1044 = vunpack.c.l.b16 %v558
      %v1045 = vunpack.c.h.b16 %v558
      %v1046 = vunpack.c.l.b16 %v559
      %v1047 = vunpack.c.h.b16 %v559
      %v1048 = vunpack.c.l.b16 %v560
      %v1049 = vunpack.c.h.b16 %v560
      %v1050 = vunpack.c.l.b16 %v561
      %v1051 = vunpack.c.h.b16 %v561
      %v1052 = vunpack.c.l.b16 %v562
      %v1053 = vunpack.c.h.b16 %v562
      %v1054 = vunpack.c.l.b16 %v563
      %v1055 = vunpack.c.h.b16 %v563
      %v1056 = vunpack.c.l.b16 %v564
      %v1057 = vunpack.c.h.b16 %v564
      %v1058 = vunpack.c.l.b16 %v565
      %v1059 = vunpack.c.h.b16 %v565
      %v1060 = vunpack.c.l.b16 %v566
      %v1061 = vunpack.c.h.b16 %v566
      %v1062 = vunpack.c.l.b16 %v567
      %v1063 = vunpack.c.h.b16 %v567
      %v1064 = vunpack.c.l.b16 %v568
      %v1065 = vunpack.c.h.b16 %v568
      %v1066 = vunpack.c.l.b16 %v569
      %v1067 = vunpack.c.h.b16 %v569
      %v1068 = vunpack.c.l.b16 %v570
      %v1069 = vunpack.c.h.b16 %v570
      %v1070 = vunpack.c.l.b16 %v571
      %v1071 = vunpack.c.h.b16 %v571
      %v1072 = vunpack.c.l.b16 %v572
      %v1073 = vunpack.c.h.b16 %v572
      %v1074 = vunpack.c.l.b16 %v573
      %v1075 = vunpack.c.h.b16 %v573
      %v1076 = vpack.c.b16 %v956, %v948
      %v1077 = vpack.c.b16 %v957, %v949
      %v1078 = vpack.c.b16 %v958, %v950
      %v1079 = vpack.c.b16 %v959, %v951
      %v1080 = vpack.c.b16 %v960, %v952
      %v1081 = vpack.c.b16 %v961, %v953
      %v1082 = vpack.c.b16 %v962, %v954
      %v1083 = vpack.c.b16 %v963, %v955
      %v1084 = vpack.c.b16 %v972, %v964
      %v1085 = vpack.c.b16 %v973, %v965
      %v1086 = vpack.c.b16 %v974, %v966
      %v1087 = vpack.c.b16 %v975, %v967
      %v1088 = vpack.c.b16 %v976, %v968
      %v1089 = vpack.c.b16 %v977, %v969
      %v1090 = vpack.c.b16 %v978, %v970
      %v1091 = vpack.c.b16 %v979, %v971
      %v1092 = vpack.c.b16 %v988, %v980
      %v1093 = vpack.c.b16 %v989, %v981
      %v1094 = vpack.c.b16 %v990, %v982
      %v1095 = vpack.c.b16 %v991, %v983
      %v1096 = vpack.c.b16 %v992, %v984
      %v1097 = vpack.c.b16 %v993, %v985
      %v1098 = vpack.c.b16 %v994, %v986
      %v1099 = vpack.c.b16 %v995, %v987
      %v1100 = vpack.c.b16 %v1004, %v996
      %v1101 = vpack.c.b16 %v1005, %v997
      %v1102 = vpack.c.b16 %v1006, %v998
      %v1103 = vpack.c.b16 %v1007, %v999
      %v1104 = vpack.c.b16 %v1008, %v1000
      %v1105 = vpack.c.b16 %v1009, %v1001
      %v1106 = vpack.c.b16 %v1010, %v1002
      %v1107 = vpack.c.b16 %v1011, %v1003
      %v1108 = vpack.c.b16 %v1020, %v1012
      %v1109 = vpack.c.b16 %v1021, %v1013
      %v1110 = vpack.c.b16 %v1022, %v1014
      %v1111 = vpack.c.b16 %v1023, %v1015
      %v1112 = vpack.c.b16 %v1024, %v1016
      %v1113 = vpack.c.b16 %v1025, %v1017
      %v1114 = vpack.c.b16 %v1026, %v1018
      %v1115 = vpack.c.b16 %v1027, %v1019
      %v1116 = vpack.c.b16 %v1036, %v1028
      %v1117 = vpack.c.b16 %v1037, %v1029
      %v1118 = vpack.c.b16 %v1038, %v1030
      %v1119 = vpack.c.b16 %v1039, %v1031
      %v1120 = vpack.c.b16 %v1040, %v1032
      %v1121 = vpack.c.b16 %v1041, %v1033
      %v1122 = vpack.c.b16 %v1042, %v1034
      %v1123 = vpack.c.b16 %v1043, %v1035
      %v1124 = vpack.c.b16 %v1052, %v1044
      %v1125 = vpack.c.b16 %v1053, %v1045
      %v1126 = vpack.c.b16 %v1054, %v1046
      %v1127 = vpack.c.b16 %v1055, %v1047
      %v1128 = vpack.c.b16 %v1056, %v1048
      %v1129 = vpack.c.b16 %v1057, %v1049
      %v1130 = vpack.c.b16 %v1058, %v1050
      %v1131 = vpack.c.b16 %v1059, %v1051
      %v1132 = vpack.c.b16 %v1068, %v1060
      %v1133 = vpack.c.b16 %v1069, %v1061
      %v1134 = vpack.c.b16 %v1070, %v1062
      %v1135 = vpack.c.b16 %v1071, %v1063
      %v1136 = vpack.c.b16 %v1072, %v1064
      %v1137 = vpack.c.b16 %v1073, %v1065
      %v1138 = vpack.c.b16 %v1074, %v1066
      %v1139 = vpack.c.b16 %v1075, %v1067
      %v1460 = vunpack.c.l.b16 %v606
      %v1461 = vunpack.c.h.b16 %v606
      %v1462 = vunpack.c.l.b16 %v607
      %v1463 = vunpack.c.h.b16 %v607
      %v1464 = vunpack.c.l.b16 %v608
      %v1465 = vunpack.c.h.b16 %v608
      %v1466 = vunpack.c.l.b16 %v609
      %v1467 = vunpack.c.h.b16 %v609
      %v1468 = vunpack.c.l.b16 %v610
      %v1469 = vunpack.c.h.b16 %v610
      %v1470 = vunpack.c.l.b16 %v611
      %v1471 = vunpack.c.h.b16 %v611
      %v1472 = vunpack.c.l.b16 %v612
      %v1473 = vunpack.c.h.b16 %v612
      %v1474 = vunpack.c.l.b16 %v613
      %v1475 = vunpack.c.h.b16 %v613
      %v1476 = vunpack.c.l.b16 %v614
      %v1477 = vunpack.c.h.b16 %v614
      %v1478 = vunpack.c.l.b16 %v615
      %v1479 = vunpack.c.h.b16 %v615
      %v1480 = vunpack.c.l.b16 %v616
      %v1481 = vunpack.c.h.b16 %v616
      %v1482 = vunpack.c.l.b16 %v617
      %v1483 = vunpack.c.h.b16 %v617
      %v1484 = vunpack.c.l.b16 %v618
      %v1485 = vunpack.c.h.b16 %v618
      %v1486 = vunpack.c.l.b16 %v619
      %v1487 = vunpack.c.h.b16 %v619
      %v1488 = vunpack.c.l.b16 %v620
      %v1489 = vunpack.c.h.b16 %v620
      %v1490 = vunpack.c.l.b16 %v621
      %v1491 = vunpack.c.h.b16 %v621
      %v1492 = vunpack.c.l.b16 %v622
      %v1493 = vunpack.c.h.b16 %v622
      %v1494 = vunpack.c.l.b16 %v623
      %v1495 = vunpack.c.h.b16 %v623
      %v1496 = vunpack.c.l.b16 %v624
      %v1497 = vunpack.c.h.b16 %v624
      %v1498 = vunpack.c.l.b16 %v625
      %v1499 = vunpack.c.h.b16 %v625
      %v1500 = vunpack.c.l.b16 %v626
      %v1501 = vunpack.c.h.b16 %v626
      %v1502 = vunpack.c.l.b16 %v627
      %v1503 = vunpack.c.h.b16 %v627
      %v1504 = vunpack.c.l.b16 %v628
      %v1505 = vunpack.c.h.b16 %v628
      %v1506 = vunpack.c.l.b16 %v629
      %v1507 = vunpack.c.h.b16 %v629
      %v1508 = vunpack.c.l.b16 %v630
      %v1509 = vunpack.c.h.b16 %v630
      %v1510 = vunpack.c.l.b16 %v631
      %v1511 = vunpack.c.h.b16 %v631
      %v1512 = vunpack.c.l.b16 %v632
      %v1513 = vunpack.c.h.b16 %v632
      %v1514 = vunpack.c.l.b16 %v633
      %v1515 = vunpack.c.h.b16 %v633
      %v1516 = vunpack.c.l.b16 %v634
      %v1517 = vunpack.c.h.b16 %v634
      %v1518 = vunpack.c.l.b16 %v635
      %v1519 = vunpack.c.h.b16 %v635
      %v1520 = vunpack.c.l.b16 %v636
      %v1521 = vunpack.c.h.b16 %v636
      %v1522 = vunpack.c.l.b16 %v637
      %v1523 = vunpack.c.h.b16 %v637
      %v1524 = vunpack.c.l.b16 %v638
      %v1525 = vunpack.c.h.b16 %v638
      %v1526 = vunpack.c.l.b16 %v639
      %v1527 = vunpack.c.h.b16 %v639
      %v1528 = vunpack.c.l.b16 %v640
      %v1529 = vunpack.c.h.b16 %v640
      %v1530 = vunpack.c.l.b16 %v641
      %v1531 = vunpack.c.h.b16 %v641
      %v1532 = vunpack.c.l.b16 %v642
      %v1533 = vunpack.c.h.b16 %v642
      %v1534 = vunpack.c.l.b16 %v643
      %v1535 = vunpack.c.h.b16 %v643
      %v1536 = vunpack.c.l.b16 %v644
      %v1537 = vunpack.c.h.b16 %v644
      %v1538 = vunpack.c.l.b16 %v645
      %v1539 = vunpack.c.h.b16 %v645
      %v1540 = vunpack.c.l.b16 %v646
      %v1541 = vunpack.c.h.b16 %v646
      %v1542 = vunpack.c.l.b16 %v647
      %v1543 = vunpack.c.h.b16 %v647
      %v1544 = vunpack.c.l.b16 %v648
      %v1545 = vunpack.c.h.b16 %v648
      %v1546 = vunpack.c.l.b16 %v649
      %v1547 = vunpack.c.h.b16 %v649
      %v1548 = vunpack.c.l.b16 %v650
      %v1549 = vunpack.c.h.b16 %v650
      %v1550 = vunpack.c.l.b16 %v651
      %v1551 = vunpack.c.h.b16 %v651
      %v1552 = vunpack.c.l.b16 %v652
      %v1553 = vunpack.c.h.b16 %v652
      %v1554 = vunpack.c.l.b16 %v653
      %v1555 = vunpack.c.h.b16 %v653
      %v1556 = vunpack.c.l.b16 %v654
      %v1557 = vunpack.c.h.b16 %v654
      %v1558 = vunpack.c.l.b16 %v655
      %v1559 = vunpack.c.h.b16 %v655
      %v1560 = vunpack.c.l.b16 %v656
      %v1561 = vunpack.c.h.b16 %v656
      %v1562 = vunpack.c.l.b16 %v657
      %v1563 = vunpack.c.h.b16 %v657
      %v1564 = vunpack.c.l.b16 %v658
      %v1565 = vunpack.c.h.b16 %v658
      %v1566 = vunpack.c.l.b16 %v659
      %v1567 = vunpack.c.h.b16 %v659
      %v1568 = vunpack.c.l.b16 %v660
      %v1569 = vunpack.c.h.b16 %v660
      %v1570 = vunpack.c.l.b16 %v661
      %v1571 = vunpack.c.h.b16 %v661
      %v1572 = vunpack.c.l.b16 %v662
      %v1573 = vunpack.c.h.b16 %v662
      %v1574 = vunpack.c.l.b16 %v663
      %v1575 = vunpack.c.h.b16 %v663
      %v1576 = vunpack.c.l.b16 %v664
      %v1577 = vunpack.c.h.b16 %v664
      %v1578 = vunpack.c.l.b16 %v665
      %v1579 = vunpack.c.h.b16 %v665
      %v1580 = vunpack.c.l.b16 %v666
      %v1581 = vunpack.c.h.b16 %v666
      %v1582 = vunpack.c.l.b16 %v667
      %v1583 = vunpack.c.h.b16 %v667
      %v1584 = vunpack.c.l.b16 %v668
      %v1585 = vunpack.c.h.b16 %v668
      %v1586 = vunpack.c.l.b16 %v669
      %v1587 = vunpack.c.h.b16 %v669
      %v1588 = vunpack.c.l.b16 %v670
      %v1589 = vunpack.c.h.b16 %v670
      %v1590 = vunpack.c.l.b16 %v671
      %v1591 = vunpack.c.h.b16 %v671
      %v1592 = vunpack.c.l.b16 %v672
      %v1593 = vunpack.c.h.b16 %v672
      %v1594 = vunpack.c.l.b16 %v673
      %v1595 = vunpack.c.h.b16 %v673
      %v1596 = vunpack.c.l.b16 %v674
      %v1597 = vunpack.c.h.b16 %v674
      %v1598 = vunpack.c.l.b16 %v675
      %v1599 = vunpack.c.h.b16 %v675
      %v1600 = vunpack.c.l.b16 %v676
      %v1601 = vunpack.c.h.b16 %v676
      %v1602 = vunpack.c.l.b16 %v677
      %v1603 = vunpack.c.h.b16 %v677
      %v1604 = vunpack.c.l.b16 %v678
      %v1605 = vunpack.c.h.b16 %v678
      %v1606 = vunpack.c.l.b16 %v679
      %v1607 = vunpack.c.h.b16 %v679
      %v1608 = vunpack.c.l.b16 %v680
      %v1609 = vunpack.c.h.b16 %v680
      %v1610 = vunpack.c.l.b16 %v681
      %v1611 = vunpack.c.h.b16 %v681
      %v1612 = vunpack.c.l.b16 %v682
      %v1613 = vunpack.c.h.b16 %v682
      %v1614 = vunpack.c.l.b16 %v683
      %v1615 = vunpack.c.h.b16 %v683
      %v1616 = vunpack.c.l.b16 %v684
      %v1617 = vunpack.c.h.b16 %v684
      %v1618 = vunpack.c.l.b16 %v685
      %v1619 = vunpack.c.h.b16 %v685
      %v1620 = vunpack.c.l.b16 %v686
      %v1621 = vunpack.c.h.b16 %v686
      %v1622 = vunpack.c.l.b16 %v687
      %v1623 = vunpack.c.h.b16 %v687
      %v1624 = vunpack.c.l.b16 %v688
      %v1625 = vunpack.c.h.b16 %v688
      %v1626 = vunpack.c.l.b16 %v689
      %v1627 = vunpack.c.h.b16 %v689
      %v1628 = vunpack.c.l.b16 %v690
      %v1629 = vunpack.c.h.b16 %v690
      %v1630 = vunpack.c.l.b16 %v691
      %v1631 = vunpack.c.h.b16 %v691
      %v1632 = vunpack.c.l.b16 %v692
      %v1633 = vunpack.c.h.b16 %v692
      %v1634 = vunpack.c.l.b16 %v693
      %v1635 = vunpack.c.h.b16 %v693
      %v1636 = vunpack.c.l.b16 %v694
      %v1637 = vunpack.c.h.b16 %v694
      %v1638 = vunpack.c.l.b16 %v695
      %v1639 = vunpack.c.h.b16 %v695
      %v1640 = vunpack.c.l.b16 %v696
      %v1641 = vunpack.c.h.b16 %v696
      %v1642 = vunpack.c.l.b16 %v697
      %v1643 = vunpack.c.h.b16 %v697
      %v1644 = vunpack.c.l.b16 %v698
      %v1645 = vunpack.c.h.b16 %v698
      %v1646 = vunpack.c.l.b16 %v699
      %v1647 = vunpack.c.h.b16 %v699
      %v1648 = vunpack.c.l.b16 %v700
      %v1649 = vunpack.c.h.b16 %v700
      %v1650 = vunpack.c.l.b16 %v701
      %v1651 = vunpack.c.h.b16 %v701
      %v1652 = vunpack.c.l.b16 %v702
      %v1653 = vunpack.c.h.b16 %v702
      %v1654 = vunpack.c.l.b16 %v703
      %v1655 = vunpack.c.h.b16 %v703
      %v1656 = vunpack.c.l.b16 %v704
      %v1657 = vunpack.c.h.b16 %v704
      %v1658 = vunpack.c.l.b16 %v705
      %v1659 = vunpack.c.h.b16 %v705
      %v1660 = vunpack.c.l.b16 %v706
      %v1661 = vunpack.c.h.b16 %v706
      %v1662 = vunpack.c.l.b16 %v707
      %v1663 = vunpack.c.h.b16 %v707
      %v1664 = vunpack.c.l.b16 %v708
      %v1665 = vunpack.c.h.b16 %v708
      %v1666 = vunpack.c.l.b16 %v709
      %v1667 = vunpack.c.h.b16 %v709
      %v1668 = vunpack.c.l.b16 %v710
      %v1669 = vunpack.c.h.b16 %v710
      %v1670 = vunpack.c.l.b16 %v711
      %v1671 = vunpack.c.h.b16 %v711
      %v1672 = vunpack.c.l.b16 %v712
      %v1673 = vunpack.c.h.b16 %v712
      %v1674 = vunpack.c.l.b16 %v713
      %v1675 = vunpack.c.h.b16 %v713
      %v1676 = vunpack.c.l.b16 %v714
      %v1677 = vunpack.c.h.b16 %v714
      %v1678 = vunpack.c.l.b16 %v715
      %v1679 = vunpack.c.h.b16 %v715
      %v1680 = vunpack.c.l.b16 %v716
      %v1681 = vunpack.c.h.b16 %v716
      %v1682 = vunpack.c.l.b16 %v717
      %v1683 = vunpack.c.h.b16 %v717
      %v1684 = vunpack.c.l.b16 %v718
      %v1685 = vunpack.c.h.b16 %v718
      %v1686 = vunpack.c.l.b16 %v719
      %v1687 = vunpack.c.h.b16 %v719
      %v1688 = vunpack.c.l.b16 %v720
      %v1689 = vunpack.c.h.b16 %v720
      %v1690 = vunpack.c.l.b16 %v721
      %v1691 = vunpack.c.h.b16 %v721
      %v1692 = vunpack.c.l.b16 %v722
      %v1693 = vunpack.c.h.b16 %v722
      %v1694 = vunpack.c.l.b16 %v723
      %v1695 = vunpack.c.h.b16 %v723
      %v1696 = vunpack.c.l.b16 %v724
      %v1697 = vunpack.c.h.b16 %v724
      %v1698 = vunpack.c.l.b16 %v725
      %v1699 = vunpack.c.h.b16 %v725
      %v1700 = vunpack.c.l.b16 %v726
      %v1701 = vunpack.c.h.b16 %v726
      %v1702 = vunpack.c.l.b16 %v727
      %v1703 = vunpack.c.h.b16 %v727
      %v1704 = vunpack.c.l.b16 %v728
      %v1705 = vunpack.c.h.b16 %v728
      %v1706 = vunpack.c.l.b16 %v729
      %v1707 = vunpack.c.h.b16 %v729
      %v1708 = vunpack.c.l.b16 %v730
      %v1709 = vunpack.c.h.b16 %v730
      %v1710 = vunpack.c.l.b16 %v731
      %v1711 = vunpack.c.h.b16 %v731
      %v1712 = vunpack.c.l.b16 %v732
      %v1713 = vunpack.c.h.b16 %v732
      %v1714 = vunpack.c.l.b16 %v733
      %v1715 = vunpack.c.h.b16 %v733
      %v1716 = vunpack.c.l.b16 %v734
      %v1717 = vunpack.c.h.b16 %v734
      %v1718 = vunpack.c.l.b16 %v735
      %v1719 = vunpack.c.h.b16 %v735
      %v1720 = vunpack.c.l.b16 %v736
      %v1721 = vunpack.c.h.b16 %v736
      %v1722 = vunpack.c.l.b16 %v737
      %v1723 = vunpack.c.h.b16 %v737
      %v1724 = vunpack.c.l.b16 %v738
      %v1725 = vunpack.c.h.b16 %v738
      %v1726 = vunpack.c.l.b16 %v739
      %v1727 = vunpack.c.h.b16 %v739
      %v1728 = vunpack.c.l.b16 %v740
      %v1729 = vunpack.c.h.b16 %v740
      %v1730 = vunpack.c.l.b16 %v741
      %v1731 = vunpack.c.h.b16 %v741
      %v1732 = vunpack.c.l.b16 %v742
      %v1733 = vunpack.c.h.b16 %v742
      %v1734 = vunpack.c.l.b16 %v743
      %v1735 = vunpack.c.h.b16 %v743
      %v1736 = vunpack.c.l.b16 %v744
      %v1737 = vunpack.c.h.b16 %v744
      %v1738 = vunpack.c.l.b16 %v745
      %v1739 = vunpack.c.h.b16 %v745
      %v1740 = vunpack.c.l.b16 %v746
      %v1741 = vunpack.c.h.b16 %v746
      %v1742 = vunpack.c.l.b16 %v747
      %v1743 = vunpack.c.h.b16 %v747
      %v1744 = vunpack.c.l.b16 %v748
      %v1745 = vunpack.c.h.b16 %v748
      %v1746 = vunpack.c.l.b16 %v749
      %v1747 = vunpack.c.h.b16 %v749
      %v1748 = vunpack.c.l.b16 %v750
      %v1749 = vunpack.c.h.b16 %v750
      %v1750 = vunpack.c.l.b16 %v751
      %v1751 = vunpack.c.h.b16 %v751
      %v1752 = vunpack.c.l.b16 %v752
      %v1753 = vunpack.c.h.b16 %v752
      %v1754 = vunpack.c.l.b16 %v753
      %v1755 = vunpack.c.h.b16 %v753
      %v1756 = vunpack.c.l.b16 %v754
      %v1757 = vunpack.c.h.b16 %v754
      %v1758 = vunpack.c.l.b16 %v755
      %v1759 = vunpack.c.h.b16 %v755
      %v1760 = vunpack.c.l.b16 %v756
      %v1761 = vunpack.c.h.b16 %v756
      %v1762 = vunpack.c.l.b16 %v757
      %v1763 = vunpack.c.h.b16 %v757
      %v1764 = vunpack.c.l.b16 %v758
      %v1765 = vunpack.c.h.b16 %v758
      %v1766 = vunpack.c.l.b16 %v759
      %v1767 = vunpack.c.h.b16 %v759
      %v1768 = vunpack.c.l.b16 %v760
      %v1769 = vunpack.c.h.b16 %v760
      %v1770 = vunpack.c.l.b16 %v761
      %v1771 = vunpack.c.h.b16 %v761
      %v1772 = vunpack.c.l.b16 %v762
      %v1773 = vunpack.c.h.b16 %v762
      %v1774 = vunpack.c.l.b16 %v763
      %v1775 = vunpack.c.h.b16 %v763
      %v1776 = vunpack.c.l.b16 %v764
      %v1777 = vunpack.c.h.b16 %v764
      %v1778 = vunpack.c.l.b16 %v765
      %v1779 = vunpack.c.h.b16 %v765
      %v1780 = vunpack.c.l.b16 %v766
      %v1781 = vunpack.c.h.b16 %v766
      %v1782 = vunpack.c.l.b16 %v767
      %v1783 = vunpack.c.h.b16 %v767
      %v1784 = vunpack.c.l.b16 %v768
      %v1785 = vunpack.c.h.b16 %v768
      %v1786 = vunpack.c.l.b16 %v769
      %v1787 = vunpack.c.h.b16 %v769
      %v1788 = vunpack.c.l.b16 %v770
      %v1789 = vunpack.c.h.b16 %v770
      %v1790 = vunpack.c.l.b16 %v771
      %v1791 = vunpack.c.h.b16 %v771
      %v1792 = vunpack.c.l.b16 %v772
      %v1793 = vunpack.c.h.b16 %v772
      %v1794 = vunpack.c.l.b16 %v773
      %v1795 = vunpack.c.h.b16 %v773
      %v1796 = vunpack.c.l.b16 %v774
      %v1797 = vunpack.c.h.b16 %v774
      %v1798 = vunpack.c.l.b16 %v775
      %v1799 = vunpack.c.h.b16 %v775
      %v1800 = vunpack.c.l.b16 %v776
      %v1801 = vunpack.c.h.b16 %v776
      %v1802 = vunpack.c.l.b16 %v777
      %v1803 = vunpack.c.h.b16 %v777
      %v1804 = vunpack.c.l.b16 %v778
      %v1805 = vunpack.c.h.b16 %v778
      %v1806 = vunpack.c.l.b16 %v779
      %v1807 = vunpack.c.h.b16 %v779
      %v1808 = vunpack.c.l.b16 %v780
      %v1809 = vunpack.c.h.b16 %v780
      %v1810 = vunpack.c.l.b16 %v781
      %v1811 = vunpack.c.h.b16 %v781
      %v1812 = vunpack.c.l.b16 %v782
      %v1813 = vunpack.c.h.b16 %v782
      %v1814 = vunpack.c.l.b16 %v783
      %v1815 = vunpack.c.h.b16 %v783
      %v1816 = vunpack.c.l.b16 %v784
      %v1817 = vunpack.c.h.b16 %v784
      %v1818 = vunpack.c.l.b16 %v785
      %v1819 = vunpack.c.h.b16 %v785
      %v1820 = vunpack.c.l.b16 %v786
      %v1821 = vunpack.c.h.b16 %v786
      %v1822 = vunpack.c.l.b16 %v787
      %v1823 = vunpack.c.h.b16 %v787
      %v1824 = vunpack.c.l.b16 %v788
      %v1825 = vunpack.c.h.b16 %v788
      %v1826 = vunpack.c.l.b16 %v789
      %v1827 = vunpack.c.h.b16 %v789
      %v1828 = vunpack.c.l.b16 %v790
      %v1829 = vunpack.c.h.b16 %v790
      %v1830 = vunpack.c.l.b16 %v791
      %v1831 = vunpack.c.h.b16 %v791
      %v1832 = vunpack.c.l.b16 %v792
      %v1833 = vunpack.c.h.b16 %v792
      %v1834 = vunpack.c.l.b16 %v793
      %v1835 = vunpack.c.h.b16 %v793
      %v1836 = vunpack.c.l.b16 %v794
      %v1837 = vunpack.c.h.b16 %v794
      %v1838 = vunpack.c.l.b16 %v795
      %v1839 = vunpack.c.h.b16 %v795
      %v1840 = vunpack.c.l.b16 %v796
      %v1841 = vunpack.c.h.b16 %v796
      %v1842 = vunpack.c.l.b16 %v797
      %v1843 = vunpack.c.h.b16 %v797
      %v1844 = vunpack.c.l.b16 %v798
      %v1845 = vunpack.c.h.b16 %v798
      %v1846 = vunpack.c.l.b16 %v799
      %v1847 = vunpack.c.h.b16 %v799
      %v1848 = vunpack.c.l.b16 %v800
      %v1849 = vunpack.c.h.b16 %v800
      %v1850 = vunpack.c.l.b16 %v801
      %v1851 = vunpack.c.h.b16 %v801
      %v1852 = vunpack.c.l.b16 %v802
      %v1853 = vunpack.c.h.b16 %v802
      %v1854 = vunpack.c.l.b16 %v803
      %v1855 = vunpack.c.h.b16 %v803
      %v1856 = vunpack.c.l.b16 %v804
      %v1857 = vunpack.c.h.b16 %v804
      %v1858 = vunpack.c.l.b16 %v805
      %v1859 = vunpack.c.h.b16 %v805
      %v1860 = vunpack.c.l.b16 %v806
      %v1861 = vunpack.c.h.b16 %v806
      %v1862 = vunpack.c.l.b16 %v807
      %v1863 = vunpack.c.h.b16 %v807
      %v1864 = vunpack.c.l.b16 %v808
      %v1865 = vunpack.c.h.b16 %v808
      %v1866 = vunpack.c.l.b16 %v809
      %v1867 = vunpack.c.h.b16 %v809
      %v1868 = vunpack.c.l.b16 %v810
      %v1869 = vunpack.c.h.b16 %v810
      %v1870 = vunpack.c.l.b16 %v811
      %v1871 = vunpack.c.h.b16 %v811
      %v1872 = vunpack.c.l.b16 %v812
      %v1873 = vunpack.c.h.b16 %v812
      %v1874 = vunpack.c.l.b16 %v813
      %v1875 = vunpack.c.h.b16 %v813
      %v1876 = vunpack.c.l.b16 %v814
      %v1877 = vunpack.c.h.b16 %v814
      %v1878 = vunpack.c.l.b16 %v815
      %v1879 = vunpack.c.h.b16 %v815
      %v1880 = vunpack.c.l.b16 %v816
      %v1881 = vunpack.c.h.b16 %v816
      %v1882 = vunpack.c.l.b16 %v817
      %v1883 = vunpack.c.h.b16 %v817
      %v1884 = vunpack.c.l.b16 %v818
      %v1885 = vunpack.c.h.b16 %v818
      %v1886 = vunpack.c.l.b16 %v819
      %v1887 = vunpack.c.h.b16 %v819
      %v1888 = vunpack.c.l.b16 %v820
      %v1889 = vunpack.c.h.b16 %v820
      %v1890 = vunpack.c.l.b16 %v821
      %v1891 = vunpack.c.h.b16 %v821
      %v1892 = vunpack.c.l.b16 %v822
      %v1893 = vunpack.c.h.b16 %v822
      %v1894 = vunpack.c.l.b16 %v823
      %v1895 = vunpack.c.h.b16 %v823
      %v1896 = vunpack.c.l.b16 %v824
      %v1897 = vunpack.c.h.b16 %v824
      %v1898 = vunpack.c.l.b16 %v825
      %v1899 = vunpack.c.h.b16 %v825
      %v1900 = vunpack.c.l.b16 %v826
      %v1901 = vunpack.c.h.b16 %v826
      %v1902 = vunpack.c.l.b16 %v827
      %v1903 = vunpack.c.h.b16 %v827
      %v1904 = vunpack.c.l.b16 %v828
      %v1905 = vunpack.c.h.b16 %v828
      %v1906 = vunpack.c.l.b16 %v829
      %v1907 = vunpack.c.h.b16 %v829
      %v1908 = vunpack.c.l.b16 %v830
      %v1909 = vunpack.c.h.b16 %v830
      %v1910 = vunpack.c.l.b16 %v831
      %v1911 = vunpack.c.h.b16 %v831
      %v1912 = vunpack.c.l.b16 %v832
      %v1913 = vunpack.c.h.b16 %v832
      %v1914 = vunpack.c.l.b16 %v833
      %v1915 = vunpack.c.h.b16 %v833
      %v1916 = vunpack.c.l.b16 %v834
      %v1917 = vunpack.c.h.b16 %v834
      %v1918 = vunpack.c.l.b16 %v835
      %v1919 = vunpack.c.h.b16 %v835
      %v1920 = vunpack.c.l.b16 %v836
      %v1921 = vunpack.c.h.b16 %v836
      %v1922 = vunpack.c.l.b16 %v837
      %v1923 = vunpack.c.h.b16 %v837
      %v1924 = vunpack.c.l.b16 %v838
      %v1925 = vunpack.c.h.b16 %v838
      %v1926 = vunpack.c.l.b16 %v839
      %v1927 = vunpack.c.h.b16 %v839
      %v1928 = vunpack.c.l.b16 %v840
      %v1929 = vunpack.c.h.b16 %v840
      %v1930 = vunpack.c.l.b16 %v841
      %v1931 = vunpack.c.h.b16 %v841
      %v1932 = vunpack.c.l.b16 %v842
      %v1933 = vunpack.c.h.b16 %v842
      %v1934 = vunpack.c.l.b16 %v843
      %v1935 = vunpack.c.h.b16 %v843
      %v1936 = vunpack.c.l.b16 %v844
      %v1937 = vunpack.c.h.b16 %v844
      %v1938 = vunpack.c.l.b16 %v845
      %v1939 = vunpack.c.h.b16 %v845
      %v1940 = vunpack.c.l.b16 %v846
      %v1941 = vunpack.c.h.b16 %v846
      %v1942 = vunpack.c.l.b16 %v847
      %v1943 = vunpack.c.h.b16 %v847
      %v1944 = vunpack.c.l.b16 %v848
      %v1945 = vunpack.c.h.b16 %v848
      %v1946 = vunpack.c.l.b16 %v849
      %v1947 = vunpack.c.h.b16 %v849
      %v1948 = vunpack.c.l.b16 %v850
      %v1949 = vunpack.c.h.b16 %v850
      %v1950 = vunpack.c.l.b16 %v851
      %v1951 = vunpack.c.h.b16 %v851
      %v1952 = vunpack.c.l.b16 %v852
      %v1953 = vunpack.c.h.b16 %v852
      %v1954 = vunpack.c.l.b16 %v853
      %v1955 = vunpack.c.h.b16 %v853
      %v1956 = vunpack.c.l.b16 %v854
      %v1957 = vunpack.c.h.b16 %v854
      %v1958 = vunpack.c.l.b16 %v855
      %v1959 = vunpack.c.h.b16 %v855
      %v1960 = vunpack.c.l.b16 %v856
      %v1961 = vunpack.c.h.b16 %v856
      %v1962 = vunpack.c.l.b16 %v857
      %v1963 = vunpack.c.h.b16 %v857
      %v1964 = vunpack.c.l.b16 %v858
      %v1965 = vunpack.c.h.b16 %v858
      %v1966 = vunpack.c.l.b16 %v859
      %v1967 = vunpack.c.h.b16 %v859
      %v1968 = vunpack.c.l.b16 %v860
      %v1969 = vunpack.c.h.b16 %v860
      %v1970 = vunpack.c.l.b16 %v861
      %v1971 = vunpack.c.h.b16 %v861
      %v1972 = vpack.c.b16 %v1464, %v1460
      %v1973 = vpack.c.b16 %v1465, %v1461
      %v1974 = vpack.c.b16 %v1466, %v1462
      %v1975 = vpack.c.b16 %v1467, %v1463
      %v1976 = vpack.c.b16 %v1472, %v1468
      %v1977 = vpack.c.b16 %v1473, %v1469
      %v1978 = vpack.c.b16 %v1474, %v1470
      %v1979 = vpack.c.b16 %v1475, %v1471
      %v1980 = vpack.c.b16 %v1480, %v1476
      %v1981 = vpack.c.b16 %v1481, %v1477
      %v1982 = vpack.c.b16 %v1482, %v1478
      %v1983 = vpack.c.b16 %v1483, %v1479
      %v1984 = vpack.c.b16 %v1488, %v1484
      %v1985 = vpack.c.b16 %v1489, %v1485
      %v1986 = vpack.c.b16 %v1490, %v1486
      %v1987 = vpack.c.b16 %v1491, %v1487
      %v1988 = vpack.c.b16 %v1496, %v1492
      %v1989 = vpack.c.b16 %v1497, %v1493
      %v1990 = vpack.c.b16 %v1498, %v1494
      %v1991 = vpack.c.b16 %v1499, %v1495
      %v1992 = vpack.c.b16 %v1504, %v1500
      %v1993 = vpack.c.b16 %v1505, %v1501
      %v1994 = vpack.c.b16 %v1506, %v1502
      %v1995 = vpack.c.b16 %v1507, %v1503
      %v1996 = vpack.c.b16 %v1512, %v1508
      %v1997 = vpack.c.b16 %v1513, %v1509
      %v1998 = vpack.c.b16 %v1514, %v1510
      %v1999 = vpack.c.b16 %v1515, %v1511
      %v2000 = vpack.c.b16 %v1520, %v1516
      %v2001 = vpack.c.b16 %v1521, %v1517
      %v2002 = vpack.c.b16 %v1522, %v1518
      %v2003 = vpack.c.b16 %v1523, %v1519
      %v2004 = vpack.c.b16 %v1528, %v1524
      %v2005 = vpack.c.b16 %v1529, %v1525
      %v2006 = vpack.c.b16 %v1530, %v1526
      %v2007 = vpack.c.b16 %v1531, %v1527
      %v2008 = vpack.c.b16 %v1536, %v1532
      %v2009 = vpack.c.b16 %v1537, %v1533
      %v2010 = vpack.c.b16 %v1538, %v1534
      %v2011 = vpack.c.b16 %v1539, %v1535
      %v2012 = vpack.c.b16 %v1544, %v1540
      %v2013 = vpack.c.b16 %v1545, %v1541
      %v2014 = vpack.c.b16 %v1546, %v1542
      %v2015 = vpack.c.b16 %v1547, %v1543
      %v2016 = vpack.c.b16 %v1552, %v1548
      %v2017 = vpack.c.b16 %v1553, %v1549
      %v2018 = vpack.c.b16 %v1554, %v1550
      %v2019 = vpack.c.b16 %v1555, %v1551
      %v2020 = vpack.c.b16 %v1560, %v1556
      %v2021 = vpack.c.b16 %v1561, %v1557
      %v2022 = vpack.c.b16 %v1562, %v1558
      %v2023 = vpack.c.b16 %v1563, %v1559
      %v2024 = vpack.c.b16 %v1568, %v1564
      %v2025 = vpack.c.b16 %v1569, %v1565
      %v2026 = vpack.c.b16 %v1570, %v1566
      %v2027 = vpack.c.b16 %v1571, %v1567
      %v2028 = vpack.c.b16 %v1576, %v1572
      %v2029 = vpack.c.b16 %v1577, %v1573
      %v2030 = vpack.c.b16 %v1578, %v1574
      %v2031 = vpack.c.b16 %v1579, %v1575
      %v2032 = vpack.c.b16 %v1584, %v1580
      %v2033 = vpack.c.b16 %v1585, %v1581
      %v2034 = vpack.c.b16 %v1586, %v1582
      %v2035 = vpack.c.b16 %v1587, %v1583
      %v2036 = vpack.c.b16 %v1592, %v1588
      %v2037 = vpack.c.b16 %v1593, %v1589
      %v2038 = vpack.c.b16 %v1594, %v1590
      %v2039 = vpack.c.b16 %v1595, %v1591
      %v2040 = vpack.c.b16 %v1600, %v1596
      %v2041 = vpack.c.b16 %v1601, %v1597
      %v2042 = vpack.c.b16 %v1602, %v1598
      %v2043 = vpack.c.b16 %v1603, %v1599
      %v2044 = vpack.c.b16 %v1608, %v1604
      %v2045 = vpack.c.b16 %v1609, %v1605
      %v2046 = vpack.c.b16 %v1610, %v1606
      %v2047 = vpack.c.b16 %v1611, %v1607
      %v2048 = vpack.c.b16 %v1616, %v1612
      %v2049 = vpack.c.b16 %v1617, %v1613
      %v2050 = vpack.c.b16 %v1618, %v1614
      %v2051 = vpack.c.b16 %v1619, %v1615
      %v2052 = vpack.c.b16 %v1624, %v1620
      %v2053 = vpack.c.b16 %v1625, %v1621
      %v2054 = vpack.c.b16 %v1626, %v1622
      %v2055 = vpack.c.b16 %v1627, %v1623
      %v2056 = vpack.c.b16 %v1632, %v1628
      %v2057 = vpack.c.b16 %v1633, %v1629
      %v2058 = vpack.c.b16 %v1634, %v1630
      %v2059 = vpack.c.b16 %v1635, %v1631
      %v2060 = vpack.c.b16 %v1640, %v1636
      %v2061 = vpack.c.b16 %v1641, %v1637
      %v2062 = vpack.c.b16 %v1642, %v1638
      %v2063 = vpack.c.b16 %v1643, %v1639
      %v2064 = vpack.c.b16 %v1648, %v1644
      %v2065 = vpack.c.b16 %v1649, %v1645
      %v2066 = vpack.c.b16 %v1650, %v1646
      %v2067 = vpack.c.b16 %v1651, %v1647
      %v2068 = vpack.c.b16 %v1656, %v1652
      %v2069 = vpack.c.b16 %v1657, %v1653
      %v2070 = vpack.c.b16 %v1658, %v1654
      %v2071 = vpack.c.b16 %v1659, %v1655
      %v2072 = vpack.c.b16 %v1664, %v1660
      %v2073 = vpack.c.b16 %v1665, %v1661
      %v2074 = vpack.c.b16 %v1666, %v1662
      %v2075 = vpack.c.b16 %v1667, %v1663
      %v2076 = vpack.c.b16 %v1672, %v1668
      %v2077 = vpack.c.b16 %v1673, %v1669
      %v2078 = vpack.c.b16 %v1674, %v1670
      %v2079 = vpack.c.b16 %v1675, %v1671
      %v2080 = vpack.c.b16 %v1680, %v1676
      %v2081 = vpack.c.b16 %v1681, %v1677
      %v2082 = vpack.c.b16 %v1682, %v1678
      %v2083 = vpack.c.b16 %v1683, %v1679
      %v2084 = vpack.c.b16 %v1688, %v1684
      %v2085 = vpack.c.b16 %v1689, %v1685
      %v2086 = vpack.c.b16 %v1690, %v1686
      %v2087 = vpack.c.b16 %v1691, %v1687
      %v2088 = vpack.c.b16 %v1696, %v1692
      %v2089 = vpack.c.b16 %v1697, %v1693
      %v2090 = vpack.c.b16 %v1698, %v1694
      %v2091 = vpack.c.b16 %v1699, %v1695
      %v2092 = vpack.c.b16 %v1704, %v1700
      %v2093 = vpack.c.b16 %v1705, %v1701
      %v2094 = vpack.c.b16 %v1706, %v1702
      %v2095 = vpack.c.b16 %v1707, %v1703
      %v2096 = vpack.c.b16 %v1712, %v1708
      %v2097 = vpack.c.b16 %v1713, %v1709
      %v2098 = vpack.c.b16 %v1714, %v1710
      %v2099 = vpack.c.b16 %v1715, %v1711
      %v2100 = vpack.c.b16 %v1720, %v1716
      %v2101 = vpack.c.b16 %v1721, %v1717
      %v2102 = vpack.c.b16 %v1722, %v1718
      %v2103 = vpack.c.b16 %v1723, %v1719
      %v2104 = vpack.c.b16 %v1728, %v1724
      %v2105 = vpack.c.b16 %v1729, %v1725
      %v2106 = vpack.c.b16 %v1730, %v1726
      %v2107 = vpack.c.b16 %v1731, %v1727
      %v2108 = vpack.c.b16 %v1736, %v1732
      %v2109 = vpack.c.b16 %v1737, %v1733
      %v2110 = vpack.c.b16 %v1738, %v1734
      %v2111 = vpack.c.b16 %v1739, %v1735
      %v2112 = vpack.c.b16 %v1744, %v1740
      %v2113 = vpack.c.b16 %v1745, %v1741
      %v2114 = vpack.c.b16 %v1746, %v1742
      %v2115 = vpack.c.b16 %v1747, %v1743
      %v2116 = vpack.c.b16 %v1752, %v1748
      %v2117 = vpack.c.b16 %v1753, %v1749
      %v2118 = vpack.c.b16 %v1754, %v1750
      %v2119 = vpack.c.b16 %v1755, %v1751
      %v2120 = vpack.c.b16 %v1760, %v1756
      %v2121 = vpack.c.b16 %v1761, %v1757
      %v2122 = vpack.c.b16 %v1762, %v1758
      %v2123 = vpack.c.b16 %v1763, %v1759
      %v2124 = vpack.c.b16 %v1768, %v1764
      %v2125 = vpack.c.b16 %v1769, %v1765
      %v2126 = vpack.c.b16 %v1770, %v1766
      %v2127 = vpack.c.b16 %v1771, %v1767
      %v2128 = vpack.c.b16 %v1776, %v1772
      %v2129 = vpack.c.b16 %v1777, %v1773
      %v2130 = vpack.c.b16 %v1778, %v1774
      %v2131 = vpack.c.b16 %v1779, %v1775
      %v2132 = vpack.c.b16 %v1784, %v1780
      %v2133 = vpack.c.b16 %v1785, %v1781
      %v2134 = vpack.c.b16 %v1786, %v1782
      %v2135 = vpack.c.b16 %v1787, %v1783
      %v2136 = vpack.c.b16 %v1792, %v1788
      %v2137 = vpack.c.b16 %v1793, %v1789
      %v2138 = vpack.c.b16 %v1794, %v1790
      %v2139 = vpack.c.b16 %v1795, %v1791
      %v2140 = vpack.c.b16 %v1800, %v1796
      %v2141 = vpack.c.b16 %v1801, %v1797
      %v2142 = vpack.c.b16 %v1802, %v1798
      %v2143 = vpack.c.b16 %v1803, %v1799
      %v2144 = vpack.c.b16 %v1808, %v1804
      %v2145 = vpack.c.b16 %v1809, %v1805
      %v2146 = vpack.c.b16 %v1810, %v1806
      %v2147 = vpack.c.b16 %v1811, %v1807
      %v2148 = vpack.c.b16 %v1816, %v1812
      %v2149 = vpack.c.b16 %v1817, %v1813
      %v2150 = vpack.c.b16 %v1818, %v1814
      %v2151 = vpack.c.b16 %v1819, %v1815
      %v2152 = vpack.c.b16 %v1824, %v1820
      %v2153 = vpack.c.b16 %v1825, %v1821
      %v2154 = vpack.c.b16 %v1826, %v1822
      %v2155 = vpack.c.b16 %v1827, %v1823
      %v2156 = vpack.c.b16 %v1832, %v1828
      %v2157 = vpack.c.b16 %v1833, %v1829
      %v2158 = vpack.c.b16 %v1834, %v1830
      %v2159 = vpack.c.b16 %v1835, %v1831
      %v2160 = vpack.c.b16 %v1840, %v1836
      %v2161 = vpack.c.b16 %v1841, %v1837
      %v2162 = vpack.c.b16 %v1842, %v1838
      %v2163 = vpack.c.b16 %v1843, %v1839
      %v2164 = vpack.c.b16 %v1848, %v1844
      %v2165 = vpack.c.b16 %v1849, %v1845
      %v2166 = vpack.c.b16 %v1850, %v1846
      %v2167 = vpack.c.b16 %v1851, %v1847
      %v2168 = vpack.c.b16 %v1856, %v1852
      %v2169 = vpack.c.b16 %v1857, %v1853
      %v2170 = vpack.c.b16 %v1858, %v1854
      %v2171 = vpack.c.b16 %v1859, %v1855
      %v2172 = vpack.c.b16 %v1864, %v1860
      %v2173 = vpack.c.b16 %v1865, %v1861
      %v2174 = vpack.c.b16 %v1866, %v1862
      %v2175 = vpack.c.b16 %v1867, %v1863
      %v2176 = vpack.c.b16 %v1872, %v1868
      %v2177 = vpack.c.b16 %v1873, %v1869
      %v2178 = vpack.c.b16 %v1874, %v1870
      %v2179 = vpack.c.b16 %v1875, %v1871
      %v2180 = vpack.c.b16 %v1880, %v1876
      %v2181 = vpack.c.b16 %v1881, %v1877
      %v2182 = vpack.c.b16 %v1882, %v1878
      %v2183 = vpack.c.b16 %v1883, %v1879
      %v2184 = vpack.c.b16 %v1888, %v1884
      %v2185 = vpack.c.b16 %v1889, %v1885
      %v2186 = vpack.c.b16 %v1890, %v1886
      %v2187 = vpack.c.b16 %v1891, %v1887
      %v2188 = vpack.c.b16 %v1896, %v1892
      %v2189 = vpack.c.b16 %v1897, %v1893
      %v2190 = vpack.c.b16 %v1898, %v1894
      %v2191 = vpack.c.b16 %v1899, %v1895
      %v2192 = vpack.c.b16 %v1904, %v1900
      %v2193 = vpack.c.b16 %v1905, %v1901
      %v2194 = vpack.c.b16 %v1906, %v1902
      %v2195 = vpack.c.b16 %v1907, %v1903
      %v2196 = vpack.c.b16 %v1912, %v1908
      %v2197 = vpack.c.b16 %v1913, %v1909
      %v2198 = vpack.c.b16 %v1914, %v1910
      %v2199 = vpack.c.b16 %v1915, %v1911
      %v2200 = vpack.c.b16 %v1920, %v1916
      %v2201 = vpack.c.b16 %v1921, %v1917
      %v2202 = vpack.c.b16 %v1922, %v1918
      %v2203 = vpack.c.b16 %v1923, %v1919
      %v2204 = vpack.c.b16 %v1928, %v1924
      %v2205 = vpack.c.b16 %v1929, %v1925
      %v2206 = vpack.c.b16 %v1930, %v1926
      %v2207 = vpack.c.b16 %v1931, %v1927
      %v2208 = vpack.c.b16 %v1936, %v1932
      %v2209 = vpack.c.b16 %v1937, %v1933
      %v2210 = vpack.c.b16 %v1938, %v1934
      %v2211 = vpack.c.b16 %v1939, %v1935
      %v2212 = vpack.c.b16 %v1944, %v1940
      %v2213 = vpack.c.b16 %v1945, %v1941
      %v2214 = vpack.c.b16 %v1946, %v1942
      %v2215 = vpack.c.b16 %v1947, %v1943
      %v2216 = vpack.c.b16 %v1952, %v1948
      %v2217 = vpack.c.b16 %v1953, %v1949
      %v2218 = vpack.c.b16 %v1954, %v1950
      %v2219 = vpack.c.b16 %v1955, %v1951
      %v2220 = vpack.c.b16 %v1960, %v1956
      %v2221 = vpack.c.b16 %v1961, %v1957
      %v2222 = vpack.c.b16 %v1962, %v1958
      %v2223 = vpack.c.b16 %v1963, %v1959
      %v2224 = vpack.c.b16 %v1968, %v1964
      %v2225 = vpack.c.b16 %v1969, %v1965
      %v2226 = vpack.c.b16 %v1970, %v1966
      %v2227 = vpack.c.b16 %v1971, %v1967
      %2484 = vmatprep.subr.bf16.mxu0 %v1973
      %2485 = vmatpush1.bf16.msra.mxu0 %v1972
      %2486 = vmatprep.subr.bf16.mxu0 %v1977
      %2487 = vmatpush1.bf16.msra.mxu0 %v1976
      %2488 = vmatprep.subr.bf16.mxu0 %v1981
      %2489 = vmatpush1.bf16.msra.mxu0 %v1980
      %2490 = vmatprep.subr.bf16.mxu0 %v1985
      %2491 = vmatpush1.bf16.msra.mxu0 %v1984
      %2492 = vmatprep.subr.bf16.mxu0 %v1989
      %2493 = vmatpush1.bf16.msra.mxu0 %v1988
      %2494 = vmatprep.subr.bf16.mxu0 %v1993
      %2495 = vmatpush1.bf16.msra.mxu0 %v1992
      %2496 = vmatprep.subr.bf16.mxu0 %v1997
      %2497 = vmatpush1.bf16.msra.mxu0 %v1996
      %2498 = vmatprep.subr.bf16.mxu0 %v2001
      %2499 = vmatpush1.bf16.msra.mxu0 %v2000
      %2500 = vmatprep.subr.bf16.mxu0 %v2005
      %2501 = vmatpush1.bf16.msra.mxu0 %v2004
      %2502 = vmatprep.subr.bf16.mxu0 %v2009
      %2503 = vmatpush1.bf16.msra.mxu0 %v2008
      %2504 = vmatprep.subr.bf16.mxu0 %v2013
      %2505 = vmatpush1.bf16.msra.mxu0 %v2012
      %2506 = vmatprep.subr.bf16.mxu0 %v2017
      %2507 = vmatpush1.bf16.msra.mxu0 %v2016
      %2508 = vmatprep.subr.bf16.mxu0 %v2021
      %2509 = vmatpush1.bf16.msra.mxu0 %v2020
      %2510 = vmatprep.subr.bf16.mxu0 %v2025
      %2511 = vmatpush1.bf16.msra.mxu0 %v2024
      %2512 = vmatprep.subr.bf16.mxu0 %v2029
      %2513 = vmatpush1.bf16.msra.mxu0 %v2028
      %2514 = vmatprep.subr.bf16.mxu0 %v2033
      %2515 = vmatpush1.bf16.msra.mxu0 %v2032
      %2516 = vmatprep.mubr.bf16.mxu0 %v1077
      %2517 = vmatmul.mubr.bf16.gmra.mrb[0].mxu0 %v1076
      %v2518 = vpop.f32.mrb[0].mxu0
      %v2519 = vadd.f32 %v867, %v2518
      %v2520 = vpop.f32.mrb[0].mxu0
      %v2521 = vadd.f32 %v871, %v2520
      %v2522 = vpop.f32.mrb[0].mxu0
      %v2523 = vadd.f32 %v867, %v2522
      %v2524 = vpop.f32.mrb[0].mxu0
      %v2525 = vadd.f32 %v871, %v2524
      %2526 = vmatprep.mubr.bf16.mxu0 %v1085
      %2527 = vmatmul.mubr.bf16.gmra.mrb[0].mxu0 %v1084
      %v2528 = vpop.f32.mrb[0].mxu0
      %v2529 = vadd.f32 %v867, %v2528
      %v2530 = vpop.f32.mrb[0].mxu0
      %v2531 = vadd.f32 %v871, %v2530
      %v2532 = vpop.f32.mrb[0].mxu0
      %v2533 = vadd.f32 %v867, %v2532
      %v2534 = vpop.f32.mrb[0].mxu0
      %v2535 = vadd.f32 %v871, %v2534
      %2536 = vmatprep.mubr.bf16.mxu0 %v1093
      %2537 = vmatmul.mubr.bf16.gmra.mrb[0].mxu0 %v1092
      %v2538 = vpop.f32.mrb[0].mxu0
      %v2539 = vadd.f32 %v867, %v2538
      %v2540 = vpop.f32.mrb[0].mxu0
      %v2541 = vadd.f32 %v871, %v2540
      %v2542 = vpop.f32.mrb[0].mxu0
      %v2543 = vadd.f32 %v867, %v2542
      %v2544 = vpop.f32.mrb[0].mxu0
      %v2545 = vadd.f32 %v871, %v2544
      %2546 = vmatprep.mubr.bf16.mxu0 %v1101
      %2547 = vmatmul.mubr.bf16.gmra.mrb[0].mxu0 %v1100
      %v2548 = vpop.f32.mrb[0].mxu0
      %v2549 = vadd.f32 %v867, %v2548
      %v2550 = vpop.f32.mrb[0].mxu0
      %v2551 = vadd.f32 %v871, %v2550
      %v2552 = vpop.f32.mrb[0].mxu0
      %v2553 = vadd.f32 %v867, %v2552
      %v2554 = vpop.f32.mrb[0].mxu0
      %v2555 = vadd.f32 %v871, %v2554
      %2556 = vmatprep.mubr.bf16.mxu0 %v1109
      %2557 = vmatmul.mubr.bf16.gmra.mrb[0].mxu0 %v1108
      %v2558 = vpop.f32.mrb[0].mxu0
      %v2559 = vadd.f32 %v867, %v2558
      %v2560 = vpop.f32.mrb[0].mxu0
      %v2561 = vadd.f32 %v871, %v2560
      %v2562 = vpop.f32.mrb[0].mxu0
      %v2563 = vadd.f32 %v867, %v2562
      %v2564 = vpop.f32.mrb[0].mxu0
      %v2565 = vadd.f32 %v871, %v2564
      %2566 = vmatprep.mubr.bf16.mxu0 %v1117
      %2567 = vmatmul.mubr.bf16.gmra.mrb[0].mxu0 %v1116
      %v2568 = vpop.f32.mrb[0].mxu0
      %v2569 = vadd.f32 %v867, %v2568
      %v2570 = vpop.f32.mrb[0].mxu0
      %v2571 = vadd.f32 %v871, %v2570
      %v2572 = vpop.f32.mrb[0].mxu0
      %v2573 = vadd.f32 %v867, %v2572
      %v2574 = vpop.f32.mrb[0].mxu0
      %v2575 = vadd.f32 %v871, %v2574
      %2576 = vmatprep.mubr.bf16.mxu0 %v1125
      %2577 = vmatmul.mubr.bf16.gmra.mrb[0].mxu0 %v1124
      %v2578 = vpop.f32.mrb[0].mxu0
      %v2579 = vadd.f32 %v867, %v2578
      %v2580 = vpop.f32.mrb[0].mxu0
      %v2581 = vadd.f32 %v871, %v2580
      %v2582 = vpop.f32.mrb[0].mxu0
      %v2583 = vadd.f32 %v867, %v2582
      %v2584 = vpop.f32.mrb[0].mxu0
      %v2585 = vadd.f32 %v871, %v2584
      %2586 = vmatprep.mubr.bf16.mxu0 %v1133
      %2587 = vmatmul.mubr.bf16.gmra.mrb[0].mxu0 %v1132
      %v2588 = vpop.f32.mrb[0].mxu0
      %v2589 = vadd.f32 %v867, %v2588
      %v2590 = vpop.f32.mrb[0].mxu0
      %v2591 = vadd.f32 %v871, %v2590
      %v2592 = vpop.f32.mrb[0].mxu0
      %v2593 = vadd.f32 %v867, %v2592
      %v2594 = vpop.f32.mrb[0].mxu0
      %v2595 = vadd.f32 %v871, %v2594
      %2596 = vdwg.mxu0
      %2597 = vmatprep.subr.bf16.mxu0 %v2037
      %2598 = vmatpush1.bf16.msra.mxu0 %v2036
      %2599 = vmatprep.subr.bf16.mxu0 %v2041
      %2600 = vmatpush1.bf16.msra.mxu0 %v2040
      %2601 = vmatprep.subr.bf16.mxu0 %v2045
      %2602 = vmatpush1.bf16.msra.mxu0 %v2044
      %2603 = vmatprep.subr.bf16.mxu0 %v2049
      %2604 = vmatpush1.bf16.msra.mxu0 %v2048
      %2605 = vmatprep.subr.bf16.mxu0 %v2053
      %2606 = vmatpush1.bf16.msra.mxu0 %v2052
      %2607 = vmatprep.subr.bf16.mxu0 %v2057
      %2608 = vmatpush1.bf16.msra.mxu0 %v2056
      %2609 = vmatprep.subr.bf16.mxu0 %v2061
      %2610 = vmatpush1.bf16.msra.mxu0 %v2060
      %2611 = vmatprep.subr.bf16.mxu0 %v2065
      %2612 = vmatpush1.bf16.msra.mxu0 %v2064
      %2613 = vmatprep.subr.bf16.mxu0 %v2069
      %2614 = vmatpush1.bf16.msra.mxu0 %v2068
      %2615 = vmatprep.subr.bf16.mxu0 %v2073
      %2616 = vmatpush1.bf16.msra.mxu0 %v2072
      %2617 = vmatprep.subr.bf16.mxu0 %v2077
      %2618 = vmatpush1.bf16.msra.mxu0 %v2076
      %2619 = vmatprep.subr.bf16.mxu0 %v2081
      %2620 = vmatpush1.bf16.msra.mxu0 %v2080
      %2621 = vmatprep.subr.bf16.mxu0 %v2085
      %2622 = vmatpush1.bf16.msra.mxu0 %v2084
      %2623 = vmatprep.subr.bf16.mxu0 %v2089
      %2624 = vmatpush1.bf16.msra.mxu0 %v2088
      %2625 = vmatprep.subr.bf16.mxu0 %v2093
      %2626 = vmatpush1.bf16.msra.mxu0 %v2092
      %2627 = vmatprep.subr.bf16.mxu0 %v2097
      %2628 = vmatpush1.bf16.msra.mxu0 %v2096
      %2629 = vmatprep.mubr.bf16.mxu0 %v1079
      %2630 = vmatmul.mubr.bf16.gmra.mrb[0].mxu0 %v1078
      %v2631 = vpop.f32.mrb[0].mxu0
      %v2632 = vadd.f32 %v2519, %v2631
      %v2633 = vpop.f32.mrb[0].mxu0
      %v2634 = vadd.f32 %v2521, %v2633
      %v2635 = vpop.f32.mrb[0].mxu0
      %v2636 = vadd.f32 %v2523, %v2635
      %v2637 = vpop.f32.mrb[0].mxu0
      %v2638 = vadd.f32 %v2525, %v2637
      %2639 = vmatprep.mubr.bf16.mxu0 %v1087
      %2640 = vmatmul.mubr.bf16.gmra.mrb[0].mxu0 %v1086
      %v2641 = vpop.f32.mrb[0].mxu0
      %v2642 = vadd.f32 %v2529, %v2641
      %v2643 = vpop.f32.mrb[0].mxu0
      %v2644 = vadd.f32 %v2531, %v2643
      %v2645 = vpop.f32.mrb[0].mxu0
      %v2646 = vadd.f32 %v2533, %v2645
      %v2647 = vpop.f32.mrb[0].mxu0
      %v2648 = vadd.f32 %v2535, %v2647
      %2649 = vmatprep.mubr.bf16.mxu0 %v1095
      %2650 = vmatmul.mubr.bf16.gmra.mrb[0].mxu0 %v1094
      %v2651 = vpop.f32.mrb[0].mxu0
      %v2652 = vadd.f32 %v2539, %v2651
      %v2653 = vpop.f32.mrb[0].mxu0
      %v2654 = vadd.f32 %v2541, %v2653
      %v2655 = vpop.f32.mrb[0].mxu0
      %v2656 = vadd.f32 %v2543, %v2655
      %v2657 = vpop.f32.mrb[0].mxu0
      %v2658 = vadd.f32 %v2545, %v2657
      %2659 = vmatprep.mubr.bf16.mxu0 %v1103
      %2660 = vmatmul.mubr.bf16.gmra.mrb[0].mxu0 %v1102
      %v2661 = vpop.f32.mrb[0].mxu0
      %v2662 = vadd.f32 %v2549, %v2661
      %v2663 = vpop.f32.mrb[0].mxu0
      %v2664 = vadd.f32 %v2551, %v2663
      %v2665 = vpop.f32.mrb[0].mxu0
      %v2666 = vadd.f32 %v2553, %v2665
      %v2667 = vpop.f32.mrb[0].mxu0
      %v2668 = vadd.f32 %v2555, %v2667
      %2669 = vmatprep.mubr.bf16.mxu0 %v1111
      %2670 = vmatmul.mubr.bf16.gmra.mrb[0].mxu0 %v1110
      %v2671 = vpop.f32.mrb[0].mxu0
      %v2672 = vadd.f32 %v2559, %v2671
      %v2673 = vpop.f32.mrb[0].mxu0
      %v2674 = vadd.f32 %v2561, %v2673
      %v2675 = vpop.f32.mrb[0].mxu0
      %v2676 = vadd.f32 %v2563, %v2675
      %v2677 = vpop.f32.mrb[0].mxu0
      %v2678 = vadd.f32 %v2565, %v2677
      %2679 = vmatprep.mubr.bf16.mxu0 %v1119
      %2680 = vmatmul.mubr.bf16.gmra.mrb[0].mxu0 %v1118
      %v2681 = vpop.f32.mrb[0].mxu0
      %v2682 = vadd.f32 %v2569, %v2681
      %v2683 = vpop.f32.mrb[0].mxu0
      %v2684 = vadd.f32 %v2571, %v2683
      %v2685 = vpop.f32.mrb[0].mxu0
      %v2686 = vadd.f32 %v2573, %v2685
      %v2687 = vpop.f32.mrb[0].mxu0
      %v2688 = vadd.f32 %v2575, %v2687
      %2689 = vmatprep.mubr.bf16.mxu0 %v1127
      %2690 = vmatmul.mubr.bf16.gmra.mrb[0].mxu0 %v1126
      %v2691 = vpop.f32.mrb[0].mxu0
      %v2692 = vadd.f32 %v2579, %v2691
      %v2693 = vpop.f32.mrb[0].mxu0
      %v2694 = vadd.f32 %v2581, %v2693
      %v2695 = vpop.f32.mrb[0].mxu0
      %v2696 = vadd.f32 %v2583, %v2695
      %v2697 = vpop.f32.mrb[0].mxu0
      %v2698 = vadd.f32 %v2585, %v2697
      %2699 = vmatprep.mubr.bf16.mxu0 %v1135
      %2700 = vmatmul.mubr.bf16.gmra.mrb[0].mxu0 %v1134
      %v2701 = vpop.f32.mrb[0].mxu0
      %v2702 = vadd.f32 %v2589, %v2701
      %v2703 = vpop.f32.mrb[0].mxu0
      %v2704 = vadd.f32 %v2591, %v2703
      %v2705 = vpop.f32.mrb[0].mxu0
      %v2706 = vadd.f32 %v2593, %v2705
      %v2707 = vpop.f32.mrb[0].mxu0
      %v2708 = vadd.f32 %v2595, %v2707
      %2709 = vdwg.mxu0
      %2710 = vmatprep.subr.bf16.mxu0 %v2101
      %2711 = vmatpush1.bf16.msra.mxu0 %v2100
      %2712 = vmatprep.subr.bf16.mxu0 %v2105
      %2713 = vmatpush1.bf16.msra.mxu0 %v2104
      %2714 = vmatprep.subr.bf16.mxu0 %v2109
      %2715 = vmatpush1.bf16.msra.mxu0 %v2108
      %2716 = vmatprep.subr.bf16.mxu0 %v2113
      %2717 = vmatpush1.bf16.msra.mxu0 %v2112
      %2718 = vmatprep.subr.bf16.mxu0 %v2117
      %2719 = vmatpush1.bf16.msra.mxu0 %v2116
      %2720 = vmatprep.subr.bf16.mxu0 %v2121
      %2721 = vmatpush1.bf16.msra.mxu0 %v2120
      %2722 = vmatprep.subr.bf16.mxu0 %v2125
      %2723 = vmatpush1.bf16.msra.mxu0 %v2124
      %2724 = vmatprep.subr.bf16.mxu0 %v2129
      %2725 = vmatpush1.bf16.msra.mxu0 %v2128
      %2726 = vmatprep.subr.bf16.mxu0 %v2133
      %2727 = vmatpush1.bf16.msra.mxu0 %v2132
      %2728 = vmatprep.subr.bf16.mxu0 %v2137
      %2729 = vmatpush1.bf16.msra.mxu0 %v2136
      %2730 = vmatprep.subr.bf16.mxu0 %v2141
      %2731 = vmatpush1.bf16.msra.mxu0 %v2140
      %2732 = vmatprep.subr.bf16.mxu0 %v2145
      %2733 = vmatpush1.bf16.msra.mxu0 %v2144
      %2734 = vmatprep.subr.bf16.mxu0 %v2149
      %2735 = vmatpush1.bf16.msra.mxu0 %v2148
      %2736 = vmatprep.subr.bf16.mxu0 %v2153
      %2737 = vmatpush1.bf16.msra.mxu0 %v2152
      %2738 = vmatprep.subr.bf16.mxu0 %v2157
      %2739 = vmatpush1.bf16.msra.mxu0 %v2156
      %2740 = vmatprep.subr.bf16.mxu0 %v2161
      %2741 = vmatpush1.bf16.msra.mxu0 %v2160
      %2742 = vmatprep.mubr.bf16.mxu0 %v1081
      %2743 = vmatmul.mubr.bf16.gmra.mrb[0].mxu0 %v1080
      %v2744 = vpop.f32.mrb[0].mxu0
      %v2745 = vadd.f32 %v2632, %v2744
      %v2746 = vpop.f32.mrb[0].mxu0
      %v2747 = vadd.f32 %v2634, %v2746
      %v2748 = vpop.f32.mrb[0].mxu0
      %v2749 = vadd.f32 %v2636, %v2748
      %v2750 = vpop.f32.mrb[0].mxu0
      %v2751 = vadd.f32 %v2638, %v2750
      %2752 = vmatprep.mubr.bf16.mxu0 %v1089
      %2753 = vmatmul.mubr.bf16.gmra.mrb[0].mxu0 %v1088
      %v2754 = vpop.f32.mrb[0].mxu0
      %v2755 = vadd.f32 %v2642, %v2754
      %v2756 = vpop.f32.mrb[0].mxu0
      %v2757 = vadd.f32 %v2644, %v2756
      %v2758 = vpop.f32.mrb[0].mxu0
      %v2759 = vadd.f32 %v2646, %v2758
      %v2760 = vpop.f32.mrb[0].mxu0
      %v2761 = vadd.f32 %v2648, %v2760
      %2762 = vmatprep.mubr.bf16.mxu0 %v1097
      %2763 = vmatmul.mubr.bf16.gmra.mrb[0].mxu0 %v1096
      %v2764 = vpop.f32.mrb[0].mxu0
      %v2765 = vadd.f32 %v2652, %v2764
      %v2766 = vpop.f32.mrb[0].mxu0
      %v2767 = vadd.f32 %v2654, %v2766
      %v2768 = vpop.f32.mrb[0].mxu0
      %v2769 = vadd.f32 %v2656, %v2768
      %v2770 = vpop.f32.mrb[0].mxu0
      %v2771 = vadd.f32 %v2658, %v2770
      %2772 = vmatprep.mubr.bf16.mxu0 %v1105
      %2773 = vmatmul.mubr.bf16.gmra.mrb[0].mxu0 %v1104
      %v2774 = vpop.f32.mrb[0].mxu0
      %v2775 = vadd.f32 %v2662, %v2774
      %v2776 = vpop.f32.mrb[0].mxu0
      %v2777 = vadd.f32 %v2664, %v2776
      %v2778 = vpop.f32.mrb[0].mxu0
      %v2779 = vadd.f32 %v2666, %v2778
      %v2780 = vpop.f32.mrb[0].mxu0
      %v2781 = vadd.f32 %v2668, %v2780
      %2782 = vmatprep.mubr.bf16.mxu0 %v1113
      %2783 = vmatmul.mubr.bf16.gmra.mrb[0].mxu0 %v1112
      %v2784 = vpop.f32.mrb[0].mxu0
      %v2785 = vadd.f32 %v2672, %v2784
      %v2786 = vpop.f32.mrb[0].mxu0
      %v2787 = vadd.f32 %v2674, %v2786
      %v2788 = vpop.f32.mrb[0].mxu0
      %v2789 = vadd.f32 %v2676, %v2788
      %v2790 = vpop.f32.mrb[0].mxu0
      %v2791 = vadd.f32 %v2678, %v2790
      %2792 = vmatprep.mubr.bf16.mxu0 %v1121
      %2793 = vmatmul.mubr.bf16.gmra.mrb[0].mxu0 %v1120
      %v2794 = vpop.f32.mrb[0].mxu0
      %v2795 = vadd.f32 %v2682, %v2794
      %v2796 = vpop.f32.mrb[0].mxu0
      %v2797 = vadd.f32 %v2684, %v2796
      %v2798 = vpop.f32.mrb[0].mxu0
      %v2799 = vadd.f32 %v2686, %v2798
      %v2800 = vpop.f32.mrb[0].mxu0
      %v2801 = vadd.f32 %v2688, %v2800
      %2802 = vmatprep.mubr.bf16.mxu0 %v1129
      %2803 = vmatmul.mubr.bf16.gmra.mrb[0].mxu0 %v1128
      %v2804 = vpop.f32.mrb[0].mxu0
      %v2805 = vadd.f32 %v2692, %v2804
      %v2806 = vpop.f32.mrb[0].mxu0
      %v2807 = vadd.f32 %v2694, %v2806
      %v2808 = vpop.f32.mrb[0].mxu0
      %v2809 = vadd.f32 %v2696, %v2808
      %v2810 = vpop.f32.mrb[0].mxu0
      %v2811 = vadd.f32 %v2698, %v2810
      %2812 = vmatprep.mubr.bf16.mxu0 %v1137
      %2813 = vmatmul.mubr.bf16.gmra.mrb[0].mxu0 %v1136
      %v2814 = vpop.f32.mrb[0].mxu0
      %v2815 = vadd.f32 %v2702, %v2814
      %v2816 = vpop.f32.mrb[0].mxu0
      %v2817 = vadd.f32 %v2704, %v2816
      %v2818 = vpop.f32.mrb[0].mxu0
      %v2819 = vadd.f32 %v2706, %v2818
      %v2820 = vpop.f32.mrb[0].mxu0
      %v2821 = vadd.f32 %v2708, %v2820
      %2822 = vdwg.mxu0
      %2823 = vmatprep.subr.bf16.mxu0 %v2165
      %2824 = vmatpush1.bf16.msra.mxu0 %v2164
      %2825 = vmatprep.subr.bf16.mxu0 %v2169
      %2826 = vmatpush1.bf16.msra.mxu0 %v2168
      %2827 = vmatprep.subr.bf16.mxu0 %v2173
      %2828 = vmatpush1.bf16.msra.mxu0 %v2172
      %2829 = vmatprep.subr.bf16.mxu0 %v2177
      %2830 = vmatpush1.bf16.msra.mxu0 %v2176
      %2831 = vmatprep.subr.bf16.mxu0 %v2181
      %2832 = vmatpush1.bf16.msra.mxu0 %v2180
      %2833 = vmatprep.subr.bf16.mxu0 %v2185
      %2834 = vmatpush1.bf16.msra.mxu0 %v2184
      %2835 = vmatprep.subr.bf16.mxu0 %v2189
      %2836 = vmatpush1.bf16.msra.mxu0 %v2188
      %2837 = vmatprep.subr.bf16.mxu0 %v2193
      %2838 = vmatpush1.bf16.msra.mxu0 %v2192
      %2839 = vmatprep.subr.bf16.mxu0 %v2197
      %2840 = vmatpush1.bf16.msra.mxu0 %v2196
      %2841 = vmatprep.subr.bf16.mxu0 %v2201
      %2842 = vmatpush1.bf16.msra.mxu0 %v2200
      %2843 = vmatprep.subr.bf16.mxu0 %v2205
      %2844 = vmatpush1.bf16.msra.mxu0 %v2204
      %2845 = vmatprep.subr.bf16.mxu0 %v2209
      %2846 = vmatpush1.bf16.msra.mxu0 %v2208
      %2847 = vmatprep.subr.bf16.mxu0 %v2213
      %2848 = vmatpush1.bf16.msra.mxu0 %v2212
      %2849 = vmatprep.subr.bf16.mxu0 %v2217
      %2850 = vmatpush1.bf16.msra.mxu0 %v2216
      %2851 = vmatprep.subr.bf16.mxu0 %v2221
      %2852 = vmatpush1.bf16.msra.mxu0 %v2220
      %2853 = vmatprep.subr.bf16.mxu0 %v2225
      %2854 = vmatpush1.bf16.msra.mxu0 %v2224
      %2855 = vmatprep.mubr.bf16.mxu0 %v1083
      %2856 = vmatmul.mubr.bf16.gmra.mrb[0].mxu0 %v1082
      %v2857 = vpop.f32.mrb[0].mxu0
      %v2858 = vadd.f32 %v2745, %v2857
      %v2859 = vpop.f32.mrb[0].mxu0
      %v2860 = vadd.f32 %v2747, %v2859
      %v2861 = vpop.f32.mrb[0].mxu0
      %v2862 = vadd.f32 %v2749, %v2861
      %v2863 = vpop.f32.mrb[0].mxu0
      %v2864 = vadd.f32 %v2751, %v2863
      %2865 = vmatprep.mubr.bf16.mxu0 %v1091
      %2866 = vmatmul.mubr.bf16.gmra.mrb[0].mxu0 %v1090
      %v2867 = vpop.f32.mrb[0].mxu0
      %v2868 = vadd.f32 %v2755, %v2867
      %v2869 = vpop.f32.mrb[0].mxu0
      %v2870 = vadd.f32 %v2757, %v2869
      %v2871 = vpop.f32.mrb[0].mxu0
      %v2872 = vadd.f32 %v2759, %v2871
      %v2873 = vpop.f32.mrb[0].mxu0
      %v2874 = vadd.f32 %v2761, %v2873
      %2875 = vmatprep.mubr.bf16.mxu0 %v1099
      %2876 = vmatmul.mubr.bf16.gmra.mrb[0].mxu0 %v1098
      %v2877 = vpop.f32.mrb[0].mxu0
      %v2878 = vadd.f32 %v2765, %v2877
      %v2879 = vpop.f32.mrb[0].mxu0
      %v2880 = vadd.f32 %v2767, %v2879
      %v2881 = vpop.f32.mrb[0].mxu0
      %v2882 = vadd.f32 %v2769, %v2881
      %v2883 = vpop.f32.mrb[0].mxu0
      %v2884 = vadd.f32 %v2771, %v2883
      %2885 = vmatprep.mubr.bf16.mxu0 %v1107
      %2886 = vmatmul.mubr.bf16.gmra.mrb[0].mxu0 %v1106
      %v2887 = vpop.f32.mrb[0].mxu0
      %v2888 = vadd.f32 %v2775, %v2887
      %v2889 = vpop.f32.mrb[0].mxu0
      %v2890 = vadd.f32 %v2777, %v2889
      %v2891 = vpop.f32.mrb[0].mxu0
      %v2892 = vadd.f32 %v2779, %v2891
      %v2893 = vpop.f32.mrb[0].mxu0
      %v2894 = vadd.f32 %v2781, %v2893
      %2895 = vmatprep.mubr.bf16.mxu0 %v1115
      %2896 = vmatmul.mubr.bf16.gmra.mrb[0].mxu0 %v1114
      %v2897 = vpop.f32.mrb[0].mxu0
      %v2898 = vadd.f32 %v2785, %v2897
      %v2899 = vpop.f32.mrb[0].mxu0
      %v2900 = vadd.f32 %v2787, %v2899
      %v2901 = vpop.f32.mrb[0].mxu0
      %v2902 = vadd.f32 %v2789, %v2901
      %v2903 = vpop.f32.mrb[0].mxu0
      %v2904 = vadd.f32 %v2791, %v2903
      %2905 = vmatprep.mubr.bf16.mxu0 %v1123
      %2906 = vmatmul.mubr.bf16.gmra.mrb[0].mxu0 %v1122
      %v2907 = vpop.f32.mrb[0].mxu0
      %v2908 = vadd.f32 %v2795, %v2907
      %v2909 = vpop.f32.mrb[0].mxu0
      %v2910 = vadd.f32 %v2797, %v2909
      %v2911 = vpop.f32.mrb[0].mxu0
      %v2912 = vadd.f32 %v2799, %v2911
      %v2913 = vpop.f32.mrb[0].mxu0
      %v2914 = vadd.f32 %v2801, %v2913
      %2915 = vmatprep.mubr.bf16.mxu0 %v1131
      %2916 = vmatmul.mubr.bf16.gmra.mrb[0].mxu0 %v1130
      %v2917 = vpop.f32.mrb[0].mxu0
      %v2918 = vadd.f32 %v2805, %v2917
      %v2919 = vpop.f32.mrb[0].mxu0
      %v2920 = vadd.f32 %v2807, %v2919
      %v2921 = vpop.f32.mrb[0].mxu0
      %v2922 = vadd.f32 %v2809, %v2921
      %v2923 = vpop.f32.mrb[0].mxu0
      %v2924 = vadd.f32 %v2811, %v2923
      %2925 = vmatprep.mubr.bf16.mxu0 %v1139
      %2926 = vmatmul.mubr.bf16.gmra.mrb[0].mxu0 %v1138
      %v2927 = vpop.f32.mrb[0].mxu0
      %v2928 = vadd.f32 %v2815, %v2927
      %v2929 = vpop.f32.mrb[0].mxu0
      %v2930 = vadd.f32 %v2817, %v2929
      %v2931 = vpop.f32.mrb[0].mxu0
      %v2932 = vadd.f32 %v2819, %v2931
      %v2933 = vpop.f32.mrb[0].mxu0
      %v2934 = vadd.f32 %v2821, %v2933
      %2935 = vdwg.mxu0
      %2936 = vmatprep.subr.bf16.mxu0 %v1975
      %2937 = vmatpush1.bf16.msra.mxu0 %v1974
      %2938 = vmatprep.subr.bf16.mxu0 %v1979
      %2939 = vmatpush1.bf16.msra.mxu0 %v1978
      %2940 = vmatprep.subr.bf16.mxu0 %v1983
      %2941 = vmatpush1.bf16.msra.mxu0 %v1982
      %2942 = vmatprep.subr.bf16.mxu0 %v1987
      %2943 = vmatpush1.bf16.msra.mxu0 %v1986
      %2944 = vmatprep.subr.bf16.mxu0 %v1991
      %2945 = vmatpush1.bf16.msra.mxu0 %v1990
      %2946 = vmatprep.subr.bf16.mxu0 %v1995
      %2947 = vmatpush1.bf16.msra.mxu0 %v1994
      %2948 = vmatprep.subr.bf16.mxu0 %v1999
      %2949 = vmatpush1.bf16.msra.mxu0 %v1998
      %2950 = vmatprep.subr.bf16.mxu0 %v2003
      %2951 = vmatpush1.bf16.msra.mxu0 %v2002
      %2952 = vmatprep.subr.bf16.mxu0 %v2007
      %2953 = vmatpush1.bf16.msra.mxu0 %v2006
      %2954 = vmatprep.subr.bf16.mxu0 %v2011
      %2955 = vmatpush1.bf16.msra.mxu0 %v2010
      %2956 = vmatprep.subr.bf16.mxu0 %v2015
      %2957 = vmatpush1.bf16.msra.mxu0 %v2014
      %2958 = vmatprep.subr.bf16.mxu0 %v2019
      %2959 = vmatpush1.bf16.msra.mxu0 %v2018
      %2960 = vmatprep.subr.bf16.mxu0 %v2023
      %2961 = vmatpush1.bf16.msra.mxu0 %v2022
      %2962 = vmatprep.subr.bf16.mxu0 %v2027
      %2963 = vmatpush1.bf16.msra.mxu0 %v2026
      %2964 = vmatprep.subr.bf16.mxu0 %v2031
      %2965 = vmatpush1.bf16.msra.mxu0 %v2030
      %2966 = vmatprep.subr.bf16.mxu0 %v2035
      %2967 = vmatpush1.bf16.msra.mxu0 %v2034
      %2968 = vmatprep.mubr.bf16.mxu0 %v1077
      %2969 = vmatmul.mubr.bf16.gmra.mrb[0].mxu0 %v1076
      %v2970 = vpop.f32.mrb[0].mxu0
      %v2971 = vadd.f32 %v875, %v2970
      %v2972 = vpop.f32.mrb[0].mxu0
      %v2973 = vadd.f32 %v879, %v2972
      %v2974 = vpop.f32.mrb[0].mxu0
      %v2975 = vadd.f32 %v875, %v2974
      %v2976 = vpop.f32.mrb[0].mxu0
      %v2977 = vadd.f32 %v879, %v2976
      %2978 = vmatprep.mubr.bf16.mxu0 %v1085
      %2979 = vmatmul.mubr.bf16.gmra.mrb[0].mxu0 %v1084
      %v2980 = vpop.f32.mrb[0].mxu0
      %v2981 = vadd.f32 %v875, %v2980
      %v2982 = vpop.f32.mrb[0].mxu0
      %v2983 = vadd.f32 %v879, %v2982
      %v2984 = vpop.f32.mrb[0].mxu0
      %v2985 = vadd.f32 %v875, %v2984
      %v2986 = vpop.f32.mrb[0].mxu0
      %v2987 = vadd.f32 %v879, %v2986
      %2988 = vmatprep.mubr.bf16.mxu0 %v1093
      %2989 = vmatmul.mubr.bf16.gmra.mrb[0].mxu0 %v1092
      %v2990 = vpop.f32.mrb[0].mxu0
      %v2991 = vadd.f32 %v875, %v2990
      %v2992 = vpop.f32.mrb[0].mxu0
      %v2993 = vadd.f32 %v879, %v2992
      %v2994 = vpop.f32.mrb[0].mxu0
      %v2995 = vadd.f32 %v875, %v2994
      %v2996 = vpop.f32.mrb[0].mxu0
      %v2997 = vadd.f32 %v879, %v2996
      %2998 = vmatprep.mubr.bf16.mxu0 %v1101
      %2999 = vmatmul.mubr.bf16.gmra.mrb[0].mxu0 %v1100
      %v3000 = vpop.f32.mrb[0].mxu0
      %v3001 = vadd.f32 %v875, %v3000
      %v3002 = vpop.f32.mrb[0].mxu0
      %v3003 = vadd.f32 %v879, %v3002
      %v3004 = vpop.f32.mrb[0].mxu0
      %v3005 = vadd.f32 %v875, %v3004
      %v3006 = vpop.f32.mrb[0].mxu0
      %v3007 = vadd.f32 %v879, %v3006
      %3008 = vmatprep.mubr.bf16.mxu0 %v1109
      %3009 = vmatmul.mubr.bf16.gmra.mrb[0].mxu0 %v1108
      %v3010 = vpop.f32.mrb[0].mxu0
      %v3011 = vadd.f32 %v875, %v3010
      %v3012 = vpop.f32.mrb[0].mxu0
      %v3013 = vadd.f32 %v879, %v3012
      %v3014 = vpop.f32.mrb[0].mxu0
      %v3015 = vadd.f32 %v875, %v3014
      %v3016 = vpop.f32.mrb[0].mxu0
      %v3017 = vadd.f32 %v879, %v3016
      %3018 = vmatprep.mubr.bf16.mxu0 %v1117
      %3019 = vmatmul.mubr.bf16.gmra.mrb[0].mxu0 %v1116
      %v3020 = vpop.f32.mrb[0].mxu0
      %v3021 = vadd.f32 %v875, %v3020
      %v3022 = vpop.f32.mrb[0].mxu0
      %v3023 = vadd.f32 %v879, %v3022
      %v3024 = vpop.f32.mrb[0].mxu0
      %v3025 = vadd.f32 %v875, %v3024
      %v3026 = vpop.f32.mrb[0].mxu0
      %v3027 = vadd.f32 %v879, %v3026
      %3028 = vmatprep.mubr.bf16.mxu0 %v1125
      %3029 = vmatmul.mubr.bf16.gmra.mrb[0].mxu0 %v1124
      %v3030 = vpop.f32.mrb[0].mxu0
      %v3031 = vadd.f32 %v875, %v3030
      %v3032 = vpop.f32.mrb[0].mxu0
      %v3033 = vadd.f32 %v879, %v3032
      %v3034 = vpop.f32.mrb[0].mxu0
      %v3035 = vadd.f32 %v875, %v3034
      %v3036 = vpop.f32.mrb[0].mxu0
      %v3037 = vadd.f32 %v879, %v3036
      %3038 = vmatprep.mubr.bf16.mxu0 %v1133
      %3039 = vmatmul.mubr.bf16.gmra.mrb[0].mxu0 %v1132
      %v3040 = vpop.f32.mrb[0].mxu0
      %v3041 = vadd.f32 %v875, %v3040
      %v3042 = vpop.f32.mrb[0].mxu0
      %v3043 = vadd.f32 %v879, %v3042
      %v3044 = vpop.f32.mrb[0].mxu0
      %v3045 = vadd.f32 %v875, %v3044
      %v3046 = vpop.f32.mrb[0].mxu0
      %v3047 = vadd.f32 %v879, %v3046
      %3048 = vdwg.mxu0
      %3049 = vmatprep.subr.bf16.mxu0 %v2039
      %3050 = vmatpush1.bf16.msra.mxu0 %v2038
      %3051 = vmatprep.subr.bf16.mxu0 %v2043
      %3052 = vmatpush1.bf16.msra.mxu0 %v2042
      %3053 = vmatprep.subr.bf16.mxu0 %v2047
      %3054 = vmatpush1.bf16.msra.mxu0 %v2046
      %3055 = vmatprep.subr.bf16.mxu0 %v2051
      %3056 = vmatpush1.bf16.msra.mxu0 %v2050
      %3057 = vmatprep.subr.bf16.mxu0 %v2055
      %3058 = vmatpush1.bf16.msra.mxu0 %v2054
      %3059 = vmatprep.subr.bf16.mxu0 %v2059
      %3060 = vmatpush1.bf16.msra.mxu0 %v2058
      %3061 = vmatprep.subr.bf16.mxu0 %v2063
      %3062 = vmatpush1.bf16.msra.mxu0 %v2062
      %3063 = vmatprep.subr.bf16.mxu0 %v2067
      %3064 = vmatpush1.bf16.msra.mxu0 %v2066
      %3065 = vmatprep.subr.bf16.mxu0 %v2071
      %3066 = vmatpush1.bf16.msra.mxu0 %v2070
      %3067 = vmatprep.subr.bf16.mxu0 %v2075
      %3068 = vmatpush1.bf16.msra.mxu0 %v2074
      %3069 = vmatprep.subr.bf16.mxu0 %v2079
      %3070 = vmatpush1.bf16.msra.mxu0 %v2078
      %3071 = vmatprep.subr.bf16.mxu0 %v2083
      %3072 = vmatpush1.bf16.msra.mxu0 %v2082
      %3073 = vmatprep.subr.bf16.mxu0 %v2087
      %3074 = vmatpush1.bf16.msra.mxu0 %v2086
      %3075 = vmatprep.subr.bf16.mxu0 %v2091
      %3076 = vmatpush1.bf16.msra.mxu0 %v2090
      %3077 = vmatprep.subr.bf16.mxu0 %v2095
      %3078 = vmatpush1.bf16.msra.mxu0 %v2094
      %3079 = vmatprep.subr.bf16.mxu0 %v2099
      %3080 = vmatpush1.bf16.msra.mxu0 %v2098
      %3081 = vmatprep.mubr.bf16.mxu0 %v1079
      %3082 = vmatmul.mubr.bf16.gmra.mrb[0].mxu0 %v1078
      %v3083 = vpop.f32.mrb[0].mxu0
      %v3084 = vadd.f32 %v2971, %v3083
      %v3085 = vpop.f32.mrb[0].mxu0
      %v3086 = vadd.f32 %v2973, %v3085
      %v3087 = vpop.f32.mrb[0].mxu0
      %v3088 = vadd.f32 %v2975, %v3087
      %v3089 = vpop.f32.mrb[0].mxu0
      %v3090 = vadd.f32 %v2977, %v3089
      %3091 = vmatprep.mubr.bf16.mxu0 %v1087
      %3092 = vmatmul.mubr.bf16.gmra.mrb[0].mxu0 %v1086
      %v3093 = vpop.f32.mrb[0].mxu0
      %v3094 = vadd.f32 %v2981, %v3093
      %v3095 = vpop.f32.mrb[0].mxu0
      %v3096 = vadd.f32 %v2983, %v3095
      %v3097 = vpop.f32.mrb[0].mxu0
      %v3098 = vadd.f32 %v2985, %v3097
      %v3099 = vpop.f32.mrb[0].mxu0
      %v3100 = vadd.f32 %v2987, %v3099
      %3101 = vmatprep.mubr.bf16.mxu0 %v1095
      %3102 = vmatmul.mubr.bf16.gmra.mrb[0].mxu0 %v1094
      %v3103 = vpop.f32.mrb[0].mxu0
      %v3104 = vadd.f32 %v2991, %v3103
      %v3105 = vpop.f32.mrb[0].mxu0
      %v3106 = vadd.f32 %v2993, %v3105
      %v3107 = vpop.f32.mrb[0].mxu0
      %v3108 = vadd.f32 %v2995, %v3107
      %v3109 = vpop.f32.mrb[0].mxu0
      %v3110 = vadd.f32 %v2997, %v3109
      %3111 = vmatprep.mubr.bf16.mxu0 %v1103
      %3112 = vmatmul.mubr.bf16.gmra.mrb[0].mxu0 %v1102
      %v3113 = vpop.f32.mrb[0].mxu0
      %v3114 = vadd.f32 %v3001, %v3113
      %v3115 = vpop.f32.mrb[0].mxu0
      %v3116 = vadd.f32 %v3003, %v3115
      %v3117 = vpop.f32.mrb[0].mxu0
      %v3118 = vadd.f32 %v3005, %v3117
      %v3119 = vpop.f32.mrb[0].mxu0
      %v3120 = vadd.f32 %v3007, %v3119
      %3121 = vmatprep.mubr.bf16.mxu0 %v1111
      %3122 = vmatmul.mubr.bf16.gmra.mrb[0].mxu0 %v1110
      %v3123 = vpop.f32.mrb[0].mxu0
      %v3124 = vadd.f32 %v3011, %v3123
      %v3125 = vpop.f32.mrb[0].mxu0
      %v3126 = vadd.f32 %v3013, %v3125
      %v3127 = vpop.f32.mrb[0].mxu0
      %v3128 = vadd.f32 %v3015, %v3127
      %v3129 = vpop.f32.mrb[0].mxu0
      %v3130 = vadd.f32 %v3017, %v3129
      %3131 = vmatprep.mubr.bf16.mxu0 %v1119
      %3132 = vmatmul.mubr.bf16.gmra.mrb[0].mxu0 %v1118
      %v3133 = vpop.f32.mrb[0].mxu0
      %v3134 = vadd.f32 %v3021, %v3133
      %v3135 = vpop.f32.mrb[0].mxu0
      %v3136 = vadd.f32 %v3023, %v3135
      %v3137 = vpop.f32.mrb[0].mxu0
      %v3138 = vadd.f32 %v3025, %v3137
      %v3139 = vpop.f32.mrb[0].mxu0
      %v3140 = vadd.f32 %v3027, %v3139
      %3141 = vmatprep.mubr.bf16.mxu0 %v1127
      %3142 = vmatmul.mubr.bf16.gmra.mrb[0].mxu0 %v1126
      %v3143 = vpop.f32.mrb[0].mxu0
      %v3144 = vadd.f32 %v3031, %v3143
      %v3145 = vpop.f32.mrb[0].mxu0
      %v3146 = vadd.f32 %v3033, %v3145
      %v3147 = vpop.f32.mrb[0].mxu0
      %v3148 = vadd.f32 %v3035, %v3147
      %v3149 = vpop.f32.mrb[0].mxu0
      %v3150 = vadd.f32 %v3037, %v3149
      %3151 = vmatprep.mubr.bf16.mxu0 %v1135
      %3152 = vmatmul.mubr.bf16.gmra.mrb[0].mxu0 %v1134
      %v3153 = vpop.f32.mrb[0].mxu0
      %v3154 = vadd.f32 %v3041, %v3153
      %v3155 = vpop.f32.mrb[0].mxu0
      %v3156 = vadd.f32 %v3043, %v3155
      %v3157 = vpop.f32.mrb[0].mxu0
      %v3158 = vadd.f32 %v3045, %v3157
      %v3159 = vpop.f32.mrb[0].mxu0
      %v3160 = vadd.f32 %v3047, %v3159
      %3161 = vdwg.mxu0
      %3162 = vmatprep.subr.bf16.mxu0 %v2103
      %3163 = vmatpush1.bf16.msra.mxu0 %v2102
      %3164 = vmatprep.subr.bf16.mxu0 %v2107
      %3165 = vmatpush1.bf16.msra.mxu0 %v2106
      %3166 = vmatprep.subr.bf16.mxu0 %v2111
      %3167 = vmatpush1.bf16.msra.mxu0 %v2110
      %3168 = vmatprep.subr.bf16.mxu0 %v2115
      %3169 = vmatpush1.bf16.msra.mxu0 %v2114
      %3170 = vmatprep.subr.bf16.mxu0 %v2119
      %3171 = vmatpush1.bf16.msra.mxu0 %v2118
      %3172 = vmatprep.subr.bf16.mxu0 %v2123
      %3173 = vmatpush1.bf16.msra.mxu0 %v2122
      %3174 = vmatprep.subr.bf16.mxu0 %v2127
      %3175 = vmatpush1.bf16.msra.mxu0 %v2126
      %3176 = vmatprep.subr.bf16.mxu0 %v2131
      %3177 = vmatpush1.bf16.msra.mxu0 %v2130
      %3178 = vmatprep.subr.bf16.mxu0 %v2135
      %3179 = vmatpush1.bf16.msra.mxu0 %v2134
      %3180 = vmatprep.subr.bf16.mxu0 %v2139
      %3181 = vmatpush1.bf16.msra.mxu0 %v2138
      %3182 = vmatprep.subr.bf16.mxu0 %v2143
      %3183 = vmatpush1.bf16.msra.mxu0 %v2142
      %3184 = vmatprep.subr.bf16.mxu0 %v2147
      %3185 = vmatpush1.bf16.msra.mxu0 %v2146
      %3186 = vmatprep.subr.bf16.mxu0 %v2151
      %3187 = vmatpush1.bf16.msra.mxu0 %v2150
      %3188 = vmatprep.subr.bf16.mxu0 %v2155
      %3189 = vmatpush1.bf16.msra.mxu0 %v2154
      %3190 = vmatprep.subr.bf16.mxu0 %v2159
      %3191 = vmatpush1.bf16.msra.mxu0 %v2158
      %3192 = vmatprep.subr.bf16.mxu0 %v2163
      %3193 = vmatpush1.bf16.msra.mxu0 %v2162
      %3194 = vmatprep.mubr.bf16.mxu0 %v1081
      %3195 = vmatmul.mubr.bf16.gmra.mrb[0].mxu0 %v1080
      %v3196 = vpop.f32.mrb[0].mxu0
      %v3197 = vadd.f32 %v3084, %v3196
      %v3198 = vpop.f32.mrb[0].mxu0
      %v3199 = vadd.f32 %v3086, %v3198
      %v3200 = vpop.f32.mrb[0].mxu0
      %v3201 = vadd.f32 %v3088, %v3200
      %v3202 = vpop.f32.mrb[0].mxu0
      %v3203 = vadd.f32 %v3090, %v3202
      %3204 = vmatprep.mubr.bf16.mxu0 %v1089
      %3205 = vmatmul.mubr.bf16.gmra.mrb[0].mxu0 %v1088
      %v3206 = vpop.f32.mrb[0].mxu0
      %v3207 = vadd.f32 %v3094, %v3206
      %v3208 = vpop.f32.mrb[0].mxu0
      %v3209 = vadd.f32 %v3096, %v3208
      %v3210 = vpop.f32.mrb[0].mxu0
      %v3211 = vadd.f32 %v3098, %v3210
      %v3212 = vpop.f32.mrb[0].mxu0
      %v3213 = vadd.f32 %v3100, %v3212
      %3214 = vmatprep.mubr.bf16.mxu0 %v1097
      %3215 = vmatmul.mubr.bf16.gmra.mrb[0].mxu0 %v1096
      %v3216 = vpop.f32.mrb[0].mxu0
      %v3217 = vadd.f32 %v3104, %v3216
      %v3218 = vpop.f32.mrb[0].mxu0
      %v3219 = vadd.f32 %v3106, %v3218
      %v3220 = vpop.f32.mrb[0].mxu0
      %v3221 = vadd.f32 %v3108, %v3220
      %v3222 = vpop.f32.mrb[0].mxu0
      %v3223 = vadd.f32 %v3110, %v3222
      %3224 = vmatprep.mubr.bf16.mxu0 %v1105
      %3225 = vmatmul.mubr.bf16.gmra.mrb[0].mxu0 %v1104
      %v3226 = vpop.f32.mrb[0].mxu0
      %v3227 = vadd.f32 %v3114, %v3226
      %v3228 = vpop.f32.mrb[0].mxu0
      %v3229 = vadd.f32 %v3116, %v3228
      %v3230 = vpop.f32.mrb[0].mxu0
      %v3231 = vadd.f32 %v3118, %v3230
      %v3232 = vpop.f32.mrb[0].mxu0
      %v3233 = vadd.f32 %v3120, %v3232
      %3234 = vmatprep.mubr.bf16.mxu0 %v1113
      %3235 = vmatmul.mubr.bf16.gmra.mrb[0].mxu0 %v1112
      %v3236 = vpop.f32.mrb[0].mxu0
      %v3237 = vadd.f32 %v3124, %v3236
      %v3238 = vpop.f32.mrb[0].mxu0
      %v3239 = vadd.f32 %v3126, %v3238
      %v3240 = vpop.f32.mrb[0].mxu0
      %v3241 = vadd.f32 %v3128, %v3240
      %v3242 = vpop.f32.mrb[0].mxu0
      %v3243 = vadd.f32 %v3130, %v3242
      %3244 = vmatprep.mubr.bf16.mxu0 %v1121
      %3245 = vmatmul.mubr.bf16.gmra.mrb[0].mxu0 %v1120
      %v3246 = vpop.f32.mrb[0].mxu0
      %v3247 = vadd.f32 %v3134, %v3246
      %v3248 = vpop.f32.mrb[0].mxu0
      %v3249 = vadd.f32 %v3136, %v3248
      %v3250 = vpop.f32.mrb[0].mxu0
      %v3251 = vadd.f32 %v3138, %v3250
      %v3252 = vpop.f32.mrb[0].mxu0
      %v3253 = vadd.f32 %v3140, %v3252
      %3254 = vmatprep.mubr.bf16.mxu0 %v1129
      %3255 = vmatmul.mubr.bf16.gmra.mrb[0].mxu0 %v1128
      %v3256 = vpop.f32.mrb[0].mxu0
      %v3257 = vadd.f32 %v3144, %v3256
      %v3258 = vpop.f32.mrb[0].mxu0
      %v3259 = vadd.f32 %v3146, %v3258
      %v3260 = vpop.f32.mrb[0].mxu0
      %v3261 = vadd.f32 %v3148, %v3260
      %v3262 = vpop.f32.mrb[0].mxu0
      %v3263 = vadd.f32 %v3150, %v3262
      %3264 = vmatprep.mubr.bf16.mxu0 %v1137
      %3265 = vmatmul.mubr.bf16.gmra.mrb[0].mxu0 %v1136
      %v3266 = vpop.f32.mrb[0].mxu0
      %v3267 = vadd.f32 %v3154, %v3266
      %v3268 = vpop.f32.mrb[0].mxu0
      %v3269 = vadd.f32 %v3156, %v3268
      %v3270 = vpop.f32.mrb[0].mxu0
      %v3271 = vadd.f32 %v3158, %v3270
      %v3272 = vpop.f32.mrb[0].mxu0
      %v3273 = vadd.f32 %v3160, %v3272
      %3274 = vdwg.mxu0
      %3275 = vmatprep.subr.bf16.mxu0 %v2167
      %3276 = vmatpush1.bf16.msra.mxu0 %v2166
      %3277 = vmatprep.subr.bf16.mxu0 %v2171
      %3278 = vmatpush1.bf16.msra.mxu0 %v2170
      %3279 = vmatprep.subr.bf16.mxu0 %v2175
      %3280 = vmatpush1.bf16.msra.mxu0 %v2174
      %3281 = vmatprep.subr.bf16.mxu0 %v2179
      %3282 = vmatpush1.bf16.msra.mxu0 %v2178
      %3283 = vmatprep.subr.bf16.mxu0 %v2183
      %3284 = vmatpush1.bf16.msra.mxu0 %v2182
      %3285 = vmatprep.subr.bf16.mxu0 %v2187
      %3286 = vmatpush1.bf16.msra.mxu0 %v2186
      %3287 = vmatprep.subr.bf16.mxu0 %v2191
      %3288 = vmatpush1.bf16.msra.mxu0 %v2190
      %3289 = vmatprep.subr.bf16.mxu0 %v2195
      %3290 = vmatpush1.bf16.msra.mxu0 %v2194
      %3291 = vmatprep.subr.bf16.mxu0 %v2199
      %3292 = vmatpush1.bf16.msra.mxu0 %v2198
      %3293 = vmatprep.subr.bf16.mxu0 %v2203
      %3294 = vmatpush1.bf16.msra.mxu0 %v2202
      %3295 = vmatprep.subr.bf16.mxu0 %v2207
      %3296 = vmatpush1.bf16.msra.mxu0 %v2206
      %3297 = vmatprep.subr.bf16.mxu0 %v2211
      %3298 = vmatpush1.bf16.msra.mxu0 %v2210
      %3299 = vmatprep.subr.bf16.mxu0 %v2215
      %3300 = vmatpush1.bf16.msra.mxu0 %v2214
      %3301 = vmatprep.subr.bf16.mxu0 %v2219
      %3302 = vmatpush1.bf16.msra.mxu0 %v2218
      %3303 = vmatprep.subr.bf16.mxu0 %v2223
      %3304 = vmatpush1.bf16.msra.mxu0 %v2222
      %3305 = vmatprep.subr.bf16.mxu0 %v2227
      %3306 = vmatpush1.bf16.msra.mxu0 %v2226
      %3307 = vmatprep.mubr.bf16.mxu0 %v1083
      %3308 = vmatmul.mubr.bf16.gmra.mrb[0].mxu0 %v1082
      %v3309 = vpop.f32.mrb[0].mxu0
      %v3310 = vadd.f32 %v3197, %v3309
      %v3311 = vpop.f32.mrb[0].mxu0
      %v3312 = vadd.f32 %v3199, %v3311
      %v3313 = vpop.f32.mrb[0].mxu0
      %v3314 = vadd.f32 %v3201, %v3313
      %v3315 = vpop.f32.mrb[0].mxu0
      %v3316 = vadd.f32 %v3203, %v3315
      %3317 = vmatprep.mubr.bf16.mxu0 %v1091
      %3318 = vmatmul.mubr.bf16.gmra.mrb[0].mxu0 %v1090
      %v3319 = vpop.f32.mrb[0].mxu0
      %v3320 = vadd.f32 %v3207, %v3319
      %v3321 = vpop.f32.mrb[0].mxu0
      %v3322 = vadd.f32 %v3209, %v3321
      %v3323 = vpop.f32.mrb[0].mxu0
      %v3324 = vadd.f32 %v3211, %v3323
      %v3325 = vpop.f32.mrb[0].mxu0
      %v3326 = vadd.f32 %v3213, %v3325
      %3327 = vmatprep.mubr.bf16.mxu0 %v1099
      %3328 = vmatmul.mubr.bf16.gmra.mrb[0].mxu0 %v1098
      %v3329 = vpop.f32.mrb[0].mxu0
      %v3330 = vadd.f32 %v3217, %v3329
      %v3331 = vpop.f32.mrb[0].mxu0
      %v3332 = vadd.f32 %v3219, %v3331
      %v3333 = vpop.f32.mrb[0].mxu0
      %v3334 = vadd.f32 %v3221, %v3333
      %v3335 = vpop.f32.mrb[0].mxu0
      %v3336 = vadd.f32 %v3223, %v3335
      %3337 = vmatprep.mubr.bf16.mxu0 %v1107
      %3338 = vmatmul.mubr.bf16.gmra.mrb[0].mxu0 %v1106
      %v3339 = vpop.f32.mrb[0].mxu0
      %v3340 = vadd.f32 %v3227, %v3339
      %v3341 = vpop.f32.mrb[0].mxu0
      %v3342 = vadd.f32 %v3229, %v3341
      %v3343 = vpop.f32.mrb[0].mxu0
      %v3344 = vadd.f32 %v3231, %v3343
      %v3345 = vpop.f32.mrb[0].mxu0
      %v3346 = vadd.f32 %v3233, %v3345
      %3347 = vmatprep.mubr.bf16.mxu0 %v1115
      %3348 = vmatmul.mubr.bf16.gmra.mrb[0].mxu0 %v1114
      %v3349 = vpop.f32.mrb[0].mxu0
      %v3350 = vadd.f32 %v3237, %v3349
      %v3351 = vpop.f32.mrb[0].mxu0
      %v3352 = vadd.f32 %v3239, %v3351
      %v3353 = vpop.f32.mrb[0].mxu0
      %v3354 = vadd.f32 %v3241, %v3353
      %v3355 = vpop.f32.mrb[0].mxu0
      %v3356 = vadd.f32 %v3243, %v3355
      %3357 = vmatprep.mubr.bf16.mxu0 %v1123
      %3358 = vmatmul.mubr.bf16.gmra.mrb[0].mxu0 %v1122
      %v3359 = vpop.f32.mrb[0].mxu0
      %v3360 = vadd.f32 %v3247, %v3359
      %v3361 = vpop.f32.mrb[0].mxu0
      %v3362 = vadd.f32 %v3249, %v3361
      %v3363 = vpop.f32.mrb[0].mxu0
      %v3364 = vadd.f32 %v3251, %v3363
      %v3365 = vpop.f32.mrb[0].mxu0
      %v3366 = vadd.f32 %v3253, %v3365
      %3367 = vmatprep.mubr.bf16.mxu0 %v1131
      %3368 = vmatmul.mubr.bf16.gmra.mrb[0].mxu0 %v1130
      %v3369 = vpop.f32.mrb[0].mxu0
      %v3370 = vadd.f32 %v3257, %v3369
      %v3371 = vpop.f32.mrb[0].mxu0
      %v3372 = vadd.f32 %v3259, %v3371
      %v3373 = vpop.f32.mrb[0].mxu0
      %v3374 = vadd.f32 %v3261, %v3373
      %v3375 = vpop.f32.mrb[0].mxu0
      %v3376 = vadd.f32 %v3263, %v3375
      %3377 = vmatprep.mubr.bf16.mxu0 %v1139
      %3378 = vmatmul.mubr.bf16.gmra.mrb[0].mxu0 %v1138
      %v3379 = vpop.f32.mrb[0].mxu0
      %v3380 = vadd.f32 %v3267, %v3379
      %v3381 = vpop.f32.mrb[0].mxu0
      %v3382 = vadd.f32 %v3269, %v3381
      %v3383 = vpop.f32.mrb[0].mxu0
      %v3384 = vadd.f32 %v3271, %v3383
      %v3385 = vpop.f32.mrb[0].mxu0
      %v3386 = vadd.f32 %v3273, %v3385
      %3387 = vdwg.mxu0
      %v3388 = vmax.f32 %v2858, 0.0
      %v3389 = vmax.f32 %v2860, 0.0
      %v3390 = vmax.f32 %v3310, 0.0
      %v3391 = vmax.f32 %v3312, 0.0
      %v3392 = vmax.f32 %v2862, 0.0
      %v3393 = vmax.f32 %v2864, 0.0
      %v3394 = vmax.f32 %v3314, 0.0
      %v3395 = vmax.f32 %v3316, 0.0
      %v3396 = vmax.f32 %v2868, 0.0
      %v3397 = vmax.f32 %v2870, 0.0
      %v3398 = vmax.f32 %v3320, 0.0
      %v3399 = vmax.f32 %v3322, 0.0
      %v3400 = vmax.f32 %v2872, 0.0
      %v3401 = vmax.f32 %v2874, 0.0
      %v3402 = vmax.f32 %v3324, 0.0
      %v3403 = vmax.f32 %v3326, 0.0
      %v3404 = vmax.f32 %v2878, 0.0
      %v3405 = vmax.f32 %v2880, 0.0
      %v3406 = vmax.f32 %v3330, 0.0
      %v3407 = vmax.f32 %v3332, 0.0
      %v3408 = vmax.f32 %v2882, 0.0
      %v3409 = vmax.f32 %v2884, 0.0
      %v3410 = vmax.f32 %v3334, 0.0
      %v3411 = vmax.f32 %v3336, 0.0
      %v3412 = vmax.f32 %v2888, 0.0
      %v3413 = vmax.f32 %v2890, 0.0
      %v3414 = vmax.f32 %v3340, 0.0
      %v3415 = vmax.f32 %v3342, 0.0
      %v3416 = vmax.f32 %v2892, 0.0
      %v3417 = vmax.f32 %v2894, 0.0
      %v3418 = vmax.f32 %v3344, 0.0
      %v3419 = vmax.f32 %v3346, 0.0
      %v3420 = vmax.f32 %v2898, 0.0
      %v3421 = vmax.f32 %v2900, 0.0
      %v3422 = vmax.f32 %v3350, 0.0
      %v3423 = vmax.f32 %v3352, 0.0
      %v3424 = vmax.f32 %v2902, 0.0
      %v3425 = vmax.f32 %v2904, 0.0
      %v3426 = vmax.f32 %v3354, 0.0
      %v3427 = vmax.f32 %v3356, 0.0
      %v3428 = vmax.f32 %v2908, 0.0
      %v3429 = vmax.f32 %v2910, 0.0
      %v3430 = vmax.f32 %v3360, 0.0
      %v3431 = vmax.f32 %v3362, 0.0
      %v3432 = vmax.f32 %v2912, 0.0
      %v3433 = vmax.f32 %v2914, 0.0
      %v3434 = vmax.f32 %v3364, 0.0
      %v3435 = vmax.f32 %v3366, 0.0
      %v3436 = vmax.f32 %v2918, 0.0
      %v3437 = vmax.f32 %v2920, 0.0
      %v3438 = vmax.f32 %v3370, 0.0
      %v3439 = vmax.f32 %v3372, 0.0
      %v3440 = vmax.f32 %v2922, 0.0
      %v3441 = vmax.f32 %v2924, 0.0
      %v3442 = vmax.f32 %v3374, 0.0
      %v3443 = vmax.f32 %v3376, 0.0
      %v3444 = vmax.f32 %v2928, 0.0
      %v3445 = vmax.f32 %v2930, 0.0
      %v3446 = vmax.f32 %v3380, 0.0
      %v3447 = vmax.f32 %v3382, 0.0
      %v3448 = vmax.f32 %v2932, 0.0
      %v3449 = vmax.f32 %v2934, 0.0
      %v3450 = vmax.f32 %v3384, 0.0
      %v3451 = vmax.f32 %v3386, 0.0
      %v3452 = vpack.c.bf16 %v3392, %v3388
      %v3453 = vpack.c.bf16 %v3393, %v3389
      %v3454 = vpack.c.bf16 %v3394, %v3390
      %v3455 = vpack.c.bf16 %v3395, %v3391
      %v3456 = vpack.c.bf16 %v3400, %v3396
      %v3457 = vpack.c.bf16 %v3401, %v3397
      %v3458 = vpack.c.bf16 %v3402, %v3398
      %v3459 = vpack.c.bf16 %v3403, %v3399
      %v3460 = vpack.c.bf16 %v3408, %v3404
      %v3461 = vpack.c.bf16 %v3409, %v3405
      %v3462 = vpack.c.bf16 %v3410, %v3406
      %v3463 = vpack.c.bf16 %v3411, %v3407
      %v3464 = vpack.c.bf16 %v3416, %v3412
      %v3465 = vpack.c.bf16 %v3417, %v3413
      %v3466 = vpack.c.bf16 %v3418, %v3414
      %v3467 = vpack.c.bf16 %v3419, %v3415
      %v3468 = vpack.c.bf16 %v3424, %v3420
      %v3469 = vpack.c.bf16 %v3425, %v3421
      %v3470 = vpack.c.bf16 %v3426, %v3422
      %v3471 = vpack.c.bf16 %v3427, %v3423
      %v3472 = vpack.c.bf16 %v3432, %v3428
      %v3473 = vpack.c.bf16 %v3433, %v3429
      %v3474 = vpack.c.bf16 %v3434, %v3430
      %v3475 = vpack.c.bf16 %v3435, %v3431
      %v3476 = vpack.c.bf16 %v3440, %v3436
      %v3477 = vpack.c.bf16 %v3441, %v3437
      %v3478 = vpack.c.bf16 %v3442, %v3438
      %v3479 = vpack.c.bf16 %v3443, %v3439
      %v3480 = vpack.c.bf16 %v3448, %v3444
      %v3481 = vpack.c.bf16 %v3449, %v3445
      %v3482 = vpack.c.bf16 %v3450, %v3446
      %v3483 = vpack.c.bf16 %v3451, %v3447
      %v3484 = vld [vmem:[%s5] sm:$0xff]
      %v3485 = vld [vmem:[%s5 + $0x8] sm:$0xff]
      %v3486 = vld [vmem:[%s5 + $0x10] sm:$0xff]
      %v3487 = vld [vmem:[%s5 + $0x18] sm:$0xff]
      %v3488 = vld [vmem:[%s5 + $0x20] sm:$0xff]
      %v3489 = vld [vmem:[%s5 + $0x28] sm:$0xff]
      %v3490 = vld [vmem:[%s5 + $0x30] sm:$0xff]
      %v3491 = vld [vmem:[%s5 + $0x38] sm:$0xff]
      %v3492 = vld [vmem:[%s5 + $0x40] sm:$0xff]
      %v3493 = vld [vmem:[%s5 + $0x48] sm:$0xff]
      %v3494 = vld [vmem:[%s5 + $0x50] sm:$0xff]
      %v3495 = vld [vmem:[%s5 + $0x58] sm:$0xff]
      %v3496 = vld [vmem:[%s5 + $0x60] sm:$0xff]
      %v3497 = vld [vmem:[%s5 + $0x68] sm:$0xff]
      %v3498 = vld [vmem:[%s5 + $0x70] sm:$0xff]
      %v3499 = vld [vmem:[%s5 + $0x78] sm:$0xff]
      %v3500 = vld [vmem:[%s5 + $0x80] sm:$0xff]
      %v3501 = vld [vmem:[%s5 + $0x88] sm:$0xff]
      %v3502 = vld [vmem:[%s5 + $0x90] sm:$0xff]
      %v3503 = vld [vmem:[%s5 + $0x98] sm:$0xff]
      %v3504 = vld [vmem:[%s5 + $0xa0] sm:$0xff]
      %v3505 = vld [vmem:[%s5 + $0xa8] sm:$0xff]
      %v3506 = vld [vmem:[%s5 + $0xb0] sm:$0xff]
      %v3507 = vld [vmem:[%s5 + $0xb8] sm:$0xff]
      %v3508 = vld [vmem:[%s5 + $0xc0] sm:$0xff]
      %v3509 = vld [vmem:[%s5 + $0xc8] sm:$0xff]
      %v3510 = vld [vmem:[%s5 + $0xd0] sm:$0xff]
      %v3511 = vld [vmem:[%s5 + $0xd8] sm:$0xff]
      %v3512 = vld [vmem:[%s5 + $0xe0] sm:$0xff]
      %v3513 = vld [vmem:[%s5 + $0xe8] sm:$0xff]
      %v3514 = vld [vmem:[%s5 + $0xf0] sm:$0xff]
      %v3515 = vld [vmem:[%s5 + $0xf8] sm:$0xff]
      %v3516 = vld [vmem:[%s5 + $0x100] sm:$0xff]
      %v3517 = vld [vmem:[%s5 + $0x108] sm:$0xff]
      %v3518 = vld [vmem:[%s5 + $0x110] sm:$0xff]
      %v3519 = vld [vmem:[%s5 + $0x118] sm:$0xff]
      %v3520 = vld [vmem:[%s5 + $0x120] sm:$0xff]
      %v3521 = vld [vmem:[%s5 + $0x128] sm:$0xff]
      %v3522 = vld [vmem:[%s5 + $0x130] sm:$0xff]
      %v3523 = vld [vmem:[%s5 + $0x138] sm:$0xff]
      %v3524 = vld [vmem:[%s5 + $0x140] sm:$0xff]
      %v3525 = vld [vmem:[%s5 + $0x148] sm:$0xff]
      %v3526 = vld [vmem:[%s5 + $0x150] sm:$0xff]
      %v3527 = vld [vmem:[%s5 + $0x158] sm:$0xff]
      %v3528 = vld [vmem:[%s5 + $0x160] sm:$0xff]
      %v3529 = vld [vmem:[%s5 + $0x168] sm:$0xff]
      %v3530 = vld [vmem:[%s5 + $0x170] sm:$0xff]
      %v3531 = vld [vmem:[%s5 + $0x178] sm:$0xff]
      %v3532 = vld [vmem:[%s5 + $0x180] sm:$0xff]
      %v3533 = vld [vmem:[%s5 + $0x188] sm:$0xff]
      %v3534 = vld [vmem:[%s5 + $0x190] sm:$0xff]
      %v3535 = vld [vmem:[%s5 + $0x198] sm:$0xff]
      %v3536 = vld [vmem:[%s5 + $0x1a0] sm:$0xff]
      %v3537 = vld [vmem:[%s5 + $0x1a8] sm:$0xff]
      %v3538 = vld [vmem:[%s5 + $0x1b0] sm:$0xff]
      %v3539 = vld [vmem:[%s5 + $0x1b8] sm:$0xff]
      %v3540 = vld [vmem:[%s5 + $0x1c0] sm:$0xff]
      %v3541 = vld [vmem:[%s5 + $0x1c8] sm:$0xff]
      %v3542 = vld [vmem:[%s5 + $0x1d0] sm:$0xff]
      %v3543 = vld [vmem:[%s5 + $0x1d8] sm:$0xff]
      %v3544 = vld [vmem:[%s5 + $0x1e0] sm:$0xff]
      %v3545 = vld [vmem:[%s5 + $0x1e8] sm:$0xff]
      %v3546 = vld [vmem:[%s5 + $0x1f0] sm:$0xff]
      %v3547 = vld [vmem:[%s5 + $0x1f8] sm:$0xff]
      %v3548 = vld [vmem:[%s6] sm:$0x3]
      %v3550 = vlaneseq
      %v3551 = vshrl.u32 %v3550, 7
      %v3552 = vsub.s32 0, %v3551
      %v3553 = vrot.slane %v3548, %v3552
      %v3554 = vlaneseq
      %v3555 = vshrl.u32 %v3554, 7
      %v3556 = vsub.s32 1, %v3555
      %v3557 = vrot.slane %v3548, %v3556
      %v3624 = vunpack.c.l.b16 %v3484
      %v3625 = vunpack.c.h.b16 %v3484
      %v3626 = vunpack.c.l.b16 %v3485
      %v3627 = vunpack.c.h.b16 %v3485
      %v3628 = vunpack.c.l.b16 %v3486
      %v3629 = vunpack.c.h.b16 %v3486
      %v3630 = vunpack.c.l.b16 %v3487
      %v3631 = vunpack.c.h.b16 %v3487
      %v3632 = vunpack.c.l.b16 %v3488
      %v3633 = vunpack.c.h.b16 %v3488
      %v3634 = vunpack.c.l.b16 %v3489
      %v3635 = vunpack.c.h.b16 %v3489
      %v3636 = vunpack.c.l.b16 %v3490
      %v3637 = vunpack.c.h.b16 %v3490
      %v3638 = vunpack.c.l.b16 %v3491
      %v3639 = vunpack.c.h.b16 %v3491
      %v3640 = vunpack.c.l.b16 %v3492
      %v3641 = vunpack.c.h.b16 %v3492
      %v3642 = vunpack.c.l.b16 %v3493
      %v3643 = vunpack.c.h.b16 %v3493
      %v3644 = vunpack.c.l.b16 %v3494
      %v3645 = vunpack.c.h.b16 %v3494
      %v3646 = vunpack.c.l.b16 %v3495
      %v3647 = vunpack.c.h.b16 %v3495
      %v3648 = vunpack.c.l.b16 %v3496
      %v3649 = vunpack.c.h.b16 %v3496
      %v3650 = vunpack.c.l.b16 %v3497
      %v3651 = vunpack.c.h.b16 %v3497
      %v3652 = vunpack.c.l.b16 %v3498
      %v3653 = vunpack.c.h.b16 %v3498
      %v3654 = vunpack.c.l.b16 %v3499
      %v3655 = vunpack.c.h.b16 %v3499
      %v3656 = vunpack.c.l.b16 %v3500
      %v3657 = vunpack.c.h.b16 %v3500
      %v3658 = vunpack.c.l.b16 %v3501
      %v3659 = vunpack.c.h.b16 %v3501
      %v3660 = vunpack.c.l.b16 %v3502
      %v3661 = vunpack.c.h.b16 %v3502
      %v3662 = vunpack.c.l.b16 %v3503
      %v3663 = vunpack.c.h.b16 %v3503
      %v3664 = vunpack.c.l.b16 %v3504
      %v3665 = vunpack.c.h.b16 %v3504
      %v3666 = vunpack.c.l.b16 %v3505
      %v3667 = vunpack.c.h.b16 %v3505
      %v3668 = vunpack.c.l.b16 %v3506
      %v3669 = vunpack.c.h.b16 %v3506
      %v3670 = vunpack.c.l.b16 %v3507
      %v3671 = vunpack.c.h.b16 %v3507
      %v3672 = vunpack.c.l.b16 %v3508
      %v3673 = vunpack.c.h.b16 %v3508
      %v3674 = vunpack.c.l.b16 %v3509
      %v3675 = vunpack.c.h.b16 %v3509
      %v3676 = vunpack.c.l.b16 %v3510
      %v3677 = vunpack.c.h.b16 %v3510
      %v3678 = vunpack.c.l.b16 %v3511
      %v3679 = vunpack.c.h.b16 %v3511
      %v3680 = vunpack.c.l.b16 %v3512
      %v3681 = vunpack.c.h.b16 %v3512
      %v3682 = vunpack.c.l.b16 %v3513
      %v3683 = vunpack.c.h.b16 %v3513
      %v3684 = vunpack.c.l.b16 %v3514
      %v3685 = vunpack.c.h.b16 %v3514
      %v3686 = vunpack.c.l.b16 %v3515
      %v3687 = vunpack.c.h.b16 %v3515
      %v3688 = vunpack.c.l.b16 %v3516
      %v3689 = vunpack.c.h.b16 %v3516
      %v3690 = vunpack.c.l.b16 %v3517
      %v3691 = vunpack.c.h.b16 %v3517
      %v3692 = vunpack.c.l.b16 %v3518
      %v3693 = vunpack.c.h.b16 %v3518
      %v3694 = vunpack.c.l.b16 %v3519
      %v3695 = vunpack.c.h.b16 %v3519
      %v3696 = vunpack.c.l.b16 %v3520
      %v3697 = vunpack.c.h.b16 %v3520
      %v3698 = vunpack.c.l.b16 %v3521
      %v3699 = vunpack.c.h.b16 %v3521
      %v3700 = vunpack.c.l.b16 %v3522
      %v3701 = vunpack.c.h.b16 %v3522
      %v3702 = vunpack.c.l.b16 %v3523
      %v3703 = vunpack.c.h.b16 %v3523
      %v3704 = vunpack.c.l.b16 %v3524
      %v3705 = vunpack.c.h.b16 %v3524
      %v3706 = vunpack.c.l.b16 %v3525
      %v3707 = vunpack.c.h.b16 %v3525
      %v3708 = vunpack.c.l.b16 %v3526
      %v3709 = vunpack.c.h.b16 %v3526
      %v3710 = vunpack.c.l.b16 %v3527
      %v3711 = vunpack.c.h.b16 %v3527
      %v3712 = vunpack.c.l.b16 %v3528
      %v3713 = vunpack.c.h.b16 %v3528
      %v3714 = vunpack.c.l.b16 %v3529
      %v3715 = vunpack.c.h.b16 %v3529
      %v3716 = vunpack.c.l.b16 %v3530
      %v3717 = vunpack.c.h.b16 %v3530
      %v3718 = vunpack.c.l.b16 %v3531
      %v3719 = vunpack.c.h.b16 %v3531
      %v3720 = vunpack.c.l.b16 %v3532
      %v3721 = vunpack.c.h.b16 %v3532
      %v3722 = vunpack.c.l.b16 %v3533
      %v3723 = vunpack.c.h.b16 %v3533
      %v3724 = vunpack.c.l.b16 %v3534
      %v3725 = vunpack.c.h.b16 %v3534
      %v3726 = vunpack.c.l.b16 %v3535
      %v3727 = vunpack.c.h.b16 %v3535
      %v3728 = vunpack.c.l.b16 %v3536
      %v3729 = vunpack.c.h.b16 %v3536
      %v3730 = vunpack.c.l.b16 %v3537
      %v3731 = vunpack.c.h.b16 %v3537
      %v3732 = vunpack.c.l.b16 %v3538
      %v3733 = vunpack.c.h.b16 %v3538
      %v3734 = vunpack.c.l.b16 %v3539
      %v3735 = vunpack.c.h.b16 %v3539
      %v3736 = vunpack.c.l.b16 %v3540
      %v3737 = vunpack.c.h.b16 %v3540
      %v3738 = vunpack.c.l.b16 %v3541
      %v3739 = vunpack.c.h.b16 %v3541
      %v3740 = vunpack.c.l.b16 %v3542
      %v3741 = vunpack.c.h.b16 %v3542
      %v3742 = vunpack.c.l.b16 %v3543
      %v3743 = vunpack.c.h.b16 %v3543
      %v3744 = vunpack.c.l.b16 %v3544
      %v3745 = vunpack.c.h.b16 %v3544
      %v3746 = vunpack.c.l.b16 %v3545
      %v3747 = vunpack.c.h.b16 %v3545
      %v3748 = vunpack.c.l.b16 %v3546
      %v3749 = vunpack.c.h.b16 %v3546
      %v3750 = vunpack.c.l.b16 %v3547
      %v3751 = vunpack.c.h.b16 %v3547
      %v3752 = vpack.c.b16 %v3626, %v3624
      %v3753 = vpack.c.b16 %v3627, %v3625
      %v3754 = vpack.c.b16 %v3630, %v3628
      %v3755 = vpack.c.b16 %v3631, %v3629
      %v3756 = vpack.c.b16 %v3634, %v3632
      %v3757 = vpack.c.b16 %v3635, %v3633
      %v3758 = vpack.c.b16 %v3638, %v3636
      %v3759 = vpack.c.b16 %v3639, %v3637
      %v3760 = vpack.c.b16 %v3642, %v3640
      %v3761 = vpack.c.b16 %v3643, %v3641
      %v3762 = vpack.c.b16 %v3646, %v3644
      %v3763 = vpack.c.b16 %v3647, %v3645
      %v3764 = vpack.c.b16 %v3650, %v3648
      %v3765 = vpack.c.b16 %v3651, %v3649
      %v3766 = vpack.c.b16 %v3654, %v3652
      %v3767 = vpack.c.b16 %v3655, %v3653
      %v3768 = vpack.c.b16 %v3658, %v3656
      %v3769 = vpack.c.b16 %v3659, %v3657
      %v3770 = vpack.c.b16 %v3662, %v3660
      %v3771 = vpack.c.b16 %v3663, %v3661
      %v3772 = vpack.c.b16 %v3666, %v3664
      %v3773 = vpack.c.b16 %v3667, %v3665
      %v3774 = vpack.c.b16 %v3670, %v3668
      %v3775 = vpack.c.b16 %v3671, %v3669
      %v3776 = vpack.c.b16 %v3674, %v3672
      %v3777 = vpack.c.b16 %v3675, %v3673
      %v3778 = vpack.c.b16 %v3678, %v3676
      %v3779 = vpack.c.b16 %v3679, %v3677
      %v3780 = vpack.c.b16 %v3682, %v3680
      %v3781 = vpack.c.b16 %v3683, %v3681
      %v3782 = vpack.c.b16 %v3686, %v3684
      %v3783 = vpack.c.b16 %v3687, %v3685
      %v3784 = vpack.c.b16 %v3690, %v3688
      %v3785 = vpack.c.b16 %v3691, %v3689
      %v3786 = vpack.c.b16 %v3694, %v3692
      %v3787 = vpack.c.b16 %v3695, %v3693
      %v3788 = vpack.c.b16 %v3698, %v3696
      %v3789 = vpack.c.b16 %v3699, %v3697
      %v3790 = vpack.c.b16 %v3702, %v3700
      %v3791 = vpack.c.b16 %v3703, %v3701
      %v3792 = vpack.c.b16 %v3706, %v3704
      %v3793 = vpack.c.b16 %v3707, %v3705
      %v3794 = vpack.c.b16 %v3710, %v3708
      %v3795 = vpack.c.b16 %v3711, %v3709
      %v3796 = vpack.c.b16 %v3714, %v3712
      %v3797 = vpack.c.b16 %v3715, %v3713
      %v3798 = vpack.c.b16 %v3718, %v3716
      %v3799 = vpack.c.b16 %v3719, %v3717
      %v3800 = vpack.c.b16 %v3722, %v3720
      %v3801 = vpack.c.b16 %v3723, %v3721
      %v3802 = vpack.c.b16 %v3726, %v3724
      %v3803 = vpack.c.b16 %v3727, %v3725
      %v3804 = vpack.c.b16 %v3730, %v3728
      %v3805 = vpack.c.b16 %v3731, %v3729
      %v3806 = vpack.c.b16 %v3734, %v3732
      %v3807 = vpack.c.b16 %v3735, %v3733
      %v3808 = vpack.c.b16 %v3738, %v3736
      %v3809 = vpack.c.b16 %v3739, %v3737
      %v3810 = vpack.c.b16 %v3742, %v3740
      %v3811 = vpack.c.b16 %v3743, %v3741
      %v3812 = vpack.c.b16 %v3746, %v3744
      %v3813 = vpack.c.b16 %v3747, %v3745
      %v3814 = vpack.c.b16 %v3750, %v3748
      %v3815 = vpack.c.b16 %v3751, %v3749
      %3880 = vmatprep.subr.bf16.mxu0 %v3753
      %3881 = vmatpush1.bf16.msra.mxu0 %v3752
      %3882 = vmatprep.subr.bf16.mxu0 %v3755
      %3883 = vmatpush1.bf16.msra.mxu0 %v3754
      %3884 = vmatprep.subr.bf16.mxu0 %v3757
      %3885 = vmatpush1.bf16.msra.mxu0 %v3756
      %3886 = vmatprep.subr.bf16.mxu0 %v3759
      %3887 = vmatpush1.bf16.msra.mxu0 %v3758
      %3888 = vmatprep.subr.bf16.mxu0 %v3761
      %3889 = vmatpush1.bf16.msra.mxu0 %v3760
      %3890 = vmatprep.subr.bf16.mxu0 %v3763
      %3891 = vmatpush1.bf16.msra.mxu0 %v3762
      %3892 = vmatprep.subr.bf16.mxu0 %v3765
      %3893 = vmatpush1.bf16.msra.mxu0 %v3764
      %3894 = vmatprep.subr.bf16.mxu0 %v3767
      %3895 = vmatpush1.bf16.msra.mxu0 %v3766
      %3896 = vmatprep.subr.bf16.mxu0 %v3769
      %3897 = vmatpush1.bf16.msra.mxu0 %v3768
      %3898 = vmatprep.subr.bf16.mxu0 %v3771
      %3899 = vmatpush1.bf16.msra.mxu0 %v3770
      %3900 = vmatprep.subr.bf16.mxu0 %v3773
      %3901 = vmatpush1.bf16.msra.mxu0 %v3772
      %3902 = vmatprep.subr.bf16.mxu0 %v3775
      %3903 = vmatpush1.bf16.msra.mxu0 %v3774
      %3904 = vmatprep.subr.bf16.mxu0 %v3777
      %3905 = vmatpush1.bf16.msra.mxu0 %v3776
      %3906 = vmatprep.subr.bf16.mxu0 %v3779
      %3907 = vmatpush1.bf16.msra.mxu0 %v3778
      %3908 = vmatprep.subr.bf16.mxu0 %v3781
      %3909 = vmatpush1.bf16.msra.mxu0 %v3780
      %3910 = vmatprep.subr.bf16.mxu0 %v3783
      %3911 = vmatpush1.bf16.msra.mxu0 %v3782
      %3912 = vmatprep.mubr.bf16.mxu0 %v3453
      %3913 = vmatmul.mubr.bf16.gmra.mrb[0].mxu0 %v3452
      %v3914 = vpop.f32.mrb[0].mxu0
      %v3915 = vadd.f32 %v3553, %v3914
      %v3916 = vpop.f32.mrb[0].mxu0
      %v3917 = vadd.f32 %v3557, %v3916
      %v3918 = vpop.f32.mrb[0].mxu0
      %v3919 = vadd.f32 %v3553, %v3918
      %v3920 = vpop.f32.mrb[0].mxu0
      %v3921 = vadd.f32 %v3557, %v3920
      %3922 = vmatprep.mubr.bf16.mxu0 %v3457
      %3923 = vmatmul.mubr.bf16.gmra.mrb[0].mxu0 %v3456
      %v3924 = vpop.f32.mrb[0].mxu0
      %v3925 = vadd.f32 %v3553, %v3924
      %v3926 = vpop.f32.mrb[0].mxu0
      %v3927 = vadd.f32 %v3557, %v3926
      %v3928 = vpop.f32.mrb[0].mxu0
      %v3929 = vadd.f32 %v3553, %v3928
      %v3930 = vpop.f32.mrb[0].mxu0
      %v3931 = vadd.f32 %v3557, %v3930
      %3932 = vmatprep.mubr.bf16.mxu0 %v3461
      %3933 = vmatmul.mubr.bf16.gmra.mrb[0].mxu0 %v3460
      %v3934 = vpop.f32.mrb[0].mxu0
      %v3935 = vadd.f32 %v3553, %v3934
      %v3936 = vpop.f32.mrb[0].mxu0
      %v3937 = vadd.f32 %v3557, %v3936
      %v3938 = vpop.f32.mrb[0].mxu0
      %v3939 = vadd.f32 %v3553, %v3938
      %v3940 = vpop.f32.mrb[0].mxu0
      %v3941 = vadd.f32 %v3557, %v3940
      %3942 = vmatprep.mubr.bf16.mxu0 %v3465
      %3943 = vmatmul.mubr.bf16.gmra.mrb[0].mxu0 %v3464
      %v3944 = vpop.f32.mrb[0].mxu0
      %v3945 = vadd.f32 %v3553, %v3944
      %v3946 = vpop.f32.mrb[0].mxu0
      %v3947 = vadd.f32 %v3557, %v3946
      %v3948 = vpop.f32.mrb[0].mxu0
      %v3949 = vadd.f32 %v3553, %v3948
      %v3950 = vpop.f32.mrb[0].mxu0
      %v3951 = vadd.f32 %v3557, %v3950
      %3952 = vmatprep.mubr.bf16.mxu0 %v3469
      %3953 = vmatmul.mubr.bf16.gmra.mrb[0].mxu0 %v3468
      %v3954 = vpop.f32.mrb[0].mxu0
      %v3955 = vadd.f32 %v3553, %v3954
      %v3956 = vpop.f32.mrb[0].mxu0
      %v3957 = vadd.f32 %v3557, %v3956
      %v3958 = vpop.f32.mrb[0].mxu0
      %v3959 = vadd.f32 %v3553, %v3958
      %v3960 = vpop.f32.mrb[0].mxu0
      %v3961 = vadd.f32 %v3557, %v3960
      %3962 = vmatprep.mubr.bf16.mxu0 %v3473
      %3963 = vmatmul.mubr.bf16.gmra.mrb[0].mxu0 %v3472
      %v3964 = vpop.f32.mrb[0].mxu0
      %v3965 = vadd.f32 %v3553, %v3964
      %v3966 = vpop.f32.mrb[0].mxu0
      %v3967 = vadd.f32 %v3557, %v3966
      %v3968 = vpop.f32.mrb[0].mxu0
      %v3969 = vadd.f32 %v3553, %v3968
      %v3970 = vpop.f32.mrb[0].mxu0
      %v3971 = vadd.f32 %v3557, %v3970
      %3972 = vmatprep.mubr.bf16.mxu0 %v3477
      %3973 = vmatmul.mubr.bf16.gmra.mrb[0].mxu0 %v3476
      %v3974 = vpop.f32.mrb[0].mxu0
      %v3975 = vadd.f32 %v3553, %v3974
      %v3976 = vpop.f32.mrb[0].mxu0
      %v3977 = vadd.f32 %v3557, %v3976
      %v3978 = vpop.f32.mrb[0].mxu0
      %v3979 = vadd.f32 %v3553, %v3978
      %v3980 = vpop.f32.mrb[0].mxu0
      %v3981 = vadd.f32 %v3557, %v3980
      %3982 = vmatprep.mubr.bf16.mxu0 %v3481
      %3983 = vmatmul.mubr.bf16.gmra.mrb[0].mxu0 %v3480
      %v3984 = vpop.f32.mrb[0].mxu0
      %v3985 = vadd.f32 %v3553, %v3984
      %v3986 = vpop.f32.mrb[0].mxu0
      %v3987 = vadd.f32 %v3557, %v3986
      %v3988 = vpop.f32.mrb[0].mxu0
      %v3989 = vadd.f32 %v3553, %v3988
      %v3990 = vpop.f32.mrb[0].mxu0
      %v3991 = vadd.f32 %v3557, %v3990
      %3992 = vdwg.mxu0
      %3993 = vmatprep.subr.bf16.mxu0 %v3785
      %3994 = vmatpush1.bf16.msra.mxu0 %v3784
      %3995 = vmatprep.subr.bf16.mxu0 %v3787
      %3996 = vmatpush1.bf16.msra.mxu0 %v3786
      %3997 = vmatprep.subr.bf16.mxu0 %v3789
      %3998 = vmatpush1.bf16.msra.mxu0 %v3788
      %3999 = vmatprep.subr.bf16.mxu0 %v3791
      %4000 = vmatpush1.bf16.msra.mxu0 %v3790
      %4001 = vmatprep.subr.bf16.mxu0 %v3793
      %4002 = vmatpush1.bf16.msra.mxu0 %v3792
      %4003 = vmatprep.subr.bf16.mxu0 %v3795
      %4004 = vmatpush1.bf16.msra.mxu0 %v3794
      %4005 = vmatprep.subr.bf16.mxu0 %v3797
      %4006 = vmatpush1.bf16.msra.mxu0 %v3796
      %4007 = vmatprep.subr.bf16.mxu0 %v3799
      %4008 = vmatpush1.bf16.msra.mxu0 %v3798
      %4009 = vmatprep.subr.bf16.mxu0 %v3801
      %4010 = vmatpush1.bf16.msra.mxu0 %v3800
      %4011 = vmatprep.subr.bf16.mxu0 %v3803
      %4012 = vmatpush1.bf16.msra.mxu0 %v3802
      %4013 = vmatprep.subr.bf16.mxu0 %v3805
      %4014 = vmatpush1.bf16.msra.mxu0 %v3804
      %4015 = vmatprep.subr.bf16.mxu0 %v3807
      %4016 = vmatpush1.bf16.msra.mxu0 %v3806
      %4017 = vmatprep.subr.bf16.mxu0 %v3809
      %4018 = vmatpush1.bf16.msra.mxu0 %v3808
      %4019 = vmatprep.subr.bf16.mxu0 %v3811
      %4020 = vmatpush1.bf16.msra.mxu0 %v3810
      %4021 = vmatprep.subr.bf16.mxu0 %v3813
      %4022 = vmatpush1.bf16.msra.mxu0 %v3812
      %4023 = vmatprep.subr.bf16.mxu0 %v3815
      %4024 = vmatpush1.bf16.msra.mxu0 %v3814
      %4025 = vmatprep.mubr.bf16.mxu0 %v3455
      %4026 = vmatmul.mubr.bf16.gmra.mrb[0].mxu0 %v3454
      %v4027 = vpop.f32.mrb[0].mxu0
      %v4028 = vadd.f32 %v3915, %v4027
      %v4029 = vpop.f32.mrb[0].mxu0
      %v4030 = vadd.f32 %v3917, %v4029
      %v4031 = vpop.f32.mrb[0].mxu0
      %v4032 = vadd.f32 %v3919, %v4031
      %v4033 = vpop.f32.mrb[0].mxu0
      %v4034 = vadd.f32 %v3921, %v4033
      %4035 = vmatprep.mubr.bf16.mxu0 %v3459
      %4036 = vmatmul.mubr.bf16.gmra.mrb[0].mxu0 %v3458
      %v4037 = vpop.f32.mrb[0].mxu0
      %v4038 = vadd.f32 %v3925, %v4037
      %v4039 = vpop.f32.mrb[0].mxu0
      %v4040 = vadd.f32 %v3927, %v4039
      %v4041 = vpop.f32.mrb[0].mxu0
      %v4042 = vadd.f32 %v3929, %v4041
      %v4043 = vpop.f32.mrb[0].mxu0
      %v4044 = vadd.f32 %v3931, %v4043
      %4045 = vmatprep.mubr.bf16.mxu0 %v3463
      %4046 = vmatmul.mubr.bf16.gmra.mrb[0].mxu0 %v3462
      %v4047 = vpop.f32.mrb[0].mxu0
      %v4048 = vadd.f32 %v3935, %v4047
      %v4049 = vpop.f32.mrb[0].mxu0
      %v4050 = vadd.f32 %v3937, %v4049
      %v4051 = vpop.f32.mrb[0].mxu0
      %v4052 = vadd.f32 %v3939, %v4051
      %v4053 = vpop.f32.mrb[0].mxu0
      %v4054 = vadd.f32 %v3941, %v4053
      %4055 = vmatprep.mubr.bf16.mxu0 %v3467
      %4056 = vmatmul.mubr.bf16.gmra.mrb[0].mxu0 %v3466
      %v4057 = vpop.f32.mrb[0].mxu0
      %v4058 = vadd.f32 %v3945, %v4057
      %v4059 = vpop.f32.mrb[0].mxu0
      %v4060 = vadd.f32 %v3947, %v4059
      %v4061 = vpop.f32.mrb[0].mxu0
      %v4062 = vadd.f32 %v3949, %v4061
      %v4063 = vpop.f32.mrb[0].mxu0
      %v4064 = vadd.f32 %v3951, %v4063
      %4065 = vmatprep.mubr.bf16.mxu0 %v3471
      %4066 = vmatmul.mubr.bf16.gmra.mrb[0].mxu0 %v3470
      %v4067 = vpop.f32.mrb[0].mxu0
      %v4068 = vadd.f32 %v3955, %v4067
      %v4069 = vpop.f32.mrb[0].mxu0
      %v4070 = vadd.f32 %v3957, %v4069
      %v4071 = vpop.f32.mrb[0].mxu0
      %v4072 = vadd.f32 %v3959, %v4071
      %v4073 = vpop.f32.mrb[0].mxu0
      %v4074 = vadd.f32 %v3961, %v4073
      %4075 = vmatprep.mubr.bf16.mxu0 %v3475
      %4076 = vmatmul.mubr.bf16.gmra.mrb[0].mxu0 %v3474
      %v4077 = vpop.f32.mrb[0].mxu0
      %v4078 = vadd.f32 %v3965, %v4077
      %v4079 = vpop.f32.mrb[0].mxu0
      %v4080 = vadd.f32 %v3967, %v4079
      %v4081 = vpop.f32.mrb[0].mxu0
      %v4082 = vadd.f32 %v3969, %v4081
      %v4083 = vpop.f32.mrb[0].mxu0
      %v4084 = vadd.f32 %v3971, %v4083
      %4085 = vmatprep.mubr.bf16.mxu0 %v3479
      %4086 = vmatmul.mubr.bf16.gmra.mrb[0].mxu0 %v3478
      %v4087 = vpop.f32.mrb[0].mxu0
      %v4088 = vadd.f32 %v3975, %v4087
      %v4089 = vpop.f32.mrb[0].mxu0
      %v4090 = vadd.f32 %v3977, %v4089
      %v4091 = vpop.f32.mrb[0].mxu0
      %v4092 = vadd.f32 %v3979, %v4091
      %v4093 = vpop.f32.mrb[0].mxu0
      %v4094 = vadd.f32 %v3981, %v4093
      %4095 = vmatprep.mubr.bf16.mxu0 %v3483
      %4096 = vmatmul.mubr.bf16.gmra.mrb[0].mxu0 %v3482
      %v4097 = vpop.f32.mrb[0].mxu0
      %v4098 = vadd.f32 %v3985, %v4097
      %v4099 = vpop.f32.mrb[0].mxu0
      %v4100 = vadd.f32 %v3987, %v4099
      %v4101 = vpop.f32.mrb[0].mxu0
      %v4102 = vadd.f32 %v3989, %v4101
      %v4103 = vpop.f32.mrb[0].mxu0
      %v4104 = vadd.f32 %v3991, %v4103
      %4105 = vdwg.mxu0
      %v4106 = vmul.f32 %v4030, 0.5
      %v4107 = vmul.f32 %v4034, 0.5
      %v4108 = vmul.f32 %v4040, 0.5
      %v4109 = vmul.f32 %v4044, 0.5
      %v4110 = vmul.f32 %v4050, 0.5
      %v4111 = vmul.f32 %v4054, 0.5
      %v4112 = vmul.f32 %v4060, 0.5
      %v4113 = vmul.f32 %v4064, 0.5
      %v4114 = vmul.f32 %v4070, 0.5
      %v4115 = vmul.f32 %v4074, 0.5
      %v4116 = vmul.f32 %v4080, 0.5
      %v4117 = vmul.f32 %v4084, 0.5
      %v4118 = vmul.f32 %v4090, 0.5
      %v4119 = vmul.f32 %v4094, 0.5
      %v4120 = vmul.f32 %v4100, 0.5
      %v4121 = vmul.f32 %v4104, 0.5
      %v4122 = vmul.f32 %v4106, 1.442695
      %v4123 = vpow.pop %v4122
      %v4124 = vmul.f32 %v4107, 1.442695
      %v4125 = vpow.pop %v4124
      %v4126 = vmul.f32 %v4108, 1.442695
      %v4127 = vpow.pop %v4126
      %v4128 = vmul.f32 %v4109, 1.442695
      %v4129 = vpow.pop %v4128
      %v4130 = vmul.f32 %v4110, 1.442695
      %v4131 = vpow.pop %v4130
      %v4132 = vmul.f32 %v4111, 1.442695
      %v4133 = vpow.pop %v4132
      %v4134 = vmul.f32 %v4112, 1.442695
      %v4135 = vpow.pop %v4134
      %v4136 = vmul.f32 %v4113, 1.442695
      %v4137 = vpow.pop %v4136
      %v4138 = vmul.f32 %v4114, 1.442695
      %v4139 = vpow.pop %v4138
      %v4140 = vmul.f32 %v4115, 1.442695
      %v4141 = vpow.pop %v4140
      %v4142 = vmul.f32 %v4116, 1.442695
      %v4143 = vpow.pop %v4142
      %v4144 = vmul.f32 %v4117, 1.442695
      %v4145 = vpow.pop %v4144
      %v4146 = vmul.f32 %v4118, 1.442695
      %v4147 = vpow.pop %v4146
      %v4148 = vmul.f32 %v4119, 1.442695
      %v4149 = vpow.pop %v4148
      %v4150 = vmul.f32 %v4120, 1.442695
      %v4151 = vpow.pop %v4150
      %v4152 = vmul.f32 %v4121, 1.442695
      %v4153 = vpow.pop %v4152
      %v4154 = vmul.f32 %v590, %v4123
      %v4155 = vmul.f32 %v591, %v4125
      %v4156 = vmul.f32 %v592, %v4127
      %v4157 = vmul.f32 %v593, %v4129
      %v4158 = vmul.f32 %v594, %v4131
      %v4159 = vmul.f32 %v595, %v4133
      %v4160 = vmul.f32 %v596, %v4135
      %v4161 = vmul.f32 %v597, %v4137
      %v4162 = vmul.f32 %v598, %v4139
      %v4163 = vmul.f32 %v599, %v4141
      %v4164 = vmul.f32 %v600, %v4143
      %v4165 = vmul.f32 %v601, %v4145
      %v4166 = vmul.f32 %v602, %v4147
      %v4167 = vmul.f32 %v603, %v4149
      %v4168 = vmul.f32 %v604, %v4151
      %v4169 = vmul.f32 %v605, %v4153
      %v4170 = vadd.f32 %v4028, %v4154
      %v4171 = vadd.f32 %v4032, %v4155
      %v4172 = vadd.f32 %v4038, %v4156
      %v4173 = vadd.f32 %v4042, %v4157
      %v4174 = vadd.f32 %v4048, %v4158
      %v4175 = vadd.f32 %v4052, %v4159
      %v4176 = vadd.f32 %v4058, %v4160
      %v4177 = vadd.f32 %v4062, %v4161
      %v4178 = vadd.f32 %v4068, %v4162
      %v4179 = vadd.f32 %v4072, %v4163
      %v4180 = vadd.f32 %v4078, %v4164
      %v4181 = vadd.f32 %v4082, %v4165
      %v4182 = vadd.f32 %v4088, %v4166
      %v4183 = vadd.f32 %v4092, %v4167
      %v4184 = vadd.f32 %v4098, %v4168
      %v4185 = vadd.f32 %v4102, %v4169
      %v4186 = vpack.c.bf16 %v4171, %v4170
      %v4187 = vpack.c.bf16 %v4173, %v4172
      %v4188 = vpack.c.bf16 %v4175, %v4174
      %v4189 = vpack.c.bf16 %v4177, %v4176
      %v4190 = vpack.c.bf16 %v4179, %v4178
      %v4191 = vpack.c.bf16 %v4181, %v4180
      %v4192 = vpack.c.bf16 %v4183, %v4182
      %v4193 = vpack.c.bf16 %v4185, %v4184
      %v4194 = vld [vmem:[%s7] sm:$0xff]
      %v4195 = vld [vmem:[%s7 + $0x8] sm:$0xff]
      %v4196 = vld [vmem:[%s7 + $0x10] sm:$0xff]
      %v4197 = vld [vmem:[%s7 + $0x18] sm:$0xff]
      %v4198 = vld [vmem:[%s7 + $0x20] sm:$0xff]
      %v4199 = vld [vmem:[%s7 + $0x28] sm:$0xff]
      %v4200 = vld [vmem:[%s7 + $0x30] sm:$0xff]
      %v4201 = vld [vmem:[%s7 + $0x38] sm:$0xff]
      %v4202 = vld [vmem:[%s7 + $0x40] sm:$0xff]
      %v4203 = vld [vmem:[%s7 + $0x48] sm:$0xff]
      %v4204 = vld [vmem:[%s7 + $0x50] sm:$0xff]
      %v4205 = vld [vmem:[%s7 + $0x58] sm:$0xff]
      %v4206 = vld [vmem:[%s7 + $0x60] sm:$0xff]
      %v4207 = vld [vmem:[%s7 + $0x68] sm:$0xff]
      %v4208 = vld [vmem:[%s7 + $0x70] sm:$0xff]
      %v4209 = vld [vmem:[%s7 + $0x78] sm:$0xff]
      %v4210 = vld [vmem:[%s7 + $0x80] sm:$0xff]
      %v4211 = vld [vmem:[%s7 + $0x88] sm:$0xff]
      %v4212 = vld [vmem:[%s7 + $0x90] sm:$0xff]
      %v4213 = vld [vmem:[%s7 + $0x98] sm:$0xff]
      %v4214 = vld [vmem:[%s7 + $0xa0] sm:$0xff]
      %v4215 = vld [vmem:[%s7 + $0xa8] sm:$0xff]
      %v4216 = vld [vmem:[%s7 + $0xb0] sm:$0xff]
      %v4217 = vld [vmem:[%s7 + $0xb8] sm:$0xff]
      %v4218 = vld [vmem:[%s7 + $0xc0] sm:$0xff]
      %v4219 = vld [vmem:[%s7 + $0xc8] sm:$0xff]
      %v4220 = vld [vmem:[%s7 + $0xd0] sm:$0xff]
      %v4221 = vld [vmem:[%s7 + $0xd8] sm:$0xff]
      %v4222 = vld [vmem:[%s7 + $0xe0] sm:$0xff]
      %v4223 = vld [vmem:[%s7 + $0xe8] sm:$0xff]
      %v4224 = vld [vmem:[%s7 + $0xf0] sm:$0xff]
      %v4225 = vld [vmem:[%s7 + $0xf8] sm:$0xff]
      %v4226 = vld [vmem:[%s8] sm:$0xff]
      %v4227 = vld [vmem:[%s8 + $0x8] sm:$0xff]
      %v4228 = vld [vmem:[%s8 + $0x10] sm:$0xff]
      %v4229 = vld [vmem:[%s8 + $0x18] sm:$0xff]
      %v4230 = vld [vmem:[%s8 + $0x20] sm:$0xff]
      %v4231 = vld [vmem:[%s8 + $0x28] sm:$0xff]
      %v4232 = vld [vmem:[%s8 + $0x30] sm:$0xff]
      %v4233 = vld [vmem:[%s8 + $0x38] sm:$0xff]
      %v4234 = vld [vmem:[%s8 + $0x40] sm:$0xff]
      %v4235 = vld [vmem:[%s8 + $0x48] sm:$0xff]
      %v4236 = vld [vmem:[%s8 + $0x50] sm:$0xff]
      %v4237 = vld [vmem:[%s8 + $0x58] sm:$0xff]
      %v4238 = vld [vmem:[%s8 + $0x60] sm:$0xff]
      %v4239 = vld [vmem:[%s8 + $0x68] sm:$0xff]
      %v4240 = vld [vmem:[%s8 + $0x70] sm:$0xff]
      %v4241 = vld [vmem:[%s8 + $0x78] sm:$0xff]
      %v4242 = vld [vmem:[%s8 + $0x80] sm:$0xff]
      %v4243 = vld [vmem:[%s8 + $0x88] sm:$0xff]
      %v4244 = vld [vmem:[%s8 + $0x90] sm:$0xff]
      %v4245 = vld [vmem:[%s8 + $0x98] sm:$0xff]
      %v4246 = vld [vmem:[%s8 + $0xa0] sm:$0xff]
      %v4247 = vld [vmem:[%s8 + $0xa8] sm:$0xff]
      %v4248 = vld [vmem:[%s8 + $0xb0] sm:$0xff]
      %v4249 = vld [vmem:[%s8 + $0xb8] sm:$0xff]
      %v4250 = vld [vmem:[%s8 + $0xc0] sm:$0xff]
      %v4251 = vld [vmem:[%s8 + $0xc8] sm:$0xff]
      %v4252 = vld [vmem:[%s8 + $0xd0] sm:$0xff]
      %v4253 = vld [vmem:[%s8 + $0xd8] sm:$0xff]
      %v4254 = vld [vmem:[%s8 + $0xe0] sm:$0xff]
      %v4255 = vld [vmem:[%s8 + $0xe8] sm:$0xff]
      %v4256 = vld [vmem:[%s8 + $0xf0] sm:$0xff]
      %v4257 = vld [vmem:[%s8 + $0xf8] sm:$0xff]
      %v4274 = vunpack.c.l.b16 %v574
      %v4275 = vunpack.c.l.b16 %v575
      %v4276 = vunpack.c.l.b16 %v576
      %v4277 = vunpack.c.l.b16 %v577
      %v4278 = vunpack.c.l.b16 %v578
      %v4279 = vunpack.c.l.b16 %v579
      %v4280 = vunpack.c.l.b16 %v580
      %v4281 = vunpack.c.l.b16 %v581
      %v4282 = vunpack.c.l.b16 %v582
      %v4283 = vunpack.c.l.b16 %v583
      %v4284 = vunpack.c.l.b16 %v584
      %v4285 = vunpack.c.l.b16 %v585
      %v4286 = vunpack.c.l.b16 %v586
      %v4287 = vunpack.c.l.b16 %v587
      %v4288 = vunpack.c.l.b16 %v588
      %v4289 = vunpack.c.l.b16 %v589
      %v4290 = vpack.c.b16 %v4275, %v4274
      %v4291 = vpack.c.b16 %v4277, %v4276
      %v4292 = vpack.c.b16 %v4279, %v4278
      %v4293 = vpack.c.b16 %v4281, %v4280
      %v4294 = vpack.c.b16 %v4283, %v4282
      %v4295 = vpack.c.b16 %v4285, %v4284
      %v4296 = vpack.c.b16 %v4287, %v4286
      %v4297 = vpack.c.b16 %v4289, %v4288
      %v4338 = vunpack.c.l.b16 %v4226
      %v4339 = vunpack.c.h.b16 %v4226
      %v4340 = vunpack.c.l.b16 %v4227
      %v4341 = vunpack.c.h.b16 %v4227
      %v4342 = vunpack.c.l.b16 %v4228
      %v4343 = vunpack.c.h.b16 %v4228
      %v4344 = vunpack.c.l.b16 %v4229
      %v4345 = vunpack.c.h.b16 %v4229
      %v4346 = vunpack.c.l.b16 %v4230
      %v4347 = vunpack.c.h.b16 %v4230
      %v4348 = vunpack.c.l.b16 %v4231
      %v4349 = vunpack.c.h.b16 %v4231
      %v4350 = vunpack.c.l.b16 %v4232
      %v4351 = vunpack.c.h.b16 %v4232
      %v4352 = vunpack.c.l.b16 %v4233
      %v4353 = vunpack.c.h.b16 %v4233
      %v4354 = vunpack.c.l.b16 %v4234
      %v4355 = vunpack.c.h.b16 %v4234
      %v4356 = vunpack.c.l.b16 %v4235
      %v4357 = vunpack.c.h.b16 %v4235
      %v4358 = vunpack.c.l.b16 %v4236
      %v4359 = vunpack.c.h.b16 %v4236
      %v4360 = vunpack.c.l.b16 %v4237
      %v4361 = vunpack.c.h.b16 %v4237
      %v4362 = vunpack.c.l.b16 %v4238
      %v4363 = vunpack.c.h.b16 %v4238
      %v4364 = vunpack.c.l.b16 %v4239
      %v4365 = vunpack.c.h.b16 %v4239
      %v4366 = vunpack.c.l.b16 %v4240
      %v4367 = vunpack.c.h.b16 %v4240
      %v4368 = vunpack.c.l.b16 %v4241
      %v4369 = vunpack.c.h.b16 %v4241
      %v4370 = vunpack.c.l.b16 %v4242
      %v4371 = vunpack.c.h.b16 %v4242
      %v4372 = vunpack.c.l.b16 %v4243
      %v4373 = vunpack.c.h.b16 %v4243
      %v4374 = vunpack.c.l.b16 %v4244
      %v4375 = vunpack.c.h.b16 %v4244
      %v4376 = vunpack.c.l.b16 %v4245
      %v4377 = vunpack.c.h.b16 %v4245
      %v4378 = vunpack.c.l.b16 %v4246
      %v4379 = vunpack.c.h.b16 %v4246
      %v4380 = vunpack.c.l.b16 %v4247
      %v4381 = vunpack.c.h.b16 %v4247
      %v4382 = vunpack.c.l.b16 %v4248
      %v4383 = vunpack.c.h.b16 %v4248
      %v4384 = vunpack.c.l.b16 %v4249
      %v4385 = vunpack.c.h.b16 %v4249
      %v4386 = vunpack.c.l.b16 %v4250
      %v4387 = vunpack.c.h.b16 %v4250
      %v4388 = vunpack.c.l.b16 %v4251
      %v4389 = vunpack.c.h.b16 %v4251
      %v4390 = vunpack.c.l.b16 %v4252
      %v4391 = vunpack.c.h.b16 %v4252
      %v4392 = vunpack.c.l.b16 %v4253
      %v4393 = vunpack.c.h.b16 %v4253
      %v4394 = vunpack.c.l.b16 %v4254
      %v4395 = vunpack.c.h.b16 %v4254
      %v4396 = vunpack.c.l.b16 %v4255
      %v4397 = vunpack.c.h.b16 %v4255
      %v4398 = vunpack.c.l.b16 %v4256
      %v4399 = vunpack.c.h.b16 %v4256
      %v4400 = vunpack.c.l.b16 %v4257
      %v4401 = vunpack.c.h.b16 %v4257
      %v4402 = vpack.c.b16 %v4342, %v4338
      %v4403 = vpack.c.b16 %v4343, %v4339
      %v4404 = vpack.c.b16 %v4344, %v4340
      %v4405 = vpack.c.b16 %v4345, %v4341
      %v4406 = vpack.c.b16 %v4350, %v4346
      %v4407 = vpack.c.b16 %v4351, %v4347
      %v4408 = vpack.c.b16 %v4352, %v4348
      %v4409 = vpack.c.b16 %v4353, %v4349
      %v4410 = vpack.c.b16 %v4358, %v4354
      %v4411 = vpack.c.b16 %v4359, %v4355
      %v4412 = vpack.c.b16 %v4360, %v4356
      %v4413 = vpack.c.b16 %v4361, %v4357
      %v4414 = vpack.c.b16 %v4366, %v4362
      %v4415 = vpack.c.b16 %v4367, %v4363
      %v4416 = vpack.c.b16 %v4368, %v4364
      %v4417 = vpack.c.b16 %v4369, %v4365
      %v4418 = vpack.c.b16 %v4374, %v4370
      %v4419 = vpack.c.b16 %v4375, %v4371
      %v4420 = vpack.c.b16 %v4376, %v4372
      %v4421 = vpack.c.b16 %v4377, %v4373
      %v4422 = vpack.c.b16 %v4382, %v4378
      %v4423 = vpack.c.b16 %v4383, %v4379
      %v4424 = vpack.c.b16 %v4384, %v4380
      %v4425 = vpack.c.b16 %v4385, %v4381
      %v4426 = vpack.c.b16 %v4390, %v4386
      %v4427 = vpack.c.b16 %v4391, %v4387
      %v4428 = vpack.c.b16 %v4392, %v4388
      %v4429 = vpack.c.b16 %v4393, %v4389
      %v4430 = vpack.c.b16 %v4398, %v4394
      %v4431 = vpack.c.b16 %v4399, %v4395
      %v4432 = vpack.c.b16 %v4400, %v4396
      %v4433 = vpack.c.b16 %v4401, %v4397
      %4466 = vmatprep.subr.bf16.mxu0 %v4403
      %4467 = vmatpush1.bf16.msra.mxu0 %v4402
      %4468 = vmatprep.subr.bf16.mxu0 %v4407
      %4469 = vmatpush1.bf16.msra.mxu0 %v4406
      %4470 = vmatprep.subr.bf16.mxu0 %v4411
      %4471 = vmatpush1.bf16.msra.mxu0 %v4410
      %4472 = vmatprep.subr.bf16.mxu0 %v4415
      %4473 = vmatpush1.bf16.msra.mxu0 %v4414
      %4474 = vmatprep.subr.bf16.mxu0 %v4419
      %4475 = vmatpush1.bf16.msra.mxu0 %v4418
      %4476 = vmatprep.subr.bf16.mxu0 %v4423
      %4477 = vmatpush1.bf16.msra.mxu0 %v4422
      %4478 = vmatprep.subr.bf16.mxu0 %v4427
      %4479 = vmatpush1.bf16.msra.mxu0 %v4426
      %4480 = vmatprep.subr.bf16.mxu0 %v4431
      %4481 = vmatpush1.bf16.msra.mxu0 %v4430
      %4482 = vmatprep.subr.bf16.mxu0 0
      %4483 = vmatpush1.bf16.msra.mxu0 0
      %4484 = vmatprep.subr.bf16.mxu0 0
      %4485 = vmatpush1.bf16.msra.mxu0 0
      %4486 = vmatprep.subr.bf16.mxu0 0
      %4487 = vmatpush1.bf16.msra.mxu0 0
      %4488 = vmatprep.subr.bf16.mxu0 0
      %4489 = vmatpush1.bf16.msra.mxu0 0
      %4490 = vmatprep.subr.bf16.mxu0 0
      %4491 = vmatpush1.bf16.msra.mxu0 0
      %4492 = vmatprep.subr.bf16.mxu0 0
      %4493 = vmatpush1.bf16.msra.mxu0 0
      %4494 = vmatprep.subr.bf16.mxu0 0
      %4495 = vmatpush1.bf16.msra.mxu0 0
      %4496 = vmatprep.subr.bf16.mxu0 0
      %4497 = vmatpush1.bf16.msra.mxu0 0
      %4498 = vmatprep.mubr.bf16.mxu0 0
      %4499 = vmatmul.mubr.bf16.gmra.mrb[0].mxu0 %v4290
      %v4500 = vpop.f32.mrb[0].mxu0
      %v4501 = vadd.f32 0.0, %v4500
      %v4502 = vpop.f32.mrb[0].mxu0
      %v4503 = vadd.f32 0.0, %v4502
      %v4504 = vpop.f32.mrb[0].mxu0
      %v4505 = vadd.f32 0.0, %v4504
      %v4506 = vpop.f32.mrb[0].mxu0
      %v4507 = vadd.f32 0.0, %v4506
      %4508 = vmatprep.mubr.bf16.mxu0 0
      %4509 = vmatmul.mubr.bf16.gmra.mrb[0].mxu0 %v4291
      %v4510 = vpop.f32.mrb[0].mxu0
      %v4511 = vadd.f32 0.0, %v4510
      %v4512 = vpop.f32.mrb[0].mxu0
      %v4513 = vadd.f32 0.0, %v4512
      %v4514 = vpop.f32.mrb[0].mxu0
      %v4515 = vadd.f32 0.0, %v4514
      %v4516 = vpop.f32.mrb[0].mxu0
      %v4517 = vadd.f32 0.0, %v4516
      %4518 = vmatprep.mubr.bf16.mxu0 0
      %4519 = vmatmul.mubr.bf16.gmra.mrb[0].mxu0 %v4292
      %v4520 = vpop.f32.mrb[0].mxu0
      %v4521 = vadd.f32 0.0, %v4520
      %v4522 = vpop.f32.mrb[0].mxu0
      %v4523 = vadd.f32 0.0, %v4522
      %v4524 = vpop.f32.mrb[0].mxu0
      %v4525 = vadd.f32 0.0, %v4524
      %v4526 = vpop.f32.mrb[0].mxu0
      %v4527 = vadd.f32 0.0, %v4526
      %4528 = vmatprep.mubr.bf16.mxu0 0
      %4529 = vmatmul.mubr.bf16.gmra.mrb[0].mxu0 %v4293
      %v4530 = vpop.f32.mrb[0].mxu0
      %v4531 = vadd.f32 0.0, %v4530
      %v4532 = vpop.f32.mrb[0].mxu0
      %v4533 = vadd.f32 0.0, %v4532
      %v4534 = vpop.f32.mrb[0].mxu0
      %v4535 = vadd.f32 0.0, %v4534
      %v4536 = vpop.f32.mrb[0].mxu0
      %v4537 = vadd.f32 0.0, %v4536
      %4538 = vmatprep.mubr.bf16.mxu0 0
      %4539 = vmatmul.mubr.bf16.gmra.mrb[0].mxu0 %v4294
      %v4540 = vpop.f32.mrb[0].mxu0
      %v4541 = vadd.f32 0.0, %v4540
      %v4542 = vpop.f32.mrb[0].mxu0
      %v4543 = vadd.f32 0.0, %v4542
      %v4544 = vpop.f32.mrb[0].mxu0
      %v4545 = vadd.f32 0.0, %v4544
      %v4546 = vpop.f32.mrb[0].mxu0
      %v4547 = vadd.f32 0.0, %v4546
      %4548 = vmatprep.mubr.bf16.mxu0 0
      %4549 = vmatmul.mubr.bf16.gmra.mrb[0].mxu0 %v4295
      %v4550 = vpop.f32.mrb[0].mxu0
      %v4551 = vadd.f32 0.0, %v4550
      %v4552 = vpop.f32.mrb[0].mxu0
      %v4553 = vadd.f32 0.0, %v4552
      %v4554 = vpop.f32.mrb[0].mxu0
      %v4555 = vadd.f32 0.0, %v4554
      %v4556 = vpop.f32.mrb[0].mxu0
      %v4557 = vadd.f32 0.0, %v4556
      %4558 = vmatprep.mubr.bf16.mxu0 0
      %4559 = vmatmul.mubr.bf16.gmra.mrb[0].mxu0 %v4296
      %v4560 = vpop.f32.mrb[0].mxu0
      %v4561 = vadd.f32 0.0, %v4560
      %v4562 = vpop.f32.mrb[0].mxu0
      %v4563 = vadd.f32 0.0, %v4562
      %v4564 = vpop.f32.mrb[0].mxu0
      %v4565 = vadd.f32 0.0, %v4564
      %v4566 = vpop.f32.mrb[0].mxu0
      %v4567 = vadd.f32 0.0, %v4566
      %4568 = vmatprep.mubr.bf16.mxu0 0
      %4569 = vmatmul.mubr.bf16.gmra.mrb[0].mxu0 %v4297
      %v4570 = vpop.f32.mrb[0].mxu0
      %v4571 = vadd.f32 0.0, %v4570
      %v4572 = vpop.f32.mrb[0].mxu0
      %v4573 = vadd.f32 0.0, %v4572
      %v4574 = vpop.f32.mrb[0].mxu0
      %v4575 = vadd.f32 0.0, %v4574
      %v4576 = vpop.f32.mrb[0].mxu0
      %v4577 = vadd.f32 0.0, %v4576
      %4578 = vdwg.mxu0
      %4579 = vmatprep.subr.bf16.mxu0 %v4405
      %4580 = vmatpush1.bf16.msra.mxu0 %v4404
      %4581 = vmatprep.subr.bf16.mxu0 %v4409
      %4582 = vmatpush1.bf16.msra.mxu0 %v4408
      %4583 = vmatprep.subr.bf16.mxu0 %v4413
      %4584 = vmatpush1.bf16.msra.mxu0 %v4412
      %4585 = vmatprep.subr.bf16.mxu0 %v4417
      %4586 = vmatpush1.bf16.msra.mxu0 %v4416
      %4587 = vmatprep.subr.bf16.mxu0 %v4421
      %4588 = vmatpush1.bf16.msra.mxu0 %v4420
      %4589 = vmatprep.subr.bf16.mxu0 %v4425
      %4590 = vmatpush1.bf16.msra.mxu0 %v4424
      %4591 = vmatprep.subr.bf16.mxu0 %v4429
      %4592 = vmatpush1.bf16.msra.mxu0 %v4428
      %4593 = vmatprep.subr.bf16.mxu0 %v4433
      %4594 = vmatpush1.bf16.msra.mxu0 %v4432
      %4595 = vmatprep.subr.bf16.mxu0 0
      %4596 = vmatpush1.bf16.msra.mxu0 0
      %4597 = vmatprep.subr.bf16.mxu0 0
      %4598 = vmatpush1.bf16.msra.mxu0 0
      %4599 = vmatprep.subr.bf16.mxu0 0
      %4600 = vmatpush1.bf16.msra.mxu0 0
      %4601 = vmatprep.subr.bf16.mxu0 0
      %4602 = vmatpush1.bf16.msra.mxu0 0
      %4603 = vmatprep.subr.bf16.mxu0 0
      %4604 = vmatpush1.bf16.msra.mxu0 0
      %4605 = vmatprep.subr.bf16.mxu0 0
      %4606 = vmatpush1.bf16.msra.mxu0 0
      %4607 = vmatprep.subr.bf16.mxu0 0
      %4608 = vmatpush1.bf16.msra.mxu0 0
      %4609 = vmatprep.subr.bf16.mxu0 0
      %4610 = vmatpush1.bf16.msra.mxu0 0
      %4611 = vmatprep.mubr.bf16.mxu0 0
      %4612 = vmatmul.mubr.bf16.gmra.mrb[0].mxu0 %v4290
      %v4613 = vpop.f32.mrb[0].mxu0
      %v4614 = vadd.f32 0.0, %v4613
      %v4615 = vpop.f32.mrb[0].mxu0
      %v4616 = vadd.f32 0.0, %v4615
      %v4617 = vpop.f32.mrb[0].mxu0
      %v4618 = vadd.f32 0.0, %v4617
      %v4619 = vpop.f32.mrb[0].mxu0
      %v4620 = vadd.f32 0.0, %v4619
      %4621 = vmatprep.mubr.bf16.mxu0 0
      %4622 = vmatmul.mubr.bf16.gmra.mrb[0].mxu0 %v4291
      %v4623 = vpop.f32.mrb[0].mxu0
      %v4624 = vadd.f32 0.0, %v4623
      %v4625 = vpop.f32.mrb[0].mxu0
      %v4626 = vadd.f32 0.0, %v4625
      %v4627 = vpop.f32.mrb[0].mxu0
      %v4628 = vadd.f32 0.0, %v4627
      %v4629 = vpop.f32.mrb[0].mxu0
      %v4630 = vadd.f32 0.0, %v4629
      %4631 = vmatprep.mubr.bf16.mxu0 0
      %4632 = vmatmul.mubr.bf16.gmra.mrb[0].mxu0 %v4292
      %v4633 = vpop.f32.mrb[0].mxu0
      %v4634 = vadd.f32 0.0, %v4633
      %v4635 = vpop.f32.mrb[0].mxu0
      %v4636 = vadd.f32 0.0, %v4635
      %v4637 = vpop.f32.mrb[0].mxu0
      %v4638 = vadd.f32 0.0, %v4637
      %v4639 = vpop.f32.mrb[0].mxu0
      %v4640 = vadd.f32 0.0, %v4639
      %4641 = vmatprep.mubr.bf16.mxu0 0
      %4642 = vmatmul.mubr.bf16.gmra.mrb[0].mxu0 %v4293
      %v4643 = vpop.f32.mrb[0].mxu0
      %v4644 = vadd.f32 0.0, %v4643
      %v4645 = vpop.f32.mrb[0].mxu0
      %v4646 = vadd.f32 0.0, %v4645
      %v4647 = vpop.f32.mrb[0].mxu0
      %v4648 = vadd.f32 0.0, %v4647
      %v4649 = vpop.f32.mrb[0].mxu0
      %v4650 = vadd.f32 0.0, %v4649
      %4651 = vmatprep.mubr.bf16.mxu0 0
      %4652 = vmatmul.mubr.bf16.gmra.mrb[0].mxu0 %v4294
      %v4653 = vpop.f32.mrb[0].mxu0
      %v4654 = vadd.f32 0.0, %v4653
      %v4655 = vpop.f32.mrb[0].mxu0
      %v4656 = vadd.f32 0.0, %v4655
      %v4657 = vpop.f32.mrb[0].mxu0
      %v4658 = vadd.f32 0.0, %v4657
      %v4659 = vpop.f32.mrb[0].mxu0
      %v4660 = vadd.f32 0.0, %v4659
      %4661 = vmatprep.mubr.bf16.mxu0 0
      %4662 = vmatmul.mubr.bf16.gmra.mrb[0].mxu0 %v4295
      %v4663 = vpop.f32.mrb[0].mxu0
      %v4664 = vadd.f32 0.0, %v4663
      %v4665 = vpop.f32.mrb[0].mxu0
      %v4666 = vadd.f32 0.0, %v4665
      %v4667 = vpop.f32.mrb[0].mxu0
      %v4668 = vadd.f32 0.0, %v4667
      %v4669 = vpop.f32.mrb[0].mxu0
      %v4670 = vadd.f32 0.0, %v4669
      %4671 = vmatprep.mubr.bf16.mxu0 0
      %4672 = vmatmul.mubr.bf16.gmra.mrb[0].mxu0 %v4296
      %v4673 = vpop.f32.mrb[0].mxu0
      %v4674 = vadd.f32 0.0, %v4673
      %v4675 = vpop.f32.mrb[0].mxu0
      %v4676 = vadd.f32 0.0, %v4675
      %v4677 = vpop.f32.mrb[0].mxu0
      %v4678 = vadd.f32 0.0, %v4677
      %v4679 = vpop.f32.mrb[0].mxu0
      %v4680 = vadd.f32 0.0, %v4679
      %4681 = vmatprep.mubr.bf16.mxu0 0
      %4682 = vmatmul.mubr.bf16.gmra.mrb[0].mxu0 %v4297
      %v4683 = vpop.f32.mrb[0].mxu0
      %v4684 = vadd.f32 0.0, %v4683
      %v4685 = vpop.f32.mrb[0].mxu0
      %v4686 = vadd.f32 0.0, %v4685
      %v4687 = vpop.f32.mrb[0].mxu0
      %v4688 = vadd.f32 0.0, %v4687
      %v4689 = vpop.f32.mrb[0].mxu0
      %v4690 = vadd.f32 0.0, %v4689
      %4691 = vdwg.mxu0
      %v4724 = vunpack.c.l.b16 %v4194
      %v4725 = vunpack.c.h.b16 %v4194
      %v4726 = vunpack.c.l.b16 %v4195
      %v4727 = vunpack.c.h.b16 %v4195
      %v4728 = vunpack.c.l.b16 %v4196
      %v4729 = vunpack.c.h.b16 %v4196
      %v4730 = vunpack.c.l.b16 %v4197
      %v4731 = vunpack.c.h.b16 %v4197
      %v4732 = vunpack.c.l.b16 %v4198
      %v4733 = vunpack.c.h.b16 %v4198
      %v4734 = vunpack.c.l.b16 %v4199
      %v4735 = vunpack.c.h.b16 %v4199
      %v4736 = vunpack.c.l.b16 %v4200
      %v4737 = vunpack.c.h.b16 %v4200
      %v4738 = vunpack.c.l.b16 %v4201
      %v4739 = vunpack.c.h.b16 %v4201
      %v4740 = vunpack.c.l.b16 %v4202
      %v4741 = vunpack.c.h.b16 %v4202
      %v4742 = vunpack.c.l.b16 %v4203
      %v4743 = vunpack.c.h.b16 %v4203
      %v4744 = vunpack.c.l.b16 %v4204
      %v4745 = vunpack.c.h.b16 %v4204
      %v4746 = vunpack.c.l.b16 %v4205
      %v4747 = vunpack.c.h.b16 %v4205
      %v4748 = vunpack.c.l.b16 %v4206
      %v4749 = vunpack.c.h.b16 %v4206
      %v4750 = vunpack.c.l.b16 %v4207
      %v4751 = vunpack.c.h.b16 %v4207
      %v4752 = vunpack.c.l.b16 %v4208
      %v4753 = vunpack.c.h.b16 %v4208
      %v4754 = vunpack.c.l.b16 %v4209
      %v4755 = vunpack.c.h.b16 %v4209
      %v4756 = vunpack.c.l.b16 %v4210
      %v4757 = vunpack.c.h.b16 %v4210
      %v4758 = vunpack.c.l.b16 %v4211
      %v4759 = vunpack.c.h.b16 %v4211
      %v4760 = vunpack.c.l.b16 %v4212
      %v4761 = vunpack.c.h.b16 %v4212
      %v4762 = vunpack.c.l.b16 %v4213
      %v4763 = vunpack.c.h.b16 %v4213
      %v4764 = vunpack.c.l.b16 %v4214
      %v4765 = vunpack.c.h.b16 %v4214
      %v4766 = vunpack.c.l.b16 %v4215
      %v4767 = vunpack.c.h.b16 %v4215
      %v4768 = vunpack.c.l.b16 %v4216
      %v4769 = vunpack.c.h.b16 %v4216
      %v4770 = vunpack.c.l.b16 %v4217
      %v4771 = vunpack.c.h.b16 %v4217
      %v4772 = vunpack.c.l.b16 %v4218
      %v4773 = vunpack.c.h.b16 %v4218
      %v4774 = vunpack.c.l.b16 %v4219
      %v4775 = vunpack.c.h.b16 %v4219
      %v4776 = vunpack.c.l.b16 %v4220
      %v4777 = vunpack.c.h.b16 %v4220
      %v4778 = vunpack.c.l.b16 %v4221
      %v4779 = vunpack.c.h.b16 %v4221
      %v4780 = vunpack.c.l.b16 %v4222
      %v4781 = vunpack.c.h.b16 %v4222
      %v4782 = vunpack.c.l.b16 %v4223
      %v4783 = vunpack.c.h.b16 %v4223
      %v4784 = vunpack.c.l.b16 %v4224
      %v4785 = vunpack.c.h.b16 %v4224
      %v4786 = vunpack.c.l.b16 %v4225
      %v4787 = vunpack.c.h.b16 %v4225
      %v4788 = vpack.c.b16 %v4728, %v4724
      %v4789 = vpack.c.b16 %v4729, %v4725
      %v4790 = vpack.c.b16 %v4730, %v4726
      %v4791 = vpack.c.b16 %v4731, %v4727
      %v4792 = vpack.c.b16 %v4736, %v4732
      %v4793 = vpack.c.b16 %v4737, %v4733
      %v4794 = vpack.c.b16 %v4738, %v4734
      %v4795 = vpack.c.b16 %v4739, %v4735
      %v4796 = vpack.c.b16 %v4744, %v4740
      %v4797 = vpack.c.b16 %v4745, %v4741
      %v4798 = vpack.c.b16 %v4746, %v4742
      %v4799 = vpack.c.b16 %v4747, %v4743
      %v4800 = vpack.c.b16 %v4752, %v4748
      %v4801 = vpack.c.b16 %v4753, %v4749
      %v4802 = vpack.c.b16 %v4754, %v4750
      %v4803 = vpack.c.b16 %v4755, %v4751
      %v4804 = vpack.c.b16 %v4760, %v4756
      %v4805 = vpack.c.b16 %v4761, %v4757
      %v4806 = vpack.c.b16 %v4762, %v4758
      %v4807 = vpack.c.b16 %v4763, %v4759
      %v4808 = vpack.c.b16 %v4768, %v4764
      %v4809 = vpack.c.b16 %v4769, %v4765
      %v4810 = vpack.c.b16 %v4770, %v4766
      %v4811 = vpack.c.b16 %v4771, %v4767
      %v4812 = vpack.c.b16 %v4776, %v4772
      %v4813 = vpack.c.b16 %v4777, %v4773
      %v4814 = vpack.c.b16 %v4778, %v4774
      %v4815 = vpack.c.b16 %v4779, %v4775
      %v4816 = vpack.c.b16 %v4784, %v4780
      %v4817 = vpack.c.b16 %v4785, %v4781
      %v4818 = vpack.c.b16 %v4786, %v4782
      %v4819 = vpack.c.b16 %v4787, %v4783
      %4852 = vmatprep.subr.bf16.mxu0 %v4789
      %4853 = vmatpush1.bf16.msra.mxu0 %v4788
      %4854 = vmatprep.subr.bf16.mxu0 %v4793
      %4855 = vmatpush1.bf16.msra.mxu0 %v4792
      %4856 = vmatprep.subr.bf16.mxu0 %v4797
      %4857 = vmatpush1.bf16.msra.mxu0 %v4796
      %4858 = vmatprep.subr.bf16.mxu0 %v4801
      %4859 = vmatpush1.bf16.msra.mxu0 %v4800
      %4860 = vmatprep.subr.bf16.mxu0 %v4805
      %4861 = vmatpush1.bf16.msra.mxu0 %v4804
      %4862 = vmatprep.subr.bf16.mxu0 %v4809
      %4863 = vmatpush1.bf16.msra.mxu0 %v4808
      %4864 = vmatprep.subr.bf16.mxu0 %v4813
      %4865 = vmatpush1.bf16.msra.mxu0 %v4812
      %4866 = vmatprep.subr.bf16.mxu0 %v4817
      %4867 = vmatpush1.bf16.msra.mxu0 %v4816
      %4868 = vmatprep.subr.bf16.mxu0 0
      %4869 = vmatpush1.bf16.msra.mxu0 0
      %4870 = vmatprep.subr.bf16.mxu0 0
      %4871 = vmatpush1.bf16.msra.mxu0 0
      %4872 = vmatprep.subr.bf16.mxu0 0
      %4873 = vmatpush1.bf16.msra.mxu0 0
      %4874 = vmatprep.subr.bf16.mxu0 0
      %4875 = vmatpush1.bf16.msra.mxu0 0
      %4876 = vmatprep.subr.bf16.mxu0 0
      %4877 = vmatpush1.bf16.msra.mxu0 0
      %4878 = vmatprep.subr.bf16.mxu0 0
      %4879 = vmatpush1.bf16.msra.mxu0 0
      %4880 = vmatprep.subr.bf16.mxu0 0
      %4881 = vmatpush1.bf16.msra.mxu0 0
      %4882 = vmatprep.subr.bf16.mxu0 0
      %4883 = vmatpush1.bf16.msra.mxu0 0
      %4884 = vmatprep.mubr.bf16.mxu0 0
      %4885 = vmatmul.mubr.bf16.gmra.mrb[0].mxu0 %v4186
      %v4886 = vpop.f32.mrb[0].mxu0
      %v4887 = vadd.f32 %v4501, %v4886
      %v4888 = vpop.f32.mrb[0].mxu0
      %v4889 = vadd.f32 %v4503, %v4888
      %v4890 = vpop.f32.mrb[0].mxu0
      %v4891 = vadd.f32 %v4505, %v4890
      %v4892 = vpop.f32.mrb[0].mxu0
      %v4893 = vadd.f32 %v4507, %v4892
      %4894 = vmatprep.mubr.bf16.mxu0 0
      %4895 = vmatmul.mubr.bf16.gmra.mrb[0].mxu0 %v4187
      %v4896 = vpop.f32.mrb[0].mxu0
      %v4897 = vadd.f32 %v4511, %v4896
      %v4898 = vpop.f32.mrb[0].mxu0
      %v4899 = vadd.f32 %v4513, %v4898
      %v4900 = vpop.f32.mrb[0].mxu0
      %v4901 = vadd.f32 %v4515, %v4900
      %v4902 = vpop.f32.mrb[0].mxu0
      %v4903 = vadd.f32 %v4517, %v4902
      %4904 = vmatprep.mubr.bf16.mxu0 0
      %4905 = vmatmul.mubr.bf16.gmra.mrb[0].mxu0 %v4188
      %v4906 = vpop.f32.mrb[0].mxu0
      %v4907 = vadd.f32 %v4521, %v4906
      %v4908 = vpop.f32.mrb[0].mxu0
      %v4909 = vadd.f32 %v4523, %v4908
      %v4910 = vpop.f32.mrb[0].mxu0
      %v4911 = vadd.f32 %v4525, %v4910
      %v4912 = vpop.f32.mrb[0].mxu0
      %v4913 = vadd.f32 %v4527, %v4912
      %4914 = vmatprep.mubr.bf16.mxu0 0
      %4915 = vmatmul.mubr.bf16.gmra.mrb[0].mxu0 %v4189
      %v4916 = vpop.f32.mrb[0].mxu0
      %v4917 = vadd.f32 %v4531, %v4916
      %v4918 = vpop.f32.mrb[0].mxu0
      %v4919 = vadd.f32 %v4533, %v4918
      %v4920 = vpop.f32.mrb[0].mxu0
      %v4921 = vadd.f32 %v4535, %v4920
      %v4922 = vpop.f32.mrb[0].mxu0
      %v4923 = vadd.f32 %v4537, %v4922
      %4924 = vmatprep.mubr.bf16.mxu0 0
      %4925 = vmatmul.mubr.bf16.gmra.mrb[0].mxu0 %v4190
      %v4926 = vpop.f32.mrb[0].mxu0
      %v4927 = vadd.f32 %v4541, %v4926
      %v4928 = vpop.f32.mrb[0].mxu0
      %v4929 = vadd.f32 %v4543, %v4928
      %v4930 = vpop.f32.mrb[0].mxu0
      %v4931 = vadd.f32 %v4545, %v4930
      %v4932 = vpop.f32.mrb[0].mxu0
      %v4933 = vadd.f32 %v4547, %v4932
      %4934 = vmatprep.mubr.bf16.mxu0 0
      %4935 = vmatmul.mubr.bf16.gmra.mrb[0].mxu0 %v4191
      %v4936 = vpop.f32.mrb[0].mxu0
      %v4937 = vadd.f32 %v4551, %v4936
      %v4938 = vpop.f32.mrb[0].mxu0
      %v4939 = vadd.f32 %v4553, %v4938
      %v4940 = vpop.f32.mrb[0].mxu0
      %v4941 = vadd.f32 %v4555, %v4940
      %v4942 = vpop.f32.mrb[0].mxu0
      %v4943 = vadd.f32 %v4557, %v4942
      %4944 = vmatprep.mubr.bf16.mxu0 0
      %4945 = vmatmul.mubr.bf16.gmra.mrb[0].mxu0 %v4192
      %v4946 = vpop.f32.mrb[0].mxu0
      %v4947 = vadd.f32 %v4561, %v4946
      %v4948 = vpop.f32.mrb[0].mxu0
      %v4949 = vadd.f32 %v4563, %v4948
      %v4950 = vpop.f32.mrb[0].mxu0
      %v4951 = vadd.f32 %v4565, %v4950
      %v4952 = vpop.f32.mrb[0].mxu0
      %v4953 = vadd.f32 %v4567, %v4952
      %4954 = vmatprep.mubr.bf16.mxu0 0
      %4955 = vmatmul.mubr.bf16.gmra.mrb[0].mxu0 %v4193
      %v4956 = vpop.f32.mrb[0].mxu0
      %v4957 = vadd.f32 %v4571, %v4956
      %v4958 = vpop.f32.mrb[0].mxu0
      %v4959 = vadd.f32 %v4573, %v4958
      %v4960 = vpop.f32.mrb[0].mxu0
      %v4961 = vadd.f32 %v4575, %v4960
      %v4962 = vpop.f32.mrb[0].mxu0
      %v4963 = vadd.f32 %v4577, %v4962
      %4964 = vdwg.mxu0
      %4965 = vmatprep.subr.bf16.mxu0 %v4791
      %4966 = vmatpush1.bf16.msra.mxu0 %v4790
      %4967 = vmatprep.subr.bf16.mxu0 %v4795
      %4968 = vmatpush1.bf16.msra.mxu0 %v4794
      %4969 = vmatprep.subr.bf16.mxu0 %v4799
      %4970 = vmatpush1.bf16.msra.mxu0 %v4798
      %4971 = vmatprep.subr.bf16.mxu0 %v4803
      %4972 = vmatpush1.bf16.msra.mxu0 %v4802
      %4973 = vmatprep.subr.bf16.mxu0 %v4807
      %4974 = vmatpush1.bf16.msra.mxu0 %v4806
      %4975 = vmatprep.subr.bf16.mxu0 %v4811
      %4976 = vmatpush1.bf16.msra.mxu0 %v4810
      %4977 = vmatprep.subr.bf16.mxu0 %v4815
      %4978 = vmatpush1.bf16.msra.mxu0 %v4814
      %4979 = vmatprep.subr.bf16.mxu0 %v4819
      %4980 = vmatpush1.bf16.msra.mxu0 %v4818
      %4981 = vmatprep.subr.bf16.mxu0 0
      %4982 = vmatpush1.bf16.msra.mxu0 0
      %4983 = vmatprep.subr.bf16.mxu0 0
      %4984 = vmatpush1.bf16.msra.mxu0 0
      %4985 = vmatprep.subr.bf16.mxu0 0
      %4986 = vmatpush1.bf16.msra.mxu0 0
      %4987 = vmatprep.subr.bf16.mxu0 0
      %4988 = vmatpush1.bf16.msra.mxu0 0
      %4989 = vmatprep.subr.bf16.mxu0 0
      %4990 = vmatpush1.bf16.msra.mxu0 0
      %4991 = vmatprep.subr.bf16.mxu0 0
      %4992 = vmatpush1.bf16.msra.mxu0 0
      %4993 = vmatprep.subr.bf16.mxu0 0
      %4994 = vmatpush1.bf16.msra.mxu0 0
      %4995 = vmatprep.subr.bf16.mxu0 0
      %4996 = vmatpush1.bf16.msra.mxu0 0
      %4997 = vmatprep.mubr.bf16.mxu0 0
      %4998 = vmatmul.mubr.bf16.gmra.mrb[0].mxu0 %v4186
      %v4999 = vpop.f32.mrb[0].mxu0
      %v5000 = vadd.f32 %v4614, %v4999
      %v5001 = vpop.f32.mrb[0].mxu0
      %v5002 = vadd.f32 %v4616, %v5001
      %v5003 = vpop.f32.mrb[0].mxu0
      %v5004 = vadd.f32 %v4618, %v5003
      %v5005 = vpop.f32.mrb[0].mxu0
      %v5006 = vadd.f32 %v4620, %v5005
      %5007 = vmatprep.mubr.bf16.mxu0 0
      %5008 = vmatmul.mubr.bf16.gmra.mrb[0].mxu0 %v4187
      %v5009 = vpop.f32.mrb[0].mxu0
      %v5010 = vadd.f32 %v4624, %v5009
      %v5011 = vpop.f32.mrb[0].mxu0
      %v5012 = vadd.f32 %v4626, %v5011
      %v5013 = vpop.f32.mrb[0].mxu0
      %v5014 = vadd.f32 %v4628, %v5013
      %v5015 = vpop.f32.mrb[0].mxu0
      %v5016 = vadd.f32 %v4630, %v5015
      %5017 = vmatprep.mubr.bf16.mxu0 0
      %5018 = vmatmul.mubr.bf16.gmra.mrb[0].mxu0 %v4188
      %v5019 = vpop.f32.mrb[0].mxu0
      %v5020 = vadd.f32 %v4634, %v5019
      %v5021 = vpop.f32.mrb[0].mxu0
      %v5022 = vadd.f32 %v4636, %v5021
      %v5023 = vpop.f32.mrb[0].mxu0
      %v5024 = vadd.f32 %v4638, %v5023
      %v5025 = vpop.f32.mrb[0].mxu0
      %v5026 = vadd.f32 %v4640, %v5025
      %5027 = vmatprep.mubr.bf16.mxu0 0
      %5028 = vmatmul.mubr.bf16.gmra.mrb[0].mxu0 %v4189
      %v5029 = vpop.f32.mrb[0].mxu0
      %v5030 = vadd.f32 %v4644, %v5029
      %v5031 = vpop.f32.mrb[0].mxu0
      %v5032 = vadd.f32 %v4646, %v5031
      %v5033 = vpop.f32.mrb[0].mxu0
      %v5034 = vadd.f32 %v4648, %v5033
      %v5035 = vpop.f32.mrb[0].mxu0
      %v5036 = vadd.f32 %v4650, %v5035
      %5037 = vmatprep.mubr.bf16.mxu0 0
      %5038 = vmatmul.mubr.bf16.gmra.mrb[0].mxu0 %v4190
      %v5039 = vpop.f32.mrb[0].mxu0
      %v5040 = vadd.f32 %v4654, %v5039
      %v5041 = vpop.f32.mrb[0].mxu0
      %v5042 = vadd.f32 %v4656, %v5041
      %v5043 = vpop.f32.mrb[0].mxu0
      %v5044 = vadd.f32 %v4658, %v5043
      %v5045 = vpop.f32.mrb[0].mxu0
      %v5046 = vadd.f32 %v4660, %v5045
      %5047 = vmatprep.mubr.bf16.mxu0 0
      %5048 = vmatmul.mubr.bf16.gmra.mrb[0].mxu0 %v4191
      %v5049 = vpop.f32.mrb[0].mxu0
      %v5050 = vadd.f32 %v4664, %v5049
      %v5051 = vpop.f32.mrb[0].mxu0
      %v5052 = vadd.f32 %v4666, %v5051
      %v5053 = vpop.f32.mrb[0].mxu0
      %v5054 = vadd.f32 %v4668, %v5053
      %v5055 = vpop.f32.mrb[0].mxu0
      %v5056 = vadd.f32 %v4670, %v5055
      %5057 = vmatprep.mubr.bf16.mxu0 0
      %5058 = vmatmul.mubr.bf16.gmra.mrb[0].mxu0 %v4192
      %v5059 = vpop.f32.mrb[0].mxu0
      %v5060 = vadd.f32 %v4674, %v5059
      %v5061 = vpop.f32.mrb[0].mxu0
      %v5062 = vadd.f32 %v4676, %v5061
      %v5063 = vpop.f32.mrb[0].mxu0
      %v5064 = vadd.f32 %v4678, %v5063
      %v5065 = vpop.f32.mrb[0].mxu0
      %v5066 = vadd.f32 %v4680, %v5065
      %5067 = vmatprep.mubr.bf16.mxu0 0
      %5068 = vmatmul.mubr.bf16.gmra.mrb[0].mxu0 %v4193
      %v5069 = vpop.f32.mrb[0].mxu0
      %v5070 = vadd.f32 %v4684, %v5069
      %v5071 = vpop.f32.mrb[0].mxu0
      %v5072 = vadd.f32 %v4686, %v5071
      %v5073 = vpop.f32.mrb[0].mxu0
      %v5074 = vadd.f32 %v4688, %v5073
      %v5075 = vpop.f32.mrb[0].mxu0
      %v5076 = vadd.f32 %v4690, %v5075
      %5077 = vdwg.mxu0
      %v5078 = vld [vmem:[%s9] sm:$0xf]
      %v5080 = vlaneseq
      %v5081 = vshrl.u32 %v5080, 7
      %v5082 = vsub.s32 0, %v5081
      %v5083 = vrot.slane %v5078, %v5082
      %v5084 = vlaneseq
      %v5085 = vshrl.u32 %v5084, 7
      %v5086 = vsub.s32 1, %v5085
      %v5087 = vrot.slane %v5078, %v5086
      %v5088 = vlaneseq
      %v5089 = vshrl.u32 %v5088, 7
      %v5090 = vsub.s32 2, %v5089
      %v5091 = vrot.slane %v5078, %v5090
      %v5092 = vlaneseq
      %v5093 = vshrl.u32 %v5092, 7
      %v5094 = vsub.s32 3, %v5093
      %v5095 = vrot.slane %v5078, %v5094
      %v5100 = vadd.f32 %v4887, %v5083
      %v5101 = vadd.f32 %v4889, %v5087
      %v5102 = vadd.f32 %v5000, %v5091
      %v5103 = vadd.f32 %v5002, %v5095
      %v5104 = vadd.f32 %v4891, %v5083
      %v5105 = vadd.f32 %v4893, %v5087
      %v5106 = vadd.f32 %v5004, %v5091
      %v5107 = vadd.f32 %v5006, %v5095
      %v5108 = vadd.f32 %v4897, %v5083
      %v5109 = vadd.f32 %v4899, %v5087
      %v5110 = vadd.f32 %v5010, %v5091
      %v5111 = vadd.f32 %v5012, %v5095
      %v5112 = vadd.f32 %v4901, %v5083
      %v5113 = vadd.f32 %v4903, %v5087
      %v5114 = vadd.f32 %v5014, %v5091
      %v5115 = vadd.f32 %v5016, %v5095
      %v5116 = vadd.f32 %v4907, %v5083
      %v5117 = vadd.f32 %v4909, %v5087
      %v5118 = vadd.f32 %v5020, %v5091
      %v5119 = vadd.f32 %v5022, %v5095
      %v5120 = vadd.f32 %v4911, %v5083
      %v5121 = vadd.f32 %v4913, %v5087
      %v5122 = vadd.f32 %v5024, %v5091
      %v5123 = vadd.f32 %v5026, %v5095
      %v5124 = vadd.f32 %v4917, %v5083
      %v5125 = vadd.f32 %v4919, %v5087
      %v5126 = vadd.f32 %v5030, %v5091
      %v5127 = vadd.f32 %v5032, %v5095
      %v5128 = vadd.f32 %v4921, %v5083
      %v5129 = vadd.f32 %v4923, %v5087
      %v5130 = vadd.f32 %v5034, %v5091
      %v5131 = vadd.f32 %v5036, %v5095
      %v5132 = vadd.f32 %v4927, %v5083
      %v5133 = vadd.f32 %v4929, %v5087
      %v5134 = vadd.f32 %v5040, %v5091
      %v5135 = vadd.f32 %v5042, %v5095
      %v5136 = vadd.f32 %v4931, %v5083
      %v5137 = vadd.f32 %v4933, %v5087
      %v5138 = vadd.f32 %v5044, %v5091
      %v5139 = vadd.f32 %v5046, %v5095
      %v5140 = vadd.f32 %v4937, %v5083
      %v5141 = vadd.f32 %v4939, %v5087
      %v5142 = vadd.f32 %v5050, %v5091
      %v5143 = vadd.f32 %v5052, %v5095
      %v5144 = vadd.f32 %v4941, %v5083
      %v5145 = vadd.f32 %v4943, %v5087
      %v5146 = vadd.f32 %v5054, %v5091
      %v5147 = vadd.f32 %v5056, %v5095
      %v5148 = vadd.f32 %v4947, %v5083
      %v5149 = vadd.f32 %v4949, %v5087
      %v5150 = vadd.f32 %v5060, %v5091
      %v5151 = vadd.f32 %v5062, %v5095
      %v5152 = vadd.f32 %v4951, %v5083
      %v5153 = vadd.f32 %v4953, %v5087
      %v5154 = vadd.f32 %v5064, %v5091
      %v5155 = vadd.f32 %v5066, %v5095
      %v5156 = vadd.f32 %v4957, %v5083
      %v5157 = vadd.f32 %v4959, %v5087
      %v5158 = vadd.f32 %v5070, %v5091
      %v5159 = vadd.f32 %v5072, %v5095
      %v5160 = vadd.f32 %v4961, %v5083
      %v5161 = vadd.f32 %v4963, %v5087
      %v5162 = vadd.f32 %v5074, %v5091
      %v5163 = vadd.f32 %v5076, %v5095
      %v5164 = vmax.f32 %v5100, 0.0
      %v5165 = vmax.f32 %v5101, 0.0
      %v5166 = vmax.f32 %v5102, 0.0
      %v5167 = vmax.f32 %v5103, 0.0
      %v5168 = vmax.f32 %v5104, 0.0
      %v5169 = vmax.f32 %v5105, 0.0
      %v5170 = vmax.f32 %v5106, 0.0
      %v5171 = vmax.f32 %v5107, 0.0
      %v5172 = vmax.f32 %v5108, 0.0
      %v5173 = vmax.f32 %v5109, 0.0
      %v5174 = vmax.f32 %v5110, 0.0
      %v5175 = vmax.f32 %v5111, 0.0
      %v5176 = vmax.f32 %v5112, 0.0
      %v5177 = vmax.f32 %v5113, 0.0
      %v5178 = vmax.f32 %v5114, 0.0
      %v5179 = vmax.f32 %v5115, 0.0
      %v5180 = vmax.f32 %v5116, 0.0
      %v5181 = vmax.f32 %v5117, 0.0
      %v5182 = vmax.f32 %v5118, 0.0
      %v5183 = vmax.f32 %v5119, 0.0
      %v5184 = vmax.f32 %v5120, 0.0
      %v5185 = vmax.f32 %v5121, 0.0
      %v5186 = vmax.f32 %v5122, 0.0
      %v5187 = vmax.f32 %v5123, 0.0
      %v5188 = vmax.f32 %v5124, 0.0
      %v5189 = vmax.f32 %v5125, 0.0
      %v5190 = vmax.f32 %v5126, 0.0
      %v5191 = vmax.f32 %v5127, 0.0
      %v5192 = vmax.f32 %v5128, 0.0
      %v5193 = vmax.f32 %v5129, 0.0
      %v5194 = vmax.f32 %v5130, 0.0
      %v5195 = vmax.f32 %v5131, 0.0
      %v5196 = vmax.f32 %v5132, 0.0
      %v5197 = vmax.f32 %v5133, 0.0
      %v5198 = vmax.f32 %v5134, 0.0
      %v5199 = vmax.f32 %v5135, 0.0
      %v5200 = vmax.f32 %v5136, 0.0
      %v5201 = vmax.f32 %v5137, 0.0
      %v5202 = vmax.f32 %v5138, 0.0
      %v5203 = vmax.f32 %v5139, 0.0
      %v5204 = vmax.f32 %v5140, 0.0
      %v5205 = vmax.f32 %v5141, 0.0
      %v5206 = vmax.f32 %v5142, 0.0
      %v5207 = vmax.f32 %v5143, 0.0
      %v5208 = vmax.f32 %v5144, 0.0
      %v5209 = vmax.f32 %v5145, 0.0
      %v5210 = vmax.f32 %v5146, 0.0
      %v5211 = vmax.f32 %v5147, 0.0
      %v5212 = vmax.f32 %v5148, 0.0
      %v5213 = vmax.f32 %v5149, 0.0
      %v5214 = vmax.f32 %v5150, 0.0
      %v5215 = vmax.f32 %v5151, 0.0
      %v5216 = vmax.f32 %v5152, 0.0
      %v5217 = vmax.f32 %v5153, 0.0
      %v5218 = vmax.f32 %v5154, 0.0
      %v5219 = vmax.f32 %v5155, 0.0
      %v5220 = vmax.f32 %v5156, 0.0
      %v5221 = vmax.f32 %v5157, 0.0
      %v5222 = vmax.f32 %v5158, 0.0
      %v5223 = vmax.f32 %v5159, 0.0
      %v5224 = vmax.f32 %v5160, 0.0
      %v5225 = vmax.f32 %v5161, 0.0
      %v5226 = vmax.f32 %v5162, 0.0
      %v5227 = vmax.f32 %v5163, 0.0
      %v5228 = vpack.c.bf16 %v5168, %v5164
      %v5229 = vpack.c.bf16 %v5169, %v5165
      %v5230 = vpack.c.bf16 %v5170, %v5166
      %v5231 = vpack.c.bf16 %v5171, %v5167
      %v5232 = vpack.c.bf16 %v5176, %v5172
      %v5233 = vpack.c.bf16 %v5177, %v5173
      %v5234 = vpack.c.bf16 %v5178, %v5174
      %v5235 = vpack.c.bf16 %v5179, %v5175
      %v5236 = vpack.c.bf16 %v5184, %v5180
      %v5237 = vpack.c.bf16 %v5185, %v5181
      %v5238 = vpack.c.bf16 %v5186, %v5182
      %v5239 = vpack.c.bf16 %v5187, %v5183
      %v5240 = vpack.c.bf16 %v5192, %v5188
      %v5241 = vpack.c.bf16 %v5193, %v5189
      %v5242 = vpack.c.bf16 %v5194, %v5190
      %v5243 = vpack.c.bf16 %v5195, %v5191
      %v5244 = vpack.c.bf16 %v5200, %v5196
      %v5245 = vpack.c.bf16 %v5201, %v5197
      %v5246 = vpack.c.bf16 %v5202, %v5198
      %v5247 = vpack.c.bf16 %v5203, %v5199
      %v5248 = vpack.c.bf16 %v5208, %v5204
      %v5249 = vpack.c.bf16 %v5209, %v5205
      %v5250 = vpack.c.bf16 %v5210, %v5206
      %v5251 = vpack.c.bf16 %v5211, %v5207
      %v5252 = vpack.c.bf16 %v5216, %v5212
      %v5253 = vpack.c.bf16 %v5217, %v5213
      %v5254 = vpack.c.bf16 %v5218, %v5214
      %v5255 = vpack.c.bf16 %v5219, %v5215
      %v5256 = vpack.c.bf16 %v5224, %v5220
      %v5257 = vpack.c.bf16 %v5225, %v5221
      %v5258 = vpack.c.bf16 %v5226, %v5222
      %v5259 = vpack.c.bf16 %v5227, %v5223
      %v5260 = vld [vmem:[%s10] sm:$0xff]
      %v5261 = vld [vmem:[%s10 + $0x8] sm:$0xff]
      %v5262 = vld [vmem:[%s10 + $0x10] sm:$0xff]
      %v5263 = vld [vmem:[%s10 + $0x18] sm:$0xf]
      %v5264 = vld [vmem:[%s10 + $0x1c] sm:$0xff]
      %v5265 = vld [vmem:[%s10 + $0x24] sm:$0xff]
      %v5266 = vld [vmem:[%s10 + $0x2c] sm:$0xff]
      %v5267 = vld [vmem:[%s10 + $0x34] sm:$0xf]
      %v5268 = vld [vmem:[%s10 + $0x38] sm:$0xff]
      %v5269 = vld [vmem:[%s10 + $0x40] sm:$0xff]
      %v5270 = vld [vmem:[%s10 + $0x48] sm:$0xff]
      %v5271 = vld [vmem:[%s10 + $0x50] sm:$0xf]
      %v5272 = vld [vmem:[%s10 + $0x54] sm:$0xff]
      %v5273 = vld [vmem:[%s10 + $0x5c] sm:$0xff]
      %v5274 = vld [vmem:[%s10 + $0x64] sm:$0xff]
      %v5275 = vld [vmem:[%s10 + $0x6c] sm:$0xf]
      %v5276 = vld [vmem:[%s10 + $0x70] sm:$0xff]
      %v5277 = vld [vmem:[%s10 + $0x78] sm:$0xff]
      %v5278 = vld [vmem:[%s10 + $0x80] sm:$0xff]
      %v5279 = vld [vmem:[%s10 + $0x88] sm:$0xf]
      %v5280 = vld [vmem:[%s10 + $0x8c] sm:$0xff]
      %v5281 = vld [vmem:[%s10 + $0x94] sm:$0xff]
      %v5282 = vld [vmem:[%s10 + $0x9c] sm:$0xff]
      %v5283 = vld [vmem:[%s10 + $0xa4] sm:$0xf]
      %v5284 = vld [vmem:[%s10 + $0xa8] sm:$0xff]
      %v5285 = vld [vmem:[%s10 + $0xb0] sm:$0xff]
      %v5286 = vld [vmem:[%s10 + $0xb8] sm:$0xff]
      %v5287 = vld [vmem:[%s10 + $0xc0] sm:$0xf]
      %v5288 = vld [vmem:[%s10 + $0xc4] sm:$0xff]
      %v5289 = vld [vmem:[%s10 + $0xcc] sm:$0xff]
      %v5290 = vld [vmem:[%s10 + $0xd4] sm:$0xff]
      %v5291 = vld [vmem:[%s10 + $0xdc] sm:$0xf]
      %v5292 = vld [vmem:[%s10 + $0xe0] sm:$0xff]
      %v5293 = vld [vmem:[%s10 + $0xe8] sm:$0xff]
      %v5294 = vld [vmem:[%s10 + $0xf0] sm:$0xff]
      %v5295 = vld [vmem:[%s10 + $0xf8] sm:$0xf]
      %v5296 = vld [vmem:[%s10 + $0xfc] sm:$0xff]
      %v5297 = vld [vmem:[%s10 + $0x104] sm:$0xff]
      %v5298 = vld [vmem:[%s10 + $0x10c] sm:$0xff]
      %v5299 = vld [vmem:[%s10 + $0x114] sm:$0xf]
      %v5300 = vld [vmem:[%s10 + $0x118] sm:$0xff]
      %v5301 = vld [vmem:[%s10 + $0x120] sm:$0xff]
      %v5302 = vld [vmem:[%s10 + $0x128] sm:$0xff]
      %v5303 = vld [vmem:[%s10 + $0x130] sm:$0xf]
      %v5304 = vld [vmem:[%s10 + $0x134] sm:$0xff]
      %v5305 = vld [vmem:[%s10 + $0x13c] sm:$0xff]
      %v5306 = vld [vmem:[%s10 + $0x144] sm:$0xff]
      %v5307 = vld [vmem:[%s10 + $0x14c] sm:$0xf]
      %v5308 = vld [vmem:[%s10 + $0x150] sm:$0xff]
      %v5309 = vld [vmem:[%s10 + $0x158] sm:$0xff]
      %v5310 = vld [vmem:[%s10 + $0x160] sm:$0xff]
      %v5311 = vld [vmem:[%s10 + $0x168] sm:$0xf]
      %v5312 = vld [vmem:[%s10 + $0x16c] sm:$0xff]
      %v5313 = vld [vmem:[%s10 + $0x174] sm:$0xff]
      %v5314 = vld [vmem:[%s10 + $0x17c] sm:$0xff]
      %v5315 = vld [vmem:[%s10 + $0x184] sm:$0xf]
      %v5316 = vld [vmem:[%s10 + $0x188] sm:$0xff]
      %v5317 = vld [vmem:[%s10 + $0x190] sm:$0xff]
      %v5318 = vld [vmem:[%s10 + $0x198] sm:$0xff]
      %v5319 = vld [vmem:[%s10 + $0x1a0] sm:$0xf]
      %v5320 = vld [vmem:[%s10 + $0x1a4] sm:$0xff]
      %v5321 = vld [vmem:[%s10 + $0x1ac] sm:$0xff]
      %v5322 = vld [vmem:[%s10 + $0x1b4] sm:$0xff]
      %v5323 = vld [vmem:[%s10 + $0x1bc] sm:$0xf]
      %v5324 = vld [vmem:[%s10 + $0x1c0] sm:$0xff]
      %v5325 = vld [vmem:[%s10 + $0x1c8] sm:$0xff]
      %v5326 = vld [vmem:[%s10 + $0x1d0] sm:$0xff]
      %v5327 = vld [vmem:[%s10 + $0x1d8] sm:$0xf]
      %v5328 = vld [vmem:[%s10 + $0x1dc] sm:$0xff]
      %v5329 = vld [vmem:[%s10 + $0x1e4] sm:$0xff]
      %v5330 = vld [vmem:[%s10 + $0x1ec] sm:$0xff]
      %v5331 = vld [vmem:[%s10 + $0x1f4] sm:$0xf]
      %v5332 = vld [vmem:[%s10 + $0x1f8] sm:$0xff]
      %v5333 = vld [vmem:[%s10 + $0x200] sm:$0xff]
      %v5334 = vld [vmem:[%s10 + $0x208] sm:$0xff]
      %v5335 = vld [vmem:[%s10 + $0x210] sm:$0xf]
      %v5336 = vld [vmem:[%s10 + $0x214] sm:$0xff]
      %v5337 = vld [vmem:[%s10 + $0x21c] sm:$0xff]
      %v5338 = vld [vmem:[%s10 + $0x224] sm:$0xff]
      %v5339 = vld [vmem:[%s10 + $0x22c] sm:$0xf]
      %v5340 = vld [vmem:[%s10 + $0x230] sm:$0xff]
      %v5341 = vld [vmem:[%s10 + $0x238] sm:$0xff]
      %v5342 = vld [vmem:[%s10 + $0x240] sm:$0xff]
      %v5343 = vld [vmem:[%s10 + $0x248] sm:$0xf]
      %v5344 = vld [vmem:[%s10 + $0x24c] sm:$0xff]
      %v5345 = vld [vmem:[%s10 + $0x254] sm:$0xff]
      %v5346 = vld [vmem:[%s10 + $0x25c] sm:$0xff]
      %v5347 = vld [vmem:[%s10 + $0x264] sm:$0xf]
      %v5348 = vld [vmem:[%s10 + $0x268] sm:$0xff]
      %v5349 = vld [vmem:[%s10 + $0x270] sm:$0xff]
      %v5350 = vld [vmem:[%s10 + $0x278] sm:$0xff]
      %v5351 = vld [vmem:[%s10 + $0x280] sm:$0xf]
      %v5352 = vld [vmem:[%s10 + $0x284] sm:$0xff]
      %v5353 = vld [vmem:[%s10 + $0x28c] sm:$0xff]
      %v5354 = vld [vmem:[%s10 + $0x294] sm:$0xff]
      %v5355 = vld [vmem:[%s10 + $0x29c] sm:$0xf]
      %v5356 = vld [vmem:[%s10 + $0x2a0] sm:$0xff]
      %v5357 = vld [vmem:[%s10 + $0x2a8] sm:$0xff]
      %v5358 = vld [vmem:[%s10 + $0x2b0] sm:$0xff]
      %v5359 = vld [vmem:[%s10 + $0x2b8] sm:$0xf]
      %v5360 = vld [vmem:[%s10 + $0x2bc] sm:$0xff]
      %v5361 = vld [vmem:[%s10 + $0x2c4] sm:$0xff]
      %v5362 = vld [vmem:[%s10 + $0x2cc] sm:$0xff]
      %v5363 = vld [vmem:[%s10 + $0x2d4] sm:$0xf]
      %v5364 = vld [vmem:[%s10 + $0x2d8] sm:$0xff]
      %v5365 = vld [vmem:[%s10 + $0x2e0] sm:$0xff]
      %v5366 = vld [vmem:[%s10 + $0x2e8] sm:$0xff]
      %v5367 = vld [vmem:[%s10 + $0x2f0] sm:$0xf]
      %v5368 = vld [vmem:[%s10 + $0x2f4] sm:$0xff]
      %v5369 = vld [vmem:[%s10 + $0x2fc] sm:$0xff]
      %v5370 = vld [vmem:[%s10 + $0x304] sm:$0xff]
      %v5371 = vld [vmem:[%s10 + $0x30c] sm:$0xf]
      %v5372 = vld [vmem:[%s10 + $0x310] sm:$0xff]
      %v5373 = vld [vmem:[%s10 + $0x318] sm:$0xff]
      %v5374 = vld [vmem:[%s10 + $0x320] sm:$0xff]
      %v5375 = vld [vmem:[%s10 + $0x328] sm:$0xf]
      %v5376 = vld [vmem:[%s10 + $0x32c] sm:$0xff]
      %v5377 = vld [vmem:[%s10 + $0x334] sm:$0xff]
      %v5378 = vld [vmem:[%s10 + $0x33c] sm:$0xff]
      %v5379 = vld [vmem:[%s10 + $0x344] sm:$0xf]
      %v5380 = vld [vmem:[%s10 + $0x348] sm:$0xff]
      %v5381 = vld [vmem:[%s10 + $0x350] sm:$0xff]
      %v5382 = vld [vmem:[%s10 + $0x358] sm:$0xff]
      %v5383 = vld [vmem:[%s10 + $0x360] sm:$0xf]
      %v5384 = vld [vmem:[%s10 + $0x364] sm:$0xff]
      %v5385 = vld [vmem:[%s10 + $0x36c] sm:$0xff]
      %v5386 = vld [vmem:[%s10 + $0x374] sm:$0xff]
      %v5387 = vld [vmem:[%s10 + $0x37c] sm:$0xf]
      %v5388 = vld [vmem:[%s10 + $0x380] sm:$0xff]
      %v5389 = vld [vmem:[%s10 + $0x388] sm:$0xff]
      %v5390 = vld [vmem:[%s10 + $0x390] sm:$0xff]
      %v5391 = vld [vmem:[%s10 + $0x398] sm:$0xf]
      %v5392 = vld [vmem:[%s10 + $0x39c] sm:$0xff]
      %v5393 = vld [vmem:[%s10 + $0x3a4] sm:$0xff]
      %v5394 = vld [vmem:[%s10 + $0x3ac] sm:$0xff]
      %v5395 = vld [vmem:[%s10 + $0x3b4] sm:$0xf]
      %v5396 = vld [vmem:[%s10 + $0x3b8] sm:$0xff]
      %v5397 = vld [vmem:[%s10 + $0x3c0] sm:$0xff]
      %v5398 = vld [vmem:[%s10 + $0x3c8] sm:$0xff]
      %v5399 = vld [vmem:[%s10 + $0x3d0] sm:$0xf]
      %v5400 = vld [vmem:[%s10 + $0x3d4] sm:$0xff]
      %v5401 = vld [vmem:[%s10 + $0x3dc] sm:$0xff]
      %v5402 = vld [vmem:[%s10 + $0x3e4] sm:$0xff]
      %v5403 = vld [vmem:[%s10 + $0x3ec] sm:$0xf]
      %v5404 = vld [vmem:[%s10 + $0x3f0] sm:$0xff]
      %v5405 = vld [vmem:[%s10 + $0x3f8] sm:$0xff]
      %v5406 = vld [vmem:[%s10 + $0x400] sm:$0xff]
      %v5407 = vld [vmem:[%s10 + $0x408] sm:$0xf]
      %v5408 = vld [vmem:[%s10 + $0x40c] sm:$0xff]
      %v5409 = vld [vmem:[%s10 + $0x414] sm:$0xff]
      %v5410 = vld [vmem:[%s10 + $0x41c] sm:$0xff]
      %v5411 = vld [vmem:[%s10 + $0x424] sm:$0xf]
      %v5412 = vld [vmem:[%s10 + $0x428] sm:$0xff]
      %v5413 = vld [vmem:[%s10 + $0x430] sm:$0xff]
      %v5414 = vld [vmem:[%s10 + $0x438] sm:$0xff]
      %v5415 = vld [vmem:[%s10 + $0x440] sm:$0xf]
      %v5416 = vld [vmem:[%s10 + $0x444] sm:$0xff]
      %v5417 = vld [vmem:[%s10 + $0x44c] sm:$0xff]
      %v5418 = vld [vmem:[%s10 + $0x454] sm:$0xff]
      %v5419 = vld [vmem:[%s10 + $0x45c] sm:$0xf]
      %v5420 = vld [vmem:[%s10 + $0x460] sm:$0xff]
      %v5421 = vld [vmem:[%s10 + $0x468] sm:$0xff]
      %v5422 = vld [vmem:[%s10 + $0x470] sm:$0xff]
      %v5423 = vld [vmem:[%s10 + $0x478] sm:$0xf]
      %v5424 = vld [vmem:[%s10 + $0x47c] sm:$0xff]
      %v5425 = vld [vmem:[%s10 + $0x484] sm:$0xff]
      %v5426 = vld [vmem:[%s10 + $0x48c] sm:$0xff]
      %v5427 = vld [vmem:[%s10 + $0x494] sm:$0xf]
      %v5428 = vld [vmem:[%s10 + $0x498] sm:$0xff]
      %v5429 = vld [vmem:[%s10 + $0x4a0] sm:$0xff]
      %v5430 = vld [vmem:[%s10 + $0x4a8] sm:$0xff]
      %v5431 = vld [vmem:[%s10 + $0x4b0] sm:$0xf]
      %v5432 = vld [vmem:[%s10 + $0x4b4] sm:$0xff]
      %v5433 = vld [vmem:[%s10 + $0x4bc] sm:$0xff]
      %v5434 = vld [vmem:[%s10 + $0x4c4] sm:$0xff]
      %v5435 = vld [vmem:[%s10 + $0x4cc] sm:$0xf]
      %v5436 = vld [vmem:[%s10 + $0x4d0] sm:$0xff]
      %v5437 = vld [vmem:[%s10 + $0x4d8] sm:$0xff]
      %v5438 = vld [vmem:[%s10 + $0x4e0] sm:$0xff]
      %v5439 = vld [vmem:[%s10 + $0x4e8] sm:$0xf]
      %v5440 = vld [vmem:[%s10 + $0x4ec] sm:$0xff]
      %v5441 = vld [vmem:[%s10 + $0x4f4] sm:$0xff]
      %v5442 = vld [vmem:[%s10 + $0x4fc] sm:$0xff]
      %v5443 = vld [vmem:[%s10 + $0x504] sm:$0xf]
      %v5444 = vld [vmem:[%s10 + $0x508] sm:$0xff]
      %v5445 = vld [vmem:[%s10 + $0x510] sm:$0xff]
      %v5446 = vld [vmem:[%s10 + $0x518] sm:$0xff]
      %v5447 = vld [vmem:[%s10 + $0x520] sm:$0xf]
      %v5448 = vld [vmem:[%s10 + $0x524] sm:$0xff]
      %v5449 = vld [vmem:[%s10 + $0x52c] sm:$0xff]
      %v5450 = vld [vmem:[%s10 + $0x534] sm:$0xff]
      %v5451 = vld [vmem:[%s10 + $0x53c] sm:$0xf]
      %v5452 = vld [vmem:[%s10 + $0x540] sm:$0xff]
      %v5453 = vld [vmem:[%s10 + $0x548] sm:$0xff]
      %v5454 = vld [vmem:[%s10 + $0x550] sm:$0xff]
      %v5455 = vld [vmem:[%s10 + $0x558] sm:$0xf]
      %v5456 = vld [vmem:[%s10 + $0x55c] sm:$0xff]
      %v5457 = vld [vmem:[%s10 + $0x564] sm:$0xff]
      %v5458 = vld [vmem:[%s10 + $0x56c] sm:$0xff]
      %v5459 = vld [vmem:[%s10 + $0x574] sm:$0xf]
      %v5460 = vld [vmem:[%s10 + $0x578] sm:$0xff]
      %v5461 = vld [vmem:[%s10 + $0x580] sm:$0xff]
      %v5462 = vld [vmem:[%s10 + $0x588] sm:$0xff]
      %v5463 = vld [vmem:[%s10 + $0x590] sm:$0xf]
      %v5464 = vld [vmem:[%s10 + $0x594] sm:$0xff]
      %v5465 = vld [vmem:[%s10 + $0x59c] sm:$0xff]
      %v5466 = vld [vmem:[%s10 + $0x5a4] sm:$0xff]
      %v5467 = vld [vmem:[%s10 + $0x5ac] sm:$0xf]
      %v5468 = vld [vmem:[%s10 + $0x5b0] sm:$0xff]
      %v5469 = vld [vmem:[%s10 + $0x5b8] sm:$0xff]
      %v5470 = vld [vmem:[%s10 + $0x5c0] sm:$0xff]
      %v5471 = vld [vmem:[%s10 + $0x5c8] sm:$0xf]
      %v5472 = vld [vmem:[%s10 + $0x5cc] sm:$0xff]
      %v5473 = vld [vmem:[%s10 + $0x5d4] sm:$0xff]
      %v5474 = vld [vmem:[%s10 + $0x5dc] sm:$0xff]
      %v5475 = vld [vmem:[%s10 + $0x5e4] sm:$0xf]
      %v5476 = vld [vmem:[%s10 + $0x5e8] sm:$0xff]
      %v5477 = vld [vmem:[%s10 + $0x5f0] sm:$0xff]
      %v5478 = vld [vmem:[%s10 + $0x5f8] sm:$0xff]
      %v5479 = vld [vmem:[%s10 + $0x600] sm:$0xf]
      %v5480 = vld [vmem:[%s10 + $0x604] sm:$0xff]
      %v5481 = vld [vmem:[%s10 + $0x60c] sm:$0xff]
      %v5482 = vld [vmem:[%s10 + $0x614] sm:$0xff]
      %v5483 = vld [vmem:[%s10 + $0x61c] sm:$0xf]
      %v5484 = vld [vmem:[%s10 + $0x620] sm:$0xff]
      %v5485 = vld [vmem:[%s10 + $0x628] sm:$0xff]
      %v5486 = vld [vmem:[%s10 + $0x630] sm:$0xff]
      %v5487 = vld [vmem:[%s10 + $0x638] sm:$0xf]
      %v5488 = vld [vmem:[%s10 + $0x63c] sm:$0xff]
      %v5489 = vld [vmem:[%s10 + $0x644] sm:$0xff]
      %v5490 = vld [vmem:[%s10 + $0x64c] sm:$0xff]
      %v5491 = vld [vmem:[%s10 + $0x654] sm:$0xf]
      %v5492 = vld [vmem:[%s10 + $0x658] sm:$0xff]
      %v5493 = vld [vmem:[%s10 + $0x660] sm:$0xff]
      %v5494 = vld [vmem:[%s10 + $0x668] sm:$0xff]
      %v5495 = vld [vmem:[%s10 + $0x670] sm:$0xf]
      %v5496 = vld [vmem:[%s10 + $0x674] sm:$0xff]
      %v5497 = vld [vmem:[%s10 + $0x67c] sm:$0xff]
      %v5498 = vld [vmem:[%s10 + $0x684] sm:$0xff]
      %v5499 = vld [vmem:[%s10 + $0x68c] sm:$0xf]
      %v5500 = vld [vmem:[%s10 + $0x690] sm:$0xff]
      %v5501 = vld [vmem:[%s10 + $0x698] sm:$0xff]
      %v5502 = vld [vmem:[%s10 + $0x6a0] sm:$0xff]
      %v5503 = vld [vmem:[%s10 + $0x6a8] sm:$0xf]
      %v5504 = vld [vmem:[%s10 + $0x6ac] sm:$0xff]
      %v5505 = vld [vmem:[%s10 + $0x6b4] sm:$0xff]
      %v5506 = vld [vmem:[%s10 + $0x6bc] sm:$0xff]
      %v5507 = vld [vmem:[%s10 + $0x6c4] sm:$0xf]
      %v5508 = vld [vmem:[%s10 + $0x6c8] sm:$0xff]
      %v5509 = vld [vmem:[%s10 + $0x6d0] sm:$0xff]
      %v5510 = vld [vmem:[%s10 + $0x6d8] sm:$0xff]
      %v5511 = vld [vmem:[%s10 + $0x6e0] sm:$0xf]
      %v5512 = vld [vmem:[%s10 + $0x6e4] sm:$0xff]
      %v5513 = vld [vmem:[%s10 + $0x6ec] sm:$0xff]
      %v5514 = vld [vmem:[%s10 + $0x6f4] sm:$0xff]
      %v5515 = vld [vmem:[%s10 + $0x6fc] sm:$0xf]
      %v5516 = vld [vmem:[%s11] sm:$0xff]
      %v5518 = vlaneseq
      %v5519 = vshrl.u32 %v5518, 7
      %v5520 = vsub.s32 0, %v5519
      %v5521 = vrot.slane %v5516, %v5520
      %v5522 = vlaneseq
      %v5523 = vshrl.u32 %v5522, 7
      %v5524 = vsub.s32 1, %v5523
      %v5525 = vrot.slane %v5516, %v5524
      %v5526 = vlaneseq
      %v5527 = vshrl.u32 %v5526, 7
      %v5528 = vsub.s32 2, %v5527
      %v5529 = vrot.slane %v5516, %v5528
      %v5530 = vlaneseq
      %v5531 = vshrl.u32 %v5530, 7
      %v5532 = vsub.s32 3, %v5531
      %v5533 = vrot.slane %v5516, %v5532
      %v5534 = vlaneseq
      %v5535 = vshrl.u32 %v5534, 7
      %v5536 = vsub.s32 4, %v5535
      %v5537 = vrot.slane %v5516, %v5536
      %v5538 = vlaneseq
      %v5539 = vshrl.u32 %v5538, 7
      %v5540 = vsub.s32 5, %v5539
      %v5541 = vrot.slane %v5516, %v5540
      %v5542 = vlaneseq
      %v5543 = vshrl.u32 %v5542, 7
      %v5544 = vsub.s32 6, %v5543
      %v5545 = vrot.slane %v5516, %v5544
      %v5809 = vunpack.c.l.b16 %v5260
      %v5810 = vunpack.c.h.b16 %v5260
      %v5811 = vunpack.c.l.b16 %v5261
      %v5812 = vunpack.c.h.b16 %v5261
      %v5813 = vunpack.c.l.b16 %v5262
      %v5814 = vunpack.c.h.b16 %v5262
      %v5815 = vunpack.c.l.b16 %v5263
      %v5816 = vunpack.c.l.b16 %v5264
      %v5817 = vunpack.c.h.b16 %v5264
      %v5818 = vunpack.c.l.b16 %v5265
      %v5819 = vunpack.c.h.b16 %v5265
      %v5820 = vunpack.c.l.b16 %v5266
      %v5821 = vunpack.c.h.b16 %v5266
      %v5822 = vunpack.c.l.b16 %v5267
      %v5823 = vunpack.c.l.b16 %v5268
      %v5824 = vunpack.c.h.b16 %v5268
      %v5825 = vunpack.c.l.b16 %v5269
      %v5826 = vunpack.c.h.b16 %v5269
      %v5827 = vunpack.c.l.b16 %v5270
      %v5828 = vunpack.c.h.b16 %v5270
      %v5829 = vunpack.c.l.b16 %v5271
      %v5830 = vunpack.c.l.b16 %v5272
      %v5831 = vunpack.c.h.b16 %v5272
      %v5832 = vunpack.c.l.b16 %v5273
      %v5833 = vunpack.c.h.b16 %v5273
      %v5834 = vunpack.c.l.b16 %v5274
      %v5835 = vunpack.c.h.b16 %v5274
      %v5836 = vunpack.c.l.b16 %v5275
      %v5837 = vunpack.c.l.b16 %v5276
      %v5838 = vunpack.c.h.b16 %v5276
      %v5839 = vunpack.c.l.b16 %v5277
      %v5840 = vunpack.c.h.b16 %v5277
      %v5841 = vunpack.c.l.b16 %v5278
      %v5842 = vunpack.c.h.b16 %v5278
      %v5843 = vunpack.c.l.b16 %v5279
      %v5844 = vunpack.c.l.b16 %v5280
      %v5845 = vunpack.c.h.b16 %v5280
      %v5846 = vunpack.c.l.b16 %v5281
      %v5847 = vunpack.c.h.b16 %v5281
      %v5848 = vunpack.c.l.b16 %v5282
      %v5849 = vunpack.c.h.b16 %v5282
      %v5850 = vunpack.c.l.b16 %v5283
      %v5851 = vunpack.c.l.b16 %v5284
      %v5852 = vunpack.c.h.b16 %v5284
      %v5853 = vunpack.c.l.b16 %v5285
      %v5854 = vunpack.c.h.b16 %v5285
      %v5855 = vunpack.c.l.b16 %v5286
      %v5856 = vunpack.c.h.b16 %v5286
      %v5857 = vunpack.c.l.b16 %v5287
      %v5858 = vunpack.c.l.b16 %v5288
      %v5859 = vunpack.c.h.b16 %v5288
      %v5860 = vunpack.c.l.b16 %v5289
      %v5861 = vunpack.c.h.b16 %v5289
      %v5862 = vunpack.c.l.b16 %v5290
      %v5863 = vunpack.c.h.b16 %v5290
      %v5864 = vunpack.c.l.b16 %v5291
      %v5865 = vunpack.c.l.b16 %v5292
      %v5866 = vunpack.c.h.b16 %v5292
      %v5867 = vunpack.c.l.b16 %v5293
      %v5868 = vunpack.c.h.b16 %v5293
      %v5869 = vunpack.c.l.b16 %v5294
      %v5870 = vunpack.c.h.b16 %v5294
      %v5871 = vunpack.c.l.b16 %v5295
      %v5872 = vunpack.c.l.b16 %v5296
      %v5873 = vunpack.c.h.b16 %v5296
      %v5874 = vunpack.c.l.b16 %v5297
      %v5875 = vunpack.c.h.b16 %v5297
      %v5876 = vunpack.c.l.b16 %v5298
      %v5877 = vunpack.c.h.b16 %v5298
      %v5878 = vunpack.c.l.b16 %v5299
      %v5879 = vunpack.c.l.b16 %v5300
      %v5880 = vunpack.c.h.b16 %v5300
      %v5881 = vunpack.c.l.b16 %v5301
      %v5882 = vunpack.c.h.b16 %v5301
      %v5883 = vunpack.c.l.b16 %v5302
      %v5884 = vunpack.c.h.b16 %v5302
      %v5885 = vunpack.c.l.b16 %v5303
      %v5886 = vunpack.c.l.b16 %v5304
      %v5887 = vunpack.c.h.b16 %v5304
      %v5888 = vunpack.c.l.b16 %v5305
      %v5889 = vunpack.c.h.b16 %v5305
      %v5890 = vunpack.c.l.b16 %v5306
      %v5891 = vunpack.c.h.b16 %v5306
      %v5892 = vunpack.c.l.b16 %v5307
      %v5893 = vunpack.c.l.b16 %v5308
      %v5894 = vunpack.c.h.b16 %v5308
      %v5895 = vunpack.c.l.b16 %v5309
      %v5896 = vunpack.c.h.b16 %v5309
      %v5897 = vunpack.c.l.b16 %v5310
      %v5898 = vunpack.c.h.b16 %v5310
      %v5899 = vunpack.c.l.b16 %v5311
      %v5900 = vunpack.c.l.b16 %v5312
      %v5901 = vunpack.c.h.b16 %v5312
      %v5902 = vunpack.c.l.b16 %v5313
      %v5903 = vunpack.c.h.b16 %v5313
      %v5904 = vunpack.c.l.b16 %v5314
      %v5905 = vunpack.c.h.b16 %v5314
      %v5906 = vunpack.c.l.b16 %v5315
      %v5907 = vunpack.c.l.b16 %v5316
      %v5908 = vunpack.c.h.b16 %v5316
      %v5909 = vunpack.c.l.b16 %v5317
      %v5910 = vunpack.c.h.b16 %v5317
      %v5911 = vunpack.c.l.b16 %v5318
      %v5912 = vunpack.c.h.b16 %v5318
      %v5913 = vunpack.c.l.b16 %v5319
      %v5914 = vunpack.c.l.b16 %v5320
      %v5915 = vunpack.c.h.b16 %v5320
      %v5916 = vunpack.c.l.b16 %v5321
      %v5917 = vunpack.c.h.b16 %v5321
      %v5918 = vunpack.c.l.b16 %v5322
      %v5919 = vunpack.c.h.b16 %v5322
      %v5920 = vunpack.c.l.b16 %v5323
      %v5921 = vunpack.c.l.b16 %v5324
      %v5922 = vunpack.c.h.b16 %v5324
      %v5923 = vunpack.c.l.b16 %v5325
      %v5924 = vunpack.c.h.b16 %v5325
      %v5925 = vunpack.c.l.b16 %v5326
      %v5926 = vunpack.c.h.b16 %v5326
      %v5927 = vunpack.c.l.b16 %v5327
      %v5928 = vunpack.c.l.b16 %v5328
      %v5929 = vunpack.c.h.b16 %v5328
      %v5930 = vunpack.c.l.b16 %v5329
      %v5931 = vunpack.c.h.b16 %v5329
      %v5932 = vunpack.c.l.b16 %v5330
      %v5933 = vunpack.c.h.b16 %v5330
      %v5934 = vunpack.c.l.b16 %v5331
      %v5935 = vunpack.c.l.b16 %v5332
      %v5936 = vunpack.c.h.b16 %v5332
      %v5937 = vunpack.c.l.b16 %v5333
      %v5938 = vunpack.c.h.b16 %v5333
      %v5939 = vunpack.c.l.b16 %v5334
      %v5940 = vunpack.c.h.b16 %v5334
      %v5941 = vunpack.c.l.b16 %v5335
      %v5942 = vunpack.c.l.b16 %v5336
      %v5943 = vunpack.c.h.b16 %v5336
      %v5944 = vunpack.c.l.b16 %v5337
      %v5945 = vunpack.c.h.b16 %v5337
      %v5946 = vunpack.c.l.b16 %v5338
      %v5947 = vunpack.c.h.b16 %v5338
      %v5948 = vunpack.c.l.b16 %v5339
      %v5949 = vunpack.c.l.b16 %v5340
      %v5950 = vunpack.c.h.b16 %v5340
      %v5951 = vunpack.c.l.b16 %v5341
      %v5952 = vunpack.c.h.b16 %v5341
      %v5953 = vunpack.c.l.b16 %v5342
      %v5954 = vunpack.c.h.b16 %v5342
      %v5955 = vunpack.c.l.b16 %v5343
      %v5956 = vunpack.c.l.b16 %v5344
      %v5957 = vunpack.c.h.b16 %v5344
      %v5958 = vunpack.c.l.b16 %v5345
      %v5959 = vunpack.c.h.b16 %v5345
      %v5960 = vunpack.c.l.b16 %v5346
      %v5961 = vunpack.c.h.b16 %v5346
      %v5962 = vunpack.c.l.b16 %v5347
      %v5963 = vunpack.c.l.b16 %v5348
      %v5964 = vunpack.c.h.b16 %v5348
      %v5965 = vunpack.c.l.b16 %v5349
      %v5966 = vunpack.c.h.b16 %v5349
      %v5967 = vunpack.c.l.b16 %v5350
      %v5968 = vunpack.c.h.b16 %v5350
      %v5969 = vunpack.c.l.b16 %v5351
      %v5970 = vunpack.c.l.b16 %v5352
      %v5971 = vunpack.c.h.b16 %v5352
      %v5972 = vunpack.c.l.b16 %v5353
      %v5973 = vunpack.c.h.b16 %v5353
      %v5974 = vunpack.c.l.b16 %v5354
      %v5975 = vunpack.c.h.b16 %v5354
      %v5976 = vunpack.c.l.b16 %v5355
      %v5977 = vunpack.c.l.b16 %v5356
      %v5978 = vunpack.c.h.b16 %v5356
      %v5979 = vunpack.c.l.b16 %v5357
      %v5980 = vunpack.c.h.b16 %v5357
      %v5981 = vunpack.c.l.b16 %v5358
      %v5982 = vunpack.c.h.b16 %v5358
      %v5983 = vunpack.c.l.b16 %v5359
      %v5984 = vunpack.c.l.b16 %v5360
      %v5985 = vunpack.c.h.b16 %v5360
      %v5986 = vunpack.c.l.b16 %v5361
      %v5987 = vunpack.c.h.b16 %v5361
      %v5988 = vunpack.c.l.b16 %v5362
      %v5989 = vunpack.c.h.b16 %v5362
      %v5990 = vunpack.c.l.b16 %v5363
      %v5991 = vunpack.c.l.b16 %v5364
      %v5992 = vunpack.c.h.b16 %v5364
      %v5993 = vunpack.c.l.b16 %v5365
      %v5994 = vunpack.c.h.b16 %v5365
      %v5995 = vunpack.c.l.b16 %v5366
      %v5996 = vunpack.c.h.b16 %v5366
      %v5997 = vunpack.c.l.b16 %v5367
      %v5998 = vunpack.c.l.b16 %v5368
      %v5999 = vunpack.c.h.b16 %v5368
      %v6000 = vunpack.c.l.b16 %v5369
      %v6001 = vunpack.c.h.b16 %v5369
      %v6002 = vunpack.c.l.b16 %v5370
      %v6003 = vunpack.c.h.b16 %v5370
      %v6004 = vunpack.c.l.b16 %v5371
      %v6005 = vunpack.c.l.b16 %v5372
      %v6006 = vunpack.c.h.b16 %v5372
      %v6007 = vunpack.c.l.b16 %v5373
      %v6008 = vunpack.c.h.b16 %v5373
      %v6009 = vunpack.c.l.b16 %v5374
      %v6010 = vunpack.c.h.b16 %v5374
      %v6011 = vunpack.c.l.b16 %v5375
      %v6012 = vunpack.c.l.b16 %v5376
      %v6013 = vunpack.c.h.b16 %v5376
      %v6014 = vunpack.c.l.b16 %v5377
      %v6015 = vunpack.c.h.b16 %v5377
      %v6016 = vunpack.c.l.b16 %v5378
      %v6017 = vunpack.c.h.b16 %v5378
      %v6018 = vunpack.c.l.b16 %v5379
      %v6019 = vunpack.c.l.b16 %v5380
      %v6020 = vunpack.c.h.b16 %v5380
      %v6021 = vunpack.c.l.b16 %v5381
      %v6022 = vunpack.c.h.b16 %v5381
      %v6023 = vunpack.c.l.b16 %v5382
      %v6024 = vunpack.c.h.b16 %v5382
      %v6025 = vunpack.c.l.b16 %v5383
      %v6026 = vunpack.c.l.b16 %v5384
      %v6027 = vunpack.c.h.b16 %v5384
      %v6028 = vunpack.c.l.b16 %v5385
      %v6029 = vunpack.c.h.b16 %v5385
      %v6030 = vunpack.c.l.b16 %v5386
      %v6031 = vunpack.c.h.b16 %v5386
      %v6032 = vunpack.c.l.b16 %v5387
      %v6033 = vunpack.c.l.b16 %v5388
      %v6034 = vunpack.c.h.b16 %v5388
      %v6035 = vunpack.c.l.b16 %v5389
      %v6036 = vunpack.c.h.b16 %v5389
      %v6037 = vunpack.c.l.b16 %v5390
      %v6038 = vunpack.c.h.b16 %v5390
      %v6039 = vunpack.c.l.b16 %v5391
      %v6040 = vunpack.c.l.b16 %v5392
      %v6041 = vunpack.c.h.b16 %v5392
      %v6042 = vunpack.c.l.b16 %v5393
      %v6043 = vunpack.c.h.b16 %v5393
      %v6044 = vunpack.c.l.b16 %v5394
      %v6045 = vunpack.c.h.b16 %v5394
      %v6046 = vunpack.c.l.b16 %v5395
      %v6047 = vunpack.c.l.b16 %v5396
      %v6048 = vunpack.c.h.b16 %v5396
      %v6049 = vunpack.c.l.b16 %v5397
      %v6050 = vunpack.c.h.b16 %v5397
      %v6051 = vunpack.c.l.b16 %v5398
      %v6052 = vunpack.c.h.b16 %v5398
      %v6053 = vunpack.c.l.b16 %v5399
      %v6054 = vunpack.c.l.b16 %v5400
      %v6055 = vunpack.c.h.b16 %v5400
      %v6056 = vunpack.c.l.b16 %v5401
      %v6057 = vunpack.c.h.b16 %v5401
      %v6058 = vunpack.c.l.b16 %v5402
      %v6059 = vunpack.c.h.b16 %v5402
      %v6060 = vunpack.c.l.b16 %v5403
      %v6061 = vunpack.c.l.b16 %v5404
      %v6062 = vunpack.c.h.b16 %v5404
      %v6063 = vunpack.c.l.b16 %v5405
      %v6064 = vunpack.c.h.b16 %v5405
      %v6065 = vunpack.c.l.b16 %v5406
      %v6066 = vunpack.c.h.b16 %v5406
      %v6067 = vunpack.c.l.b16 %v5407
      %v6068 = vunpack.c.l.b16 %v5408
      %v6069 = vunpack.c.h.b16 %v5408
      %v6070 = vunpack.c.l.b16 %v5409
      %v6071 = vunpack.c.h.b16 %v5409
      %v6072 = vunpack.c.l.b16 %v5410
      %v6073 = vunpack.c.h.b16 %v5410
      %v6074 = vunpack.c.l.b16 %v5411
      %v6075 = vunpack.c.l.b16 %v5412
      %v6076 = vunpack.c.h.b16 %v5412
      %v6077 = vunpack.c.l.b16 %v5413
      %v6078 = vunpack.c.h.b16 %v5413
      %v6079 = vunpack.c.l.b16 %v5414
      %v6080 = vunpack.c.h.b16 %v5414
      %v6081 = vunpack.c.l.b16 %v5415
      %v6082 = vunpack.c.l.b16 %v5416
      %v6083 = vunpack.c.h.b16 %v5416
      %v6084 = vunpack.c.l.b16 %v5417
      %v6085 = vunpack.c.h.b16 %v5417
      %v6086 = vunpack.c.l.b16 %v5418
      %v6087 = vunpack.c.h.b16 %v5418
      %v6088 = vunpack.c.l.b16 %v5419
      %v6089 = vunpack.c.l.b16 %v5420
      %v6090 = vunpack.c.h.b16 %v5420
      %v6091 = vunpack.c.l.b16 %v5421
      %v6092 = vunpack.c.h.b16 %v5421
      %v6093 = vunpack.c.l.b16 %v5422
      %v6094 = vunpack.c.h.b16 %v5422
      %v6095 = vunpack.c.l.b16 %v5423
      %v6096 = vunpack.c.l.b16 %v5424
      %v6097 = vunpack.c.h.b16 %v5424
      %v6098 = vunpack.c.l.b16 %v5425
      %v6099 = vunpack.c.h.b16 %v5425
      %v6100 = vunpack.c.l.b16 %v5426
      %v6101 = vunpack.c.h.b16 %v5426
      %v6102 = vunpack.c.l.b16 %v5427
      %v6103 = vunpack.c.l.b16 %v5428
      %v6104 = vunpack.c.h.b16 %v5428
      %v6105 = vunpack.c.l.b16 %v5429
      %v6106 = vunpack.c.h.b16 %v5429
      %v6107 = vunpack.c.l.b16 %v5430
      %v6108 = vunpack.c.h.b16 %v5430
      %v6109 = vunpack.c.l.b16 %v5431
      %v6110 = vunpack.c.l.b16 %v5432
      %v6111 = vunpack.c.h.b16 %v5432
      %v6112 = vunpack.c.l.b16 %v5433
      %v6113 = vunpack.c.h.b16 %v5433
      %v6114 = vunpack.c.l.b16 %v5434
      %v6115 = vunpack.c.h.b16 %v5434
      %v6116 = vunpack.c.l.b16 %v5435
      %v6117 = vunpack.c.l.b16 %v5436
      %v6118 = vunpack.c.h.b16 %v5436
      %v6119 = vunpack.c.l.b16 %v5437
      %v6120 = vunpack.c.h.b16 %v5437
      %v6121 = vunpack.c.l.b16 %v5438
      %v6122 = vunpack.c.h.b16 %v5438
      %v6123 = vunpack.c.l.b16 %v5439
      %v6124 = vunpack.c.l.b16 %v5440
      %v6125 = vunpack.c.h.b16 %v5440
      %v6126 = vunpack.c.l.b16 %v5441
      %v6127 = vunpack.c.h.b16 %v5441
      %v6128 = vunpack.c.l.b16 %v5442
      %v6129 = vunpack.c.h.b16 %v5442
      %v6130 = vunpack.c.l.b16 %v5443
      %v6131 = vunpack.c.l.b16 %v5444
      %v6132 = vunpack.c.h.b16 %v5444
      %v6133 = vunpack.c.l.b16 %v5445
      %v6134 = vunpack.c.h.b16 %v5445
      %v6135 = vunpack.c.l.b16 %v5446
      %v6136 = vunpack.c.h.b16 %v5446
      %v6137 = vunpack.c.l.b16 %v5447
      %v6138 = vunpack.c.l.b16 %v5448
      %v6139 = vunpack.c.h.b16 %v5448
      %v6140 = vunpack.c.l.b16 %v5449
      %v6141 = vunpack.c.h.b16 %v5449
      %v6142 = vunpack.c.l.b16 %v5450
      %v6143 = vunpack.c.h.b16 %v5450
      %v6144 = vunpack.c.l.b16 %v5451
      %v6145 = vunpack.c.l.b16 %v5452
      %v6146 = vunpack.c.h.b16 %v5452
      %v6147 = vunpack.c.l.b16 %v5453
      %v6148 = vunpack.c.h.b16 %v5453
      %v6149 = vunpack.c.l.b16 %v5454
      %v6150 = vunpack.c.h.b16 %v5454
      %v6151 = vunpack.c.l.b16 %v5455
      %v6152 = vunpack.c.l.b16 %v5456
      %v6153 = vunpack.c.h.b16 %v5456
      %v6154 = vunpack.c.l.b16 %v5457
      %v6155 = vunpack.c.h.b16 %v5457
      %v6156 = vunpack.c.l.b16 %v5458
      %v6157 = vunpack.c.h.b16 %v5458
      %v6158 = vunpack.c.l.b16 %v5459
      %v6159 = vunpack.c.l.b16 %v5460
      %v6160 = vunpack.c.h.b16 %v5460
      %v6161 = vunpack.c.l.b16 %v5461
      %v6162 = vunpack.c.h.b16 %v5461
      %v6163 = vunpack.c.l.b16 %v5462
      %v6164 = vunpack.c.h.b16 %v5462
      %v6165 = vunpack.c.l.b16 %v5463
      %v6166 = vunpack.c.l.b16 %v5464
      %v6167 = vunpack.c.h.b16 %v5464
      %v6168 = vunpack.c.l.b16 %v5465
      %v6169 = vunpack.c.h.b16 %v5465
      %v6170 = vunpack.c.l.b16 %v5466
      %v6171 = vunpack.c.h.b16 %v5466
      %v6172 = vunpack.c.l.b16 %v5467
      %v6173 = vunpack.c.l.b16 %v5468
      %v6174 = vunpack.c.h.b16 %v5468
      %v6175 = vunpack.c.l.b16 %v5469
      %v6176 = vunpack.c.h.b16 %v5469
      %v6177 = vunpack.c.l.b16 %v5470
      %v6178 = vunpack.c.h.b16 %v5470
      %v6179 = vunpack.c.l.b16 %v5471
      %v6180 = vunpack.c.l.b16 %v5472
      %v6181 = vunpack.c.h.b16 %v5472
      %v6182 = vunpack.c.l.b16 %v5473
      %v6183 = vunpack.c.h.b16 %v5473
      %v6184 = vunpack.c.l.b16 %v5474
      %v6185 = vunpack.c.h.b16 %v5474
      %v6186 = vunpack.c.l.b16 %v5475
      %v6187 = vunpack.c.l.b16 %v5476
      %v6188 = vunpack.c.h.b16 %v5476
      %v6189 = vunpack.c.l.b16 %v5477
      %v6190 = vunpack.c.h.b16 %v5477
      %v6191 = vunpack.c.l.b16 %v5478
      %v6192 = vunpack.c.h.b16 %v5478
      %v6193 = vunpack.c.l.b16 %v5479
      %v6194 = vunpack.c.l.b16 %v5480
      %v6195 = vunpack.c.h.b16 %v5480
      %v6196 = vunpack.c.l.b16 %v5481
      %v6197 = vunpack.c.h.b16 %v5481
      %v6198 = vunpack.c.l.b16 %v5482
      %v6199 = vunpack.c.h.b16 %v5482
      %v6200 = vunpack.c.l.b16 %v5483
      %v6201 = vunpack.c.l.b16 %v5484
      %v6202 = vunpack.c.h.b16 %v5484
      %v6203 = vunpack.c.l.b16 %v5485
      %v6204 = vunpack.c.h.b16 %v5485
      %v6205 = vunpack.c.l.b16 %v5486
      %v6206 = vunpack.c.h.b16 %v5486
      %v6207 = vunpack.c.l.b16 %v5487
      %v6208 = vunpack.c.l.b16 %v5488
      %v6209 = vunpack.c.h.b16 %v5488
      %v6210 = vunpack.c.l.b16 %v5489
      %v6211 = vunpack.c.h.b16 %v5489
      %v6212 = vunpack.c.l.b16 %v5490
      %v6213 = vunpack.c.h.b16 %v5490
      %v6214 = vunpack.c.l.b16 %v5491
      %v6215 = vunpack.c.l.b16 %v5492
      %v6216 = vunpack.c.h.b16 %v5492
      %v6217 = vunpack.c.l.b16 %v5493
      %v6218 = vunpack.c.h.b16 %v5493
      %v6219 = vunpack.c.l.b16 %v5494
      %v6220 = vunpack.c.h.b16 %v5494
      %v6221 = vunpack.c.l.b16 %v5495
      %v6222 = vunpack.c.l.b16 %v5496
      %v6223 = vunpack.c.h.b16 %v5496
      %v6224 = vunpack.c.l.b16 %v5497
      %v6225 = vunpack.c.h.b16 %v5497
      %v6226 = vunpack.c.l.b16 %v5498
      %v6227 = vunpack.c.h.b16 %v5498
      %v6228 = vunpack.c.l.b16 %v5499
      %v6229 = vunpack.c.l.b16 %v5500
      %v6230 = vunpack.c.h.b16 %v5500
      %v6231 = vunpack.c.l.b16 %v5501
      %v6232 = vunpack.c.h.b16 %v5501
      %v6233 = vunpack.c.l.b16 %v5502
      %v6234 = vunpack.c.h.b16 %v5502
      %v6235 = vunpack.c.l.b16 %v5503
      %v6236 = vunpack.c.l.b16 %v5504
      %v6237 = vunpack.c.h.b16 %v5504
      %v6238 = vunpack.c.l.b16 %v5505
      %v6239 = vunpack.c.h.b16 %v5505
      %v6240 = vunpack.c.l.b16 %v5506
      %v6241 = vunpack.c.h.b16 %v5506
      %v6242 = vunpack.c.l.b16 %v5507
      %v6243 = vunpack.c.l.b16 %v5508
      %v6244 = vunpack.c.h.b16 %v5508
      %v6245 = vunpack.c.l.b16 %v5509
      %v6246 = vunpack.c.h.b16 %v5509
      %v6247 = vunpack.c.l.b16 %v5510
      %v6248 = vunpack.c.h.b16 %v5510
      %v6249 = vunpack.c.l.b16 %v5511
      %v6250 = vunpack.c.l.b16 %v5512
      %v6251 = vunpack.c.h.b16 %v5512
      %v6252 = vunpack.c.l.b16 %v5513
      %v6253 = vunpack.c.h.b16 %v5513
      %v6254 = vunpack.c.l.b16 %v5514
      %v6255 = vunpack.c.h.b16 %v5514
      %v6256 = vunpack.c.l.b16 %v5515
      %v6257 = vpack.c.b16 %v5816, %v5809
      %v6258 = vpack.c.b16 %v5817, %v5810
      %v6259 = vpack.c.b16 %v5818, %v5811
      %v6260 = vpack.c.b16 %v5819, %v5812
      %v6261 = vpack.c.b16 %v5820, %v5813
      %v6262 = vpack.c.b16 %v5821, %v5814
      %v6263 = vpack.c.b16 %v5822, %v5815
      %v6264 = vpack.c.b16 %v5830, %v5823
      %v6265 = vpack.c.b16 %v5831, %v5824
      %v6266 = vpack.c.b16 %v5832, %v5825
      %v6267 = vpack.c.b16 %v5833, %v5826
      %v6268 = vpack.c.b16 %v5834, %v5827
      %v6269 = vpack.c.b16 %v5835, %v5828
      %v6270 = vpack.c.b16 %v5836, %v5829
      %v6271 = vpack.c.b16 %v5844, %v5837
      %v6272 = vpack.c.b16 %v5845, %v5838
      %v6273 = vpack.c.b16 %v5846, %v5839
      %v6274 = vpack.c.b16 %v5847, %v5840
      %v6275 = vpack.c.b16 %v5848, %v5841
      %v6276 = vpack.c.b16 %v5849, %v5842
      %v6277 = vpack.c.b16 %v5850, %v5843
      %v6278 = vpack.c.b16 %v5858, %v5851
      %v6279 = vpack.c.b16 %v5859, %v5852
      %v6280 = vpack.c.b16 %v5860, %v5853
      %v6281 = vpack.c.b16 %v5861, %v5854
      %v6282 = vpack.c.b16 %v5862, %v5855
      %v6283 = vpack.c.b16 %v5863, %v5856
      %v6284 = vpack.c.b16 %v5864, %v5857
      %v6285 = vpack.c.b16 %v5872, %v5865
      %v6286 = vpack.c.b16 %v5873, %v5866
      %v6287 = vpack.c.b16 %v5874, %v5867
      %v6288 = vpack.c.b16 %v5875, %v5868
      %v6289 = vpack.c.b16 %v5876, %v5869
      %v6290 = vpack.c.b16 %v5877, %v5870
      %v6291 = vpack.c.b16 %v5878, %v5871
      %v6292 = vpack.c.b16 %v5886, %v5879
      %v6293 = vpack.c.b16 %v5887, %v5880
      %v6294 = vpack.c.b16 %v5888, %v5881
      %v6295 = vpack.c.b16 %v5889, %v5882
      %v6296 = vpack.c.b16 %v5890, %v5883
      %v6297 = vpack.c.b16 %v5891, %v5884
      %v6298 = vpack.c.b16 %v5892, %v5885
      %v6299 = vpack.c.b16 %v5900, %v5893
      %v6300 = vpack.c.b16 %v5901, %v5894
      %v6301 = vpack.c.b16 %v5902, %v5895
      %v6302 = vpack.c.b16 %v5903, %v5896
      %v6303 = vpack.c.b16 %v5904, %v5897
      %v6304 = vpack.c.b16 %v5905, %v5898
      %v6305 = vpack.c.b16 %v5906, %v5899
      %v6306 = vpack.c.b16 %v5914, %v5907
      %v6307 = vpack.c.b16 %v5915, %v5908
      %v6308 = vpack.c.b16 %v5916, %v5909
      %v6309 = vpack.c.b16 %v5917, %v5910
      %v6310 = vpack.c.b16 %v5918, %v5911
      %v6311 = vpack.c.b16 %v5919, %v5912
      %v6312 = vpack.c.b16 %v5920, %v5913
      %v6313 = vpack.c.b16 %v5928, %v5921
      %v6314 = vpack.c.b16 %v5929, %v5922
      %v6315 = vpack.c.b16 %v5930, %v5923
      %v6316 = vpack.c.b16 %v5931, %v5924
      %v6317 = vpack.c.b16 %v5932, %v5925
      %v6318 = vpack.c.b16 %v5933, %v5926
      %v6319 = vpack.c.b16 %v5934, %v5927
      %v6320 = vpack.c.b16 %v5942, %v5935
      %v6321 = vpack.c.b16 %v5943, %v5936
      %v6322 = vpack.c.b16 %v5944, %v5937
      %v6323 = vpack.c.b16 %v5945, %v5938
      %v6324 = vpack.c.b16 %v5946, %v5939
      %v6325 = vpack.c.b16 %v5947, %v5940
      %v6326 = vpack.c.b16 %v5948, %v5941
      %v6327 = vpack.c.b16 %v5956, %v5949
      %v6328 = vpack.c.b16 %v5957, %v5950
      %v6329 = vpack.c.b16 %v5958, %v5951
      %v6330 = vpack.c.b16 %v5959, %v5952
      %v6331 = vpack.c.b16 %v5960, %v5953
      %v6332 = vpack.c.b16 %v5961, %v5954
      %v6333 = vpack.c.b16 %v5962, %v5955
      %v6334 = vpack.c.b16 %v5970, %v5963
      %v6335 = vpack.c.b16 %v5971, %v5964
      %v6336 = vpack.c.b16 %v5972, %v5965
      %v6337 = vpack.c.b16 %v5973, %v5966
      %v6338 = vpack.c.b16 %v5974, %v5967
      %v6339 = vpack.c.b16 %v5975, %v5968
      %v6340 = vpack.c.b16 %v5976, %v5969
      %v6341 = vpack.c.b16 %v5984, %v5977
      %v6342 = vpack.c.b16 %v5985, %v5978
      %v6343 = vpack.c.b16 %v5986, %v5979
      %v6344 = vpack.c.b16 %v5987, %v5980
      %v6345 = vpack.c.b16 %v5988, %v5981
      %v6346 = vpack.c.b16 %v5989, %v5982
      %v6347 = vpack.c.b16 %v5990, %v5983
      %v6348 = vpack.c.b16 %v5998, %v5991
      %v6349 = vpack.c.b16 %v5999, %v5992
      %v6350 = vpack.c.b16 %v6000, %v5993
      %v6351 = vpack.c.b16 %v6001, %v5994
      %v6352 = vpack.c.b16 %v6002, %v5995
      %v6353 = vpack.c.b16 %v6003, %v5996
      %v6354 = vpack.c.b16 %v6004, %v5997
      %v6355 = vpack.c.b16 %v6012, %v6005
      %v6356 = vpack.c.b16 %v6013, %v6006
      %v6357 = vpack.c.b16 %v6014, %v6007
      %v6358 = vpack.c.b16 %v6015, %v6008
      %v6359 = vpack.c.b16 %v6016, %v6009
      %v6360 = vpack.c.b16 %v6017, %v6010
      %v6361 = vpack.c.b16 %v6018, %v6011
      %v6362 = vpack.c.b16 %v6026, %v6019
      %v6363 = vpack.c.b16 %v6027, %v6020
      %v6364 = vpack.c.b16 %v6028, %v6021
      %v6365 = vpack.c.b16 %v6029, %v6022
      %v6366 = vpack.c.b16 %v6030, %v6023
      %v6367 = vpack.c.b16 %v6031, %v6024
      %v6368 = vpack.c.b16 %v6032, %v6025
      %v6369 = vpack.c.b16 %v6040, %v6033
      %v6370 = vpack.c.b16 %v6041, %v6034
      %v6371 = vpack.c.b16 %v6042, %v6035
      %v6372 = vpack.c.b16 %v6043, %v6036
      %v6373 = vpack.c.b16 %v6044, %v6037
      %v6374 = vpack.c.b16 %v6045, %v6038
      %v6375 = vpack.c.b16 %v6046, %v6039
      %v6376 = vpack.c.b16 %v6054, %v6047
      %v6377 = vpack.c.b16 %v6055, %v6048
      %v6378 = vpack.c.b16 %v6056, %v6049
      %v6379 = vpack.c.b16 %v6057, %v6050
      %v6380 = vpack.c.b16 %v6058, %v6051
      %v6381 = vpack.c.b16 %v6059, %v6052
      %v6382 = vpack.c.b16 %v6060, %v6053
      %v6383 = vpack.c.b16 %v6068, %v6061
      %v6384 = vpack.c.b16 %v6069, %v6062
      %v6385 = vpack.c.b16 %v6070, %v6063
      %v6386 = vpack.c.b16 %v6071, %v6064
      %v6387 = vpack.c.b16 %v6072, %v6065
      %v6388 = vpack.c.b16 %v6073, %v6066
      %v6389 = vpack.c.b16 %v6074, %v6067
      %v6390 = vpack.c.b16 %v6082, %v6075
      %v6391 = vpack.c.b16 %v6083, %v6076
      %v6392 = vpack.c.b16 %v6084, %v6077
      %v6393 = vpack.c.b16 %v6085, %v6078
      %v6394 = vpack.c.b16 %v6086, %v6079
      %v6395 = vpack.c.b16 %v6087, %v6080
      %v6396 = vpack.c.b16 %v6088, %v6081
      %v6397 = vpack.c.b16 %v6096, %v6089
      %v6398 = vpack.c.b16 %v6097, %v6090
      %v6399 = vpack.c.b16 %v6098, %v6091
      %v6400 = vpack.c.b16 %v6099, %v6092
      %v6401 = vpack.c.b16 %v6100, %v6093
      %v6402 = vpack.c.b16 %v6101, %v6094
      %v6403 = vpack.c.b16 %v6102, %v6095
      %v6404 = vpack.c.b16 %v6110, %v6103
      %v6405 = vpack.c.b16 %v6111, %v6104
      %v6406 = vpack.c.b16 %v6112, %v6105
      %v6407 = vpack.c.b16 %v6113, %v6106
      %v6408 = vpack.c.b16 %v6114, %v6107
      %v6409 = vpack.c.b16 %v6115, %v6108
      %v6410 = vpack.c.b16 %v6116, %v6109
      %v6411 = vpack.c.b16 %v6124, %v6117
      %v6412 = vpack.c.b16 %v6125, %v6118
      %v6413 = vpack.c.b16 %v6126, %v6119
      %v6414 = vpack.c.b16 %v6127, %v6120
      %v6415 = vpack.c.b16 %v6128, %v6121
      %v6416 = vpack.c.b16 %v6129, %v6122
      %v6417 = vpack.c.b16 %v6130, %v6123
      %v6418 = vpack.c.b16 %v6138, %v6131
      %v6419 = vpack.c.b16 %v6139, %v6132
      %v6420 = vpack.c.b16 %v6140, %v6133
      %v6421 = vpack.c.b16 %v6141, %v6134
      %v6422 = vpack.c.b16 %v6142, %v6135
      %v6423 = vpack.c.b16 %v6143, %v6136
      %v6424 = vpack.c.b16 %v6144, %v6137
      %v6425 = vpack.c.b16 %v6152, %v6145
      %v6426 = vpack.c.b16 %v6153, %v6146
      %v6427 = vpack.c.b16 %v6154, %v6147
      %v6428 = vpack.c.b16 %v6155, %v6148
      %v6429 = vpack.c.b16 %v6156, %v6149
      %v6430 = vpack.c.b16 %v6157, %v6150
      %v6431 = vpack.c.b16 %v6158, %v6151
      %v6432 = vpack.c.b16 %v6166, %v6159
      %v6433 = vpack.c.b16 %v6167, %v6160
      %v6434 = vpack.c.b16 %v6168, %v6161
      %v6435 = vpack.c.b16 %v6169, %v6162
      %v6436 = vpack.c.b16 %v6170, %v6163
      %v6437 = vpack.c.b16 %v6171, %v6164
      %v6438 = vpack.c.b16 %v6172, %v6165
      %v6439 = vpack.c.b16 %v6180, %v6173
      %v6440 = vpack.c.b16 %v6181, %v6174
      %v6441 = vpack.c.b16 %v6182, %v6175
      %v6442 = vpack.c.b16 %v6183, %v6176
      %v6443 = vpack.c.b16 %v6184, %v6177
      %v6444 = vpack.c.b16 %v6185, %v6178
      %v6445 = vpack.c.b16 %v6186, %v6179
      %v6446 = vpack.c.b16 %v6194, %v6187
      %v6447 = vpack.c.b16 %v6195, %v6188
      %v6448 = vpack.c.b16 %v6196, %v6189
      %v6449 = vpack.c.b16 %v6197, %v6190
      %v6450 = vpack.c.b16 %v6198, %v6191
      %v6451 = vpack.c.b16 %v6199, %v6192
      %v6452 = vpack.c.b16 %v6200, %v6193
      %v6453 = vpack.c.b16 %v6208, %v6201
      %v6454 = vpack.c.b16 %v6209, %v6202
      %v6455 = vpack.c.b16 %v6210, %v6203
      %v6456 = vpack.c.b16 %v6211, %v6204
      %v6457 = vpack.c.b16 %v6212, %v6205
      %v6458 = vpack.c.b16 %v6213, %v6206
      %v6459 = vpack.c.b16 %v6214, %v6207
      %v6460 = vpack.c.b16 %v6222, %v6215
      %v6461 = vpack.c.b16 %v6223, %v6216
      %v6462 = vpack.c.b16 %v6224, %v6217
      %v6463 = vpack.c.b16 %v6225, %v6218
      %v6464 = vpack.c.b16 %v6226, %v6219
      %v6465 = vpack.c.b16 %v6227, %v6220
      %v6466 = vpack.c.b16 %v6228, %v6221
      %v6467 = vpack.c.b16 %v6236, %v6229
      %v6468 = vpack.c.b16 %v6237, %v6230
      %v6469 = vpack.c.b16 %v6238, %v6231
      %v6470 = vpack.c.b16 %v6239, %v6232
      %v6471 = vpack.c.b16 %v6240, %v6233
      %v6472 = vpack.c.b16 %v6241, %v6234
      %v6473 = vpack.c.b16 %v6242, %v6235
      %v6474 = vpack.c.b16 %v6250, %v6243
      %v6475 = vpack.c.b16 %v6251, %v6244
      %v6476 = vpack.c.b16 %v6252, %v6245
      %v6477 = vpack.c.b16 %v6253, %v6246
      %v6478 = vpack.c.b16 %v6254, %v6247
      %v6479 = vpack.c.b16 %v6255, %v6248
      %v6480 = vpack.c.b16 %v6256, %v6249
      %6705 = vmatprep.subr.bf16.mxu0 %v6258
      %6706 = vmatpush1.bf16.msra.mxu0 %v6257
      %6707 = vmatprep.subr.bf16.mxu0 %v6265
      %6708 = vmatpush1.bf16.msra.mxu0 %v6264
      %6709 = vmatprep.subr.bf16.mxu0 %v6272
      %6710 = vmatpush1.bf16.msra.mxu0 %v6271
      %6711 = vmatprep.subr.bf16.mxu0 %v6279
      %6712 = vmatpush1.bf16.msra.mxu0 %v6278
      %6713 = vmatprep.subr.bf16.mxu0 %v6286
      %6714 = vmatpush1.bf16.msra.mxu0 %v6285
      %6715 = vmatprep.subr.bf16.mxu0 %v6293
      %6716 = vmatpush1.bf16.msra.mxu0 %v6292
      %6717 = vmatprep.subr.bf16.mxu0 %v6300
      %6718 = vmatpush1.bf16.msra.mxu0 %v6299
      %6719 = vmatprep.subr.bf16.mxu0 %v6307
      %6720 = vmatpush1.bf16.msra.mxu0 %v6306
      %6721 = vmatprep.subr.bf16.mxu0 %v6314
      %6722 = vmatpush1.bf16.msra.mxu0 %v6313
      %6723 = vmatprep.subr.bf16.mxu0 %v6321
      %6724 = vmatpush1.bf16.msra.mxu0 %v6320
      %6725 = vmatprep.subr.bf16.mxu0 %v6328
      %6726 = vmatpush1.bf16.msra.mxu0 %v6327
      %6727 = vmatprep.subr.bf16.mxu0 %v6335
      %6728 = vmatpush1.bf16.msra.mxu0 %v6334
      %6729 = vmatprep.subr.bf16.mxu0 %v6342
      %6730 = vmatpush1.bf16.msra.mxu0 %v6341
      %6731 = vmatprep.subr.bf16.mxu0 %v6349
      %6732 = vmatpush1.bf16.msra.mxu0 %v6348
      %6733 = vmatprep.subr.bf16.mxu0 %v6356
      %6734 = vmatpush1.bf16.msra.mxu0 %v6355
      %6735 = vmatprep.subr.bf16.mxu0 %v6363
      %6736 = vmatpush1.bf16.msra.mxu0 %v6362
      %6737 = vmatprep.mubr.bf16.mxu0 %v5229
      %6738 = vmatmul.mubr.bf16.gmra.mrb[0].mxu0 %v5228
      %v6739 = vpop.f32.mrb[0].mxu0
      %v6740 = vadd.f32 %v5521, %v6739
      %v6741 = vpop.f32.mrb[0].mxu0
      %v6742 = vadd.f32 %v5525, %v6741
      %v6743 = vpop.f32.mrb[0].mxu0
      %v6744 = vadd.f32 %v5521, %v6743
      %v6745 = vpop.f32.mrb[0].mxu0
      %v6746 = vadd.f32 %v5525, %v6745
      %6747 = vmatprep.mubr.bf16.mxu0 %v5233
      %6748 = vmatmul.mubr.bf16.gmra.mrb[0].mxu0 %v5232
      %v6749 = vpop.f32.mrb[0].mxu0
      %v6750 = vadd.f32 %v5521, %v6749
      %v6751 = vpop.f32.mrb[0].mxu0
      %v6752 = vadd.f32 %v5525, %v6751
      %v6753 = vpop.f32.mrb[0].mxu0
      %v6754 = vadd.f32 %v5521, %v6753
      %v6755 = vpop.f32.mrb[0].mxu0
      %v6756 = vadd.f32 %v5525, %v6755
      %6757 = vmatprep.mubr.bf16.mxu0 %v5237
      %6758 = vmatmul.mubr.bf16.gmra.mrb[0].mxu0 %v5236
      %v6759 = vpop.f32.mrb[0].mxu0
      %v6760 = vadd.f32 %v5521, %v6759
      %v6761 = vpop.f32.mrb[0].mxu0
      %v6762 = vadd.f32 %v5525, %v6761
      %v6763 = vpop.f32.mrb[0].mxu0
      %v6764 = vadd.f32 %v5521, %v6763
      %v6765 = vpop.f32.mrb[0].mxu0
      %v6766 = vadd.f32 %v5525, %v6765
      %6767 = vmatprep.mubr.bf16.mxu0 %v5241
      %6768 = vmatmul.mubr.bf16.gmra.mrb[0].mxu0 %v5240
      %v6769 = vpop.f32.mrb[0].mxu0
      %v6770 = vadd.f32 %v5521, %v6769
      %v6771 = vpop.f32.mrb[0].mxu0
      %v6772 = vadd.f32 %v5525, %v6771
      %v6773 = vpop.f32.mrb[0].mxu0
      %v6774 = vadd.f32 %v5521, %v6773
      %v6775 = vpop.f32.mrb[0].mxu0
      %v6776 = vadd.f32 %v5525, %v6775
      %6777 = vmatprep.mubr.bf16.mxu0 %v5245
      %6778 = vmatmul.mubr.bf16.gmra.mrb[0].mxu0 %v5244
      %v6779 = vpop.f32.mrb[0].mxu0
      %v6780 = vadd.f32 %v5521, %v6779
      %v6781 = vpop.f32.mrb[0].mxu0
      %v6782 = vadd.f32 %v5525, %v6781
      %v6783 = vpop.f32.mrb[0].mxu0
      %v6784 = vadd.f32 %v5521, %v6783
      %v6785 = vpop.f32.mrb[0].mxu0
      %v6786 = vadd.f32 %v5525, %v6785
      %6787 = vmatprep.mubr.bf16.mxu0 %v5249
      %6788 = vmatmul.mubr.bf16.gmra.mrb[0].mxu0 %v5248
      %v6789 = vpop.f32.mrb[0].mxu0
      %v6790 = vadd.f32 %v5521, %v6789
      %v6791 = vpop.f32.mrb[0].mxu0
      %v6792 = vadd.f32 %v5525, %v6791
      %v6793 = vpop.f32.mrb[0].mxu0
      %v6794 = vadd.f32 %v5521, %v6793
      %v6795 = vpop.f32.mrb[0].mxu0
      %v6796 = vadd.f32 %v5525, %v6795
      %6797 = vmatprep.mubr.bf16.mxu0 %v5253
      %6798 = vmatmul.mubr.bf16.gmra.mrb[0].mxu0 %v5252
      %v6799 = vpop.f32.mrb[0].mxu0
      %v6800 = vadd.f32 %v5521, %v6799
      %v6801 = vpop.f32.mrb[0].mxu0
      %v6802 = vadd.f32 %v5525, %v6801
      %v6803 = vpop.f32.mrb[0].mxu0
      %v6804 = vadd.f32 %v5521, %v6803
      %v6805 = vpop.f32.mrb[0].mxu0
      %v6806 = vadd.f32 %v5525, %v6805
      %6807 = vmatprep.mubr.bf16.mxu0 %v5257
      %6808 = vmatmul.mubr.bf16.gmra.mrb[0].mxu0 %v5256
      %v6809 = vpop.f32.mrb[0].mxu0
      %v6810 = vadd.f32 %v5521, %v6809
      %v6811 = vpop.f32.mrb[0].mxu0
      %v6812 = vadd.f32 %v5525, %v6811
      %v6813 = vpop.f32.mrb[0].mxu0
      %v6814 = vadd.f32 %v5521, %v6813
      %v6815 = vpop.f32.mrb[0].mxu0
      %v6816 = vadd.f32 %v5525, %v6815
      %6817 = vdwg.mxu0
      %6818 = vmatprep.subr.bf16.mxu0 %v6370
      %6819 = vmatpush1.bf16.msra.mxu0 %v6369
      %6820 = vmatprep.subr.bf16.mxu0 %v6377
      %6821 = vmatpush1.bf16.msra.mxu0 %v6376
      %6822 = vmatprep.subr.bf16.mxu0 %v6384
      %6823 = vmatpush1.bf16.msra.mxu0 %v6383
      %6824 = vmatprep.subr.bf16.mxu0 %v6391
      %6825 = vmatpush1.bf16.msra.mxu0 %v6390
      %6826 = vmatprep.subr.bf16.mxu0 %v6398
      %6827 = vmatpush1.bf16.msra.mxu0 %v6397
      %6828 = vmatprep.subr.bf16.mxu0 %v6405
      %6829 = vmatpush1.bf16.msra.mxu0 %v6404
      %6830 = vmatprep.subr.bf16.mxu0 %v6412
      %6831 = vmatpush1.bf16.msra.mxu0 %v6411
      %6832 = vmatprep.subr.bf16.mxu0 %v6419
      %6833 = vmatpush1.bf16.msra.mxu0 %v6418
      %6834 = vmatprep.subr.bf16.mxu0 %v6426
      %6835 = vmatpush1.bf16.msra.mxu0 %v6425
      %6836 = vmatprep.subr.bf16.mxu0 %v6433
      %6837 = vmatpush1.bf16.msra.mxu0 %v6432
      %6838 = vmatprep.subr.bf16.mxu0 %v6440
      %6839 = vmatpush1.bf16.msra.mxu0 %v6439
      %6840 = vmatprep.subr.bf16.mxu0 %v6447
      %6841 = vmatpush1.bf16.msra.mxu0 %v6446
      %6842 = vmatprep.subr.bf16.mxu0 %v6454
      %6843 = vmatpush1.bf16.msra.mxu0 %v6453
      %6844 = vmatprep.subr.bf16.mxu0 %v6461
      %6845 = vmatpush1.bf16.msra.mxu0 %v6460
      %6846 = vmatprep.subr.bf16.mxu0 %v6468
      %6847 = vmatpush1.bf16.msra.mxu0 %v6467
      %6848 = vmatprep.subr.bf16.mxu0 %v6475
      %6849 = vmatpush1.bf16.msra.mxu0 %v6474
      %6850 = vmatprep.mubr.bf16.mxu0 %v5231
      %6851 = vmatmul.mubr.bf16.gmra.mrb[0].mxu0 %v5230
      %v6852 = vpop.f32.mrb[0].mxu0
      %v6853 = vadd.f32 %v6740, %v6852
      %v6854 = vpop.f32.mrb[0].mxu0
      %v6855 = vadd.f32 %v6742, %v6854
      %v6856 = vpop.f32.mrb[0].mxu0
      %v6857 = vadd.f32 %v6744, %v6856
      %v6858 = vpop.f32.mrb[0].mxu0
      %v6859 = vadd.f32 %v6746, %v6858
      %6860 = vmatprep.mubr.bf16.mxu0 %v5235
      %6861 = vmatmul.mubr.bf16.gmra.mrb[0].mxu0 %v5234
      %v6862 = vpop.f32.mrb[0].mxu0
      %v6863 = vadd.f32 %v6750, %v6862
      %v6864 = vpop.f32.mrb[0].mxu0
      %v6865 = vadd.f32 %v6752, %v6864
      %v6866 = vpop.f32.mrb[0].mxu0
      %v6867 = vadd.f32 %v6754, %v6866
      %v6868 = vpop.f32.mrb[0].mxu0
      %v6869 = vadd.f32 %v6756, %v6868
      %6870 = vmatprep.mubr.bf16.mxu0 %v5239
      %6871 = vmatmul.mubr.bf16.gmra.mrb[0].mxu0 %v5238
      %v6872 = vpop.f32.mrb[0].mxu0
      %v6873 = vadd.f32 %v6760, %v6872
      %v6874 = vpop.f32.mrb[0].mxu0
      %v6875 = vadd.f32 %v6762, %v6874
      %v6876 = vpop.f32.mrb[0].mxu0
      %v6877 = vadd.f32 %v6764, %v6876
      %v6878 = vpop.f32.mrb[0].mxu0
      %v6879 = vadd.f32 %v6766, %v6878
      %6880 = vmatprep.mubr.bf16.mxu0 %v5243
      %6881 = vmatmul.mubr.bf16.gmra.mrb[0].mxu0 %v5242
      %v6882 = vpop.f32.mrb[0].mxu0
      %v6883 = vadd.f32 %v6770, %v6882
      %v6884 = vpop.f32.mrb[0].mxu0
      %v6885 = vadd.f32 %v6772, %v6884
      %v6886 = vpop.f32.mrb[0].mxu0
      %v6887 = vadd.f32 %v6774, %v6886
      %v6888 = vpop.f32.mrb[0].mxu0
      %v6889 = vadd.f32 %v6776, %v6888
      %6890 = vmatprep.mubr.bf16.mxu0 %v5247
      %6891 = vmatmul.mubr.bf16.gmra.mrb[0].mxu0 %v5246
      %v6892 = vpop.f32.mrb[0].mxu0
      %v6893 = vadd.f32 %v6780, %v6892
      %v6894 = vpop.f32.mrb[0].mxu0
      %v6895 = vadd.f32 %v6782, %v6894
      %v6896 = vpop.f32.mrb[0].mxu0
      %v6897 = vadd.f32 %v6784, %v6896
      %v6898 = vpop.f32.mrb[0].mxu0
      %v6899 = vadd.f32 %v6786, %v6898
      %6900 = vmatprep.mubr.bf16.mxu0 %v5251
      %6901 = vmatmul.mubr.bf16.gmra.mrb[0].mxu0 %v5250
      %v6902 = vpop.f32.mrb[0].mxu0
      %v6903 = vadd.f32 %v6790, %v6902
      %v6904 = vpop.f32.mrb[0].mxu0
      %v6905 = vadd.f32 %v6792, %v6904
      %v6906 = vpop.f32.mrb[0].mxu0
      %v6907 = vadd.f32 %v6794, %v6906
      %v6908 = vpop.f32.mrb[0].mxu0
      %v6909 = vadd.f32 %v6796, %v6908
      %6910 = vmatprep.mubr.bf16.mxu0 %v5255
      %6911 = vmatmul.mubr.bf16.gmra.mrb[0].mxu0 %v5254
      %v6912 = vpop.f32.mrb[0].mxu0
      %v6913 = vadd.f32 %v6800, %v6912
      %v6914 = vpop.f32.mrb[0].mxu0
      %v6915 = vadd.f32 %v6802, %v6914
      %v6916 = vpop.f32.mrb[0].mxu0
      %v6917 = vadd.f32 %v6804, %v6916
      %v6918 = vpop.f32.mrb[0].mxu0
      %v6919 = vadd.f32 %v6806, %v6918
      %6920 = vmatprep.mubr.bf16.mxu0 %v5259
      %6921 = vmatmul.mubr.bf16.gmra.mrb[0].mxu0 %v5258
      %v6922 = vpop.f32.mrb[0].mxu0
      %v6923 = vadd.f32 %v6810, %v6922
      %v6924 = vpop.f32.mrb[0].mxu0
      %v6925 = vadd.f32 %v6812, %v6924
      %v6926 = vpop.f32.mrb[0].mxu0
      %v6927 = vadd.f32 %v6814, %v6926
      %v6928 = vpop.f32.mrb[0].mxu0
      %v6929 = vadd.f32 %v6816, %v6928
      %6930 = vdwg.mxu0
      %6931 = vmatprep.subr.bf16.mxu0 %v6260
      %6932 = vmatpush1.bf16.msra.mxu0 %v6259
      %6933 = vmatprep.subr.bf16.mxu0 %v6267
      %6934 = vmatpush1.bf16.msra.mxu0 %v6266
      %6935 = vmatprep.subr.bf16.mxu0 %v6274
      %6936 = vmatpush1.bf16.msra.mxu0 %v6273
      %6937 = vmatprep.subr.bf16.mxu0 %v6281
      %6938 = vmatpush1.bf16.msra.mxu0 %v6280
      %6939 = vmatprep.subr.bf16.mxu0 %v6288
      %6940 = vmatpush1.bf16.msra.mxu0 %v6287
      %6941 = vmatprep.subr.bf16.mxu0 %v6295
      %6942 = vmatpush1.bf16.msra.mxu0 %v6294
      %6943 = vmatprep.subr.bf16.mxu0 %v6302
      %6944 = vmatpush1.bf16.msra.mxu0 %v6301
      %6945 = vmatprep.subr.bf16.mxu0 %v6309
      %6946 = vmatpush1.bf16.msra.mxu0 %v6308
      %6947 = vmatprep.subr.bf16.mxu0 %v6316
      %6948 = vmatpush1.bf16.msra.mxu0 %v6315
      %6949 = vmatprep.subr.bf16.mxu0 %v6323
      %6950 = vmatpush1.bf16.msra.mxu0 %v6322
      %6951 = vmatprep.subr.bf16.mxu0 %v6330
      %6952 = vmatpush1.bf16.msra.mxu0 %v6329
      %6953 = vmatprep.subr.bf16.mxu0 %v6337
      %6954 = vmatpush1.bf16.msra.mxu0 %v6336
      %6955 = vmatprep.subr.bf16.mxu0 %v6344
      %6956 = vmatpush1.bf16.msra.mxu0 %v6343
      %6957 = vmatprep.subr.bf16.mxu0 %v6351
      %6958 = vmatpush1.bf16.msra.mxu0 %v6350
      %6959 = vmatprep.subr.bf16.mxu0 %v6358
      %6960 = vmatpush1.bf16.msra.mxu0 %v6357
      %6961 = vmatprep.subr.bf16.mxu0 %v6365
      %6962 = vmatpush1.bf16.msra.mxu0 %v6364
      %6963 = vmatprep.mubr.bf16.mxu0 %v5229
      %6964 = vmatmul.mubr.bf16.gmra.mrb[0].mxu0 %v5228
      %v6965 = vpop.f32.mrb[0].mxu0
      %v6966 = vadd.f32 %v5529, %v6965
      %v6967 = vpop.f32.mrb[0].mxu0
      %v6968 = vadd.f32 %v5533, %v6967
      %v6969 = vpop.f32.mrb[0].mxu0
      %v6970 = vadd.f32 %v5529, %v6969
      %v6971 = vpop.f32.mrb[0].mxu0
      %v6972 = vadd.f32 %v5533, %v6971
      %6973 = vmatprep.mubr.bf16.mxu0 %v5233
      %6974 = vmatmul.mubr.bf16.gmra.mrb[0].mxu0 %v5232
      %v6975 = vpop.f32.mrb[0].mxu0
      %v6976 = vadd.f32 %v5529, %v6975
      %v6977 = vpop.f32.mrb[0].mxu0
      %v6978 = vadd.f32 %v5533, %v6977
      %v6979 = vpop.f32.mrb[0].mxu0
      %v6980 = vadd.f32 %v5529, %v6979
      %v6981 = vpop.f32.mrb[0].mxu0
      %v6982 = vadd.f32 %v5533, %v6981
      %6983 = vmatprep.mubr.bf16.mxu0 %v5237
      %6984 = vmatmul.mubr.bf16.gmra.mrb[0].mxu0 %v5236
      %v6985 = vpop.f32.mrb[0].mxu0
      %v6986 = vadd.f32 %v5529, %v6985
      %v6987 = vpop.f32.mrb[0].mxu0
      %v6988 = vadd.f32 %v5533, %v6987
      %v6989 = vpop.f32.mrb[0].mxu0
      %v6990 = vadd.f32 %v5529, %v6989
      %v6991 = vpop.f32.mrb[0].mxu0
      %v6992 = vadd.f32 %v5533, %v6991
      %6993 = vmatprep.mubr.bf16.mxu0 %v5241
      %6994 = vmatmul.mubr.bf16.gmra.mrb[0].mxu0 %v5240
      %v6995 = vpop.f32.mrb[0].mxu0
      %v6996 = vadd.f32 %v5529, %v6995
      %v6997 = vpop.f32.mrb[0].mxu0
      %v6998 = vadd.f32 %v5533, %v6997
      %v6999 = vpop.f32.mrb[0].mxu0
      %v7000 = vadd.f32 %v5529, %v6999
      %v7001 = vpop.f32.mrb[0].mxu0
      %v7002 = vadd.f32 %v5533, %v7001
      %7003 = vmatprep.mubr.bf16.mxu0 %v5245
      %7004 = vmatmul.mubr.bf16.gmra.mrb[0].mxu0 %v5244
      %v7005 = vpop.f32.mrb[0].mxu0
      %v7006 = vadd.f32 %v5529, %v7005
      %v7007 = vpop.f32.mrb[0].mxu0
      %v7008 = vadd.f32 %v5533, %v7007
      %v7009 = vpop.f32.mrb[0].mxu0
      %v7010 = vadd.f32 %v5529, %v7009
      %v7011 = vpop.f32.mrb[0].mxu0
      %v7012 = vadd.f32 %v5533, %v7011
      %7013 = vmatprep.mubr.bf16.mxu0 %v5249
      %7014 = vmatmul.mubr.bf16.gmra.mrb[0].mxu0 %v5248
      %v7015 = vpop.f32.mrb[0].mxu0
      %v7016 = vadd.f32 %v5529, %v7015
      %v7017 = vpop.f32.mrb[0].mxu0
      %v7018 = vadd.f32 %v5533, %v7017
      %v7019 = vpop.f32.mrb[0].mxu0
      %v7020 = vadd.f32 %v5529, %v7019
      %v7021 = vpop.f32.mrb[0].mxu0
      %v7022 = vadd.f32 %v5533, %v7021
      %7023 = vmatprep.mubr.bf16.mxu0 %v5253
      %7024 = vmatmul.mubr.bf16.gmra.mrb[0].mxu0 %v5252
      %v7025 = vpop.f32.mrb[0].mxu0
      %v7026 = vadd.f32 %v5529, %v7025
      %v7027 = vpop.f32.mrb[0].mxu0
      %v7028 = vadd.f32 %v5533, %v7027
      %v7029 = vpop.f32.mrb[0].mxu0
      %v7030 = vadd.f32 %v5529, %v7029
      %v7031 = vpop.f32.mrb[0].mxu0
      %v7032 = vadd.f32 %v5533, %v7031
      %7033 = vmatprep.mubr.bf16.mxu0 %v5257
      %7034 = vmatmul.mubr.bf16.gmra.mrb[0].mxu0 %v5256
      %v7035 = vpop.f32.mrb[0].mxu0
      %v7036 = vadd.f32 %v5529, %v7035
      %v7037 = vpop.f32.mrb[0].mxu0
      %v7038 = vadd.f32 %v5533, %v7037
      %v7039 = vpop.f32.mrb[0].mxu0
      %v7040 = vadd.f32 %v5529, %v7039
      %v7041 = vpop.f32.mrb[0].mxu0
      %v7042 = vadd.f32 %v5533, %v7041
      %7043 = vdwg.mxu0
      %7044 = vmatprep.subr.bf16.mxu0 %v6372
      %7045 = vmatpush1.bf16.msra.mxu0 %v6371
      %7046 = vmatprep.subr.bf16.mxu0 %v6379
      %7047 = vmatpush1.bf16.msra.mxu0 %v6378
      %7048 = vmatprep.subr.bf16.mxu0 %v6386
      %7049 = vmatpush1.bf16.msra.mxu0 %v6385
      %7050 = vmatprep.subr.bf16.mxu0 %v6393
      %7051 = vmatpush1.bf16.msra.mxu0 %v6392
      %7052 = vmatprep.subr.bf16.mxu0 %v6400
      %7053 = vmatpush1.bf16.msra.mxu0 %v6399
      %7054 = vmatprep.subr.bf16.mxu0 %v6407
      %7055 = vmatpush1.bf16.msra.mxu0 %v6406
      %7056 = vmatprep.subr.bf16.mxu0 %v6414
      %7057 = vmatpush1.bf16.msra.mxu0 %v6413
      %7058 = vmatprep.subr.bf16.mxu0 %v6421
      %7059 = vmatpush1.bf16.msra.mxu0 %v6420
      %7060 = vmatprep.subr.bf16.mxu0 %v6428
      %7061 = vmatpush1.bf16.msra.mxu0 %v6427
      %7062 = vmatprep.subr.bf16.mxu0 %v6435
      %7063 = vmatpush1.bf16.msra.mxu0 %v6434
      %7064 = vmatprep.subr.bf16.mxu0 %v6442
      %7065 = vmatpush1.bf16.msra.mxu0 %v6441
      %7066 = vmatprep.subr.bf16.mxu0 %v6449
      %7067 = vmatpush1.bf16.msra.mxu0 %v6448
      %7068 = vmatprep.subr.bf16.mxu0 %v6456
      %7069 = vmatpush1.bf16.msra.mxu0 %v6455
      %7070 = vmatprep.subr.bf16.mxu0 %v6463
      %7071 = vmatpush1.bf16.msra.mxu0 %v6462
      %7072 = vmatprep.subr.bf16.mxu0 %v6470
      %7073 = vmatpush1.bf16.msra.mxu0 %v6469
      %7074 = vmatprep.subr.bf16.mxu0 %v6477
      %7075 = vmatpush1.bf16.msra.mxu0 %v6476
      %7076 = vmatprep.mubr.bf16.mxu0 %v5231
      %7077 = vmatmul.mubr.bf16.gmra.mrb[0].mxu0 %v5230
      %v7078 = vpop.f32.mrb[0].mxu0
      %v7079 = vadd.f32 %v6966, %v7078
      %v7080 = vpop.f32.mrb[0].mxu0
      %v7081 = vadd.f32 %v6968, %v7080
      %v7082 = vpop.f32.mrb[0].mxu0
      %v7083 = vadd.f32 %v6970, %v7082
      %v7084 = vpop.f32.mrb[0].mxu0
      %v7085 = vadd.f32 %v6972, %v7084
      %7086 = vmatprep.mubr.bf16.mxu0 %v5235
      %7087 = vmatmul.mubr.bf16.gmra.mrb[0].mxu0 %v5234
      %v7088 = vpop.f32.mrb[0].mxu0
      %v7089 = vadd.f32 %v6976, %v7088
      %v7090 = vpop.f32.mrb[0].mxu0
      %v7091 = vadd.f32 %v6978, %v7090
      %v7092 = vpop.f32.mrb[0].mxu0
      %v7093 = vadd.f32 %v6980, %v7092
      %v7094 = vpop.f32.mrb[0].mxu0
      %v7095 = vadd.f32 %v6982, %v7094
      %7096 = vmatprep.mubr.bf16.mxu0 %v5239
      %7097 = vmatmul.mubr.bf16.gmra.mrb[0].mxu0 %v5238
      %v7098 = vpop.f32.mrb[0].mxu0
      %v7099 = vadd.f32 %v6986, %v7098
      %v7100 = vpop.f32.mrb[0].mxu0
      %v7101 = vadd.f32 %v6988, %v7100
      %v7102 = vpop.f32.mrb[0].mxu0
      %v7103 = vadd.f32 %v6990, %v7102
      %v7104 = vpop.f32.mrb[0].mxu0
      %v7105 = vadd.f32 %v6992, %v7104
      %7106 = vmatprep.mubr.bf16.mxu0 %v5243
      %7107 = vmatmul.mubr.bf16.gmra.mrb[0].mxu0 %v5242
      %v7108 = vpop.f32.mrb[0].mxu0
      %v7109 = vadd.f32 %v6996, %v7108
      %v7110 = vpop.f32.mrb[0].mxu0
      %v7111 = vadd.f32 %v6998, %v7110
      %v7112 = vpop.f32.mrb[0].mxu0
      %v7113 = vadd.f32 %v7000, %v7112
      %v7114 = vpop.f32.mrb[0].mxu0
      %v7115 = vadd.f32 %v7002, %v7114
      %7116 = vmatprep.mubr.bf16.mxu0 %v5247
      %7117 = vmatmul.mubr.bf16.gmra.mrb[0].mxu0 %v5246
      %v7118 = vpop.f32.mrb[0].mxu0
      %v7119 = vadd.f32 %v7006, %v7118
      %v7120 = vpop.f32.mrb[0].mxu0
      %v7121 = vadd.f32 %v7008, %v7120
      %v7122 = vpop.f32.mrb[0].mxu0
      %v7123 = vadd.f32 %v7010, %v7122
      %v7124 = vpop.f32.mrb[0].mxu0
      %v7125 = vadd.f32 %v7012, %v7124
      %7126 = vmatprep.mubr.bf16.mxu0 %v5251
      %7127 = vmatmul.mubr.bf16.gmra.mrb[0].mxu0 %v5250
      %v7128 = vpop.f32.mrb[0].mxu0
      %v7129 = vadd.f32 %v7016, %v7128
      %v7130 = vpop.f32.mrb[0].mxu0
      %v7131 = vadd.f32 %v7018, %v7130
      %v7132 = vpop.f32.mrb[0].mxu0
      %v7133 = vadd.f32 %v7020, %v7132
      %v7134 = vpop.f32.mrb[0].mxu0
      %v7135 = vadd.f32 %v7022, %v7134
      %7136 = vmatprep.mubr.bf16.mxu0 %v5255
      %7137 = vmatmul.mubr.bf16.gmra.mrb[0].mxu0 %v5254
      %v7138 = vpop.f32.mrb[0].mxu0
      %v7139 = vadd.f32 %v7026, %v7138
      %v7140 = vpop.f32.mrb[0].mxu0
      %v7141 = vadd.f32 %v7028, %v7140
      %v7142 = vpop.f32.mrb[0].mxu0
      %v7143 = vadd.f32 %v7030, %v7142
      %v7144 = vpop.f32.mrb[0].mxu0
      %v7145 = vadd.f32 %v7032, %v7144
      %7146 = vmatprep.mubr.bf16.mxu0 %v5259
      %7147 = vmatmul.mubr.bf16.gmra.mrb[0].mxu0 %v5258
      %v7148 = vpop.f32.mrb[0].mxu0
      %v7149 = vadd.f32 %v7036, %v7148
      %v7150 = vpop.f32.mrb[0].mxu0
      %v7151 = vadd.f32 %v7038, %v7150
      %v7152 = vpop.f32.mrb[0].mxu0
      %v7153 = vadd.f32 %v7040, %v7152
      %v7154 = vpop.f32.mrb[0].mxu0
      %v7155 = vadd.f32 %v7042, %v7154
      %7156 = vdwg.mxu0
      %7157 = vmatprep.subr.bf16.mxu0 %v6262
      %7158 = vmatpush1.bf16.msra.mxu0 %v6261
      %7159 = vmatprep.subr.bf16.mxu0 %v6269
      %7160 = vmatpush1.bf16.msra.mxu0 %v6268
      %7161 = vmatprep.subr.bf16.mxu0 %v6276
      %7162 = vmatpush1.bf16.msra.mxu0 %v6275
      %7163 = vmatprep.subr.bf16.mxu0 %v6283
      %7164 = vmatpush1.bf16.msra.mxu0 %v6282
      %7165 = vmatprep.subr.bf16.mxu0 %v6290
      %7166 = vmatpush1.bf16.msra.mxu0 %v6289
      %7167 = vmatprep.subr.bf16.mxu0 %v6297
      %7168 = vmatpush1.bf16.msra.mxu0 %v6296
      %7169 = vmatprep.subr.bf16.mxu0 %v6304
      %7170 = vmatpush1.bf16.msra.mxu0 %v6303
      %7171 = vmatprep.subr.bf16.mxu0 %v6311
      %7172 = vmatpush1.bf16.msra.mxu0 %v6310
      %7173 = vmatprep.subr.bf16.mxu0 %v6318
      %7174 = vmatpush1.bf16.msra.mxu0 %v6317
      %7175 = vmatprep.subr.bf16.mxu0 %v6325
      %7176 = vmatpush1.bf16.msra.mxu0 %v6324
      %7177 = vmatprep.subr.bf16.mxu0 %v6332
      %7178 = vmatpush1.bf16.msra.mxu0 %v6331
      %7179 = vmatprep.subr.bf16.mxu0 %v6339
      %7180 = vmatpush1.bf16.msra.mxu0 %v6338
      %7181 = vmatprep.subr.bf16.mxu0 %v6346
      %7182 = vmatpush1.bf16.msra.mxu0 %v6345
      %7183 = vmatprep.subr.bf16.mxu0 %v6353
      %7184 = vmatpush1.bf16.msra.mxu0 %v6352
      %7185 = vmatprep.subr.bf16.mxu0 %v6360
      %7186 = vmatpush1.bf16.msra.mxu0 %v6359
      %7187 = vmatprep.subr.bf16.mxu0 %v6367
      %7188 = vmatpush1.bf16.msra.mxu0 %v6366
      %7189 = vmatprep.mubr.bf16.mxu0 %v5229
      %7190 = vmatmul.mubr.bf16.gmra.mrb[0].mxu0 %v5228
      %v7191 = vpop.f32.mrb[0].mxu0
      %v7192 = vadd.f32 %v5537, %v7191
      %v7193 = vpop.f32.mrb[0].mxu0
      %v7194 = vadd.f32 %v5541, %v7193
      %v7195 = vpop.f32.mrb[0].mxu0
      %v7196 = vadd.f32 %v5537, %v7195
      %v7197 = vpop.f32.mrb[0].mxu0
      %v7198 = vadd.f32 %v5541, %v7197
      %7199 = vmatprep.mubr.bf16.mxu0 %v5233
      %7200 = vmatmul.mubr.bf16.gmra.mrb[0].mxu0 %v5232
      %v7201 = vpop.f32.mrb[0].mxu0
      %v7202 = vadd.f32 %v5537, %v7201
      %v7203 = vpop.f32.mrb[0].mxu0
      %v7204 = vadd.f32 %v5541, %v7203
      %v7205 = vpop.f32.mrb[0].mxu0
      %v7206 = vadd.f32 %v5537, %v7205
      %v7207 = vpop.f32.mrb[0].mxu0
      %v7208 = vadd.f32 %v5541, %v7207
      %7209 = vmatprep.mubr.bf16.mxu0 %v5237
      %7210 = vmatmul.mubr.bf16.gmra.mrb[0].mxu0 %v5236
      %v7211 = vpop.f32.mrb[0].mxu0
      %v7212 = vadd.f32 %v5537, %v7211
      %v7213 = vpop.f32.mrb[0].mxu0
      %v7214 = vadd.f32 %v5541, %v7213
      %v7215 = vpop.f32.mrb[0].mxu0
      %v7216 = vadd.f32 %v5537, %v7215
      %v7217 = vpop.f32.mrb[0].mxu0
      %v7218 = vadd.f32 %v5541, %v7217
      %7219 = vmatprep.mubr.bf16.mxu0 %v5241
      %7220 = vmatmul.mubr.bf16.gmra.mrb[0].mxu0 %v5240
      %v7221 = vpop.f32.mrb[0].mxu0
      %v7222 = vadd.f32 %v5537, %v7221
      %v7223 = vpop.f32.mrb[0].mxu0
      %v7224 = vadd.f32 %v5541, %v7223
      %v7225 = vpop.f32.mrb[0].mxu0
      %v7226 = vadd.f32 %v5537, %v7225
      %v7227 = vpop.f32.mrb[0].mxu0
      %v7228 = vadd.f32 %v5541, %v7227
      %7229 = vmatprep.mubr.bf16.mxu0 %v5245
      %7230 = vmatmul.mubr.bf16.gmra.mrb[0].mxu0 %v5244
      %v7231 = vpop.f32.mrb[0].mxu0
      %v7232 = vadd.f32 %v5537, %v7231
      %v7233 = vpop.f32.mrb[0].mxu0
      %v7234 = vadd.f32 %v5541, %v7233
      %v7235 = vpop.f32.mrb[0].mxu0
      %v7236 = vadd.f32 %v5537, %v7235
      %v7237 = vpop.f32.mrb[0].mxu0
      %v7238 = vadd.f32 %v5541, %v7237
      %7239 = vmatprep.mubr.bf16.mxu0 %v5249
      %7240 = vmatmul.mubr.bf16.gmra.mrb[0].mxu0 %v5248
      %v7241 = vpop.f32.mrb[0].mxu0
      %v7242 = vadd.f32 %v5537, %v7241
      %v7243 = vpop.f32.mrb[0].mxu0
      %v7244 = vadd.f32 %v5541, %v7243
      %v7245 = vpop.f32.mrb[0].mxu0
      %v7246 = vadd.f32 %v5537, %v7245
      %v7247 = vpop.f32.mrb[0].mxu0
      %v7248 = vadd.f32 %v5541, %v7247
      %7249 = vmatprep.mubr.bf16.mxu0 %v5253
      %7250 = vmatmul.mubr.bf16.gmra.mrb[0].mxu0 %v5252
      %v7251 = vpop.f32.mrb[0].mxu0
      %v7252 = vadd.f32 %v5537, %v7251
      %v7253 = vpop.f32.mrb[0].mxu0
      %v7254 = vadd.f32 %v5541, %v7253
      %v7255 = vpop.f32.mrb[0].mxu0
      %v7256 = vadd.f32 %v5537, %v7255
      %v7257 = vpop.f32.mrb[0].mxu0
      %v7258 = vadd.f32 %v5541, %v7257
      %7259 = vmatprep.mubr.bf16.mxu0 %v5257
      %7260 = vmatmul.mubr.bf16.gmra.mrb[0].mxu0 %v5256
      %v7261 = vpop.f32.mrb[0].mxu0
      %v7262 = vadd.f32 %v5537, %v7261
      %v7263 = vpop.f32.mrb[0].mxu0
      %v7264 = vadd.f32 %v5541, %v7263
      %v7265 = vpop.f32.mrb[0].mxu0
      %v7266 = vadd.f32 %v5537, %v7265
      %v7267 = vpop.f32.mrb[0].mxu0
      %v7268 = vadd.f32 %v5541, %v7267
      %7269 = vdwg.mxu0
      %7270 = vmatprep.subr.bf16.mxu0 %v6374
      %7271 = vmatpush1.bf16.msra.mxu0 %v6373
      %7272 = vmatprep.subr.bf16.mxu0 %v6381
      %7273 = vmatpush1.bf16.msra.mxu0 %v6380
      %7274 = vmatprep.subr.bf16.mxu0 %v6388
      %7275 = vmatpush1.bf16.msra.mxu0 %v6387
      %7276 = vmatprep.subr.bf16.mxu0 %v6395
      %7277 = vmatpush1.bf16.msra.mxu0 %v6394
      %7278 = vmatprep.subr.bf16.mxu0 %v6402
      %7279 = vmatpush1.bf16.msra.mxu0 %v6401
      %7280 = vmatprep.subr.bf16.mxu0 %v6409
      %7281 = vmatpush1.bf16.msra.mxu0 %v6408
      %7282 = vmatprep.subr.bf16.mxu0 %v6416
      %7283 = vmatpush1.bf16.msra.mxu0 %v6415
      %7284 = vmatprep.subr.bf16.mxu0 %v6423
      %7285 = vmatpush1.bf16.msra.mxu0 %v6422
      %7286 = vmatprep.subr.bf16.mxu0 %v6430
      %7287 = vmatpush1.bf16.msra.mxu0 %v6429
      %7288 = vmatprep.subr.bf16.mxu0 %v6437
      %7289 = vmatpush1.bf16.msra.mxu0 %v6436
      %7290 = vmatprep.subr.bf16.mxu0 %v6444
      %7291 = vmatpush1.bf16.msra.mxu0 %v6443
      %7292 = vmatprep.subr.bf16.mxu0 %v6451
      %7293 = vmatpush1.bf16.msra.mxu0 %v6450
      %7294 = vmatprep.subr.bf16.mxu0 %v6458
      %7295 = vmatpush1.bf16.msra.mxu0 %v6457
      %7296 = vmatprep.subr.bf16.mxu0 %v6465
      %7297 = vmatpush1.bf16.msra.mxu0 %v6464
      %7298 = vmatprep.subr.bf16.mxu0 %v6472
      %7299 = vmatpush1.bf16.msra.mxu0 %v6471
      %7300 = vmatprep.subr.bf16.mxu0 %v6479
      %7301 = vmatpush1.bf16.msra.mxu0 %v6478
      %7302 = vmatprep.mubr.bf16.mxu0 %v5231
      %7303 = vmatmul.mubr.bf16.gmra.mrb[0].mxu0 %v5230
      %v7304 = vpop.f32.mrb[0].mxu0
      %v7305 = vadd.f32 %v7192, %v7304
      %v7306 = vpop.f32.mrb[0].mxu0
      %v7307 = vadd.f32 %v7194, %v7306
      %v7308 = vpop.f32.mrb[0].mxu0
      %v7309 = vadd.f32 %v7196, %v7308
      %v7310 = vpop.f32.mrb[0].mxu0
      %v7311 = vadd.f32 %v7198, %v7310
      %7312 = vmatprep.mubr.bf16.mxu0 %v5235
      %7313 = vmatmul.mubr.bf16.gmra.mrb[0].mxu0 %v5234
      %v7314 = vpop.f32.mrb[0].mxu0
      %v7315 = vadd.f32 %v7202, %v7314
      %v7316 = vpop.f32.mrb[0].mxu0
      %v7317 = vadd.f32 %v7204, %v7316
      %v7318 = vpop.f32.mrb[0].mxu0
      %v7319 = vadd.f32 %v7206, %v7318
      %v7320 = vpop.f32.mrb[0].mxu0
      %v7321 = vadd.f32 %v7208, %v7320
      %7322 = vmatprep.mubr.bf16.mxu0 %v5239
      %7323 = vmatmul.mubr.bf16.gmra.mrb[0].mxu0 %v5238
      %v7324 = vpop.f32.mrb[0].mxu0
      %v7325 = vadd.f32 %v7212, %v7324
      %v7326 = vpop.f32.mrb[0].mxu0
      %v7327 = vadd.f32 %v7214, %v7326
      %v7328 = vpop.f32.mrb[0].mxu0
      %v7329 = vadd.f32 %v7216, %v7328
      %v7330 = vpop.f32.mrb[0].mxu0
      %v7331 = vadd.f32 %v7218, %v7330
      %7332 = vmatprep.mubr.bf16.mxu0 %v5243
      %7333 = vmatmul.mubr.bf16.gmra.mrb[0].mxu0 %v5242
      %v7334 = vpop.f32.mrb[0].mxu0
      %v7335 = vadd.f32 %v7222, %v7334
      %v7336 = vpop.f32.mrb[0].mxu0
      %v7337 = vadd.f32 %v7224, %v7336
      %v7338 = vpop.f32.mrb[0].mxu0
      %v7339 = vadd.f32 %v7226, %v7338
      %v7340 = vpop.f32.mrb[0].mxu0
      %v7341 = vadd.f32 %v7228, %v7340
      %7342 = vmatprep.mubr.bf16.mxu0 %v5247
      %7343 = vmatmul.mubr.bf16.gmra.mrb[0].mxu0 %v5246
      %v7344 = vpop.f32.mrb[0].mxu0
      %v7345 = vadd.f32 %v7232, %v7344
      %v7346 = vpop.f32.mrb[0].mxu0
      %v7347 = vadd.f32 %v7234, %v7346
      %v7348 = vpop.f32.mrb[0].mxu0
      %v7349 = vadd.f32 %v7236, %v7348
      %v7350 = vpop.f32.mrb[0].mxu0
      %v7351 = vadd.f32 %v7238, %v7350
      %7352 = vmatprep.mubr.bf16.mxu0 %v5251
      %7353 = vmatmul.mubr.bf16.gmra.mrb[0].mxu0 %v5250
      %v7354 = vpop.f32.mrb[0].mxu0
      %v7355 = vadd.f32 %v7242, %v7354
      %v7356 = vpop.f32.mrb[0].mxu0
      %v7357 = vadd.f32 %v7244, %v7356
      %v7358 = vpop.f32.mrb[0].mxu0
      %v7359 = vadd.f32 %v7246, %v7358
      %v7360 = vpop.f32.mrb[0].mxu0
      %v7361 = vadd.f32 %v7248, %v7360
      %7362 = vmatprep.mubr.bf16.mxu0 %v5255
      %7363 = vmatmul.mubr.bf16.gmra.mrb[0].mxu0 %v5254
      %v7364 = vpop.f32.mrb[0].mxu0
      %v7365 = vadd.f32 %v7252, %v7364
      %v7366 = vpop.f32.mrb[0].mxu0
      %v7367 = vadd.f32 %v7254, %v7366
      %v7368 = vpop.f32.mrb[0].mxu0
      %v7369 = vadd.f32 %v7256, %v7368
      %v7370 = vpop.f32.mrb[0].mxu0
      %v7371 = vadd.f32 %v7258, %v7370
      %7372 = vmatprep.mubr.bf16.mxu0 %v5259
      %7373 = vmatmul.mubr.bf16.gmra.mrb[0].mxu0 %v5258
      %v7374 = vpop.f32.mrb[0].mxu0
      %v7375 = vadd.f32 %v7262, %v7374
      %v7376 = vpop.f32.mrb[0].mxu0
      %v7377 = vadd.f32 %v7264, %v7376
      %v7378 = vpop.f32.mrb[0].mxu0
      %v7379 = vadd.f32 %v7266, %v7378
      %v7380 = vpop.f32.mrb[0].mxu0
      %v7381 = vadd.f32 %v7268, %v7380
      %7382 = vdwg.mxu0
      %7383 = vmatprep.subr.bf16.mxu0 0
      %7384 = vmatpush1.bf16.msra.mxu0 %v6263
      %7385 = vmatprep.subr.bf16.mxu0 0
      %7386 = vmatpush1.bf16.msra.mxu0 %v6270
      %7387 = vmatprep.subr.bf16.mxu0 0
      %7388 = vmatpush1.bf16.msra.mxu0 %v6277
      %7389 = vmatprep.subr.bf16.mxu0 0
      %7390 = vmatpush1.bf16.msra.mxu0 %v6284
      %7391 = vmatprep.subr.bf16.mxu0 0
      %7392 = vmatpush1.bf16.msra.mxu0 %v6291
      %7393 = vmatprep.subr.bf16.mxu0 0
      %7394 = vmatpush1.bf16.msra.mxu0 %v6298
      %7395 = vmatprep.subr.bf16.mxu0 0
      %7396 = vmatpush1.bf16.msra.mxu0 %v6305
      %7397 = vmatprep.subr.bf16.mxu0 0
      %7398 = vmatpush1.bf16.msra.mxu0 %v6312
      %7399 = vmatprep.subr.bf16.mxu0 0
      %7400 = vmatpush1.bf16.msra.mxu0 %v6319
      %7401 = vmatprep.subr.bf16.mxu0 0
      %7402 = vmatpush1.bf16.msra.mxu0 %v6326
      %7403 = vmatprep.subr.bf16.mxu0 0
      %7404 = vmatpush1.bf16.msra.mxu0 %v6333
      %7405 = vmatprep.subr.bf16.mxu0 0
      %7406 = vmatpush1.bf16.msra.mxu0 %v6340
      %7407 = vmatprep.subr.bf16.mxu0 0
      %7408 = vmatpush1.bf16.msra.mxu0 %v6347
      %7409 = vmatprep.subr.bf16.mxu0 0
      %7410 = vmatpush1.bf16.msra.mxu0 %v6354
      %7411 = vmatprep.subr.bf16.mxu0 0
      %7412 = vmatpush1.bf16.msra.mxu0 %v6361
      %7413 = vmatprep.subr.bf16.mxu0 0
      %7414 = vmatpush1.bf16.msra.mxu0 %v6368
      %7415 = vmatprep.mubr.bf16.mxu0 %v5229
      %7416 = vmatmul.mubr.bf16.gmra.mrb[0].mxu0 %v5228
      %v7417 = vpop.f32.mrb[0].mxu0
      %v7418 = vadd.f32 %v5545, %v7417
      %v7419 = vpop.f32.mrb[0].mxu0
      %v7420 = vpop.f32.mrb[0].mxu0
      %v7421 = vadd.f32 %v5545, %v7420
      %v7422 = vpop.f32.mrb[0].mxu0
      %7423 = vmatprep.mubr.bf16.mxu0 %v5233
      %7424 = vmatmul.mubr.bf16.gmra.mrb[0].mxu0 %v5232
      %v7425 = vpop.f32.mrb[0].mxu0
      %v7426 = vadd.f32 %v5545, %v7425
      %v7427 = vpop.f32.mrb[0].mxu0
      %v7428 = vpop.f32.mrb[0].mxu0
      %v7429 = vadd.f32 %v5545, %v7428
      %v7430 = vpop.f32.mrb[0].mxu0
      %7431 = vmatprep.mubr.bf16.mxu0 %v5237
      %7432 = vmatmul.mubr.bf16.gmra.mrb[0].mxu0 %v5236
      %v7433 = vpop.f32.mrb[0].mxu0
      %v7434 = vadd.f32 %v5545, %v7433
      %v7435 = vpop.f32.mrb[0].mxu0
      %v7436 = vpop.f32.mrb[0].mxu0
      %v7437 = vadd.f32 %v5545, %v7436
      %v7438 = vpop.f32.mrb[0].mxu0
      %7439 = vmatprep.mubr.bf16.mxu0 %v5241
      %7440 = vmatmul.mubr.bf16.gmra.mrb[0].mxu0 %v5240
      %v7441 = vpop.f32.mrb[0].mxu0
      %v7442 = vadd.f32 %v5545, %v7441
      %v7443 = vpop.f32.mrb[0].mxu0
      %v7444 = vpop.f32.mrb[0].mxu0
      %v7445 = vadd.f32 %v5545, %v7444
      %v7446 = vpop.f32.mrb[0].mxu0
      %7447 = vmatprep.mubr.bf16.mxu0 %v5245
      %7448 = vmatmul.mubr.bf16.gmra.mrb[0].mxu0 %v5244
      %v7449 = vpop.f32.mrb[0].mxu0
      %v7450 = vadd.f32 %v5545, %v7449
      %v7451 = vpop.f32.mrb[0].mxu0
      %v7452 = vpop.f32.mrb[0].mxu0
      %v7453 = vadd.f32 %v5545, %v7452
      %v7454 = vpop.f32.mrb[0].mxu0
      %7455 = vmatprep.mubr.bf16.mxu0 %v5249
      %7456 = vmatmul.mubr.bf16.gmra.mrb[0].mxu0 %v5248
      %v7457 = vpop.f32.mrb[0].mxu0
      %v7458 = vadd.f32 %v5545, %v7457
      %v7459 = vpop.f32.mrb[0].mxu0
      %v7460 = vpop.f32.mrb[0].mxu0
      %v7461 = vadd.f32 %v5545, %v7460
      %v7462 = vpop.f32.mrb[0].mxu0
      %7463 = vmatprep.mubr.bf16.mxu0 %v5253
      %7464 = vmatmul.mubr.bf16.gmra.mrb[0].mxu0 %v5252
      %v7465 = vpop.f32.mrb[0].mxu0
      %v7466 = vadd.f32 %v5545, %v7465
      %v7467 = vpop.f32.mrb[0].mxu0
      %v7468 = vpop.f32.mrb[0].mxu0
      %v7469 = vadd.f32 %v5545, %v7468
      %v7470 = vpop.f32.mrb[0].mxu0
      %7471 = vmatprep.mubr.bf16.mxu0 %v5257
      %7472 = vmatmul.mubr.bf16.gmra.mrb[0].mxu0 %v5256
      %v7473 = vpop.f32.mrb[0].mxu0
      %v7474 = vadd.f32 %v5545, %v7473
      %v7475 = vpop.f32.mrb[0].mxu0
      %v7476 = vpop.f32.mrb[0].mxu0
      %v7477 = vadd.f32 %v5545, %v7476
      %v7478 = vpop.f32.mrb[0].mxu0
      %7479 = vdwg.mxu0
      %7480 = vmatprep.subr.bf16.mxu0 0
      %7481 = vmatpush1.bf16.msra.mxu0 %v6375
      %7482 = vmatprep.subr.bf16.mxu0 0
      %7483 = vmatpush1.bf16.msra.mxu0 %v6382
      %7484 = vmatprep.subr.bf16.mxu0 0
      %7485 = vmatpush1.bf16.msra.mxu0 %v6389
      %7486 = vmatprep.subr.bf16.mxu0 0
      %7487 = vmatpush1.bf16.msra.mxu0 %v6396
      %7488 = vmatprep.subr.bf16.mxu0 0
      %7489 = vmatpush1.bf16.msra.mxu0 %v6403
      %7490 = vmatprep.subr.bf16.mxu0 0
      %7491 = vmatpush1.bf16.msra.mxu0 %v6410
      %7492 = vmatprep.subr.bf16.mxu0 0
      %7493 = vmatpush1.bf16.msra.mxu0 %v6417
      %7494 = vmatprep.subr.bf16.mxu0 0
      %7495 = vmatpush1.bf16.msra.mxu0 %v6424
      %7496 = vmatprep.subr.bf16.mxu0 0
      %7497 = vmatpush1.bf16.msra.mxu0 %v6431
      %7498 = vmatprep.subr.bf16.mxu0 0
      %7499 = vmatpush1.bf16.msra.mxu0 %v6438
      %7500 = vmatprep.subr.bf16.mxu0 0
      %7501 = vmatpush1.bf16.msra.mxu0 %v6445
      %7502 = vmatprep.subr.bf16.mxu0 0
      %7503 = vmatpush1.bf16.msra.mxu0 %v6452
      %7504 = vmatprep.subr.bf16.mxu0 0
      %7505 = vmatpush1.bf16.msra.mxu0 %v6459
      %7506 = vmatprep.subr.bf16.mxu0 0
      %7507 = vmatpush1.bf16.msra.mxu0 %v6466
      %7508 = vmatprep.subr.bf16.mxu0 0
      %7509 = vmatpush1.bf16.msra.mxu0 %v6473
      %7510 = vmatprep.subr.bf16.mxu0 0
      %7511 = vmatpush1.bf16.msra.mxu0 %v6480
      %7512 = vmatprep.mubr.bf16.mxu0 %v5231
      %7513 = vmatmul.mubr.bf16.gmra.mrb[0].mxu0 %v5230
      %v7514 = vpop.f32.mrb[0].mxu0
      %v7515 = vadd.f32 %v7418, %v7514
      %v7516 = vpop.f32.mrb[0].mxu0
      %v7517 = vpop.f32.mrb[0].mxu0
      %v7518 = vadd.f32 %v7421, %v7517
      %v7519 = vpop.f32.mrb[0].mxu0
      %7520 = vmatprep.mubr.bf16.mxu0 %v5235
      %7521 = vmatmul.mubr.bf16.gmra.mrb[0].mxu0 %v5234
      %v7522 = vpop.f32.mrb[0].mxu0
      %v7523 = vadd.f32 %v7426, %v7522
      %v7524 = vpop.f32.mrb[0].mxu0
      %v7525 = vpop.f32.mrb[0].mxu0
      %v7526 = vadd.f32 %v7429, %v7525
      %v7527 = vpop.f32.mrb[0].mxu0
      %7528 = vmatprep.mubr.bf16.mxu0 %v5239
      %7529 = vmatmul.mubr.bf16.gmra.mrb[0].mxu0 %v5238
      %v7530 = vpop.f32.mrb[0].mxu0
      %v7531 = vadd.f32 %v7434, %v7530
      %v7532 = vpop.f32.mrb[0].mxu0
      %v7533 = vpop.f32.mrb[0].mxu0
      %v7534 = vadd.f32 %v7437, %v7533
      %v7535 = vpop.f32.mrb[0].mxu0
      %7536 = vmatprep.mubr.bf16.mxu0 %v5243
      %7537 = vmatmul.mubr.bf16.gmra.mrb[0].mxu0 %v5242
      %v7538 = vpop.f32.mrb[0].mxu0
      %v7539 = vadd.f32 %v7442, %v7538
      %v7540 = vpop.f32.mrb[0].mxu0
      %v7541 = vpop.f32.mrb[0].mxu0
      %v7542 = vadd.f32 %v7445, %v7541
      %v7543 = vpop.f32.mrb[0].mxu0
      %7544 = vmatprep.mubr.bf16.mxu0 %v5247
      %7545 = vmatmul.mubr.bf16.gmra.mrb[0].mxu0 %v5246
      %v7546 = vpop.f32.mrb[0].mxu0
      %v7547 = vadd.f32 %v7450, %v7546
      %v7548 = vpop.f32.mrb[0].mxu0
      %v7549 = vpop.f32.mrb[0].mxu0
      %v7550 = vadd.f32 %v7453, %v7549
      %v7551 = vpop.f32.mrb[0].mxu0
      %7552 = vmatprep.mubr.bf16.mxu0 %v5251
      %7553 = vmatmul.mubr.bf16.gmra.mrb[0].mxu0 %v5250
      %v7554 = vpop.f32.mrb[0].mxu0
      %v7555 = vadd.f32 %v7458, %v7554
      %v7556 = vpop.f32.mrb[0].mxu0
      %v7557 = vpop.f32.mrb[0].mxu0
      %v7558 = vadd.f32 %v7461, %v7557
      %v7559 = vpop.f32.mrb[0].mxu0
      %7560 = vmatprep.mubr.bf16.mxu0 %v5255
      %7561 = vmatmul.mubr.bf16.gmra.mrb[0].mxu0 %v5254
      %v7562 = vpop.f32.mrb[0].mxu0
      %v7563 = vadd.f32 %v7466, %v7562
      %v7564 = vpop.f32.mrb[0].mxu0
      %v7565 = vpop.f32.mrb[0].mxu0
      %v7566 = vadd.f32 %v7469, %v7565
      %v7567 = vpop.f32.mrb[0].mxu0
      %7568 = vmatprep.mubr.bf16.mxu0 %v5259
      %7569 = vmatmul.mubr.bf16.gmra.mrb[0].mxu0 %v5258
      %v7570 = vpop.f32.mrb[0].mxu0
      %v7571 = vadd.f32 %v7474, %v7570
      %v7572 = vpop.f32.mrb[0].mxu0
      %v7573 = vpop.f32.mrb[0].mxu0
      %v7574 = vadd.f32 %v7477, %v7573
      %v7575 = vpop.f32.mrb[0].mxu0
      %7576 = vdwg.mxu0
      %v7577 = vxor.u32 %v6853, 2147483648
      %v7578 = vxor.u32 %v6855, 2147483648
      %v7579 = vxor.u32 %v7079, 2147483648
      %v7580 = vxor.u32 %v7081, 2147483648
      %v7581 = vxor.u32 %v7305, 2147483648
      %v7582 = vxor.u32 %v7307, 2147483648
      %v7583 = vxor.u32 %v7515, 2147483648
      %v7584 = vxor.u32 %v6857, 2147483648
      %v7585 = vxor.u32 %v6859, 2147483648
      %v7586 = vxor.u32 %v7083, 2147483648
      %v7587 = vxor.u32 %v7085, 2147483648
      %v7588 = vxor.u32 %v7309, 2147483648
      %v7589 = vxor.u32 %v7311, 2147483648
      %v7590 = vxor.u32 %v7518, 2147483648
      %v7591 = vxor.u32 %v6863, 2147483648
      %v7592 = vxor.u32 %v6865, 2147483648
      %v7593 = vxor.u32 %v7089, 2147483648
      %v7594 = vxor.u32 %v7091, 2147483648
      %v7595 = vxor.u32 %v7315, 2147483648
      %v7596 = vxor.u32 %v7317, 2147483648
      %v7597 = vxor.u32 %v7523, 2147483648
      %v7598 = vxor.u32 %v6867, 2147483648
      %v7599 = vxor.u32 %v6869, 2147483648
      %v7600 = vxor.u32 %v7093, 2147483648
      %v7601 = vxor.u32 %v7095, 2147483648
      %v7602 = vxor.u32 %v7319, 2147483648
      %v7603 = vxor.u32 %v7321, 2147483648
      %v7604 = vxor.u32 %v7526, 2147483648
      %v7605 = vxor.u32 %v6873, 2147483648
      %v7606 = vxor.u32 %v6875, 2147483648
      %v7607 = vxor.u32 %v7099, 2147483648
      %v7608 = vxor.u32 %v7101, 2147483648
      %v7609 = vxor.u32 %v7325, 2147483648
      %v7610 = vxor.u32 %v7327, 2147483648
      %v7611 = vxor.u32 %v7531, 2147483648
      %v7612 = vxor.u32 %v6877, 2147483648
      %v7613 = vxor.u32 %v6879, 2147483648
      %v7614 = vxor.u32 %v7103, 2147483648
      %v7615 = vxor.u32 %v7105, 2147483648
      %v7616 = vxor.u32 %v7329, 2147483648
      %v7617 = vxor.u32 %v7331, 2147483648
      %v7618 = vxor.u32 %v7534, 2147483648
      %v7619 = vxor.u32 %v6883, 2147483648
      %v7620 = vxor.u32 %v6885, 2147483648
      %v7621 = vxor.u32 %v7109, 2147483648
      %v7622 = vxor.u32 %v7111, 2147483648
      %v7623 = vxor.u32 %v7335, 2147483648
      %v7624 = vxor.u32 %v7337, 2147483648
      %v7625 = vxor.u32 %v7539, 2147483648
      %v7626 = vxor.u32 %v6887, 2147483648
      %v7627 = vxor.u32 %v6889, 2147483648
      %v7628 = vxor.u32 %v7113, 2147483648
      %v7629 = vxor.u32 %v7115, 2147483648
      %v7630 = vxor.u32 %v7339, 2147483648
      %v7631 = vxor.u32 %v7341, 2147483648
      %v7632 = vxor.u32 %v7542, 2147483648
      %v7633 = vxor.u32 %v6893, 2147483648
      %v7634 = vxor.u32 %v6895, 2147483648
      %v7635 = vxor.u32 %v7119, 2147483648
      %v7636 = vxor.u32 %v7121, 2147483648
      %v7637 = vxor.u32 %v7345, 2147483648
      %v7638 = vxor.u32 %v7347, 2147483648
      %v7639 = vxor.u32 %v7547, 2147483648
      %v7640 = vxor.u32 %v6897, 2147483648
      %v7641 = vxor.u32 %v6899, 2147483648
      %v7642 = vxor.u32 %v7123, 2147483648
      %v7643 = vxor.u32 %v7125, 2147483648
      %v7644 = vxor.u32 %v7349, 2147483648
      %v7645 = vxor.u32 %v7351, 2147483648
      %v7646 = vxor.u32 %v7550, 2147483648
      %v7647 = vxor.u32 %v6903, 2147483648
      %v7648 = vxor.u32 %v6905, 2147483648
      %v7649 = vxor.u32 %v7129, 2147483648
      %v7650 = vxor.u32 %v7131, 2147483648
      %v7651 = vxor.u32 %v7355, 2147483648
      %v7652 = vxor.u32 %v7357, 2147483648
      %v7653 = vxor.u32 %v7555, 2147483648
      %v7654 = vxor.u32 %v6907, 2147483648
      %v7655 = vxor.u32 %v6909, 2147483648
      %v7656 = vxor.u32 %v7133, 2147483648
      %v7657 = vxor.u32 %v7135, 2147483648
      %v7658 = vxor.u32 %v7359, 2147483648
      %v7659 = vxor.u32 %v7361, 2147483648
      %v7660 = vxor.u32 %v7558, 2147483648
      %v7661 = vxor.u32 %v6913, 2147483648
      %v7662 = vxor.u32 %v6915, 2147483648
      %v7663 = vxor.u32 %v7139, 2147483648
      %v7664 = vxor.u32 %v7141, 2147483648
      %v7665 = vxor.u32 %v7365, 2147483648
      %v7666 = vxor.u32 %v7367, 2147483648
      %v7667 = vxor.u32 %v7563, 2147483648
      %v7668 = vxor.u32 %v6917, 2147483648
      %v7669 = vxor.u32 %v6919, 2147483648
      %v7670 = vxor.u32 %v7143, 2147483648
      %v7671 = vxor.u32 %v7145, 2147483648
      %v7672 = vxor.u32 %v7369, 2147483648
      %v7673 = vxor.u32 %v7371, 2147483648
      %v7674 = vxor.u32 %v7566, 2147483648
      %v7675 = vxor.u32 %v6923, 2147483648
      %v7676 = vxor.u32 %v6925, 2147483648
      %v7677 = vxor.u32 %v7149, 2147483648
      %v7678 = vxor.u32 %v7151, 2147483648
      %v7679 = vxor.u32 %v7375, 2147483648
      %v7680 = vxor.u32 %v7377, 2147483648
      %v7681 = vxor.u32 %v7571, 2147483648
      %v7682 = vxor.u32 %v6927, 2147483648
      %v7683 = vxor.u32 %v6929, 2147483648
      %v7684 = vxor.u32 %v7153, 2147483648
      %v7685 = vxor.u32 %v7155, 2147483648
      %v7686 = vxor.u32 %v7379, 2147483648
      %v7687 = vxor.u32 %v7381, 2147483648
      %v7688 = vxor.u32 %v7574, 2147483648
      %v7689 = vmul.f32 %v7577, 1.442695
      %v7690 = vpow.pop %v7689
      %v7691 = vmul.f32 %v7578, 1.442695
      %v7692 = vpow.pop %v7691
      %v7693 = vmul.f32 %v7579, 1.442695
      %v7694 = vpow.pop %v7693
      %v7695 = vmul.f32 %v7580, 1.442695
      %v7696 = vpow.pop %v7695
      %v7697 = vmul.f32 %v7581, 1.442695
      %v7698 = vpow.pop %v7697
      %v7699 = vmul.f32 %v7582, 1.442695
      %v7700 = vpow.pop %v7699
      %v7701 = vmul.f32 %v7583, 1.442695
      %v7702 = vpow.pop %v7701
      %v7703 = vmul.f32 %v7584, 1.442695
      %v7704 = vpow.pop %v7703
      %v7705 = vmul.f32 %v7585, 1.442695
      %v7706 = vpow.pop %v7705
      %v7707 = vmul.f32 %v7586, 1.442695
      %v7708 = vpow.pop %v7707
      %v7709 = vmul.f32 %v7587, 1.442695
      %v7710 = vpow.pop %v7709
      %v7711 = vmul.f32 %v7588, 1.442695
      %v7712 = vpow.pop %v7711
      %v7713 = vmul.f32 %v7589, 1.442695
      %v7714 = vpow.pop %v7713
      %v7715 = vmul.f32 %v7590, 1.442695
      %v7716 = vpow.pop %v7715
      %v7717 = vmul.f32 %v7591, 1.442695
      %v7718 = vpow.pop %v7717
      %v7719 = vmul.f32 %v7592, 1.442695
      %v7720 = vpow.pop %v7719
      %v7721 = vmul.f32 %v7593, 1.442695
      %v7722 = vpow.pop %v7721
      %v7723 = vmul.f32 %v7594, 1.442695
      %v7724 = vpow.pop %v7723
      %v7725 = vmul.f32 %v7595, 1.442695
      %v7726 = vpow.pop %v7725
      %v7727 = vmul.f32 %v7596, 1.442695
      %v7728 = vpow.pop %v7727
      %v7729 = vmul.f32 %v7597, 1.442695
      %v7730 = vpow.pop %v7729
      %v7731 = vmul.f32 %v7598, 1.442695
      %v7732 = vpow.pop %v7731
      %v7733 = vmul.f32 %v7599, 1.442695
      %v7734 = vpow.pop %v7733
      %v7735 = vmul.f32 %v7600, 1.442695
      %v7736 = vpow.pop %v7735
      %v7737 = vmul.f32 %v7601, 1.442695
      %v7738 = vpow.pop %v7737
      %v7739 = vmul.f32 %v7602, 1.442695
      %v7740 = vpow.pop %v7739
      %v7741 = vmul.f32 %v7603, 1.442695
      %v7742 = vpow.pop %v7741
      %v7743 = vmul.f32 %v7604, 1.442695
      %v7744 = vpow.pop %v7743
      %v7745 = vmul.f32 %v7605, 1.442695
      %v7746 = vpow.pop %v7745
      %v7747 = vmul.f32 %v7606, 1.442695
      %v7748 = vpow.pop %v7747
      %v7749 = vmul.f32 %v7607, 1.442695
      %v7750 = vpow.pop %v7749
      %v7751 = vmul.f32 %v7608, 1.442695
      %v7752 = vpow.pop %v7751
      %v7753 = vmul.f32 %v7609, 1.442695
      %v7754 = vpow.pop %v7753
      %v7755 = vmul.f32 %v7610, 1.442695
      %v7756 = vpow.pop %v7755
      %v7757 = vmul.f32 %v7611, 1.442695
      %v7758 = vpow.pop %v7757
      %v7759 = vmul.f32 %v7612, 1.442695
      %v7760 = vpow.pop %v7759
      %v7761 = vmul.f32 %v7613, 1.442695
      %v7762 = vpow.pop %v7761
      %v7763 = vmul.f32 %v7614, 1.442695
      %v7764 = vpow.pop %v7763
      %v7765 = vmul.f32 %v7615, 1.442695
      %v7766 = vpow.pop %v7765
      %v7767 = vmul.f32 %v7616, 1.442695
      %v7768 = vpow.pop %v7767
      %v7769 = vmul.f32 %v7617, 1.442695
      %v7770 = vpow.pop %v7769
      %v7771 = vmul.f32 %v7618, 1.442695
      %v7772 = vpow.pop %v7771
      %v7773 = vmul.f32 %v7619, 1.442695
      %v7774 = vpow.pop %v7773
      %v7775 = vmul.f32 %v7620, 1.442695
      %v7776 = vpow.pop %v7775
      %v7777 = vmul.f32 %v7621, 1.442695
      %v7778 = vpow.pop %v7777
      %v7779 = vmul.f32 %v7622, 1.442695
      %v7780 = vpow.pop %v7779
      %v7781 = vmul.f32 %v7623, 1.442695
      %v7782 = vpow.pop %v7781
      %v7783 = vmul.f32 %v7624, 1.442695
      %v7784 = vpow.pop %v7783
      %v7785 = vmul.f32 %v7625, 1.442695
      %v7786 = vpow.pop %v7785
      %v7787 = vmul.f32 %v7626, 1.442695
      %v7788 = vpow.pop %v7787
      %v7789 = vmul.f32 %v7627, 1.442695
      %v7790 = vpow.pop %v7789
      %v7791 = vmul.f32 %v7628, 1.442695
      %v7792 = vpow.pop %v7791
      %v7793 = vmul.f32 %v7629, 1.442695
      %v7794 = vpow.pop %v7793
      %v7795 = vmul.f32 %v7630, 1.442695
      %v7796 = vpow.pop %v7795
      %v7797 = vmul.f32 %v7631, 1.442695
      %v7798 = vpow.pop %v7797
      %v7799 = vmul.f32 %v7632, 1.442695
      %v7800 = vpow.pop %v7799
      %v7801 = vmul.f32 %v7633, 1.442695
      %v7802 = vpow.pop %v7801
      %v7803 = vmul.f32 %v7634, 1.442695
      %v7804 = vpow.pop %v7803
      %v7805 = vmul.f32 %v7635, 1.442695
      %v7806 = vpow.pop %v7805
      %v7807 = vmul.f32 %v7636, 1.442695
      %v7808 = vpow.pop %v7807
      %v7809 = vmul.f32 %v7637, 1.442695
      %v7810 = vpow.pop %v7809
      %v7811 = vmul.f32 %v7638, 1.442695
      %v7812 = vpow.pop %v7811
      %v7813 = vmul.f32 %v7639, 1.442695
      %v7814 = vpow.pop %v7813
      %v7815 = vmul.f32 %v7640, 1.442695
      %v7816 = vpow.pop %v7815
      %v7817 = vmul.f32 %v7641, 1.442695
      %v7818 = vpow.pop %v7817
      %v7819 = vmul.f32 %v7642, 1.442695
      %v7820 = vpow.pop %v7819
      %v7821 = vmul.f32 %v7643, 1.442695
      %v7822 = vpow.pop %v7821
      %v7823 = vmul.f32 %v7644, 1.442695
      %v7824 = vpow.pop %v7823
      %v7825 = vmul.f32 %v7645, 1.442695
      %v7826 = vpow.pop %v7825
      %v7827 = vmul.f32 %v7646, 1.442695
      %v7828 = vpow.pop %v7827
      %v7829 = vmul.f32 %v7647, 1.442695
      %v7830 = vpow.pop %v7829
      %v7831 = vmul.f32 %v7648, 1.442695
      %v7832 = vpow.pop %v7831
      %v7833 = vmul.f32 %v7649, 1.442695
      %v7834 = vpow.pop %v7833
      %v7835 = vmul.f32 %v7650, 1.442695
      %v7836 = vpow.pop %v7835
      %v7837 = vmul.f32 %v7651, 1.442695
      %v7838 = vpow.pop %v7837
      %v7839 = vmul.f32 %v7652, 1.442695
      %v7840 = vpow.pop %v7839
      %v7841 = vmul.f32 %v7653, 1.442695
      %v7842 = vpow.pop %v7841
      %v7843 = vmul.f32 %v7654, 1.442695
      %v7844 = vpow.pop %v7843
      %v7845 = vmul.f32 %v7655, 1.442695
      %v7846 = vpow.pop %v7845
      %v7847 = vmul.f32 %v7656, 1.442695
      %v7848 = vpow.pop %v7847
      %v7849 = vmul.f32 %v7657, 1.442695
      %v7850 = vpow.pop %v7849
      %v7851 = vmul.f32 %v7658, 1.442695
      %v7852 = vpow.pop %v7851
      %v7853 = vmul.f32 %v7659, 1.442695
      %v7854 = vpow.pop %v7853
      %v7855 = vmul.f32 %v7660, 1.442695
      %v7856 = vpow.pop %v7855
      %v7857 = vmul.f32 %v7661, 1.442695
      %v7858 = vpow.pop %v7857
      %v7859 = vmul.f32 %v7662, 1.442695
      %v7860 = vpow.pop %v7859
      %v7861 = vmul.f32 %v7663, 1.442695
      %v7862 = vpow.pop %v7861
      %v7863 = vmul.f32 %v7664, 1.442695
      %v7864 = vpow.pop %v7863
      %v7865 = vmul.f32 %v7665, 1.442695
      %v7866 = vpow.pop %v7865
      %v7867 = vmul.f32 %v7666, 1.442695
      %v7868 = vpow.pop %v7867
      %v7869 = vmul.f32 %v7667, 1.442695
      %v7870 = vpow.pop %v7869
      %v7871 = vmul.f32 %v7668, 1.442695
      %v7872 = vpow.pop %v7871
      %v7873 = vmul.f32 %v7669, 1.442695
      %v7874 = vpow.pop %v7873
      %v7875 = vmul.f32 %v7670, 1.442695
      %v7876 = vpow.pop %v7875
      %v7877 = vmul.f32 %v7671, 1.442695
      %v7878 = vpow.pop %v7877
      %v7879 = vmul.f32 %v7672, 1.442695
      %v7880 = vpow.pop %v7879
      %v7881 = vmul.f32 %v7673, 1.442695
      %v7882 = vpow.pop %v7881
      %v7883 = vmul.f32 %v7674, 1.442695
      %v7884 = vpow.pop %v7883
      %v7885 = vmul.f32 %v7675, 1.442695
      %v7886 = vpow.pop %v7885
      %v7887 = vmul.f32 %v7676, 1.442695
      %v7888 = vpow.pop %v7887
      %v7889 = vmul.f32 %v7677, 1.442695
      %v7890 = vpow.pop %v7889
      %v7891 = vmul.f32 %v7678, 1.442695
      %v7892 = vpow.pop %v7891
      %v7893 = vmul.f32 %v7679, 1.442695
      %v7894 = vpow.pop %v7893
      %v7895 = vmul.f32 %v7680, 1.442695
      %v7896 = vpow.pop %v7895
      %v7897 = vmul.f32 %v7681, 1.442695
      %v7898 = vpow.pop %v7897
      %v7899 = vmul.f32 %v7682, 1.442695
      %v7900 = vpow.pop %v7899
      %v7901 = vmul.f32 %v7683, 1.442695
      %v7902 = vpow.pop %v7901
      %v7903 = vmul.f32 %v7684, 1.442695
      %v7904 = vpow.pop %v7903
      %v7905 = vmul.f32 %v7685, 1.442695
      %v7906 = vpow.pop %v7905
      %v7907 = vmul.f32 %v7686, 1.442695
      %v7908 = vpow.pop %v7907
      %v7909 = vmul.f32 %v7687, 1.442695
      %v7910 = vpow.pop %v7909
      %v7911 = vmul.f32 %v7688, 1.442695
      %v7912 = vpow.pop %v7911
      %v7913 = vadd.f32 %v7690, 1.0
      %v7914 = vadd.f32 %v7692, 1.0
      %v7915 = vadd.f32 %v7694, 1.0
      %v7916 = vadd.f32 %v7696, 1.0
      %v7917 = vadd.f32 %v7698, 1.0
      %v7918 = vadd.f32 %v7700, 1.0
      %v7919 = vadd.f32 %v7702, 1.0
      %v7920 = vadd.f32 %v7704, 1.0
      %v7921 = vadd.f32 %v7706, 1.0
      %v7922 = vadd.f32 %v7708, 1.0
      %v7923 = vadd.f32 %v7710, 1.0
      %v7924 = vadd.f32 %v7712, 1.0
      %v7925 = vadd.f32 %v7714, 1.0
      %v7926 = vadd.f32 %v7716, 1.0
      %v7927 = vadd.f32 %v7718, 1.0
      %v7928 = vadd.f32 %v7720, 1.0
      %v7929 = vadd.f32 %v7722, 1.0
      %v7930 = vadd.f32 %v7724, 1.0
      %v7931 = vadd.f32 %v7726, 1.0
      %v7932 = vadd.f32 %v7728, 1.0
      %v7933 = vadd.f32 %v7730, 1.0
      %v7934 = vadd.f32 %v7732, 1.0
      %v7935 = vadd.f32 %v7734, 1.0
      %v7936 = vadd.f32 %v7736, 1.0
      %v7937 = vadd.f32 %v7738, 1.0
      %v7938 = vadd.f32 %v7740, 1.0
      %v7939 = vadd.f32 %v7742, 1.0
      %v7940 = vadd.f32 %v7744, 1.0
      %v7941 = vadd.f32 %v7746, 1.0
      %v7942 = vadd.f32 %v7748, 1.0
      %v7943 = vadd.f32 %v7750, 1.0
      %v7944 = vadd.f32 %v7752, 1.0
      %v7945 = vadd.f32 %v7754, 1.0
      %v7946 = vadd.f32 %v7756, 1.0
      %v7947 = vadd.f32 %v7758, 1.0
      %v7948 = vadd.f32 %v7760, 1.0
      %v7949 = vadd.f32 %v7762, 1.0
      %v7950 = vadd.f32 %v7764, 1.0
      %v7951 = vadd.f32 %v7766, 1.0
      %v7952 = vadd.f32 %v7768, 1.0
      %v7953 = vadd.f32 %v7770, 1.0
      %v7954 = vadd.f32 %v7772, 1.0
      %v7955 = vadd.f32 %v7774, 1.0
      %v7956 = vadd.f32 %v7776, 1.0
      %v7957 = vadd.f32 %v7778, 1.0
      %v7958 = vadd.f32 %v7780, 1.0
      %v7959 = vadd.f32 %v7782, 1.0
      %v7960 = vadd.f32 %v7784, 1.0
      %v7961 = vadd.f32 %v7786, 1.0
      %v7962 = vadd.f32 %v7788, 1.0
      %v7963 = vadd.f32 %v7790, 1.0
      %v7964 = vadd.f32 %v7792, 1.0
      %v7965 = vadd.f32 %v7794, 1.0
      %v7966 = vadd.f32 %v7796, 1.0
      %v7967 = vadd.f32 %v7798, 1.0
      %v7968 = vadd.f32 %v7800, 1.0
      %v7969 = vadd.f32 %v7802, 1.0
      %v7970 = vadd.f32 %v7804, 1.0
      %v7971 = vadd.f32 %v7806, 1.0
      %v7972 = vadd.f32 %v7808, 1.0
      %v7973 = vadd.f32 %v7810, 1.0
      %v7974 = vadd.f32 %v7812, 1.0
      %v7975 = vadd.f32 %v7814, 1.0
      %v7976 = vadd.f32 %v7816, 1.0
      %v7977 = vadd.f32 %v7818, 1.0
      %v7978 = vadd.f32 %v7820, 1.0
      %v7979 = vadd.f32 %v7822, 1.0
      %v7980 = vadd.f32 %v7824, 1.0
      %v7981 = vadd.f32 %v7826, 1.0
      %v7982 = vadd.f32 %v7828, 1.0
      %v7983 = vadd.f32 %v7830, 1.0
      %v7984 = vadd.f32 %v7832, 1.0
      %v7985 = vadd.f32 %v7834, 1.0
      %v7986 = vadd.f32 %v7836, 1.0
      %v7987 = vadd.f32 %v7838, 1.0
      %v7988 = vadd.f32 %v7840, 1.0
      %v7989 = vadd.f32 %v7842, 1.0
      %v7990 = vadd.f32 %v7844, 1.0
      %v7991 = vadd.f32 %v7846, 1.0
      %v7992 = vadd.f32 %v7848, 1.0
      %v7993 = vadd.f32 %v7850, 1.0
      %v7994 = vadd.f32 %v7852, 1.0
      %v7995 = vadd.f32 %v7854, 1.0
      %v7996 = vadd.f32 %v7856, 1.0
      %v7997 = vadd.f32 %v7858, 1.0
      %v7998 = vadd.f32 %v7860, 1.0
      %v7999 = vadd.f32 %v7862, 1.0
      %v8000 = vadd.f32 %v7864, 1.0
      %v8001 = vadd.f32 %v7866, 1.0
      %v8002 = vadd.f32 %v7868, 1.0
      %v8003 = vadd.f32 %v7870, 1.0
      %v8004 = vadd.f32 %v7872, 1.0
      %v8005 = vadd.f32 %v7874, 1.0
      %v8006 = vadd.f32 %v7876, 1.0
      %v8007 = vadd.f32 %v7878, 1.0
      %v8008 = vadd.f32 %v7880, 1.0
      %v8009 = vadd.f32 %v7882, 1.0
      %v8010 = vadd.f32 %v7884, 1.0
      %v8011 = vadd.f32 %v7886, 1.0
      %v8012 = vadd.f32 %v7888, 1.0
      %v8013 = vadd.f32 %v7890, 1.0
      %v8014 = vadd.f32 %v7892, 1.0
      %v8015 = vadd.f32 %v7894, 1.0
      %v8016 = vadd.f32 %v7896, 1.0
      %v8017 = vadd.f32 %v7898, 1.0
      %v8018 = vadd.f32 %v7900, 1.0
      %v8019 = vadd.f32 %v7902, 1.0
      %v8020 = vadd.f32 %v7904, 1.0
      %v8021 = vadd.f32 %v7906, 1.0
      %v8022 = vadd.f32 %v7908, 1.0
      %v8023 = vadd.f32 %v7910, 1.0
      %v8024 = vadd.f32 %v7912, 1.0
      %v8025 = vrcp.pop %v7913
      %v8026 = vmul.f32 1.0, %v8025
      %v8027 = vrcp.pop %v7914
      %v8028 = vmul.f32 1.0, %v8027
      %v8029 = vrcp.pop %v7915
      %v8030 = vmul.f32 1.0, %v8029
      %v8031 = vrcp.pop %v7916
      %v8032 = vmul.f32 1.0, %v8031
      %v8033 = vrcp.pop %v7917
      %v8034 = vmul.f32 1.0, %v8033
      %v8035 = vrcp.pop %v7918
      %v8036 = vmul.f32 1.0, %v8035
      %v8037 = vrcp.pop %v7919
      %v8038 = vmul.f32 1.0, %v8037
      %v8039 = vrcp.pop %v7920
      %v8040 = vmul.f32 1.0, %v8039
      %v8041 = vrcp.pop %v7921
      %v8042 = vmul.f32 1.0, %v8041
      %v8043 = vrcp.pop %v7922
      %v8044 = vmul.f32 1.0, %v8043
      %v8045 = vrcp.pop %v7923
      %v8046 = vmul.f32 1.0, %v8045
      %v8047 = vrcp.pop %v7924
      %v8048 = vmul.f32 1.0, %v8047
      %v8049 = vrcp.pop %v7925
      %v8050 = vmul.f32 1.0, %v8049
      %v8051 = vrcp.pop %v7926
      %v8052 = vmul.f32 1.0, %v8051
      %v8053 = vrcp.pop %v7927
      %v8054 = vmul.f32 1.0, %v8053
      %v8055 = vrcp.pop %v7928
      %v8056 = vmul.f32 1.0, %v8055
      %v8057 = vrcp.pop %v7929
      %v8058 = vmul.f32 1.0, %v8057
      %v8059 = vrcp.pop %v7930
      %v8060 = vmul.f32 1.0, %v8059
      %v8061 = vrcp.pop %v7931
      %v8062 = vmul.f32 1.0, %v8061
      %v8063 = vrcp.pop %v7932
      %v8064 = vmul.f32 1.0, %v8063
      %v8065 = vrcp.pop %v7933
      %v8066 = vmul.f32 1.0, %v8065
      %v8067 = vrcp.pop %v7934
      %v8068 = vmul.f32 1.0, %v8067
      %v8069 = vrcp.pop %v7935
      %v8070 = vmul.f32 1.0, %v8069
      %v8071 = vrcp.pop %v7936
      %v8072 = vmul.f32 1.0, %v8071
      %v8073 = vrcp.pop %v7937
      %v8074 = vmul.f32 1.0, %v8073
      %v8075 = vrcp.pop %v7938
      %v8076 = vmul.f32 1.0, %v8075
      %v8077 = vrcp.pop %v7939
      %v8078 = vmul.f32 1.0, %v8077
      %v8079 = vrcp.pop %v7940
      %v8080 = vmul.f32 1.0, %v8079
      %v8081 = vrcp.pop %v7941
      %v8082 = vmul.f32 1.0, %v8081
      %v8083 = vrcp.pop %v7942
      %v8084 = vmul.f32 1.0, %v8083
      %v8085 = vrcp.pop %v7943
      %v8086 = vmul.f32 1.0, %v8085
      %v8087 = vrcp.pop %v7944
      %v8088 = vmul.f32 1.0, %v8087
      %v8089 = vrcp.pop %v7945
      %v8090 = vmul.f32 1.0, %v8089
      %v8091 = vrcp.pop %v7946
      %v8092 = vmul.f32 1.0, %v8091
      %v8093 = vrcp.pop %v7947
      %v8094 = vmul.f32 1.0, %v8093
      %v8095 = vrcp.pop %v7948
      %v8096 = vmul.f32 1.0, %v8095
      %v8097 = vrcp.pop %v7949
      %v8098 = vmul.f32 1.0, %v8097
      %v8099 = vrcp.pop %v7950
      %v8100 = vmul.f32 1.0, %v8099
      %v8101 = vrcp.pop %v7951
      %v8102 = vmul.f32 1.0, %v8101
      %v8103 = vrcp.pop %v7952
      %v8104 = vmul.f32 1.0, %v8103
      %v8105 = vrcp.pop %v7953
      %v8106 = vmul.f32 1.0, %v8105
      %v8107 = vrcp.pop %v7954
      %v8108 = vmul.f32 1.0, %v8107
      %v8109 = vrcp.pop %v7955
      %v8110 = vmul.f32 1.0, %v8109
      %v8111 = vrcp.pop %v7956
      %v8112 = vmul.f32 1.0, %v8111
      %v8113 = vrcp.pop %v7957
      %v8114 = vmul.f32 1.0, %v8113
      %v8115 = vrcp.pop %v7958
      %v8116 = vmul.f32 1.0, %v8115
      %v8117 = vrcp.pop %v7959
      %v8118 = vmul.f32 1.0, %v8117
      %v8119 = vrcp.pop %v7960
      %v8120 = vmul.f32 1.0, %v8119
      %v8121 = vrcp.pop %v7961
      %v8122 = vmul.f32 1.0, %v8121
      %v8123 = vrcp.pop %v7962
      %v8124 = vmul.f32 1.0, %v8123
      %v8125 = vrcp.pop %v7963
      %v8126 = vmul.f32 1.0, %v8125
      %v8127 = vrcp.pop %v7964
      %v8128 = vmul.f32 1.0, %v8127
      %v8129 = vrcp.pop %v7965
      %v8130 = vmul.f32 1.0, %v8129
      %v8131 = vrcp.pop %v7966
      %v8132 = vmul.f32 1.0, %v8131
      %v8133 = vrcp.pop %v7967
      %v8134 = vmul.f32 1.0, %v8133
      %v8135 = vrcp.pop %v7968
      %v8136 = vmul.f32 1.0, %v8135
      %v8137 = vrcp.pop %v7969
      %v8138 = vmul.f32 1.0, %v8137
      %v8139 = vrcp.pop %v7970
      %v8140 = vmul.f32 1.0, %v8139
      %v8141 = vrcp.pop %v7971
      %v8142 = vmul.f32 1.0, %v8141
      %v8143 = vrcp.pop %v7972
      %v8144 = vmul.f32 1.0, %v8143
      %v8145 = vrcp.pop %v7973
      %v8146 = vmul.f32 1.0, %v8145
      %v8147 = vrcp.pop %v7974
      %v8148 = vmul.f32 1.0, %v8147
      %v8149 = vrcp.pop %v7975
      %v8150 = vmul.f32 1.0, %v8149
      %v8151 = vrcp.pop %v7976
      %v8152 = vmul.f32 1.0, %v8151
      %v8153 = vrcp.pop %v7977
      %v8154 = vmul.f32 1.0, %v8153
      %v8155 = vrcp.pop %v7978
      %v8156 = vmul.f32 1.0, %v8155
      %v8157 = vrcp.pop %v7979
      %v8158 = vmul.f32 1.0, %v8157
      %v8159 = vrcp.pop %v7980
      %v8160 = vmul.f32 1.0, %v8159
      %v8161 = vrcp.pop %v7981
      %v8162 = vmul.f32 1.0, %v8161
      %v8163 = vrcp.pop %v7982
      %v8164 = vmul.f32 1.0, %v8163
      %v8165 = vrcp.pop %v7983
      %v8166 = vmul.f32 1.0, %v8165
      %v8167 = vrcp.pop %v7984
      %v8168 = vmul.f32 1.0, %v8167
      %v8169 = vrcp.pop %v7985
      %v8170 = vmul.f32 1.0, %v8169
      %v8171 = vrcp.pop %v7986
      %v8172 = vmul.f32 1.0, %v8171
      %v8173 = vrcp.pop %v7987
      %v8174 = vmul.f32 1.0, %v8173
      %v8175 = vrcp.pop %v7988
      %v8176 = vmul.f32 1.0, %v8175
      %v8177 = vrcp.pop %v7989
      %v8178 = vmul.f32 1.0, %v8177
      %v8179 = vrcp.pop %v7990
      %v8180 = vmul.f32 1.0, %v8179
      %v8181 = vrcp.pop %v7991
      %v8182 = vmul.f32 1.0, %v8181
      %v8183 = vrcp.pop %v7992
      %v8184 = vmul.f32 1.0, %v8183
      %v8185 = vrcp.pop %v7993
      %v8186 = vmul.f32 1.0, %v8185
      %v8187 = vrcp.pop %v7994
      %v8188 = vmul.f32 1.0, %v8187
      %v8189 = vrcp.pop %v7995
      %v8190 = vmul.f32 1.0, %v8189
      %v8191 = vrcp.pop %v7996
      %v8192 = vmul.f32 1.0, %v8191
      %v8193 = vrcp.pop %v7997
      %v8194 = vmul.f32 1.0, %v8193
      %v8195 = vrcp.pop %v7998
      %v8196 = vmul.f32 1.0, %v8195
      %v8197 = vrcp.pop %v7999
      %v8198 = vmul.f32 1.0, %v8197
      %v8199 = vrcp.pop %v8000
      %v8200 = vmul.f32 1.0, %v8199
      %v8201 = vrcp.pop %v8001
      %v8202 = vmul.f32 1.0, %v8201
      %v8203 = vrcp.pop %v8002
      %v8204 = vmul.f32 1.0, %v8203
      %v8205 = vrcp.pop %v8003
      %v8206 = vmul.f32 1.0, %v8205
      %v8207 = vrcp.pop %v8004
      %v8208 = vmul.f32 1.0, %v8207
      %v8209 = vrcp.pop %v8005
      %v8210 = vmul.f32 1.0, %v8209
      %v8211 = vrcp.pop %v8006
      %v8212 = vmul.f32 1.0, %v8211
      %v8213 = vrcp.pop %v8007
      %v8214 = vmul.f32 1.0, %v8213
      %v8215 = vrcp.pop %v8008
      %v8216 = vmul.f32 1.0, %v8215
      %v8217 = vrcp.pop %v8009
      %v8218 = vmul.f32 1.0, %v8217
      %v8219 = vrcp.pop %v8010
      %v8220 = vmul.f32 1.0, %v8219
      %v8221 = vrcp.pop %v8011
      %v8222 = vmul.f32 1.0, %v8221
      %v8223 = vrcp.pop %v8012
      %v8224 = vmul.f32 1.0, %v8223
      %v8225 = vrcp.pop %v8013
      %v8226 = vmul.f32 1.0, %v8225
      %v8227 = vrcp.pop %v8014
      %v8228 = vmul.f32 1.0, %v8227
      %v8229 = vrcp.pop %v8015
      %v8230 = vmul.f32 1.0, %v8229
      %v8231 = vrcp.pop %v8016
      %v8232 = vmul.f32 1.0, %v8231
      %v8233 = vrcp.pop %v8017
      %v8234 = vmul.f32 1.0, %v8233
      %v8235 = vrcp.pop %v8018
      %v8236 = vmul.f32 1.0, %v8235
      %v8237 = vrcp.pop %v8019
      %v8238 = vmul.f32 1.0, %v8237
      %v8239 = vrcp.pop %v8020
      %v8240 = vmul.f32 1.0, %v8239
      %v8241 = vrcp.pop %v8021
      %v8242 = vmul.f32 1.0, %v8241
      %v8243 = vrcp.pop %v8022
      %v8244 = vmul.f32 1.0, %v8243
      %v8245 = vrcp.pop %v8023
      %v8246 = vmul.f32 1.0, %v8245
      %v8247 = vrcp.pop %v8024
      %v8248 = vmul.f32 1.0, %v8247
      %8249 = vst [vmem:[%s500] sm:$0xff] %v8026
      %8250 = vst [vmem:[%s500 + $0x8] sm:$0xff] %v8028
      %8251 = vst [vmem:[%s500 + $0x10] sm:$0xff] %v8030
      %8252 = vst [vmem:[%s500 + $0x18] sm:$0xff] %v8032
      %8253 = vst [vmem:[%s500 + $0x20] sm:$0xff] %v8034
      %8254 = vst [vmem:[%s500 + $0x28] sm:$0xff] %v8036
      %8255 = vst [vmem:[%s500 + $0x30] sm:$0xff] %v8038
      %8256 = vst [vmem:[%s500 + $0x38] sm:$0xff] %v8040
      %8257 = vst [vmem:[%s500 + $0x40] sm:$0xff] %v8042
      %8258 = vst [vmem:[%s500 + $0x48] sm:$0xff] %v8044
      %8259 = vst [vmem:[%s500 + $0x50] sm:$0xff] %v8046
      %8260 = vst [vmem:[%s500 + $0x58] sm:$0xff] %v8048
      %8261 = vst [vmem:[%s500 + $0x60] sm:$0xff] %v8050
      %8262 = vst [vmem:[%s500 + $0x68] sm:$0xff] %v8052
      %8263 = vst [vmem:[%s500 + $0x70] sm:$0xff] %v8054
      %8264 = vst [vmem:[%s500 + $0x78] sm:$0xff] %v8056
      %8265 = vst [vmem:[%s500 + $0x80] sm:$0xff] %v8058
      %8266 = vst [vmem:[%s500 + $0x88] sm:$0xff] %v8060
      %8267 = vst [vmem:[%s500 + $0x90] sm:$0xff] %v8062
      %8268 = vst [vmem:[%s500 + $0x98] sm:$0xff] %v8064
      %8269 = vst [vmem:[%s500 + $0xa0] sm:$0xff] %v8066
      %8270 = vst [vmem:[%s500 + $0xa8] sm:$0xff] %v8068
      %8271 = vst [vmem:[%s500 + $0xb0] sm:$0xff] %v8070
      %8272 = vst [vmem:[%s500 + $0xb8] sm:$0xff] %v8072
      %8273 = vst [vmem:[%s500 + $0xc0] sm:$0xff] %v8074
      %8274 = vst [vmem:[%s500 + $0xc8] sm:$0xff] %v8076
      %8275 = vst [vmem:[%s500 + $0xd0] sm:$0xff] %v8078
      %8276 = vst [vmem:[%s500 + $0xd8] sm:$0xff] %v8080
      %8277 = vst [vmem:[%s500 + $0xe0] sm:$0xff] %v8082
      %8278 = vst [vmem:[%s500 + $0xe8] sm:$0xff] %v8084
      %8279 = vst [vmem:[%s500 + $0xf0] sm:$0xff] %v8086
      %8280 = vst [vmem:[%s500 + $0xf8] sm:$0xff] %v8088
      %8281 = vst [vmem:[%s500 + $0x100] sm:$0xff] %v8090
      %8282 = vst [vmem:[%s500 + $0x108] sm:$0xff] %v8092
      %8283 = vst [vmem:[%s500 + $0x110] sm:$0xff] %v8094
      %8284 = vst [vmem:[%s500 + $0x118] sm:$0xff] %v8096
      %8285 = vst [vmem:[%s500 + $0x120] sm:$0xff] %v8098
      %8286 = vst [vmem:[%s500 + $0x128] sm:$0xff] %v8100
      %8287 = vst [vmem:[%s500 + $0x130] sm:$0xff] %v8102
      %8288 = vst [vmem:[%s500 + $0x138] sm:$0xff] %v8104
      %8289 = vst [vmem:[%s500 + $0x140] sm:$0xff] %v8106
      %8290 = vst [vmem:[%s500 + $0x148] sm:$0xff] %v8108
      %8291 = vst [vmem:[%s500 + $0x150] sm:$0xff] %v8110
      %8292 = vst [vmem:[%s500 + $0x158] sm:$0xff] %v8112
      %8293 = vst [vmem:[%s500 + $0x160] sm:$0xff] %v8114
      %8294 = vst [vmem:[%s500 + $0x168] sm:$0xff] %v8116
      %8295 = vst [vmem:[%s500 + $0x170] sm:$0xff] %v8118
      %8296 = vst [vmem:[%s500 + $0x178] sm:$0xff] %v8120
      %8297 = vst [vmem:[%s500 + $0x180] sm:$0xff] %v8122
      %8298 = vst [vmem:[%s500 + $0x188] sm:$0xff] %v8124
      %8299 = vst [vmem:[%s500 + $0x190] sm:$0xff] %v8126
      %8300 = vst [vmem:[%s500 + $0x198] sm:$0xff] %v8128
      %8301 = vst [vmem:[%s500 + $0x1a0] sm:$0xff] %v8130
      %8302 = vst [vmem:[%s500 + $0x1a8] sm:$0xff] %v8132
      %8303 = vst [vmem:[%s500 + $0x1b0] sm:$0xff] %v8134
      %8304 = vst [vmem:[%s500 + $0x1b8] sm:$0xff] %v8136
      %8305 = vst [vmem:[%s500 + $0x1c0] sm:$0xff] %v8138
      %8306 = vst [vmem:[%s500 + $0x1c8] sm:$0xff] %v8140
      %8307 = vst [vmem:[%s500 + $0x1d0] sm:$0xff] %v8142
      %8308 = vst [vmem:[%s500 + $0x1d8] sm:$0xff] %v8144
      %8309 = vst [vmem:[%s500 + $0x1e0] sm:$0xff] %v8146
      %8310 = vst [vmem:[%s500 + $0x1e8] sm:$0xff] %v8148
      %8311 = vst [vmem:[%s500 + $0x1f0] sm:$0xff] %v8150
      %8312 = vst [vmem:[%s500 + $0x1f8] sm:$0xff] %v8152
      %8313 = vst [vmem:[%s500 + $0x200] sm:$0xff] %v8154
      %8314 = vst [vmem:[%s500 + $0x208] sm:$0xff] %v8156
      %8315 = vst [vmem:[%s500 + $0x210] sm:$0xff] %v8158
      %8316 = vst [vmem:[%s500 + $0x218] sm:$0xff] %v8160
      %8317 = vst [vmem:[%s500 + $0x220] sm:$0xff] %v8162
      %8318 = vst [vmem:[%s500 + $0x228] sm:$0xff] %v8164
      %8319 = vst [vmem:[%s500 + $0x230] sm:$0xff] %v8166
      %8320 = vst [vmem:[%s500 + $0x238] sm:$0xff] %v8168
      %8321 = vst [vmem:[%s500 + $0x240] sm:$0xff] %v8170
      %8322 = vst [vmem:[%s500 + $0x248] sm:$0xff] %v8172
      %8323 = vst [vmem:[%s500 + $0x250] sm:$0xff] %v8174
      %8324 = vst [vmem:[%s500 + $0x258] sm:$0xff] %v8176
      %8325 = vst [vmem:[%s500 + $0x260] sm:$0xff] %v8178
      %8326 = vst [vmem:[%s500 + $0x268] sm:$0xff] %v8180
      %8327 = vst [vmem:[%s500 + $0x270] sm:$0xff] %v8182
      %8328 = vst [vmem:[%s500 + $0x278] sm:$0xff] %v8184
      %8329 = vst [vmem:[%s500 + $0x280] sm:$0xff] %v8186
      %8330 = vst [vmem:[%s500 + $0x288] sm:$0xff] %v8188
      %8331 = vst [vmem:[%s500 + $0x290] sm:$0xff] %v8190
      %8332 = vst [vmem:[%s500 + $0x298] sm:$0xff] %v8192
      %8333 = vst [vmem:[%s500 + $0x2a0] sm:$0xff] %v8194
      %8334 = vst [vmem:[%s500 + $0x2a8] sm:$0xff] %v8196
      %8335 = vst [vmem:[%s500 + $0x2b0] sm:$0xff] %v8198
      %8336 = vst [vmem:[%s500 + $0x2b8] sm:$0xff] %v8200
      %8337 = vst [vmem:[%s500 + $0x2c0] sm:$0xff] %v8202
      %8338 = vst [vmem:[%s500 + $0x2c8] sm:$0xff] %v8204
      %8339 = vst [vmem:[%s500 + $0x2d0] sm:$0xff] %v8206
      %8340 = vst [vmem:[%s500 + $0x2d8] sm:$0xff] %v8208
      %8341 = vst [vmem:[%s500 + $0x2e0] sm:$0xff] %v8210
      %8342 = vst [vmem:[%s500 + $0x2e8] sm:$0xff] %v8212
      %8343 = vst [vmem:[%s500 + $0x2f0] sm:$0xff] %v8214
      %8344 = vst [vmem:[%s500 + $0x2f8] sm:$0xff] %v8216
      %8345 = vst [vmem:[%s500 + $0x300] sm:$0xff] %v8218
      %8346 = vst [vmem:[%s500 + $0x308] sm:$0xff] %v8220
      %8347 = vst [vmem:[%s500 + $0x310] sm:$0xff] %v8222
      %8348 = vst [vmem:[%s500 + $0x318] sm:$0xff] %v8224
      %8349 = vst [vmem:[%s500 + $0x320] sm:$0xff] %v8226
      %8350 = vst [vmem:[%s500 + $0x328] sm:$0xff] %v8228
      %8351 = vst [vmem:[%s500 + $0x330] sm:$0xff] %v8230
      %8352 = vst [vmem:[%s500 + $0x338] sm:$0xff] %v8232
      %8353 = vst [vmem:[%s500 + $0x340] sm:$0xff] %v8234
      %8354 = vst [vmem:[%s500 + $0x348] sm:$0xff] %v8236
      %8355 = vst [vmem:[%s500 + $0x350] sm:$0xff] %v8238
      %8356 = vst [vmem:[%s500 + $0x358] sm:$0xff] %v8240
      %8357 = vst [vmem:[%s500 + $0x360] sm:$0xff] %v8242
      %8358 = vst [vmem:[%s500 + $0x368] sm:$0xff] %v8244
      %8359 = vst [vmem:[%s500 + $0x370] sm:$0xff] %v8246
      %8360 = vst [vmem:[%s500 + $0x378] sm:$0xff] %v8248
      %8361 = vst [vmem:[%s507] sm:$0xff] %v4028
      %8362 = vst [vmem:[%s507 + $0x8] sm:$0xff] %v4030
      %8363 = vst [vmem:[%s507 + $0x10] sm:$0xff] %v4032
      %8364 = vst [vmem:[%s507 + $0x18] sm:$0xff] %v4034
      %8365 = vst [vmem:[%s507 + $0x20] sm:$0xff] %v4038
      %8366 = vst [vmem:[%s507 + $0x28] sm:$0xff] %v4040
      %8367 = vst [vmem:[%s507 + $0x30] sm:$0xff] %v4042
      %8368 = vst [vmem:[%s507 + $0x38] sm:$0xff] %v4044
      %8369 = vst [vmem:[%s507 + $0x40] sm:$0xff] %v4048
      %8370 = vst [vmem:[%s507 + $0x48] sm:$0xff] %v4050
      %8371 = vst [vmem:[%s507 + $0x50] sm:$0xff] %v4052
      %8372 = vst [vmem:[%s507 + $0x58] sm:$0xff] %v4054
      %8373 = vst [vmem:[%s507 + $0x60] sm:$0xff] %v4058
      %8374 = vst [vmem:[%s507 + $0x68] sm:$0xff] %v4060
      %8375 = vst [vmem:[%s507 + $0x70] sm:$0xff] %v4062
      %8376 = vst [vmem:[%s507 + $0x78] sm:$0xff] %v4064
      %8377 = vst [vmem:[%s507 + $0x80] sm:$0xff] %v4068
      %8378 = vst [vmem:[%s507 + $0x88] sm:$0xff] %v4070
      %8379 = vst [vmem:[%s507 + $0x90] sm:$0xff] %v4072
      %8380 = vst [vmem:[%s507 + $0x98] sm:$0xff] %v4074
      %8381 = vst [vmem:[%s507 + $0xa0] sm:$0xff] %v4078
      %8382 = vst [vmem:[%s507 + $0xa8] sm:$0xff] %v4080
      %8383 = vst [vmem:[%s507 + $0xb0] sm:$0xff] %v4082
      %8384 = vst [vmem:[%s507 + $0xb8] sm:$0xff] %v4084
      %8385 = vst [vmem:[%s507 + $0xc0] sm:$0xff] %v4088
      %8386 = vst [vmem:[%s507 + $0xc8] sm:$0xff] %v4090
      %8387 = vst [vmem:[%s507 + $0xd0] sm:$0xff] %v4092
      %8388 = vst [vmem:[%s507 + $0xd8] sm:$0xff] %v4094
      %8389 = vst [vmem:[%s507 + $0xe0] sm:$0xff] %v4098
      %8390 = vst [vmem:[%s507 + $0xe8] sm:$0xff] %v4100
      %8391 = vst [vmem:[%s507 + $0xf0] sm:$0xff] %v4102
      %8392 = vst [vmem:[%s507 + $0xf8] sm:$0xff] %v4104
      %s8393 = smul.u32 16, %s25
      %p8394 = scmp.lt.s32.totalorder %s8393, 31
      %s8395 = scalar_select %p8394, %s8393, 31
      %s8396 = smul.addr %s8395, 7
      %s8397 = smul.addr %s8396, 8
      %s8398 = scalar_lea.vmem %s12, %s8397
      %s8399 = smul.u32 16, %s25
      %p8400 = scmp.lt.s32.totalorder %s8399, 31
      %s8401 = scalar_select %p8400, %s8399, 31
      %s8402 = smul.addr %s8401, 2
      %s8403 = smul.addr %s8402, 8
      %s8404 = scalar_lea.vmem %s13, %s8403
      // Predicated region
      $region69: #{cvae_forward.1} parent=67 // pred_check
        %p8405 = pneg %p310
      $region70: #{cvae_forward.1} parent=67 // pred_check_branch
        %8407 = sbr.rel (%p8405) target = $region72
      $region71: #{cvae_forward.1} parent=67 // pred_region
        %s8408 = smul.u32 16, %s25
      $region72: #{cvae_forward.1} parent=67 // pred_fallthru
        _
      // Predicated region
      $region73: #{cvae_forward.1} parent=67 // pred_check
        %p8409 = pneg %p336
      $region74: #{cvae_forward.1} parent=67 // pred_check_branch
        %8411 = sbr.rel (%p8409) target = $region76
      $region75: #{cvae_forward.1} parent=67 // pred_region
        %s8412 = smul.u32 16, %s25
      $region76: #{cvae_forward.1} parent=67 // pred_fallthru
        _
    $region68: #{cvae_forward.1} parent=5 // pred_fallthru
      _
    %p8413 = scmp.le.s32.totalorder 2, %s20
    // Predicated region
    $region77: #{cvae_forward.1} parent=5 // pred_check
      %p8414 = pneg %p8413
    $region78: #{cvae_forward.1} parent=5 // pred_check_branch
      %8416 = sbr.rel (%p8414) target = $region80
    $region79: #{cvae_forward.1} parent=5 // pred_region
      %s8417 = ssub.s32 %s20, 2
      // Predicated region
      $region81: #{cvae_forward.1} parent=79 // pred_check
        %p8418 = pneg %p316
      $region82: #{cvae_forward.1} parent=79 // pred_check_branch
        %8420 = sbr.rel (%p8418) target = $region84
      $region83: #{cvae_forward.1} parent=79 // pred_region
        %s8421 = smul.u32 16, %s26
        %p8422 = scmp.lt.s32.totalorder %s8421, 31
        %s8423 = scalar_select %p8422, %s8421, 31
        %s8424 = smul.addr %s8423, 7
        %s8425 = smul.addr %s8424, 8
        %s8426 = scalar_lea.vmem %s12, %s8425
      $region84: #{cvae_forward.1} parent=79 // pred_fallthru
        _
      // Predicated region
      $region85: #{cvae_forward.1} parent=79 // pred_check
        %p8427 = pneg %p342
      $region86: #{cvae_forward.1} parent=79 // pred_check_branch
        %8429 = sbr.rel (%p8427) target = $region88
      $region87: #{cvae_forward.1} parent=79 // pred_region
        %s8430 = smul.u32 16, %s26
        %p8431 = scmp.lt.s32.totalorder %s8430, 31
        %s8432 = scalar_select %p8431, %s8430, 31
        %s8433 = smul.addr %s8432, 2
        %s8434 = smul.addr %s8433, 8
        %s8435 = scalar_lea.vmem %s13, %s8434
      $region88: #{cvae_forward.1} parent=79 // pred_fallthru
        _
    $region80: #{cvae_forward.1} parent=5 // pred_fallthru
      _
  $region6: #{cvae_forward.1} parent=0 // loop_footer
    %s24 = sadd.s32 1, %s20
  $region7: #{cvae_forward.1} parent=0 // loop_footer_branch
    %19 = sbr.rel target = $region3
  $region8: #{cvae_forward.1} parent=0 // loop_exit
    _

</llo_original>
